<compile_context>
chip_gen: v7x
topology: tpu7x:2x2x1
jax: 0.10.0
libtpu: 0.0.40
codegen_flags: <defaults>
</compile_context>

<pallas_src>
import functools
import math

import numpy as np
import jax
import jax.numpy as jnp
from jax.experimental import pallas as pl
from jax.experimental.pallas import tpu as pltpu


# ----------------------------------------------------------------------------
# sincos positional embedding (host-side numpy, copied from the reference)
# ----------------------------------------------------------------------------
def get_1d_sincos_pos_embed_from_grid(embed_dim, pos):
    assert embed_dim % 2 == 0
    omega = np.arange(embed_dim // 2, dtype=np.float64)
    omega /= embed_dim / 2.0
    omega = 1.0 / 10000 ** omega
    pos = pos.reshape(-1)
    out = np.einsum('m,d->md', pos, omega)
    return np.concatenate([np.sin(out), np.cos(out)], axis=1)


def get_2d_sincos_pos_embed_from_grid(embed_dim, grid):
    assert embed_dim % 2 == 0
    emb_h = get_1d_sincos_pos_embed_from_grid(embed_dim // 2, grid[0])
    emb_w = get_1d_sincos_pos_embed_from_grid(embed_dim // 2, grid[1])
    return np.concatenate([emb_h, emb_w], axis=1)


def get_2d_sincos_pos_embed(embed_dim, grid_size, lewei_scale=1.0, base_size=16):
    if isinstance(grid_size, int):
        grid_size = (grid_size, grid_size)
    grid_h = np.arange(grid_size[0], dtype=np.float32) / (grid_size[0] / base_size) / lewei_scale
    grid_w = np.arange(grid_size[1], dtype=np.float32) / (grid_size[1] / base_size) / lewei_scale
    grid = np.meshgrid(grid_w, grid_h)
    grid = np.stack(grid, axis=0)
    grid = grid.reshape([2, 1, grid_size[1], grid_size[0]])
    return get_2d_sincos_pos_embed_from_grid(embed_dim, grid)


def linear_interp_matrix(l_in, l_out):
    """F.interpolate(mode='linear', align_corners=False) as a fixed (l_in, l_out) matrix."""
    w = np.zeros((l_in, l_out), dtype=np.float32)
    scale = l_in / l_out
    for j in range(l_out):
        src = (j + 0.5) * scale - 0.5
        src = max(src, 0.0)
        i0 = min(int(np.floor(src)), l_in - 1)
        i1 = min(i0 + 1, l_in - 1)
        lam = src - i0
        w[i0, j] += 1.0 - lam
        w[i1, j] += lam
    return w


# ----------------------------------------------------------------------------
# generation-dependent VMEM budget / tile caps
# ----------------------------------------------------------------------------
def _tpu_vmem_capacity():
    try:
        info = pltpu.get_tpu_info()
        cap = getattr(info, "vmem_capacity_bytes", None)
        if cap:
            return int(cap)
    except Exception:
        pass
    return 64 * 1024 * 1024          # conservative fallback (v7x-sized)


_VMEM_CAP = _tpu_vmem_capacity()
_BIG_VMEM = _VMEM_CAP >= 100 * 1024 * 1024          # v5e / v6e (128 MiB)
_VMEM_LIMIT = min(_VMEM_CAP * 3 // 4, 100 * 1024 * 1024)   # ~96 MiB big, ~48 MiB v7x

_ROW_TILE = 256                                     # MXU-friendly row tile
_FEAT_TILE = 1024 if _BIG_VMEM else 512
_K_TILE = 1024 if _BIG_VMEM else 512
_Q_TILE = 512 if _BIG_VMEM else 256

_EPS = 1e-6


def _pick_tile(dim, cap, aligns=(128,)):
    """Largest tile <= cap dividing `dim` that is a multiple of one of `aligns`
    (preferred order), or the full dim when dim <= cap.  Falls back to the full
    dim when no aligned divisor exists."""
    if dim <= cap:
        return dim
    for align in aligns:
        best = None
        for t in range(align, cap + 1, align):
            if dim % t == 0:
                best = t
        if best is not None:
            return best
    # TODO(synk): pad non-divisible shapes instead of falling back to the full dim.
    return dim


def _gelu_tanh(x):
    return 0.5 * x * (1.0 + jnp.tanh(0.7978845608028654 * (x + 0.044715 * x * x * x)))


def _silu(x):
    return x * (1.0 / (1.0 + jnp.exp(-x)))


# ----------------------------------------------------------------------------
# Kernel A: [LN + t2i-modulate prologue, computed once per row tile] + projections
#   x:(B,N,K), shift/scale:(B,1,K) f32, W_i:(K,F) bf16, b_i:(F,) f32
#   outputs: n_out arrays (B,N,F) in `out_dtype` (optional gelu_tanh epilogue)
# ----------------------------------------------------------------------------
def _make_proj_kernel(n_out, has_ln, act):
    def kernel(*refs):
        idx = 0
        x_ref = refs[idx]; idx += 1
        if has_ln:
            shift_ref = refs[idx]; scale_ref = refs[idx + 1]; idx += 2
        w_refs = refs[idx:idx + n_out]; idx += n_out
        b_refs = refs[idx:idx + n_out]; idx += n_out
        o_refs = refs[idx:idx + n_out]; idx += n_out

        if has_ln:
            xs_ref = refs[idx]   # (tn, K) bf16 scratch, feature axis is innermost/arbitrary

            @pl.when(pl.program_id(2) == 0)
            def _():
                x = x_ref[...].astype(jnp.float32)
                mu = jnp.mean(x, axis=-1, keepdims=True)
                var = jnp.mean(jnp.square(x - mu), axis=-1, keepdims=True)
                x = (x - mu) * jax.lax.rsqrt(var + _EPS)
                x = x * (1.0 + scale_ref[...]) + shift_ref[...]      # t2i_modulate
                xs_ref[...] = x.astype(jnp.bfloat16)

            xb = xs_ref[...]
        else:
            xb = x_ref[...]
            if xb.dtype != jnp.bfloat16:
                xb = xb.astype(jnp.bfloat16)

        for w_ref, b_ref, o_ref in zip(w_refs, b_refs, o_refs):
            y = jnp.dot(xb, w_ref[...], preferred_element_type=jnp.float32) + b_ref[...]
            if act == "gelu_tanh":
                y = _gelu_tanh(y)
            o_ref[...] = y.astype(o_ref.dtype)
    return kernel


def fused_proj(x, weights, biases, shift=None, scale=None, act="none",
               out_dtype=jnp.bfloat16):
    b, n, k = x.shape
    f = weights[0].shape[1]
    n_out = len(weights)
    has_ln = shift is not None
    tn = _pick_tile(n, _ROW_TILE, (256, 128, 8))
    tf = _pick_tile(f, _FEAT_TILE, (128,))
    grid = (b, n // tn, f // tf)

    in_specs = [pl.BlockSpec((None, tn, k), lambda ib, it, jf: (ib, it, 0))]
    inputs = [x]
    if has_ln:
        in_specs += [pl.BlockSpec((None, 1, k), lambda ib, it, jf: (ib, 0, 0))] * 2
        inputs += [shift, scale]
    for w_arr in weights:
        in_specs.append(pl.BlockSpec((k, tf), lambda ib, it, jf: (0, jf)))
        inputs.append(w_arr)
    for b_arr in biases:
        in_specs.append(pl.BlockSpec((1, tf), lambda ib, it, jf: (0, jf)))
        inputs.append(b_arr.reshape(1, f))

    out_specs = tuple(pl.BlockSpec((None, tn, tf), lambda ib, it, jf: (ib, it, jf))
                      for _ in range(n_out))
    out_shape = tuple(jax.ShapeDtypeStruct((b, n, f), out_dtype) for _ in range(n_out))
    scratch = [pltpu.VMEM((tn, k), jnp.bfloat16)] if has_ln else []
    # feature axis must iterate sequentially when the LN scratch is reused across it
    sem = ("parallel", "parallel", "arbitrary") if has_ln else ("parallel",) * 3

    outs = pl.pallas_call(
        _make_proj_kernel(n_out, has_ln, act),
        out_shape=out_shape,
        grid=grid,
        in_specs=in_specs,
        out_specs=out_specs,
        scratch_shapes=scratch,
        compiler_params=pltpu.CompilerParams(
            dimension_semantics=sem, vmem_limit_bytes=_VMEM_LIMIT),
    )(*inputs)
    return outs


# ----------------------------------------------------------------------------
# Kernel B: K-tiled matmul with fused (gated) residual epilogue
#   out = res + [gate *] (h @ W + b)
#   h:(B,N,K) bf16/f32, W:(K,C) bf16, b:(C,) f32, res:(B,N,C) f32, gate:(B,1,C)|None
#   Accumulates directly into the VMEM-resident f32 output block (no scratch).
# ----------------------------------------------------------------------------
def _make_linres_kernel(has_gate):
    def kernel(h_ref, w_ref, b_ref, res_ref, *rest):
        if has_gate:
            gate_ref, o_ref = rest
        else:
            (o_ref,) = rest
        kk = pl.program_id(3)

        @pl.when(kk == 0)
        def _():
            o_ref[...] = jnp.zeros_like(o_ref)

        h = h_ref[...]
        if h.dtype != jnp.bfloat16:
            h = h.astype(jnp.bfloat16)
        o_ref[...] += jnp.dot(h, w_ref[...], preferred_element_type=jnp.float32)

        @pl.when(kk == pl.num_programs(3) - 1)
        def _():
            y = o_ref[...] + b_ref[...]
            if has_gate:
                y = y * gate_ref[...]
            o_ref[...] = res_ref[...] + y
    return kernel


def fused_linear_residual(h, w, b, res, gate=None):
    bsz, n, k = h.shape
    c = w.shape[1]
    tn = _pick_tile(n, _ROW_TILE, (256, 128, 8))
    tc = _pick_tile(c, _FEAT_TILE, (128,))
    tk = _pick_tile(k, _K_TILE, (128,))
    grid = (bsz, n // tn, c // tc, k // tk)

    in_specs = [
        pl.BlockSpec((None, tn, tk), lambda ib, it, ic, ik: (ib, it, ik)),
        pl.BlockSpec((tk, tc), lambda ib, it, ic, ik: (ik, ic)),
        pl.BlockSpec((1, tc), lambda ib, it, ic, ik: (0, ic)),
        pl.BlockSpec((None, tn, tc), lambda ib, it, ic, ik: (ib, it, ic)),
    ]
    inputs = [h, w, b.reshape(1, c), res]
    if gate is not None:
        in_specs.append(pl.BlockSpec((None, 1, tc), lambda ib, it, ic, ik: (ib, 0, ic)))
        inputs.append(gate)

    return pl.pallas_call(
        _make_linres_kernel(gate is not None),
        out_shape=jax.ShapeDtypeStruct((bsz, n, c), jnp.float32),
        grid=grid,
        in_specs=in_specs,
        out_specs=pl.BlockSpec((None, tn, tc), lambda ib, it, ic, ik: (ib, it, ic)),
        compiler_params=pltpu.CompilerParams(
            dimension_semantics=("parallel", "parallel", "parallel", "arbitrary"),
            vmem_limit_bytes=_VMEM_LIMIT),
    )(*inputs)


# ----------------------------------------------------------------------------
# Kernel C: general tiled 2-D linear (M,K)x(K,N)+b with optional activations
#   (also used K-tiled for the caption/text embedder MLPs so the big
#    caption_channels fc1 fits v7x VMEM)
# ----------------------------------------------------------------------------
def _linear2d_kernel(x_ref, w_ref, b_ref, o_ref, *, act, in_act):
    kk = pl.program_id(2)

    @pl.when(kk == 0)
    def _():
        o_ref[...] = jnp.zeros_like(o_ref)

    x = x_ref[...].astype(jnp.float32)
    if in_act == "silu":
        x = _silu(x)
    o_ref[...] += jnp.dot(x.astype(jnp.bfloat16), w_ref[...].astype(jnp.bfloat16),
                          preferred_element_type=jnp.float32)

    @pl.when(kk == pl.num_programs(2) - 1)
    def _():
        y = o_ref[...] + b_ref[...]
        if act == "gelu_tanh":
            y = _gelu_tanh(y)
        elif act == "silu":
            y = _silu(y)
        o_ref[...] = y


def pallas_linear(x, w, b, act="none", in_act="none"):
    m, k = x.shape
    n = w.shape[1]
    tm = _pick_tile(m, _ROW_TILE, (256, 128, 8))
    tn = _pick_tile(n, _FEAT_TILE, (128,))
    tk = _pick_tile(k, _K_TILE, (128,))
    grid = (m // tm, n // tn, k // tk)
    kern = functools.partial(_linear2d_kernel, act=act, in_act=in_act)
    return pl.pallas_call(
        kern,
        out_shape=jax.ShapeDtypeStruct((m, n), jnp.float32),
        grid=grid,
        in_specs=[pl.BlockSpec((tm, tk), lambda i, j, q: (i, q)),
                  pl.BlockSpec((tk, tn), lambda i, j, q: (q, j)),
                  pl.BlockSpec((1, tn), lambda i, j, q: (0, j))],
        out_specs=pl.BlockSpec((tm, tn), lambda i, j, q: (i, j)),
        compiler_params=pltpu.CompilerParams(
            dimension_semantics=("parallel", "parallel", "arbitrary"),
            vmem_limit_bytes=_VMEM_LIMIT),
    )(x, w, b.reshape(1, n))


# ----------------------------------------------------------------------------
# Kernel D: multi-head softmax attention, token-major layout (no host transposes)
#   q:(B,Nq,C), k/v:(B,Nk,C) bf16 -> (B,Nq,C) bf16.
#   Heads are processed via static lane slices; per-head results land in a
#   (tq, C) f32 VMEM scratch and are stored once, lane-dense.
# ----------------------------------------------------------------------------
def _make_mha_kernel(num_heads, head_dim, scale):
    # TODO(synk): for very large head counts / sequences, move heads onto a grid
    #             axis and switch to a streaming-KV (online-softmax) accumulation.
    def kernel(q_ref, k_ref, v_ref, o_ref, o_scr):
        for h in range(num_heads):
            sl = slice(h * head_dim, (h + 1) * head_dim)
            qh = q_ref[:, sl]                                       # (tq, D) bf16
            kh = k_ref[:, sl]                                       # (Nk, D) bf16
            vh = v_ref[:, sl]                                       # (Nk, D) bf16
            s = jax.lax.dot_general(qh, kh, (((1,), (1,)), ((), ())),
                                    preferred_element_type=jnp.float32) * scale
            m = jnp.max(s, axis=-1, keepdims=True)
            p = jnp.exp(s - m)
            denom = jnp.sum(p, axis=-1, keepdims=True)
            oh = jnp.dot(p.astype(jnp.bfloat16), vh,
                         preferred_element_type=jnp.float32)
            o_scr[:, sl] = oh * pl.reciprocal(denom, approx=False)
        o_ref[...] = o_scr[...].astype(o_ref.dtype)                 # single lane-dense store
    return kernel


def pallas_mha(q, k, v, num_heads):
    b, nq, c = q.shape
    nk = k.shape[1]
    head_dim = c // num_heads
    tq = _pick_tile(nq, _Q_TILE, (256, 128, 8))
    kern = _make_mha_kernel(num_heads, head_dim, 1.0 / math.sqrt(head_dim))
    return pl.pallas_call(
        kern,
        out_shape=jax.ShapeDtypeStruct((b, nq, c), jnp.bfloat16),
        grid=(b, nq // tq),
        in_specs=[pl.BlockSpec((None, tq, c), lambda ib, iq: (ib, iq, 0)),
                  pl.BlockSpec((None, nk, c), lambda ib, iq: (ib, 0, 0)),
                  pl.BlockSpec((None, nk, c), lambda ib, iq: (ib, 0, 0))],
        out_specs=pl.BlockSpec((None, tq, c), lambda ib, iq: (ib, iq, 0)),
        scratch_shapes=[pltpu.VMEM((tq, c), jnp.float32)],
        compiler_params=pltpu.CompilerParams(
            dimension_semantics=("parallel", "parallel"),
            vmem_limit_bytes=_VMEM_LIMIT),
    )(q, k, v)


# ----------------------------------------------------------------------------
# Model wiring
# ----------------------------------------------------------------------------
def transformer_block(x, y_addn, y_t, bp, num_heads):
    b, n, c = x.shape
    mod = bp['sst'][None] + y_addn.reshape(b, 6, c)                     # (B,6,C)
    shift_msa, scale_msa, gate_msa = mod[:, 0:1], mod[:, 1:2], mod[:, 2:3]
    shift_mlp, scale_mlp, gate_mlp = mod[:, 3:4], mod[:, 4:5], mod[:, 5:6]

    # --- self attention: LN+modulate fused into the QKV projection (bf16 outs) ---
    q, k, v = fused_proj(x, [bp['wq'], bp['wk'], bp['wv']],
                         [bp['bq'], bp['bk'], bp['bv']],
                         shift=shift_msa, scale=scale_msa)
    a = pallas_mha(q, k, v, num_heads)
    x = fused_linear_residual(a, bp['attn_proj_w'], bp['attn_proj_b'], x, gate=gate_msa)

    # --- cross attention (y_lens == [L]*B  -> per-batch block-diagonal attention) ---
    (cq,) = fused_proj(x, [bp['xq_w']], [bp['xq_b']])
    ck, cv = fused_proj(y_t, [bp['xk_w'], bp['xv_w']], [bp['xk_b'], bp['xv_b']])
    ca = pallas_mha(cq, ck, cv, num_heads)
    x = fused_linear_residual(ca, bp['xproj_w'], bp['xproj_b'], x, gate=None)

    # --- MLP: LN+modulate+fc1+GELU fused (bf16 hidden); fc2+gated residual fused ---
    h = fused_proj(x, [bp['fc1_w']], [bp['fc1_b']],
                   shift=shift_mlp, scale=scale_mlp, act="gelu_tanh")[0]
    x = fused_linear_residual(h, bp['fc2_w'], bp['fc2_b'], x, gate=gate_mlp)
    return x


def decoder_block_forward(params, x, y, y_t, cfg):
    hs = cfg['hidden_size']
    p = cfg['patch_size']
    c = cfg['in_channels']
    num_heads = cfg['num_heads']
    out_size = cfg['output_size']
    t = (out_size * out_size) // (p * p)
    ppc = p * p * c
    l = cfg['model_max_length']
    cc = cfg['caption_channels']
    b = x.shape[0]

    # --- decoder_upsample: linear interpolation (as matmul) + embed_latent ---
    z = pallas_linear(x, params['interp_w'], params['interp_b'])          # (B, T*ppc)
    z = z.reshape(b * t, ppc)
    xt = pallas_linear(z, params['embed_latent_w'], params['embed_latent_b'])
    xt = xt.reshape(b, t, hs) + params['pos_embed']

    # --- caption / text embedders: fc1 (K-tiled over caption_channels) -> gelu -> fc2 ---
    y_h = pallas_linear(y.reshape(b, cc), params['y_fc1_w'], params['y_fc1_b'],
                        act="gelu_tanh")
    y2 = pallas_linear(y_h, params['y_fc2_w'], params['y_fc2_b'])          # (B, hs)
    yt_h = pallas_linear(y_t.reshape(b * l, cc), params['yt_fc1_w'], params['yt_fc1_b'],
                         act="gelu_tanh")
    yt2 = pallas_linear(yt_h, params['yt_fc2_w'], params['yt_fc2_b']).reshape(b, l, hs)

    # --- y_block: SiLU + Linear(hs -> 6*hs) ---
    y_addn = pallas_linear(y2, params['y_block_w'], params['y_block_b'], in_act="silu")

    # TODO(synk): masked_select variable-length text path (mask != None) not implemented;
    #             this covers the mask=None branch (y_lens == [L]*B -> per-batch cross-attn).

    # --- transformer blocks (one compiled program via scan over stacked params) ---
    def body(carry, bp):
        return transformer_block(carry, y_addn, yt2, bp, num_heads), None
    xt, _ = jax.lax.scan(body, xt, params['blocks'])

    # --- final layer: LN+modulate fused into the output projection (f32 out) ---
    mod_f = params['final_sst'][None] + y2[:, None]                        # (B, 2, hs)
    out = fused_proj(xt, [params['final_w']], [params['final_b']],
                     shift=mod_f[:, 0:1], scale=mod_f[:, 1:2],
                     out_dtype=jnp.float32)[0]                             # (B, T, ppc)

    # --- unpatchify: (B, T, p*p*c) -> (B, C, H, W) ---
    hg = int(t ** 0.5)
    out = out.reshape(b, hg, hg, p, p, c)
    out = jnp.einsum('nhwpqc->nchpwq', out)
    return out.reshape(b, c, hg * p, hg * p)


# ----------------------------------------------------------------------------
# Deterministic parameter construction (matmul weights stored bf16)
# ----------------------------------------------------------------------------
def init_params(key, cfg, latent_dim):
    hs = cfg['hidden_size']
    p = cfg['patch_size']
    c = cfg['in_channels']
    cc = cfg['caption_channels']
    out_size = cfg['output_size']
    depth = cfg['depth']
    t = (out_size * out_size) // (p * p)
    ppc = p * p * c
    mlp_h = int(hs * cfg['mlp_ratio'])

    keys = iter(jax.random.split(key, 64))

    def wf(shape, std=0.02):                      # f32 weight
        return jax.random.normal(next(keys), shape, jnp.float32) * std

    def wb(shape, std=0.02):                      # bf16 matmul weight
        return wf(shape, std).astype(jnp.bfloat16)

    def zb(*shape):
        return jnp.zeros(shape, jnp.float32)

    base_size = out_size // p
    pos = get_2d_sincos_pos_embed(hs, int(t ** 0.5), lewei_scale=1.0, base_size=base_size)

    params = {
        'interp_w': jnp.asarray(linear_interp_matrix(latent_dim, t * ppc)).astype(jnp.bfloat16),
        'interp_b': zb(t * ppc),
        'embed_latent_w': wb((ppc, hs)), 'embed_latent_b': zb(hs),
        'pos_embed': jnp.asarray(pos, jnp.float32)[None],
        'y_fc1_w': wb((cc, hs)), 'y_fc1_b': zb(hs),
        'y_fc2_w': wb((hs, hs)), 'y_fc2_b': zb(hs),
        'yt_fc1_w': wb((cc, hs)), 'yt_fc1_b': zb(hs),
        'yt_fc2_w': wb((hs, hs)), 'yt_fc2_b': zb(hs),
        'y_block_w': wb((hs, 6 * hs)), 'y_block_b': zb(6 * hs),
        'final_sst': wf((2, hs), std=hs ** -0.5),
        'final_w': wb((hs, ppc)), 'final_b': zb(ppc),
        # per-block params stacked along a leading `depth` axis (scanned)
        'blocks': {
            'sst': wf((depth, 6, hs), std=hs ** -0.5),
            'wq': wb((depth, hs, hs)), 'bq': zb(depth, hs),
            'wk': wb((depth, hs, hs)), 'bk': zb(depth, hs),
            'wv': wb((depth, hs, hs)), 'bv': zb(depth, hs),
            'attn_proj_w': wb((depth, hs, hs)), 'attn_proj_b': zb(depth, hs),
            'xq_w': wb((depth, hs, hs)), 'xq_b': zb(depth, hs),
            'xk_w': wb((depth, hs, hs)), 'xk_b': zb(depth, hs),
            'xv_w': wb((depth, hs, hs)), 'xv_b': zb(depth, hs),
            'xproj_w': wb((depth, hs, hs)), 'xproj_b': zb(depth, hs),
            'fc1_w': wb((depth, hs, mlp_h)), 'fc1_b': zb(depth, mlp_h),
            'fc2_w': wb((depth, mlp_h, hs)), 'fc2_b': zb(depth, hs),
        },
    }
    return params


# ----------------------------------------------------------------------------
if __name__ == "__main__":
    cfg = dict(
        output_size=8,       # -> T = 16 patches
        patch_size=2,
        in_channels=4,
        hidden_size=64,
        depth=2,
        num_heads=4,
        mlp_ratio=4.0,
        caption_channels=32,
        model_max_length=8,
    )
    latent_dim = 512
    B = 2

    key = jax.random.PRNGKey(0)
    kx, ky, kyt, kp = jax.random.split(key, 4)
    x = jax.random.normal(kx, (B, latent_dim), jnp.float32)
    y = jax.random.normal(ky, (B, 1, 1, cfg['caption_channels']), jnp.float32)
    y_t = jax.random.normal(kyt, (B, 1, cfg['model_max_length'], cfg['caption_channels']),
                            jnp.float32)

    params = init_params(kp, cfg, latent_dim)

    fwd = jax.jit(lambda p, a, b_, c_: decoder_block_forward(p, a, b_, c_, cfg))
    out = fwd(params, x, y, y_t)
    out = jax.block_until_ready(out)

    assert out.shape == (B, cfg['in_channels'], cfg['output_size'], cfg['output_size']), out.shape
    assert bool(jnp.all(jnp.isfinite(out)))
    print("KERNEL_OK")
</pallas_src>

<mosaic_0001>
module attributes {stable_mosaic.version = 11 : i64} {
  func.func @_linear2d_kernel(%arg0: i32, %arg1: i32, %arg2: i32, %arg3: memref<32x16xf32, #tpu.memory_space<vmem>>, %arg4: memref<16x64xbf16, #tpu.memory_space<vmem>>, %arg5: memref<1x64xf32, #tpu.memory_space<vmem>>, %arg6: memref<32x64xf32, #tpu.memory_space<vmem>>) attributes {dimension_semantics = [#tpu.dimension_semantics<parallel>, #tpu.dimension_semantics<parallel>, #tpu.dimension_semantics<arbitrary>], iteration_bounds = array<i64: 1, 1, 1>, scalar_prefetch = 0 : i64, scratch_operands = 0 : i64, tpu.core_type = #tpu.core_type<tc>, window_params = [{transform_indices = @transform_0, window_bounds = array<i64: 32, 16>}, {transform_indices = @transform_1, window_bounds = array<i64: 16, 64>}, {transform_indices = @transform_2, window_bounds = array<i64: 1, 64>}, {transform_indices = @transform_3, window_bounds = array<i64: 32, 64>}]} {
    %c0_i32 = arith.constant 0 : i32
    %0 = arith.cmpi eq, %arg2, %c0_i32 : i32
    %1 = arith.extui %0 : i1 to i32
    %c0_i32_0 = arith.constant 0 : i32
    %2 = arith.cmpi ne, %1, %c0_i32_0 : i32
    scf.if %2 {
      %cst_10 = arith.constant 0.000000e+00 : f32
      %13 = vector.broadcast %cst_10 : f32 to vector<32x64xf32>
      %c0_11 = arith.constant 0 : index
      %c0_12 = arith.constant 0 : index
      %14 = vector.load %arg6[%c0_11, %c0_12] : memref<32x64xf32, #tpu.memory_space<vmem>>, vector<32x64xf32>
      tpu.vector_store %arg6[%c0_11, %c0_12], %13 {strides = array<i32>} : memref<32x64xf32, #tpu.memory_space<vmem>>, vector<32x64xf32>,
    } else {
    }
    %c0 = arith.constant 0 : index
    %c0_1 = arith.constant 0 : index
    %3 = vector.load %arg3[%c0, %c0_1] : memref<32x16xf32, #tpu.memory_space<vmem>>, vector<32x16xf32>
    %c0_2 = arith.constant 0 : index
    %c0_3 = arith.constant 0 : index
    %4 = vector.load %arg6[%c0_2, %c0_3] : memref<32x64xf32, #tpu.memory_space<vmem>>, vector<32x64xf32>
    %5 = arith.truncf %3 : vector<32x16xf32> to vector<32x16xbf16>
    %c0_4 = arith.constant 0 : index
    %c0_5 = arith.constant 0 : index
    %6 = vector.load %arg4[%c0_4, %c0_5] : memref<16x64xbf16, #tpu.memory_space<vmem>>, vector<16x64xbf16>
    %cst = arith.constant dense<0.000000e+00> : vector<32x64xf32>
    %7 = tpu.matmul %5, %6, %cst {dimension_numbers = #tpu.dot_dimension_numbers<[1], [0], [0], [1], [0, 0, 1, 1], [], []>} : vector<32x16xbf16>, vector<16x64xbf16>, vector<32x64xf32> -> vector<32x64xf32>
    %8 = arith.addf %4, %7 : vector<32x64xf32>
    %c0_6 = arith.constant 0 : index
    %c0_7 = arith.constant 0 : index
    %9 = vector.load %arg6[%c0_6, %c0_7] : memref<32x64xf32, #tpu.memory_space<vmem>>, vector<32x64xf32>
    tpu.vector_store %arg6[%c0_6, %c0_7], %8 {strides = array<i32>} : memref<32x64xf32, #tpu.memory_space<vmem>>, vector<32x64xf32>,
    %c0_i32_8 = arith.constant 0 : i32
    %10 = arith.cmpi eq, %arg2, %c0_i32_8 : i32
    %11 = arith.extui %10 : i1 to i32
    %c0_i32_9 = arith.constant 0 : i32
    %12 = arith.cmpi ne, %11, %c0_i32_9 : i32
    scf.if %12 {
      %c0_10 = arith.constant 0 : index
      %c0_11 = arith.constant 0 : index
      %13 = vector.load %arg6[%c0_10, %c0_11] : memref<32x64xf32, #tpu.memory_space<vmem>>, vector<32x64xf32>
      %c0_12 = arith.constant 0 : index
      %c0_13 = arith.constant 0 : index
      %14 = vector.load %arg5[%c0_12, %c0_13] : memref<1x64xf32, #tpu.memory_space<vmem>>, vector<1x64xf32>
      %15 = vector.broadcast %14 : vector<1x64xf32> to vector<32x64xf32>
      %16 = arith.addf %13, %15 : vector<32x64xf32>
      %c0_14 = arith.constant 0 : index
      %c0_15 = arith.constant 0 : index
      %17 = vector.load %arg6[%c0_14, %c0_15] : memref<32x64xf32, #tpu.memory_space<vmem>>, vector<32x64xf32>
      tpu.vector_store %arg6[%c0_14, %c0_15], %16 {strides = array<i32>} : memref<32x64xf32, #tpu.memory_space<vmem>>, vector<32x64xf32>,
    } else {
    }
    return
  }
  func.func @transform_0(%arg0: i32, %arg1: i32, %arg2: i32) -> (i32, i32) {
    %c0_i32 = arith.constant 0 : i32
    return %arg0, %arg2 : i32, i32
  }
  func.func @transform_1(%arg0: i32, %arg1: i32, %arg2: i32) -> (i32, i32) {
    %c0_i32 = arith.constant 0 : i32
    return %arg2, %arg1 : i32, i32
  }
  func.func @transform_2(%arg0: i32, %arg1: i32, %arg2: i32) -> (i32, i32) {
    %c0_i32 = arith.constant 0 : i32
    %c0_i32_0 = arith.constant 0 : i32
    return %c0_i32, %arg1 : i32, i32
  }
  func.func @transform_3(%arg0: i32, %arg1: i32, %arg2: i32) -> (i32, i32) {
    %c0_i32 = arith.constant 0 : i32
    return %arg0, %arg1 : i32, i32
  }
}

module attributes {stable_mosaic.version = 11 : i64} {
  func.func @_linear2d_kernel(%arg0: i32, %arg1: i32, %arg2: i32, %arg3: memref<2x512xf32, #tpu.memory_space<vmem>>, %arg4: memref<512x256xbf16, #tpu.memory_space<vmem>>, %arg5: memref<1x256xf32, #tpu.memory_space<vmem>>, %arg6: memref<2x256xf32, #tpu.memory_space<vmem>>) attributes {dimension_semantics = [#tpu.dimension_semantics<parallel>, #tpu.dimension_semantics<parallel>, #tpu.dimension_semantics<arbitrary>], iteration_bounds = array<i64: 1, 1, 1>, scalar_prefetch = 0 : i64, scratch_operands = 0 : i64, tpu.core_type = #tpu.core_type<tc>, window_params = [{transform_indices = @transform_0, window_bounds = array<i64: 2, 512>}, {transform_indices = @transform_1, window_bounds = array<i64: 512, 256>}, {transform_indices = @transform_2, window_bounds = array<i64: 1, 256>}, {transform_indices = @transform_3, window_bounds = array<i64: 2, 256>}]} {
    %c0_i32 = arith.constant 0 : i32
    %0 = arith.cmpi eq, %arg2, %c0_i32 : i32
    %1 = arith.extui %0 : i1 to i32
    %c0_i32_0 = arith.constant 0 : i32
    %2 = arith.cmpi ne, %1, %c0_i32_0 : i32
    scf.if %2 {
      %cst_10 = arith.constant 0.000000e+00 : f32
      %13 = vector.broadcast %cst_10 : f32 to vector<2x256xf32>
      %c0_11 = arith.constant 0 : index
      %c0_12 = arith.constant 0 : index
      %14 = vector.load %arg6[%c0_11, %c0_12] : memref<2x256xf32, #tpu.memory_space<vmem>>, vector<2x256xf32>
      tpu.vector_store %arg6[%c0_11, %c0_12], %13 {strides = array<i32>} : memref<2x256xf32, #tpu.memory_space<vmem>>, vector<2x256xf32>,
    } else {
    }
    %c0 = arith.constant 0 : index
    %c0_1 = arith.constant 0 : index
    %3 = vector.load %arg3[%c0, %c0_1] : memref<2x512xf32, #tpu.memory_space<vmem>>, vector<2x512xf32>
    %c0_2 = arith.constant 0 : index
    %c0_3 = arith.constant 0 : index
    %4 = vector.load %arg6[%c0_2, %c0_3] : memref<2x256xf32, #tpu.memory_space<vmem>>, vector<2x256xf32>
    %5 = arith.truncf %3 : vector<2x512xf32> to vector<2x512xbf16>
    %c0_4 = arith.constant 0 : index
    %c0_5 = arith.constant 0 : index
    %6 = vector.load %arg4[%c0_4, %c0_5] : memref<512x256xbf16, #tpu.memory_space<vmem>>, vector<512x256xbf16>
    %cst = arith.constant dense<0.000000e+00> : vector<2x256xf32>
    %7 = tpu.matmul %5, %6, %cst {dimension_numbers = #tpu.dot_dimension_numbers<[1], [0], [0], [1], [0, 0, 1, 1], [], []>} : vector<2x512xbf16>, vector<512x256xbf16>, vector<2x256xf32> -> vector<2x256xf32>
    %8 = arith.addf %4, %7 : vector<2x256xf32>
    %c0_6 = arith.constant 0 : index
    %c0_7 = arith.constant 0 : index
    %9 = vector.load %arg6[%c0_6, %c0_7] : memref<2x256xf32, #tpu.memory_space<vmem>>, vector<2x256xf32>
    tpu.vector_store %arg6[%c0_6, %c0_7], %8 {strides = array<i32>} : memref<2x256xf32, #tpu.memory_space<vmem>>, vector<2x256xf32>,
    %c0_i32_8 = arith.constant 0 : i32
    %10 = arith.cmpi eq, %arg2, %c0_i32_8 : i32
    %11 = arith.extui %10 : i1 to i32
    %c0_i32_9 = arith.constant 0 : i32
    %12 = arith.cmpi ne, %11, %c0_i32_9 : i32
    scf.if %12 {
      %c0_10 = arith.constant 0 : index
      %c0_11 = arith.constant 0 : index
      %13 = vector.load %arg6[%c0_10, %c0_11] : memref<2x256xf32, #tpu.memory_space<vmem>>, vector<2x256xf32>
      %c0_12 = arith.constant 0 : index
      %c0_13 = arith.constant 0 : index
      %14 = vector.load %arg5[%c0_12, %c0_13] : memref<1x256xf32, #tpu.memory_space<vmem>>, vector<1x256xf32>
      %15 = vector.broadcast %14 : vector<1x256xf32> to vector<2x256xf32>
      %16 = arith.addf %13, %15 : vector<2x256xf32>
      %c0_14 = arith.constant 0 : index
      %c0_15 = arith.constant 0 : index
      %17 = vector.load %arg6[%c0_14, %c0_15] : memref<2x256xf32, #tpu.memory_space<vmem>>, vector<2x256xf32>
      tpu.vector_store %arg6[%c0_14, %c0_15], %16 {strides = array<i32>} : memref<2x256xf32, #tpu.memory_space<vmem>>, vector<2x256xf32>,
    } else {
    }
    return
  }
  func.func @transform_0(%arg0: i32, %arg1: i32, %arg2: i32) -> (i32, i32) {
    %c0_i32 = arith.constant 0 : i32
    return %arg0, %arg2 : i32, i32
  }
  func.func @transform_1(%arg0: i32, %arg1: i32, %arg2: i32) -> (i32, i32) {
    %c0_i32 = arith.constant 0 : i32
    return %arg2, %arg1 : i32, i32
  }
  func.func @transform_2(%arg0: i32, %arg1: i32, %arg2: i32) -> (i32, i32) {
    %c0_i32 = arith.constant 0 : i32
    %c0_i32_0 = arith.constant 0 : i32
    return %c0_i32, %arg1 : i32, i32
  }
  func.func @transform_3(%arg0: i32, %arg1: i32, %arg2: i32) -> (i32, i32) {
    %c0_i32 = arith.constant 0 : i32
    return %arg0, %arg1 : i32, i32
  }
}

module attributes {stable_mosaic.version = 11 : i64} {
  func.func @_linear2d_kernel(%arg0: i32, %arg1: i32, %arg2: i32, %arg3: memref<2x32xf32, #tpu.memory_space<vmem>>, %arg4: memref<32x64xbf16, #tpu.memory_space<vmem>>, %arg5: memref<1x64xf32, #tpu.memory_space<vmem>>, %arg6: memref<2x64xf32, #tpu.memory_space<vmem>>) attributes {dimension_semantics = [#tpu.dimension_semantics<parallel>, #tpu.dimension_semantics<parallel>, #tpu.dimension_semantics<arbitrary>], iteration_bounds = array<i64: 1, 1, 1>, scalar_prefetch = 0 : i64, scratch_operands = 0 : i64, tpu.core_type = #tpu.core_type<tc>, window_params = [{transform_indices = @transform_0, window_bounds = array<i64: 2, 32>}, {transform_indices = @transform_1, window_bounds = array<i64: 32, 64>}, {transform_indices = @transform_2, window_bounds = array<i64: 1, 64>}, {transform_indices = @transform_3, window_bounds = array<i64: 2, 64>}]} {
    %c0_i32 = arith.constant 0 : i32
    %0 = arith.cmpi eq, %arg2, %c0_i32 : i32
    %1 = arith.extui %0 : i1 to i32
    %c0_i32_0 = arith.constant 0 : i32
    %2 = arith.cmpi ne, %1, %c0_i32_0 : i32
    scf.if %2 {
      %cst_10 = arith.constant 0.000000e+00 : f32
      %13 = vector.broadcast %cst_10 : f32 to vector<2x64xf32>
      %c0_11 = arith.constant 0 : index
      %c0_12 = arith.constant 0 : index
      %14 = vector.load %arg6[%c0_11, %c0_12] : memref<2x64xf32, #tpu.memory_space<vmem>>, vector<2x64xf32>
      tpu.vector_store %arg6[%c0_11, %c0_12], %13 {strides = array<i32>} : memref<2x64xf32, #tpu.memory_space<vmem>>, vector<2x64xf32>,
    } else {
    }
    %c0 = arith.constant 0 : index
    %c0_1 = arith.constant 0 : index
    %3 = vector.load %arg3[%c0, %c0_1] : memref<2x32xf32, #tpu.memory_space<vmem>>, vector<2x32xf32>
    %c0_2 = arith.constant 0 : index
    %c0_3 = arith.constant 0 : index
    %4 = vector.load %arg6[%c0_2, %c0_3] : memref<2x64xf32, #tpu.memory_space<vmem>>, vector<2x64xf32>
    %5 = arith.truncf %3 : vector<2x32xf32> to vector<2x32xbf16>
    %c0_4 = arith.constant 0 : index
    %c0_5 = arith.constant 0 : index
    %6 = vector.load %arg4[%c0_4, %c0_5] : memref<32x64xbf16, #tpu.memory_space<vmem>>, vector<32x64xbf16>
    %cst = arith.constant dense<0.000000e+00> : vector<2x64xf32>
    %7 = tpu.matmul %5, %6, %cst {dimension_numbers = #tpu.dot_dimension_numbers<[1], [0], [0], [1], [0, 0, 1, 1], [], []>} : vector<2x32xbf16>, vector<32x64xbf16>, vector<2x64xf32> -> vector<2x64xf32>
    %8 = arith.addf %4, %7 : vector<2x64xf32>
    %c0_6 = arith.constant 0 : index
    %c0_7 = arith.constant 0 : index
    %9 = vector.load %arg6[%c0_6, %c0_7] : memref<2x64xf32, #tpu.memory_space<vmem>>, vector<2x64xf32>
    tpu.vector_store %arg6[%c0_6, %c0_7], %8 {strides = array<i32>} : memref<2x64xf32, #tpu.memory_space<vmem>>, vector<2x64xf32>,
    %c0_i32_8 = arith.constant 0 : i32
    %10 = arith.cmpi eq, %arg2, %c0_i32_8 : i32
    %11 = arith.extui %10 : i1 to i32
    %c0_i32_9 = arith.constant 0 : i32
    %12 = arith.cmpi ne, %11, %c0_i32_9 : i32
    scf.if %12 {
      %c0_10 = arith.constant 0 : index
      %c0_11 = arith.constant 0 : index
      %13 = vector.load %arg6[%c0_10, %c0_11] : memref<2x64xf32, #tpu.memory_space<vmem>>, vector<2x64xf32>
      %c0_12 = arith.constant 0 : index
      %c0_13 = arith.constant 0 : index
      %14 = vector.load %arg5[%c0_12, %c0_13] : memref<1x64xf32, #tpu.memory_space<vmem>>, vector<1x64xf32>
      %15 = vector.broadcast %14 : vector<1x64xf32> to vector<2x64xf32>
      %16 = arith.addf %13, %15 : vector<2x64xf32>
      %cst_14 = arith.constant 5.000000e-01 : f32
      %17 = vector.broadcast %cst_14 : f32 to vector<2x64xf32>
      %18 = arith.mulf %17, %16 : vector<2x64xf32>
      %cst_15 = arith.constant 4.471500e-02 : f32
      %19 = vector.broadcast %cst_15 : f32 to vector<2x64xf32>
      %20 = arith.mulf %19, %16 : vector<2x64xf32>
      %21 = arith.mulf %20, %16 : vector<2x64xf32>
      %22 = arith.mulf %21, %16 : vector<2x64xf32>
      %23 = arith.addf %16, %22 : vector<2x64xf32>
      %cst_16 = arith.constant 0.797884583 : f32
      %24 = vector.broadcast %cst_16 : f32 to vector<2x64xf32>
      %25 = arith.mulf %24, %23 : vector<2x64xf32>
      %26 = math.tanh %25 : vector<2x64xf32>
      %cst_17 = arith.constant 1.000000e+00 : f32
      %27 = vector.broadcast %cst_17 : f32 to vector<2x64xf32>
      %28 = arith.addf %27, %26 : vector<2x64xf32>
      %29 = arith.mulf %18, %28 : vector<2x64xf32>
      %c0_18 = arith.constant 0 : index
      %c0_19 = arith.constant 0 : index
      %30 = vector.load %arg6[%c0_18, %c0_19] : memref<2x64xf32, #tpu.memory_space<vmem>>, vector<2x64xf32>
      tpu.vector_store %arg6[%c0_18, %c0_19], %29 {strides = array<i32>} : memref<2x64xf32, #tpu.memory_space<vmem>>, vector<2x64xf32>,
    } else {
    }
    return
  }
  func.func @transform_0(%arg0: i32, %arg1: i32, %arg2: i32) -> (i32, i32) {
    %c0_i32 = arith.constant 0 : i32
    return %arg0, %arg2 : i32, i32
  }
  func.func @transform_1(%arg0: i32, %arg1: i32, %arg2: i32) -> (i32, i32) {
    %c0_i32 = arith.constant 0 : i32
    return %arg2, %arg1 : i32, i32
  }
  func.func @transform_2(%arg0: i32, %arg1: i32, %arg2: i32) -> (i32, i32) {
    %c0_i32 = arith.constant 0 : i32
    %c0_i32_0 = arith.constant 0 : i32
    return %c0_i32, %arg1 : i32, i32
  }
  func.func @transform_3(%arg0: i32, %arg1: i32, %arg2: i32) -> (i32, i32) {
    %c0_i32 = arith.constant 0 : i32
    return %arg0, %arg1 : i32, i32
  }
}

module attributes {stable_mosaic.version = 11 : i64} {
  func.func @_linear2d_kernel(%arg0: i32, %arg1: i32, %arg2: i32, %arg3: memref<2x64xf32, #tpu.memory_space<vmem>>, %arg4: memref<64x64xbf16, #tpu.memory_space<vmem>>, %arg5: memref<1x64xf32, #tpu.memory_space<vmem>>, %arg6: memref<2x64xf32, #tpu.memory_space<vmem>>) attributes {dimension_semantics = [#tpu.dimension_semantics<parallel>, #tpu.dimension_semantics<parallel>, #tpu.dimension_semantics<arbitrary>], iteration_bounds = array<i64: 1, 1, 1>, scalar_prefetch = 0 : i64, scratch_operands = 0 : i64, tpu.core_type = #tpu.core_type<tc>, window_params = [{transform_indices = @transform_0, window_bounds = array<i64: 2, 64>}, {transform_indices = @transform_1, window_bounds = array<i64: 64, 64>}, {transform_indices = @transform_2, window_bounds = array<i64: 1, 64>}, {transform_indices = @transform_3, window_bounds = array<i64: 2, 64>}]} {
    %c0_i32 = arith.constant 0 : i32
    %0 = arith.cmpi eq, %arg2, %c0_i32 : i32
    %1 = arith.extui %0 : i1 to i32
    %c0_i32_0 = arith.constant 0 : i32
    %2 = arith.cmpi ne, %1, %c0_i32_0 : i32
    scf.if %2 {
      %cst_10 = arith.constant 0.000000e+00 : f32
      %13 = vector.broadcast %cst_10 : f32 to vector<2x64xf32>
      %c0_11 = arith.constant 0 : index
      %c0_12 = arith.constant 0 : index
      %14 = vector.load %arg6[%c0_11, %c0_12] : memref<2x64xf32, #tpu.memory_space<vmem>>, vector<2x64xf32>
      tpu.vector_store %arg6[%c0_11, %c0_12], %13 {strides = array<i32>} : memref<2x64xf32, #tpu.memory_space<vmem>>, vector<2x64xf32>,
    } else {
    }
    %c0 = arith.constant 0 : index
    %c0_1 = arith.constant 0 : index
    %3 = vector.load %arg3[%c0, %c0_1] : memref<2x64xf32, #tpu.memory_space<vmem>>, vector<2x64xf32>
    %c0_2 = arith.constant 0 : index
    %c0_3 = arith.constant 0 : index
    %4 = vector.load %arg6[%c0_2, %c0_3] : memref<2x64xf32, #tpu.memory_space<vmem>>, vector<2x64xf32>
    %5 = arith.truncf %3 : vector<2x64xf32> to vector<2x64xbf16>
    %c0_4 = arith.constant 0 : index
    %c0_5 = arith.constant 0 : index
    %6 = vector.load %arg4[%c0_4, %c0_5] : memref<64x64xbf16, #tpu.memory_space<vmem>>, vector<64x64xbf16>
    %cst = arith.constant dense<0.000000e+00> : vector<2x64xf32>
    %7 = tpu.matmul %5, %6, %cst {dimension_numbers = #tpu.dot_dimension_numbers<[1], [0], [0], [1], [0, 0, 1, 1], [], []>} : vector<2x64xbf16>, vector<64x64xbf16>, vector<2x64xf32> -> vector<2x64xf32>
    %8 = arith.addf %4, %7 : vector<2x64xf32>
    %c0_6 = arith.constant 0 : index
    %c0_7 = arith.constant 0 : index
    %9 = vector.load %arg6[%c0_6, %c0_7] : memref<2x64xf32, #tpu.memory_space<vmem>>, vector<2x64xf32>
    tpu.vector_store %arg6[%c0_6, %c0_7], %8 {strides = array<i32>} : memref<2x64xf32, #tpu.memory_space<vmem>>, vector<2x64xf32>,
    %c0_i32_8 = arith.constant 0 : i32
    %10 = arith.cmpi eq, %arg2, %c0_i32_8 : i32
    %11 = arith.extui %10 : i1 to i32
    %c0_i32_9 = arith.constant 0 : i32
    %12 = arith.cmpi ne, %11, %c0_i32_9 : i32
    scf.if %12 {
      %c0_10 = arith.constant 0 : index
      %c0_11 = arith.constant 0 : index
      %13 = vector.load %arg6[%c0_10, %c0_11] : memref<2x64xf32, #tpu.memory_space<vmem>>, vector<2x64xf32>
      %c0_12 = arith.constant 0 : index
      %c0_13 = arith.constant 0 : index
      %14 = vector.load %arg5[%c0_12, %c0_13] : memref<1x64xf32, #tpu.memory_space<vmem>>, vector<1x64xf32>
      %15 = vector.broadcast %14 : vector<1x64xf32> to vector<2x64xf32>
      %16 = arith.addf %13, %15 : vector<2x64xf32>
      %c0_14 = arith.constant 0 : index
      %c0_15 = arith.constant 0 : index
      %17 = vector.load %arg6[%c0_14, %c0_15] : memref<2x64xf32, #tpu.memory_space<vmem>>, vector<2x64xf32>
      tpu.vector_store %arg6[%c0_14, %c0_15], %16 {strides = array<i32>} : memref<2x64xf32, #tpu.memory_space<vmem>>, vector<2x64xf32>,
    } else {
    }
    return
  }
  func.func @transform_0(%arg0: i32, %arg1: i32, %arg2: i32) -> (i32, i32) {
    %c0_i32 = arith.constant 0 : i32
    return %arg0, %arg2 : i32, i32
  }
  func.func @transform_1(%arg0: i32, %arg1: i32, %arg2: i32) -> (i32, i32) {
    %c0_i32 = arith.constant 0 : i32
    return %arg2, %arg1 : i32, i32
  }
  func.func @transform_2(%arg0: i32, %arg1: i32, %arg2: i32) -> (i32, i32) {
    %c0_i32 = arith.constant 0 : i32
    %c0_i32_0 = arith.constant 0 : i32
    return %c0_i32, %arg1 : i32, i32
  }
  func.func @transform_3(%arg0: i32, %arg1: i32, %arg2: i32) -> (i32, i32) {
    %c0_i32 = arith.constant 0 : i32
    return %arg0, %arg1 : i32, i32
  }
}

module attributes {stable_mosaic.version = 11 : i64} {
  func.func @_linear2d_kernel(%arg0: i32, %arg1: i32, %arg2: i32, %arg3: memref<2x64xf32, #tpu.memory_space<vmem>>, %arg4: memref<64x384xbf16, #tpu.memory_space<vmem>>, %arg5: memref<1x384xf32, #tpu.memory_space<vmem>>, %arg6: memref<2x384xf32, #tpu.memory_space<vmem>>) attributes {dimension_semantics = [#tpu.dimension_semantics<parallel>, #tpu.dimension_semantics<parallel>, #tpu.dimension_semantics<arbitrary>], iteration_bounds = array<i64: 1, 1, 1>, scalar_prefetch = 0 : i64, scratch_operands = 0 : i64, tpu.core_type = #tpu.core_type<tc>, window_params = [{transform_indices = @transform_0, window_bounds = array<i64: 2, 64>}, {transform_indices = @transform_1, window_bounds = array<i64: 64, 384>}, {transform_indices = @transform_2, window_bounds = array<i64: 1, 384>}, {transform_indices = @transform_3, window_bounds = array<i64: 2, 384>}]} {
    %c0_i32 = arith.constant 0 : i32
    %0 = arith.cmpi eq, %arg2, %c0_i32 : i32
    %1 = arith.extui %0 : i1 to i32
    %c0_i32_0 = arith.constant 0 : i32
    %2 = arith.cmpi ne, %1, %c0_i32_0 : i32
    scf.if %2 {
      %cst_13 = arith.constant 0.000000e+00 : f32
      %21 = vector.broadcast %cst_13 : f32 to vector<2x384xf32>
      %c0_14 = arith.constant 0 : index
      %c0_15 = arith.constant 0 : index
      %22 = vector.load %arg6[%c0_14, %c0_15] : memref<2x384xf32, #tpu.memory_space<vmem>>, vector<2x384xf32>
      tpu.vector_store %arg6[%c0_14, %c0_15], %21 {strides = array<i32>} : memref<2x384xf32, #tpu.memory_space<vmem>>, vector<2x384xf32>,
    } else {
    }
    %c0 = arith.constant 0 : index
    %c0_1 = arith.constant 0 : index
    %3 = vector.load %arg3[%c0, %c0_1] : memref<2x64xf32, #tpu.memory_space<vmem>>, vector<2x64xf32>
    %cst = arith.constant 0.000000e+00 : f32
    %4 = vector.broadcast %cst : f32 to vector<2x64xf32>
    %5 = arith.subf %4, %3 : vector<2x64xf32>
    %6 = math.exp %5 : vector<2x64xf32>
    %cst_2 = arith.constant 1.000000e+00 : f32
    %7 = vector.broadcast %cst_2 : f32 to vector<2x64xf32>
    %8 = arith.addf %7, %6 : vector<2x64xf32>
    %cst_3 = arith.constant 1.000000e+00 : f32
    %9 = vector.broadcast %cst_3 : f32 to vector<2x64xf32>
    %10 = arith.divf %9, %8 : vector<2x64xf32>
    %11 = arith.mulf %3, %10 : vector<2x64xf32>
    %c0_4 = arith.constant 0 : index
    %c0_5 = arith.constant 0 : index
    %12 = vector.load %arg6[%c0_4, %c0_5] : memref<2x384xf32, #tpu.memory_space<vmem>>, vector<2x384xf32>
    %13 = arith.truncf %11 : vector<2x64xf32> to vector<2x64xbf16>
    %c0_6 = arith.constant 0 : index
    %c0_7 = arith.constant 0 : index
    %14 = vector.load %arg4[%c0_6, %c0_7] : memref<64x384xbf16, #tpu.memory_space<vmem>>, vector<64x384xbf16>
    %cst_8 = arith.constant dense<0.000000e+00> : vector<2x384xf32>
    %15 = tpu.matmul %13, %14, %cst_8 {dimension_numbers = #tpu.dot_dimension_numbers<[1], [0], [0], [1], [0, 0, 1, 1], [], []>} : vector<2x64xbf16>, vector<64x384xbf16>, vector<2x384xf32> -> vector<2x384xf32>
    %16 = arith.addf %12, %15 : vector<2x384xf32>
    %c0_9 = arith.constant 0 : index
    %c0_10 = arith.constant 0 : index
    %17 = vector.load %arg6[%c0_9, %c0_10] : memref<2x384xf32, #tpu.memory_space<vmem>>, vector<2x384xf32>
    tpu.vector_store %arg6[%c0_9, %c0_10], %16 {strides = array<i32>} : memref<2x384xf32, #tpu.memory_space<vmem>>, vector<2x384xf32>,
    %c0_i32_11 = arith.constant 0 : i32
    %18 = arith.cmpi eq, %arg2, %c0_i32_11 : i32
    %19 = arith.extui %18 : i1 to i32
    %c0_i32_12 = arith.constant 0 : i32
    %20 = arith.cmpi ne, %19, %c0_i32_12 : i32
    scf.if %20 {
      %c0_13 = arith.constant 0 : index
      %c0_14 = arith.constant 0 : index
      %21 = vector.load %arg6[%c0_13, %c0_14] : memref<2x384xf32, #tpu.memory_space<vmem>>, vector<2x384xf32>
      %c0_15 = arith.constant 0 : index
      %c0_16 = arith.constant 0 : index
      %22 = vector.load %arg5[%c0_15, %c0_16] : memref<1x384xf32, #tpu.memory_space<vmem>>, vector<1x384xf32>
      %23 = vector.broadcast %22 : vector<1x384xf32> to vector<2x384xf32>
      %24 = arith.addf %21, %23 : vector<2x384xf32>
      %c0_17 = arith.constant 0 : index
      %c0_18 = arith.constant 0 : index
      %25 = vector.load %arg6[%c0_17, %c0_18] : memref<2x384xf32, #tpu.memory_space<vmem>>, vector<2x384xf32>
      tpu.vector_store %arg6[%c0_17, %c0_18], %24 {strides = array<i32>} : memref<2x384xf32, #tpu.memory_space<vmem>>, vector<2x384xf32>,
    } else {
    }
    return
  }
  func.func @transform_0(%arg0: i32, %arg1: i32, %arg2: i32) -> (i32, i32) {
    %c0_i32 = arith.constant 0 : i32
    return %arg0, %arg2 : i32, i32
  }
  func.func @transform_1(%arg0: i32, %arg1: i32, %arg2: i32) -> (i32, i32) {
    %c0_i32 = arith.constant 0 : i32
    return %arg2, %arg1 : i32, i32
  }
  func.func @transform_2(%arg0: i32, %arg1: i32, %arg2: i32) -> (i32, i32) {
    %c0_i32 = arith.constant 0 : i32
    %c0_i32_0 = arith.constant 0 : i32
    return %c0_i32, %arg1 : i32, i32
  }
  func.func @transform_3(%arg0: i32, %arg1: i32, %arg2: i32) -> (i32, i32) {
    %c0_i32 = arith.constant 0 : i32
    return %arg0, %arg1 : i32, i32
  }
}

module attributes {stable_mosaic.version = 11 : i64} {
  func.func @_linear2d_kernel(%arg0: i32, %arg1: i32, %arg2: i32, %arg3: memref<16x32xf32, #tpu.memory_space<vmem>>, %arg4: memref<32x64xbf16, #tpu.memory_space<vmem>>, %arg5: memref<1x64xf32, #tpu.memory_space<vmem>>, %arg6: memref<16x64xf32, #tpu.memory_space<vmem>>) attributes {dimension_semantics = [#tpu.dimension_semantics<parallel>, #tpu.dimension_semantics<parallel>, #tpu.dimension_semantics<arbitrary>], iteration_bounds = array<i64: 1, 1, 1>, scalar_prefetch = 0 : i64, scratch_operands = 0 : i64, tpu.core_type = #tpu.core_type<tc>, window_params = [{transform_indices = @transform_0, window_bounds = array<i64: 16, 32>}, {transform_indices = @transform_1, window_bounds = array<i64: 32, 64>}, {transform_indices = @transform_2, window_bounds = array<i64: 1, 64>}, {transform_indices = @transform_3, window_bounds = array<i64: 16, 64>}]} {
    %c0_i32 = arith.constant 0 : i32
    %0 = arith.cmpi eq, %arg2, %c0_i32 : i32
    %1 = arith.extui %0 : i1 to i32
    %c0_i32_0 = arith.constant 0 : i32
    %2 = arith.cmpi ne, %1, %c0_i32_0 : i32
    scf.if %2 {
      %cst_10 = arith.constant 0.000000e+00 : f32
      %13 = vector.broadcast %cst_10 : f32 to vector<16x64xf32>
      %c0_11 = arith.constant 0 : index
      %c0_12 = arith.constant 0 : index
      %14 = vector.load %arg6[%c0_11, %c0_12] : memref<16x64xf32, #tpu.memory_space<vmem>>, vector<16x64xf32>
      tpu.vector_store %arg6[%c0_11, %c0_12], %13 {strides = array<i32>} : memref<16x64xf32, #tpu.memory_space<vmem>>, vector<16x64xf32>,
    } else {
    }
    %c0 = arith.constant 0 : index
    %c0_1 = arith.constant 0 : index
    %3 = vector.load %arg3[%c0, %c0_1] : memref<16x32xf32, #tpu.memory_space<vmem>>, vector<16x32xf32>
    %c0_2 = arith.constant 0 : index
    %c0_3 = arith.constant 0 : index
    %4 = vector.load %arg6[%c0_2, %c0_3] : memref<16x64xf32, #tpu.memory_space<vmem>>, vector<16x64xf32>
    %5 = arith.truncf %3 : vector<16x32xf32> to vector<16x32xbf16>
    %c0_4 = arith.constant 0 : index
    %c0_5 = arith.constant 0 : index
    %6 = vector.load %arg4[%c0_4, %c0_5] : memref<32x64xbf16, #tpu.memory_space<vmem>>, vector<32x64xbf16>
    %cst = arith.constant dense<0.000000e+00> : vector<16x64xf32>
    %7 = tpu.matmul %5, %6, %cst {dimension_numbers = #tpu.dot_dimension_numbers<[1], [0], [0], [1], [0, 0, 1, 1], [], []>} : vector<16x32xbf16>, vector<32x64xbf16>, vector<16x64xf32> -> vector<16x64xf32>
    %8 = arith.addf %4, %7 : vector<16x64xf32>
    %c0_6 = arith.constant 0 : index
    %c0_7 = arith.constant 0 : index
    %9 = vector.load %arg6[%c0_6, %c0_7] : memref<16x64xf32, #tpu.memory_space<vmem>>, vector<16x64xf32>
    tpu.vector_store %arg6[%c0_6, %c0_7], %8 {strides = array<i32>} : memref<16x64xf32, #tpu.memory_space<vmem>>, vector<16x64xf32>,
    %c0_i32_8 = arith.constant 0 : i32
    %10 = arith.cmpi eq, %arg2, %c0_i32_8 : i32
    %11 = arith.extui %10 : i1 to i32
    %c0_i32_9 = arith.constant 0 : i32
    %12 = arith.cmpi ne, %11, %c0_i32_9 : i32
    scf.if %12 {
      %c0_10 = arith.constant 0 : index
      %c0_11 = arith.constant 0 : index
      %13 = vector.load %arg6[%c0_10, %c0_11] : memref<16x64xf32, #tpu.memory_space<vmem>>, vector<16x64xf32>
      %c0_12 = arith.constant 0 : index
      %c0_13 = arith.constant 0 : index
      %14 = vector.load %arg5[%c0_12, %c0_13] : memref<1x64xf32, #tpu.memory_space<vmem>>, vector<1x64xf32>
      %15 = vector.broadcast %14 : vector<1x64xf32> to vector<16x64xf32>
      %16 = arith.addf %13, %15 : vector<16x64xf32>
      %cst_14 = arith.constant 5.000000e-01 : f32
      %17 = vector.broadcast %cst_14 : f32 to vector<16x64xf32>
      %18 = arith.mulf %17, %16 : vector<16x64xf32>
      %cst_15 = arith.constant 4.471500e-02 : f32
      %19 = vector.broadcast %cst_15 : f32 to vector<16x64xf32>
      %20 = arith.mulf %19, %16 : vector<16x64xf32>
      %21 = arith.mulf %20, %16 : vector<16x64xf32>
      %22 = arith.mulf %21, %16 : vector<16x64xf32>
      %23 = arith.addf %16, %22 : vector<16x64xf32>
      %cst_16 = arith.constant 0.797884583 : f32
      %24 = vector.broadcast %cst_16 : f32 to vector<16x64xf32>
      %25 = arith.mulf %24, %23 : vector<16x64xf32>
      %26 = math.tanh %25 : vector<16x64xf32>
      %cst_17 = arith.constant 1.000000e+00 : f32
      %27 = vector.broadcast %cst_17 : f32 to vector<16x64xf32>
      %28 = arith.addf %27, %26 : vector<16x64xf32>
      %29 = arith.mulf %18, %28 : vector<16x64xf32>
      %c0_18 = arith.constant 0 : index
      %c0_19 = arith.constant 0 : index
      %30 = vector.load %arg6[%c0_18, %c0_19] : memref<16x64xf32, #tpu.memory_space<vmem>>, vector<16x64xf32>
      tpu.vector_store %arg6[%c0_18, %c0_19], %29 {strides = array<i32>} : memref<16x64xf32, #tpu.memory_space<vmem>>, vector<16x64xf32>,
    } else {
    }
    return
  }
  func.func @transform_0(%arg0: i32, %arg1: i32, %arg2: i32) -> (i32, i32) {
    %c0_i32 = arith.constant 0 : i32
    return %arg0, %arg2 : i32, i32
  }
  func.func @transform_1(%arg0: i32, %arg1: i32, %arg2: i32) -> (i32, i32) {
    %c0_i32 = arith.constant 0 : i32
    return %arg2, %arg1 : i32, i32
  }
  func.func @transform_2(%arg0: i32, %arg1: i32, %arg2: i32) -> (i32, i32) {
    %c0_i32 = arith.constant 0 : i32
    %c0_i32_0 = arith.constant 0 : i32
    return %c0_i32, %arg1 : i32, i32
  }
  func.func @transform_3(%arg0: i32, %arg1: i32, %arg2: i32) -> (i32, i32) {
    %c0_i32 = arith.constant 0 : i32
    return %arg0, %arg1 : i32, i32
  }
}

module attributes {stable_mosaic.version = 11 : i64} {
  func.func @_linear2d_kernel(%arg0: i32, %arg1: i32, %arg2: i32, %arg3: memref<16x64xf32, #tpu.memory_space<vmem>>, %arg4: memref<64x64xbf16, #tpu.memory_space<vmem>>, %arg5: memref<1x64xf32, #tpu.memory_space<vmem>>, %arg6: memref<16x64xf32, #tpu.memory_space<vmem>>) attributes {dimension_semantics = [#tpu.dimension_semantics<parallel>, #tpu.dimension_semantics<parallel>, #tpu.dimension_semantics<arbitrary>], iteration_bounds = array<i64: 1, 1, 1>, scalar_prefetch = 0 : i64, scratch_operands = 0 : i64, tpu.core_type = #tpu.core_type<tc>, window_params = [{transform_indices = @transform_0, window_bounds = array<i64: 16, 64>}, {transform_indices = @transform_1, window_bounds = array<i64: 64, 64>}, {transform_indices = @transform_2, window_bounds = array<i64: 1, 64>}, {transform_indices = @transform_3, window_bounds = array<i64: 16, 64>}]} {
    %c0_i32 = arith.constant 0 : i32
    %0 = arith.cmpi eq, %arg2, %c0_i32 : i32
    %1 = arith.extui %0 : i1 to i32
    %c0_i32_0 = arith.constant 0 : i32
    %2 = arith.cmpi ne, %1, %c0_i32_0 : i32
    scf.if %2 {
      %cst_10 = arith.constant 0.000000e+00 : f32
      %13 = vector.broadcast %cst_10 : f32 to vector<16x64xf32>
      %c0_11 = arith.constant 0 : index
      %c0_12 = arith.constant 0 : index
      %14 = vector.load %arg6[%c0_11, %c0_12] : memref<16x64xf32, #tpu.memory_space<vmem>>, vector<16x64xf32>
      tpu.vector_store %arg6[%c0_11, %c0_12], %13 {strides = array<i32>} : memref<16x64xf32, #tpu.memory_space<vmem>>, vector<16x64xf32>,
    } else {
    }
    %c0 = arith.constant 0 : index
    %c0_1 = arith.constant 0 : index
    %3 = vector.load %arg3[%c0, %c0_1] : memref<16x64xf32, #tpu.memory_space<vmem>>, vector<16x64xf32>
    %c0_2 = arith.constant 0 : index
    %c0_3 = arith.constant 0 : index
    %4 = vector.load %arg6[%c0_2, %c0_3] : memref<16x64xf32, #tpu.memory_space<vmem>>, vector<16x64xf32>
    %5 = arith.truncf %3 : vector<16x64xf32> to vector<16x64xbf16>
    %c0_4 = arith.constant 0 : index
    %c0_5 = arith.constant 0 : index
    %6 = vector.load %arg4[%c0_4, %c0_5] : memref<64x64xbf16, #tpu.memory_space<vmem>>, vector<64x64xbf16>
    %cst = arith.constant dense<0.000000e+00> : vector<16x64xf32>
    %7 = tpu.matmul %5, %6, %cst {dimension_numbers = #tpu.dot_dimension_numbers<[1], [0], [0], [1], [0, 0, 1, 1], [], []>} : vector<16x64xbf16>, vector<64x64xbf16>, vector<16x64xf32> -> vector<16x64xf32>
    %8 = arith.addf %4, %7 : vector<16x64xf32>
    %c0_6 = arith.constant 0 : index
    %c0_7 = arith.constant 0 : index
    %9 = vector.load %arg6[%c0_6, %c0_7] : memref<16x64xf32, #tpu.memory_space<vmem>>, vector<16x64xf32>
    tpu.vector_store %arg6[%c0_6, %c0_7], %8 {strides = array<i32>} : memref<16x64xf32, #tpu.memory_space<vmem>>, vector<16x64xf32>,
    %c0_i32_8 = arith.constant 0 : i32
    %10 = arith.cmpi eq, %arg2, %c0_i32_8 : i32
    %11 = arith.extui %10 : i1 to i32
    %c0_i32_9 = arith.constant 0 : i32
    %12 = arith.cmpi ne, %11, %c0_i32_9 : i32
    scf.if %12 {
      %c0_10 = arith.constant 0 : index
      %c0_11 = arith.constant 0 : index
      %13 = vector.load %arg6[%c0_10, %c0_11] : memref<16x64xf32, #tpu.memory_space<vmem>>, vector<16x64xf32>
      %c0_12 = arith.constant 0 : index
      %c0_13 = arith.constant 0 : index
      %14 = vector.load %arg5[%c0_12, %c0_13] : memref<1x64xf32, #tpu.memory_space<vmem>>, vector<1x64xf32>
      %15 = vector.broadcast %14 : vector<1x64xf32> to vector<16x64xf32>
      %16 = arith.addf %13, %15 : vector<16x64xf32>
      %c0_14 = arith.constant 0 : index
      %c0_15 = arith.constant 0 : index
      %17 = vector.load %arg6[%c0_14, %c0_15] : memref<16x64xf32, #tpu.memory_space<vmem>>, vector<16x64xf32>
      tpu.vector_store %arg6[%c0_14, %c0_15], %16 {strides = array<i32>} : memref<16x64xf32, #tpu.memory_space<vmem>>, vector<16x64xf32>,
    } else {
    }
    return
  }
  func.func @transform_0(%arg0: i32, %arg1: i32, %arg2: i32) -> (i32, i32) {
    %c0_i32 = arith.constant 0 : i32
    return %arg0, %arg2 : i32, i32
  }
  func.func @transform_1(%arg0: i32, %arg1: i32, %arg2: i32) -> (i32, i32) {
    %c0_i32 = arith.constant 0 : i32
    return %arg2, %arg1 : i32, i32
  }
  func.func @transform_2(%arg0: i32, %arg1: i32, %arg2: i32) -> (i32, i32) {
    %c0_i32 = arith.constant 0 : i32
    %c0_i32_0 = arith.constant 0 : i32
    return %c0_i32, %arg1 : i32, i32
  }
  func.func @transform_3(%arg0: i32, %arg1: i32, %arg2: i32) -> (i32, i32) {
    %c0_i32 = arith.constant 0 : i32
    return %arg0, %arg1 : i32, i32
  }
}

module attributes {stable_mosaic.version = 11 : i64} {
  func.func @kernel(%arg0: i32, %arg1: i32, %arg2: i32, %arg3: memref<1x16x64xf32, #tpu.memory_space<vmem>>, %arg4: memref<1x1x64xf32, #tpu.memory_space<vmem>>, %arg5: memref<1x1x64xf32, #tpu.memory_space<vmem>>, %arg6: memref<64x64xbf16, #tpu.memory_space<vmem>>, %arg7: memref<64x64xbf16, #tpu.memory_space<vmem>>, %arg8: memref<64x64xbf16, #tpu.memory_space<vmem>>, %arg9: memref<1x64xf32, #tpu.memory_space<vmem>>, %arg10: memref<1x64xf32, #tpu.memory_space<vmem>>, %arg11: memref<1x64xf32, #tpu.memory_space<vmem>>, %arg12: memref<1x16x64xbf16, #tpu.memory_space<vmem>>, %arg13: memref<1x16x64xbf16, #tpu.memory_space<vmem>>, %arg14: memref<1x16x64xbf16, #tpu.memory_space<vmem>>, %arg15: memref<16x64xbf16, #tpu.memory_space<vmem>>) attributes {dimension_semantics = [#tpu.dimension_semantics<parallel>, #tpu.dimension_semantics<parallel>, #tpu.dimension_semantics<arbitrary>], iteration_bounds = array<i64: 2, 1, 1>, scalar_prefetch = 0 : i64, scratch_operands = 1 : i64, tpu.core_type = #tpu.core_type<tc>, window_params = [{transform_indices = @transform_0, window_bounds = array<i64: 1, 16, 64>}, {transform_indices = @transform_1, window_bounds = array<i64: 1, 1, 64>}, {transform_indices = @transform_2, window_bounds = array<i64: 1, 1, 64>}, {transform_indices = @transform_3, window_bounds = array<i64: 64, 64>}, {transform_indices = @transform_4, window_bounds = array<i64: 64, 64>}, {transform_indices = @transform_5, window_bounds = array<i64: 64, 64>}, {transform_indices = @transform_6, window_bounds = array<i64: 1, 64>}, {transform_indices = @transform_7, window_bounds = array<i64: 1, 64>}, {transform_indices = @transform_8, window_bounds = array<i64: 1, 64>}, {transform_indices = @transform_9, window_bounds = array<i64: 1, 16, 64>}, {transform_indices = @transform_10, window_bounds = array<i64: 1, 16, 64>}, {transform_indices = @transform_11, window_bounds = array<i64: 1, 16, 64>}]} {
    %c0_i32 = arith.constant 0 : i32
    %0 = arith.cmpi eq, %arg2, %c0_i32 : i32
    %1 = arith.extui %0 : i1 to i32
    %c0_i32_0 = arith.constant 0 : i32
    %2 = arith.cmpi ne, %1, %c0_i32_0 : i32
    scf.if %2 {
      %c0_25 = arith.constant 0 : index
      %c0_26 = arith.constant 0 : index
      %c0_27 = arith.constant 0 : index
      %31 = vector.load %arg3[%c0_25, %c0_26, %c0_27] : memref<1x16x64xf32, #tpu.memory_space<vmem>>, vector<1x16x64xf32>
      %32 = vector.shape_cast %31 : vector<1x16x64xf32> to vector<16x64xf32>
      %cst_28 = arith.constant dense<0.000000e+00> : vector<16xf32>
      %33 = vector.multi_reduction <add>, %32, %cst_28 [1] : vector<16x64xf32> to vector<16xf32>
      %34 = vector.shape_cast %33 : vector<16xf32> to vector<16x1xf32>
      %cst_29 = arith.constant 6.400000e+01 : f32
      %35 = vector.broadcast %cst_29 : f32 to vector<16x1xf32>
      %36 = arith.divf %34, %35 : vector<16x1xf32>
      %37 = vector.broadcast %36 : vector<16x1xf32> to vector<16x64xf32>
      %38 = arith.subf %32, %37 : vector<16x64xf32>
      %39 = arith.mulf %38, %38 : vector<16x64xf32>
      %cst_30 = arith.constant dense<0.000000e+00> : vector<16xf32>
      %40 = vector.multi_reduction <add>, %39, %cst_30 [1] : vector<16x64xf32> to vector<16xf32>
      %41 = vector.shape_cast %40 : vector<16xf32> to vector<16x1xf32>
      %cst_31 = arith.constant 6.400000e+01 : f32
      %42 = vector.broadcast %cst_31 : f32 to vector<16x1xf32>
      %43 = arith.divf %41, %42 : vector<16x1xf32>
      %44 = vector.broadcast %36 : vector<16x1xf32> to vector<16x64xf32>
      %45 = arith.subf %32, %44 : vector<16x64xf32>
      %cst_32 = arith.constant 9.99999997E-7 : f32
      %46 = vector.broadcast %cst_32 : f32 to vector<16x1xf32>
      %47 = arith.addf %43, %46 : vector<16x1xf32>
      %48 = math.rsqrt %47 : vector<16x1xf32>
      %49 = vector.broadcast %48 : vector<16x1xf32> to vector<16x64xf32>
      %50 = arith.mulf %45, %49 : vector<16x64xf32>
      %c0_33 = arith.constant 0 : index
      %c0_34 = arith.constant 0 : index
      %c0_35 = arith.constant 0 : index
      %51 = vector.load %arg5[%c0_33, %c0_34, %c0_35] : memref<1x1x64xf32, #tpu.memory_space<vmem>>, vector<1x1x64xf32>
      %52 = vector.shape_cast %51 : vector<1x1x64xf32> to vector<1x64xf32>
      %cst_36 = arith.constant 1.000000e+00 : f32
      %53 = vector.broadcast %cst_36 : f32 to vector<1x64xf32>
      %54 = arith.addf %53, %52 : vector<1x64xf32>
      %55 = vector.broadcast %54 : vector<1x64xf32> to vector<16x64xf32>
      %56 = arith.mulf %50, %55 : vector<16x64xf32>
      %c0_37 = arith.constant 0 : index
      %c0_38 = arith.constant 0 : index
      %c0_39 = arith.constant 0 : index
      %57 = vector.load %arg4[%c0_37, %c0_38, %c0_39] : memref<1x1x64xf32, #tpu.memory_space<vmem>>, vector<1x1x64xf32>
      %58 = vector.shape_cast %57 : vector<1x1x64xf32> to vector<1x64xf32>
      %59 = vector.broadcast %58 : vector<1x64xf32> to vector<16x64xf32>
      %60 = arith.addf %56, %59 : vector<16x64xf32>
      %61 = arith.truncf %60 : vector<16x64xf32> to vector<16x64xbf16>
      %c0_40 = arith.constant 0 : index
      %c0_41 = arith.constant 0 : index
      %62 = vector.load %arg15[%c0_40, %c0_41] : memref<16x64xbf16, #tpu.memory_space<vmem>>, vector<16x64xbf16>
      tpu.vector_store %arg15[%c0_40, %c0_41], %61 {strides = array<i32>} : memref<16x64xbf16, #tpu.memory_space<vmem>>, vector<16x64xbf16>,
    } else {
    }
    %c0 = arith.constant 0 : index
    %c0_1 = arith.constant 0 : index
    %3 = vector.load %arg15[%c0, %c0_1] : memref<16x64xbf16, #tpu.memory_space<vmem>>, vector<16x64xbf16>
    %c0_2 = arith.constant 0 : index
    %c0_3 = arith.constant 0 : index
    %4 = vector.load %arg6[%c0_2, %c0_3] : memref<64x64xbf16, #tpu.memory_space<vmem>>, vector<64x64xbf16>
    %cst = arith.constant dense<0.000000e+00> : vector<16x64xf32>
    %5 = tpu.matmul %3, %4, %cst {dimension_numbers = #tpu.dot_dimension_numbers<[1], [0], [0], [1], [0, 0, 1, 1], [], []>} : vector<16x64xbf16>, vector<64x64xbf16>, vector<16x64xf32> -> vector<16x64xf32>
    %c0_4 = arith.constant 0 : index
    %c0_5 = arith.constant 0 : index
    %6 = vector.load %arg9[%c0_4, %c0_5] : memref<1x64xf32, #tpu.memory_space<vmem>>, vector<1x64xf32>
    %7 = vector.broadcast %6 : vector<1x64xf32> to vector<16x64xf32>
    %8 = arith.addf %5, %7 : vector<16x64xf32>
    %9 = arith.truncf %8 : vector<16x64xf32> to vector<16x64xbf16>
    %c0_6 = arith.constant 0 : index
    %c0_7 = arith.constant 0 : index
    %c0_8 = arith.constant 0 : index
    %10 = vector.load %arg12[%c0_6, %c0_7, %c0_8] : memref<1x16x64xbf16, #tpu.memory_space<vmem>>, vector<1x16x64xbf16>
    %11 = vector.shape_cast %10 : vector<1x16x64xbf16> to vector<16x64xbf16>
    %12 = vector.shape_cast %9 : vector<16x64xbf16> to vector<1x16x64xbf16>
    tpu.vector_store %arg12[%c0_6, %c0_7, %c0_8], %12 {strides = array<i32>} : memref<1x16x64xbf16, #tpu.memory_space<vmem>>, vector<1x16x64xbf16>,
    %c0_9 = arith.constant 0 : index
    %c0_10 = arith.constant 0 : index
    %13 = vector.load %arg7[%c0_9, %c0_10] : memref<64x64xbf16, #tpu.memory_space<vmem>>, vector<64x64xbf16>
    %cst_11 = arith.constant dense<0.000000e+00> : vector<16x64xf32>
    %14 = tpu.matmul %3, %13, %cst_11 {dimension_numbers = #tpu.dot_dimension_numbers<[1], [0], [0], [1], [0, 0, 1, 1], [], []>} : vector<16x64xbf16>, vector<64x64xbf16>, vector<16x64xf32> -> vector<16x64xf32>
    %c0_12 = arith.constant 0 : index
    %c0_13 = arith.constant 0 : index
    %15 = vector.load %arg10[%c0_12, %c0_13] : memref<1x64xf32, #tpu.memory_space<vmem>>, vector<1x64xf32>
    %16 = vector.broadcast %15 : vector<1x64xf32> to vector<16x64xf32>
    %17 = arith.addf %14, %16 : vector<16x64xf32>
    %18 = arith.truncf %17 : vector<16x64xf32> to vector<16x64xbf16>
    %c0_14 = arith.constant 0 : index
    %c0_15 = arith.constant 0 : index
    %c0_16 = arith.constant 0 : index
    %19 = vector.load %arg13[%c0_14, %c0_15, %c0_16] : memref<1x16x64xbf16, #tpu.memory_space<vmem>>, vector<1x16x64xbf16>
    %20 = vector.shape_cast %19 : vector<1x16x64xbf16> to vector<16x64xbf16>
    %21 = vector.shape_cast %18 : vector<16x64xbf16> to vector<1x16x64xbf16>
    tpu.vector_store %arg13[%c0_14, %c0_15, %c0_16], %21 {strides = array<i32>} : memref<1x16x64xbf16, #tpu.memory_space<vmem>>, vector<1x16x64xbf16>,
    %c0_17 = arith.constant 0 : index
    %c0_18 = arith.constant 0 : index
    %22 = vector.load %arg8[%c0_17, %c0_18] : memref<64x64xbf16, #tpu.memory_space<vmem>>, vector<64x64xbf16>
    %cst_19 = arith.constant dense<0.000000e+00> : vector<16x64xf32>
    %23 = tpu.matmul %3, %22, %cst_19 {dimension_numbers = #tpu.dot_dimension_numbers<[1], [0], [0], [1], [0, 0, 1, 1], [], []>} : vector<16x64xbf16>, vector<64x64xbf16>, vector<16x64xf32> -> vector<16x64xf32>
    %c0_20 = arith.constant 0 : index
    %c0_21 = arith.constant 0 : index
    %24 = vector.load %arg11[%c0_20, %c0_21] : memref<1x64xf32, #tpu.memory_space<vmem>>, vector<1x64xf32>
    %25 = vector.broadcast %24 : vector<1x64xf32> to vector<16x64xf32>
    %26 = arith.addf %23, %25 : vector<16x64xf32>
    %27 = arith.truncf %26 : vector<16x64xf32> to vector<16x64xbf16>
    %c0_22 = arith.constant 0 : index
    %c0_23 = arith.constant 0 : index
    %c0_24 = arith.constant 0 : index
    %28 = vector.load %arg14[%c0_22, %c0_23, %c0_24] : memref<1x16x64xbf16, #tpu.memory_space<vmem>>, vector<1x16x64xbf16>
    %29 = vector.shape_cast %28 : vector<1x16x64xbf16> to vector<16x64xbf16>
    %30 = vector.shape_cast %27 : vector<16x64xbf16> to vector<1x16x64xbf16>
    tpu.vector_store %arg14[%c0_22, %c0_23, %c0_24], %30 {strides = array<i32>} : memref<1x16x64xbf16, #tpu.memory_space<vmem>>, vector<1x16x64xbf16>,
    return
  }
  func.func @transform_0(%arg0: i32, %arg1: i32, %arg2: i32) -> (i32, i32, i32) {
    %c0_i32 = arith.constant 0 : i32
    %c0_i32_0 = arith.constant 0 : i32
    return %arg0, %arg1, %c0_i32 : i32, i32, i32
  }
  func.func @transform_1(%arg0: i32, %arg1: i32, %arg2: i32) -> (i32, i32, i32) {
    %c0_i32 = arith.constant 0 : i32
    %c0_i32_0 = arith.constant 0 : i32
    %c0_i32_1 = arith.constant 0 : i32
    return %arg0, %c0_i32, %c0_i32_0 : i32, i32, i32
  }
  func.func @transform_2(%arg0: i32, %arg1: i32, %arg2: i32) -> (i32, i32, i32) {
    %c0_i32 = arith.constant 0 : i32
    %c0_i32_0 = arith.constant 0 : i32
    %c0_i32_1 = arith.constant 0 : i32
    return %arg0, %c0_i32, %c0_i32_0 : i32, i32, i32
  }
  func.func @transform_3(%arg0: i32, %arg1: i32, %arg2: i32) -> (i32, i32) {
    %c0_i32 = arith.constant 0 : i32
    %c0_i32_0 = arith.constant 0 : i32
    return %c0_i32, %arg2 : i32, i32
  }
  func.func @transform_4(%arg0: i32, %arg1: i32, %arg2: i32) -> (i32, i32) {
    %c0_i32 = arith.constant 0 : i32
    %c0_i32_0 = arith.constant 0 : i32
    return %c0_i32, %arg2 : i32, i32
  }
  func.func @transform_5(%arg0: i32, %arg1: i32, %arg2: i32) -> (i32, i32) {
    %c0_i32 = arith.constant 0 : i32
    %c0_i32_0 = arith.constant 0 : i32
    return %c0_i32, %arg2 : i32, i32
  }
  func.func @transform_6(%arg0: i32, %arg1: i32, %arg2: i32) -> (i32, i32) {
    %c0_i32 = arith.constant 0 : i32
    %c0_i32_0 = arith.constant 0 : i32
    return %c0_i32, %arg2 : i32, i32
  }
  func.func @transform_7(%arg0: i32, %arg1: i32, %arg2: i32) -> (i32, i32) {
    %c0_i32 = arith.constant 0 : i32
    %c0_i32_0 = arith.constant 0 : i32
    return %c0_i32, %arg2 : i32, i32
  }
  func.func @transform_8(%arg0: i32, %arg1: i32, %arg2: i32) -> (i32, i32) {
    %c0_i32 = arith.constant 0 : i32
    %c0_i32_0 = arith.constant 0 : i32
    return %c0_i32, %arg2 : i32, i32
  }
  func.func @transform_9(%arg0: i32, %arg1: i32, %arg2: i32) -> (i32, i32, i32) {
    %c0_i32 = arith.constant 0 : i32
    return %arg0, %arg1, %arg2 : i32, i32, i32
  }
  func.func @transform_10(%arg0: i32, %arg1: i32, %arg2: i32) -> (i32, i32, i32) {
    %c0_i32 = arith.constant 0 : i32
    return %arg0, %arg1, %arg2 : i32, i32, i32
  }
  func.func @transform_11(%arg0: i32, %arg1: i32, %arg2: i32) -> (i32, i32, i32) {
    %c0_i32 = arith.constant 0 : i32
    return %arg0, %arg1, %arg2 : i32, i32, i32
  }
}

module attributes {stable_mosaic.version = 11 : i64} {
  func.func @kernel(%arg0: i32, %arg1: i32, %arg2: memref<1x16x64xbf16, #tpu.memory_space<vmem>>, %arg3: memref<1x16x64xbf16, #tpu.memory_space<vmem>>, %arg4: memref<1x16x64xbf16, #tpu.memory_space<vmem>>, %arg5: memref<1x16x64xbf16, #tpu.memory_space<vmem>>, %arg6: memref<16x64xf32, #tpu.memory_space<vmem>>) attributes {dimension_semantics = [#tpu.dimension_semantics<parallel>, #tpu.dimension_semantics<parallel>], iteration_bounds = array<i64: 2, 1>, scalar_prefetch = 0 : i64, scratch_operands = 1 : i64, tpu.core_type = #tpu.core_type<tc>, window_params = [{transform_indices = @transform_0, window_bounds = array<i64: 1, 16, 64>}, {transform_indices = @transform_1, window_bounds = array<i64: 1, 16, 64>}, {transform_indices = @transform_2, window_bounds = array<i64: 1, 16, 64>}, {transform_indices = @transform_3, window_bounds = array<i64: 1, 16, 64>}]} {
    %c0 = arith.constant 0 : index
    %c0_0 = arith.constant 0 : index
    %c0_1 = arith.constant 0 : index
    %0 = vector.load %arg2[%c0, %c0_0, %c0_1] : memref<1x16x64xbf16, #tpu.memory_space<vmem>>, vector<1x16x16xbf16>
    %1 = vector.shape_cast %0 : vector<1x16x16xbf16> to vector<16x16xbf16>
    %c0_2 = arith.constant 0 : index
    %c0_3 = arith.constant 0 : index
    %c0_4 = arith.constant 0 : index
    %2 = vector.load %arg3[%c0_2, %c0_3, %c0_4] : memref<1x16x64xbf16, #tpu.memory_space<vmem>>, vector<1x16x16xbf16>
    %3 = vector.shape_cast %2 : vector<1x16x16xbf16> to vector<16x16xbf16>
    %c0_5 = arith.constant 0 : index
    %c0_6 = arith.constant 0 : index
    %c0_7 = arith.constant 0 : index
    %4 = vector.load %arg4[%c0_5, %c0_6, %c0_7] : memref<1x16x64xbf16, #tpu.memory_space<vmem>>, vector<1x16x16xbf16>
    %5 = vector.shape_cast %4 : vector<1x16x16xbf16> to vector<16x16xbf16>
    %cst = arith.constant dense<0.000000e+00> : vector<16x16xf32>
    %6 = tpu.matmul %1, %3, %cst {dimension_numbers = #tpu.dot_dimension_numbers<[1], [1], [0], [0], [0, 0, 1, 0], [], []>} : vector<16x16xbf16>, vector<16x16xbf16>, vector<16x16xf32> -> vector<16x16xf32>
    %cst_8 = arith.constant 2.500000e-01 : f32
    %7 = vector.broadcast %cst_8 : f32 to vector<16x16xf32>
    %8 = arith.mulf %6, %7 : vector<16x16xf32>
    %cst_9 = arith.constant dense<0xFF800000> : vector<16xf32>
    %9 = vector.multi_reduction <maximumf>, %8, %cst_9 [1] : vector<16x16xf32> to vector<16xf32>
    %10 = vector.shape_cast %9 : vector<16xf32> to vector<16x1xf32>
    %11 = vector.broadcast %10 : vector<16x1xf32> to vector<16x16xf32>
    %12 = arith.subf %8, %11 : vector<16x16xf32>
    %13 = math.exp %12 : vector<16x16xf32>
    %cst_10 = arith.constant dense<0.000000e+00> : vector<16xf32>
    %14 = vector.multi_reduction <add>, %13, %cst_10 [1] : vector<16x16xf32> to vector<16xf32>
    %15 = vector.shape_cast %14 : vector<16xf32> to vector<16x1xf32>
    %16 = arith.truncf %13 : vector<16x16xf32> to vector<16x16xbf16>
    %cst_11 = arith.constant dense<0.000000e+00> : vector<16x16xf32>
    %17 = tpu.matmul %16, %5, %cst_11 {dimension_numbers = #tpu.dot_dimension_numbers<[1], [0], [0], [1], [0, 0, 1, 1], [], []>} : vector<16x16xbf16>, vector<16x16xbf16>, vector<16x16xf32> -> vector<16x16xf32>
    %18 = tpu.reciprocal %15 : vector<16x1xf32> -> vector<16x1xf32>
    %19 = vector.broadcast %18 : vector<16x1xf32> to vector<16x16xf32>
    %20 = arith.mulf %17, %19 : vector<16x16xf32>
    %c0_12 = arith.constant 0 : index
    %c0_13 = arith.constant 0 : index
    %21 = vector.load %arg6[%c0_12, %c0_13] : memref<16x64xf32, #tpu.memory_space<vmem>>, vector<16x16xf32>
    tpu.vector_store %arg6[%c0_12, %c0_13], %20 {strides = array<i32>} : memref<16x64xf32, #tpu.memory_space<vmem>>, vector<16x16xf32>,
    %c0_14 = arith.constant 0 : index
    %c0_15 = arith.constant 0 : index
    %c16 = arith.constant 16 : index
    %22 = vector.load %arg2[%c0_14, %c0_15, %c16] : memref<1x16x64xbf16, #tpu.memory_space<vmem>>, vector<1x16x16xbf16>
    %23 = vector.shape_cast %22 : vector<1x16x16xbf16> to vector<16x16xbf16>
    %c0_16 = arith.constant 0 : index
    %c0_17 = arith.constant 0 : index
    %c16_18 = arith.constant 16 : index
    %24 = vector.load %arg3[%c0_16, %c0_17, %c16_18] : memref<1x16x64xbf16, #tpu.memory_space<vmem>>, vector<1x16x16xbf16>
    %25 = vector.shape_cast %24 : vector<1x16x16xbf16> to vector<16x16xbf16>
    %c0_19 = arith.constant 0 : index
    %c0_20 = arith.constant 0 : index
    %c16_21 = arith.constant 16 : index
    %26 = vector.load %arg4[%c0_19, %c0_20, %c16_21] : memref<1x16x64xbf16, #tpu.memory_space<vmem>>, vector<1x16x16xbf16>
    %27 = vector.shape_cast %26 : vector<1x16x16xbf16> to vector<16x16xbf16>
    %cst_22 = arith.constant dense<0.000000e+00> : vector<16x16xf32>
    %28 = tpu.matmul %23, %25, %cst_22 {dimension_numbers = #tpu.dot_dimension_numbers<[1], [1], [0], [0], [0, 0, 1, 0], [], []>} : vector<16x16xbf16>, vector<16x16xbf16>, vector<16x16xf32> -> vector<16x16xf32>
    %cst_23 = arith.constant 2.500000e-01 : f32
    %29 = vector.broadcast %cst_23 : f32 to vector<16x16xf32>
    %30 = arith.mulf %28, %29 : vector<16x16xf32>
    %cst_24 = arith.constant dense<0xFF800000> : vector<16xf32>
    %31 = vector.multi_reduction <maximumf>, %30, %cst_24 [1] : vector<16x16xf32> to vector<16xf32>
    %32 = vector.shape_cast %31 : vector<16xf32> to vector<16x1xf32>
    %33 = vector.broadcast %32 : vector<16x1xf32> to vector<16x16xf32>
    %34 = arith.subf %30, %33 : vector<16x16xf32>
    %35 = math.exp %34 : vector<16x16xf32>
    %cst_25 = arith.constant dense<0.000000e+00> : vector<16xf32>
    %36 = vector.multi_reduction <add>, %35, %cst_25 [1] : vector<16x16xf32> to vector<16xf32>
    %37 = vector.shape_cast %36 : vector<16xf32> to vector<16x1xf32>
    %38 = arith.truncf %35 : vector<16x16xf32> to vector<16x16xbf16>
    %cst_26 = arith.constant dense<0.000000e+00> : vector<16x16xf32>
    %39 = tpu.matmul %38, %27, %cst_26 {dimension_numbers = #tpu.dot_dimension_numbers<[1], [0], [0], [1], [0, 0, 1, 1], [], []>} : vector<16x16xbf16>, vector<16x16xbf16>, vector<16x16xf32> -> vector<16x16xf32>
    %40 = tpu.reciprocal %37 : vector<16x1xf32> -> vector<16x1xf32>
    %41 = vector.broadcast %40 : vector<16x1xf32> to vector<16x16xf32>
    %42 = arith.mulf %39, %41 : vector<16x16xf32>
    %c0_27 = arith.constant 0 : index
    %c16_28 = arith.constant 16 : index
    %43 = vector.load %arg6[%c0_27, %c16_28] : memref<16x64xf32, #tpu.memory_space<vmem>>, vector<16x16xf32>
    tpu.vector_store %arg6[%c0_27, %c16_28], %42 {strides = array<i32>} : memref<16x64xf32, #tpu.memory_space<vmem>>, vector<16x16xf32>,
    %c0_29 = arith.constant 0 : index
    %c0_30 = arith.constant 0 : index
    %c32 = arith.constant 32 : index
    %44 = vector.load %arg2[%c0_29, %c0_30, %c32] : memref<1x16x64xbf16, #tpu.memory_space<vmem>>, vector<1x16x16xbf16>
    %45 = vector.shape_cast %44 : vector<1x16x16xbf16> to vector<16x16xbf16>
    %c0_31 = arith.constant 0 : index
    %c0_32 = arith.constant 0 : index
    %c32_33 = arith.constant 32 : index
    %46 = vector.load %arg3[%c0_31, %c0_32, %c32_33] : memref<1x16x64xbf16, #tpu.memory_space<vmem>>, vector<1x16x16xbf16>
    %47 = vector.shape_cast %46 : vector<1x16x16xbf16> to vector<16x16xbf16>
    %c0_34 = arith.constant 0 : index
    %c0_35 = arith.constant 0 : index
    %c32_36 = arith.constant 32 : index
    %48 = vector.load %arg4[%c0_34, %c0_35, %c32_36] : memref<1x16x64xbf16, #tpu.memory_space<vmem>>, vector<1x16x16xbf16>
    %49 = vector.shape_cast %48 : vector<1x16x16xbf16> to vector<16x16xbf16>
    %cst_37 = arith.constant dense<0.000000e+00> : vector<16x16xf32>
    %50 = tpu.matmul %45, %47, %cst_37 {dimension_numbers = #tpu.dot_dimension_numbers<[1], [1], [0], [0], [0, 0, 1, 0], [], []>} : vector<16x16xbf16>, vector<16x16xbf16>, vector<16x16xf32> -> vector<16x16xf32>
    %cst_38 = arith.constant 2.500000e-01 : f32
    %51 = vector.broadcast %cst_38 : f32 to vector<16x16xf32>
    %52 = arith.mulf %50, %51 : vector<16x16xf32>
    %cst_39 = arith.constant dense<0xFF800000> : vector<16xf32>
    %53 = vector.multi_reduction <maximumf>, %52, %cst_39 [1] : vector<16x16xf32> to vector<16xf32>
    %54 = vector.shape_cast %53 : vector<16xf32> to vector<16x1xf32>
    %55 = vector.broadcast %54 : vector<16x1xf32> to vector<16x16xf32>
    %56 = arith.subf %52, %55 : vector<16x16xf32>
    %57 = math.exp %56 : vector<16x16xf32>
    %cst_40 = arith.constant dense<0.000000e+00> : vector<16xf32>
    %58 = vector.multi_reduction <add>, %57, %cst_40 [1] : vector<16x16xf32> to vector<16xf32>
    %59 = vector.shape_cast %58 : vector<16xf32> to vector<16x1xf32>
    %60 = arith.truncf %57 : vector<16x16xf32> to vector<16x16xbf16>
    %cst_41 = arith.constant dense<0.000000e+00> : vector<16x16xf32>
    %61 = tpu.matmul %60, %49, %cst_41 {dimension_numbers = #tpu.dot_dimension_numbers<[1], [0], [0], [1], [0, 0, 1, 1], [], []>} : vector<16x16xbf16>, vector<16x16xbf16>, vector<16x16xf32> -> vector<16x16xf32>
    %62 = tpu.reciprocal %59 : vector<16x1xf32> -> vector<16x1xf32>
    %63 = vector.broadcast %62 : vector<16x1xf32> to vector<16x16xf32>
    %64 = arith.mulf %61, %63 : vector<16x16xf32>
    %c0_42 = arith.constant 0 : index
    %c32_43 = arith.constant 32 : index
    %65 = vector.load %arg6[%c0_42, %c32_43] : memref<16x64xf32, #tpu.memory_space<vmem>>, vector<16x16xf32>
    tpu.vector_store %arg6[%c0_42, %c32_43], %64 {strides = array<i32>} : memref<16x64xf32, #tpu.memory_space<vmem>>, vector<16x16xf32>,
    %c0_44 = arith.constant 0 : index
    %c0_45 = arith.constant 0 : index
    %c48 = arith.constant 48 : index
    %66 = vector.load %arg2[%c0_44, %c0_45, %c48] : memref<1x16x64xbf16, #tpu.memory_space<vmem>>, vector<1x16x16xbf16>
    %67 = vector.shape_cast %66 : vector<1x16x16xbf16> to vector<16x16xbf16>
    %c0_46 = arith.constant 0 : index
    %c0_47 = arith.constant 0 : index
    %c48_48 = arith.constant 48 : index
    %68 = vector.load %arg3[%c0_46, %c0_47, %c48_48] : memref<1x16x64xbf16, #tpu.memory_space<vmem>>, vector<1x16x16xbf16>
    %69 = vector.shape_cast %68 : vector<1x16x16xbf16> to vector<16x16xbf16>
    %c0_49 = arith.constant 0 : index
    %c0_50 = arith.constant 0 : index
    %c48_51 = arith.constant 48 : index
    %70 = vector.load %arg4[%c0_49, %c0_50, %c48_51] : memref<1x16x64xbf16, #tpu.memory_space<vmem>>, vector<1x16x16xbf16>
    %71 = vector.shape_cast %70 : vector<1x16x16xbf16> to vector<16x16xbf16>
    %cst_52 = arith.constant dense<0.000000e+00> : vector<16x16xf32>
    %72 = tpu.matmul %67, %69, %cst_52 {dimension_numbers = #tpu.dot_dimension_numbers<[1], [1], [0], [0], [0, 0, 1, 0], [], []>} : vector<16x16xbf16>, vector<16x16xbf16>, vector<16x16xf32> -> vector<16x16xf32>
    %cst_53 = arith.constant 2.500000e-01 : f32
    %73 = vector.broadcast %cst_53 : f32 to vector<16x16xf32>
    %74 = arith.mulf %72, %73 : vector<16x16xf32>
    %cst_54 = arith.constant dense<0xFF800000> : vector<16xf32>
    %75 = vector.multi_reduction <maximumf>, %74, %cst_54 [1] : vector<16x16xf32> to vector<16xf32>
    %76 = vector.shape_cast %75 : vector<16xf32> to vector<16x1xf32>
    %77 = vector.broadcast %76 : vector<16x1xf32> to vector<16x16xf32>
    %78 = arith.subf %74, %77 : vector<16x16xf32>
    %79 = math.exp %78 : vector<16x16xf32>
    %cst_55 = arith.constant dense<0.000000e+00> : vector<16xf32>
    %80 = vector.multi_reduction <add>, %79, %cst_55 [1] : vector<16x16xf32> to vector<16xf32>
    %81 = vector.shape_cast %80 : vector<16xf32> to vector<16x1xf32>
    %82 = arith.truncf %79 : vector<16x16xf32> to vector<16x16xbf16>
    %cst_56 = arith.constant dense<0.000000e+00> : vector<16x16xf32>
    %83 = tpu.matmul %82, %71, %cst_56 {dimension_numbers = #tpu.dot_dimension_numbers<[1], [0], [0], [1], [0, 0, 1, 1], [], []>} : vector<16x16xbf16>, vector<16x16xbf16>, vector<16x16xf32> -> vector<16x16xf32>
    %84 = tpu.reciprocal %81 : vector<16x1xf32> -> vector<16x1xf32>
    %85 = vector.broadcast %84 : vector<16x1xf32> to vector<16x16xf32>
    %86 = arith.mulf %83, %85 : vector<16x16xf32>
    %c0_57 = arith.constant 0 : index
    %c48_58 = arith.constant 48 : index
    %87 = vector.load %arg6[%c0_57, %c48_58] : memref<16x64xf32, #tpu.memory_space<vmem>>, vector<16x16xf32>
    tpu.vector_store %arg6[%c0_57, %c48_58], %86 {strides = array<i32>} : memref<16x64xf32, #tpu.memory_space<vmem>>, vector<16x16xf32>,
    %c0_59 = arith.constant 0 : index
    %c0_60 = arith.constant 0 : index
    %88 = vector.load %arg6[%c0_59, %c0_60] : memref<16x64xf32, #tpu.memory_space<vmem>>, vector<16x64xf32>
    %89 = arith.truncf %88 : vector<16x64xf32> to vector<16x64xbf16>
    %c0_61 = arith.constant 0 : index
    %c0_62 = arith.constant 0 : index
    %c0_63 = arith.constant 0 : index
    %90 = vector.load %arg5[%c0_61, %c0_62, %c0_63] : memref<1x16x64xbf16, #tpu.memory_space<vmem>>, vector<1x16x64xbf16>
    %91 = vector.shape_cast %90 : vector<1x16x64xbf16> to vector<16x64xbf16>
    %92 = vector.shape_cast %89 : vector<16x64xbf16> to vector<1x16x64xbf16>
    tpu.vector_store %arg5[%c0_61, %c0_62, %c0_63], %92 {strides = array<i32>} : memref<1x16x64xbf16, #tpu.memory_space<vmem>>, vector<1x16x64xbf16>,
    return
  }
  func.func @transform_0(%arg0: i32, %arg1: i32) -> (i32, i32, i32) {
    %c0_i32 = arith.constant 0 : i32
    %c0_i32_0 = arith.constant 0 : i32
    return %arg0, %arg1, %c0_i32 : i32, i32, i32
  }
  func.func @transform_1(%arg0: i32, %arg1: i32) -> (i32, i32, i32) {
    %c0_i32 = arith.constant 0 : i32
    %c0_i32_0 = arith.constant 0 : i32
    %c0_i32_1 = arith.constant 0 : i32
    return %arg0, %c0_i32, %c0_i32_0 : i32, i32, i32
  }
  func.func @transform_2(%arg0: i32, %arg1: i32) -> (i32, i32, i32) {
    %c0_i32 = arith.constant 0 : i32
    %c0_i32_0 = arith.constant 0 : i32
    %c0_i32_1 = arith.constant 0 : i32
    return %arg0, %c0_i32, %c0_i32_0 : i32, i32, i32
  }
  func.func @transform_3(%arg0: i32, %arg1: i32) -> (i32, i32, i32) {
    %c0_i32 = arith.constant 0 : i32
    %c0_i32_0 = arith.constant 0 : i32
    return %arg0, %arg1, %c0_i32 : i32, i32, i32
  }
}

module attributes {stable_mosaic.version = 11 : i64} {
  func.func @kernel(%arg0: i32, %arg1: i32, %arg2: i32, %arg3: i32, %arg4: memref<1x16x64xbf16, #tpu.memory_space<vmem>>, %arg5: memref<64x64xbf16, #tpu.memory_space<vmem>>, %arg6: memref<1x64xf32, #tpu.memory_space<vmem>>, %arg7: memref<1x16x64xf32, #tpu.memory_space<vmem>>, %arg8: memref<1x1x64xf32, #tpu.memory_space<vmem>>, %arg9: memref<1x16x64xf32, #tpu.memory_space<vmem>>) attributes {dimension_semantics = [#tpu.dimension_semantics<parallel>, #tpu.dimension_semantics<parallel>, #tpu.dimension_semantics<parallel>, #tpu.dimension_semantics<arbitrary>], iteration_bounds = array<i64: 2, 1, 1, 1>, scalar_prefetch = 0 : i64, scratch_operands = 0 : i64, tpu.core_type = #tpu.core_type<tc>, window_params = [{transform_indices = @transform_0, window_bounds = array<i64: 1, 16, 64>}, {transform_indices = @transform_1, window_bounds = array<i64: 64, 64>}, {transform_indices = @transform_2, window_bounds = array<i64: 1, 64>}, {transform_indices = @transform_3, window_bounds = array<i64: 1, 16, 64>}, {transform_indices = @transform_4, window_bounds = array<i64: 1, 1, 64>}, {transform_indices = @transform_5, window_bounds = array<i64: 1, 16, 64>}]} {
    %c0_i32 = arith.constant 0 : i32
    %0 = arith.cmpi eq, %arg3, %c0_i32 : i32
    %1 = arith.extui %0 : i1 to i32
    %c0_i32_0 = arith.constant 0 : i32
    %2 = arith.cmpi ne, %1, %c0_i32_0 : i32
    scf.if %2 {
      %cst_13 = arith.constant 0.000000e+00 : f32
      %16 = vector.broadcast %cst_13 : f32 to vector<16x64xf32>
      %c0_14 = arith.constant 0 : index
      %c0_15 = arith.constant 0 : index
      %c0_16 = arith.constant 0 : index
      %17 = vector.load %arg9[%c0_14, %c0_15, %c0_16] : memref<1x16x64xf32, #tpu.memory_space<vmem>>, vector<1x16x64xf32>
      %18 = vector.shape_cast %17 : vector<1x16x64xf32> to vector<16x64xf32>
      %19 = vector.shape_cast %16 : vector<16x64xf32> to vector<1x16x64xf32>
      tpu.vector_store %arg9[%c0_14, %c0_15, %c0_16], %19 {strides = array<i32>} : memref<1x16x64xf32, #tpu.memory_space<vmem>>, vector<1x16x64xf32>,
    } else {
    }
    %c0 = arith.constant 0 : index
    %c0_1 = arith.constant 0 : index
    %c0_2 = arith.constant 0 : index
    %3 = vector.load %arg4[%c0, %c0_1, %c0_2] : memref<1x16x64xbf16, #tpu.memory_space<vmem>>, vector<1x16x64xbf16>
    %4 = vector.shape_cast %3 : vector<1x16x64xbf16> to vector<16x64xbf16>
    %c0_3 = arith.constant 0 : index
    %c0_4 = arith.constant 0 : index
    %c0_5 = arith.constant 0 : index
    %5 = vector.load %arg9[%c0_3, %c0_4, %c0_5] : memref<1x16x64xf32, #tpu.memory_space<vmem>>, vector<1x16x64xf32>
    %6 = vector.shape_cast %5 : vector<1x16x64xf32> to vector<16x64xf32>
    %c0_6 = arith.constant 0 : index
    %c0_7 = arith.constant 0 : index
    %7 = vector.load %arg5[%c0_6, %c0_7] : memref<64x64xbf16, #tpu.memory_space<vmem>>, vector<64x64xbf16>
    %cst = arith.constant dense<0.000000e+00> : vector<16x64xf32>
    %8 = tpu.matmul %4, %7, %cst {dimension_numbers = #tpu.dot_dimension_numbers<[1], [0], [0], [1], [0, 0, 1, 1], [], []>} : vector<16x64xbf16>, vector<64x64xbf16>, vector<16x64xf32> -> vector<16x64xf32>
    %9 = arith.addf %6, %8 : vector<16x64xf32>
    %c0_8 = arith.constant 0 : index
    %c0_9 = arith.constant 0 : index
    %c0_10 = arith.constant 0 : index
    %10 = vector.load %arg9[%c0_8, %c0_9, %c0_10] : memref<1x16x64xf32, #tpu.memory_space<vmem>>, vector<1x16x64xf32>
    %11 = vector.shape_cast %10 : vector<1x16x64xf32> to vector<16x64xf32>
    %12 = vector.shape_cast %9 : vector<16x64xf32> to vector<1x16x64xf32>
    tpu.vector_store %arg9[%c0_8, %c0_9, %c0_10], %12 {strides = array<i32>} : memref<1x16x64xf32, #tpu.memory_space<vmem>>, vector<1x16x64xf32>,
    %c0_i32_11 = arith.constant 0 : i32
    %13 = arith.cmpi eq, %arg3, %c0_i32_11 : i32
    %14 = arith.extui %13 : i1 to i32
    %c0_i32_12 = arith.constant 0 : i32
    %15 = arith.cmpi ne, %14, %c0_i32_12 : i32
    scf.if %15 {
      %c0_13 = arith.constant 0 : index
      %c0_14 = arith.constant 0 : index
      %c0_15 = arith.constant 0 : index
      %16 = vector.load %arg9[%c0_13, %c0_14, %c0_15] : memref<1x16x64xf32, #tpu.memory_space<vmem>>, vector<1x16x64xf32>
      %17 = vector.shape_cast %16 : vector<1x16x64xf32> to vector<16x64xf32>
      %c0_16 = arith.constant 0 : index
      %c0_17 = arith.constant 0 : index
      %18 = vector.load %arg6[%c0_16, %c0_17] : memref<1x64xf32, #tpu.memory_space<vmem>>, vector<1x64xf32>
      %19 = vector.broadcast %18 : vector<1x64xf32> to vector<16x64xf32>
      %20 = arith.addf %17, %19 : vector<16x64xf32>
      %c0_18 = arith.constant 0 : index
      %c0_19 = arith.constant 0 : index
      %c0_20 = arith.constant 0 : index
      %21 = vector.load %arg8[%c0_18, %c0_19, %c0_20] : memref<1x1x64xf32, #tpu.memory_space<vmem>>, vector<1x1x64xf32>
      %22 = vector.shape_cast %21 : vector<1x1x64xf32> to vector<1x64xf32>
      %23 = vector.broadcast %22 : vector<1x64xf32> to vector<16x64xf32>
      %24 = arith.mulf %20, %23 : vector<16x64xf32>
      %c0_21 = arith.constant 0 : index
      %c0_22 = arith.constant 0 : index
      %c0_23 = arith.constant 0 : index
      %25 = vector.load %arg7[%c0_21, %c0_22, %c0_23] : memref<1x16x64xf32, #tpu.memory_space<vmem>>, vector<1x16x64xf32>
      %26 = vector.shape_cast %25 : vector<1x16x64xf32> to vector<16x64xf32>
      %27 = arith.addf %26, %24 : vector<16x64xf32>
      %c0_24 = arith.constant 0 : index
      %c0_25 = arith.constant 0 : index
      %c0_26 = arith.constant 0 : index
      %28 = vector.load %arg9[%c0_24, %c0_25, %c0_26] : memref<1x16x64xf32, #tpu.memory_space<vmem>>, vector<1x16x64xf32>
      %29 = vector.shape_cast %28 : vector<1x16x64xf32> to vector<16x64xf32>
      %30 = vector.shape_cast %27 : vector<16x64xf32> to vector<1x16x64xf32>
      tpu.vector_store %arg9[%c0_24, %c0_25, %c0_26], %30 {strides = array<i32>} : memref<1x16x64xf32, #tpu.memory_space<vmem>>, vector<1x16x64xf32>,
    } else {
    }
    return
  }
  func.func @transform_0(%arg0: i32, %arg1: i32, %arg2: i32, %arg3: i32) -> (i32, i32, i32) {
    %c0_i32 = arith.constant 0 : i32
    return %arg0, %arg1, %arg3 : i32, i32, i32
  }
  func.func @transform_1(%arg0: i32, %arg1: i32, %arg2: i32, %arg3: i32) -> (i32, i32) {
    %c0_i32 = arith.constant 0 : i32
    return %arg3, %arg2 : i32, i32
  }
  func.func @transform_2(%arg0: i32, %arg1: i32, %arg2: i32, %arg3: i32) -> (i32, i32) {
    %c0_i32 = arith.constant 0 : i32
    %c0_i32_0 = arith.constant 0 : i32
    return %c0_i32, %arg2 : i32, i32
  }
  func.func @transform_3(%arg0: i32, %arg1: i32, %arg2: i32, %arg3: i32) -> (i32, i32, i32) {
    %c0_i32 = arith.constant 0 : i32
    return %arg0, %arg1, %arg2 : i32, i32, i32
  }
  func.func @transform_4(%arg0: i32, %arg1: i32, %arg2: i32, %arg3: i32) -> (i32, i32, i32) {
    %c0_i32 = arith.constant 0 : i32
    %c0_i32_0 = arith.constant 0 : i32
    return %arg0, %c0_i32, %arg2 : i32, i32, i32
  }
  func.func @transform_5(%arg0: i32, %arg1: i32, %arg2: i32, %arg3: i32) -> (i32, i32, i32) {
    %c0_i32 = arith.constant 0 : i32
    return %arg0, %arg1, %arg2 : i32, i32, i32
  }
}

module attributes {stable_mosaic.version = 11 : i64} {
  func.func @kernel(%arg0: i32, %arg1: i32, %arg2: i32, %arg3: memref<1x16x64xf32, #tpu.memory_space<vmem>>, %arg4: memref<64x64xbf16, #tpu.memory_space<vmem>>, %arg5: memref<1x64xf32, #tpu.memory_space<vmem>>, %arg6: memref<1x16x64xbf16, #tpu.memory_space<vmem>>) attributes {dimension_semantics = [#tpu.dimension_semantics<parallel>, #tpu.dimension_semantics<parallel>, #tpu.dimension_semantics<parallel>], iteration_bounds = array<i64: 2, 1, 1>, scalar_prefetch = 0 : i64, scratch_operands = 0 : i64, tpu.core_type = #tpu.core_type<tc>, window_params = [{transform_indices = @transform_0, window_bounds = array<i64: 1, 16, 64>}, {transform_indices = @transform_1, window_bounds = array<i64: 64, 64>}, {transform_indices = @transform_2, window_bounds = array<i64: 1, 64>}, {transform_indices = @transform_3, window_bounds = array<i64: 1, 16, 64>}]} {
    %c0 = arith.constant 0 : index
    %c0_0 = arith.constant 0 : index
    %c0_1 = arith.constant 0 : index
    %0 = vector.load %arg3[%c0, %c0_0, %c0_1] : memref<1x16x64xf32, #tpu.memory_space<vmem>>, vector<1x16x64xf32>
    %1 = vector.shape_cast %0 : vector<1x16x64xf32> to vector<16x64xf32>
    %2 = arith.truncf %1 : vector<16x64xf32> to vector<16x64xbf16>
    %c0_2 = arith.constant 0 : index
    %c0_3 = arith.constant 0 : index
    %3 = vector.load %arg4[%c0_2, %c0_3] : memref<64x64xbf16, #tpu.memory_space<vmem>>, vector<64x64xbf16>
    %cst = arith.constant dense<0.000000e+00> : vector<16x64xf32>
    %4 = tpu.matmul %2, %3, %cst {dimension_numbers = #tpu.dot_dimension_numbers<[1], [0], [0], [1], [0, 0, 1, 1], [], []>} : vector<16x64xbf16>, vector<64x64xbf16>, vector<16x64xf32> -> vector<16x64xf32>
    %c0_4 = arith.constant 0 : index
    %c0_5 = arith.constant 0 : index
    %5 = vector.load %arg5[%c0_4, %c0_5] : memref<1x64xf32, #tpu.memory_space<vmem>>, vector<1x64xf32>
    %6 = vector.broadcast %5 : vector<1x64xf32> to vector<16x64xf32>
    %7 = arith.addf %4, %6 : vector<16x64xf32>
    %8 = arith.truncf %7 : vector<16x64xf32> to vector<16x64xbf16>
    %c0_6 = arith.constant 0 : index
    %c0_7 = arith.constant 0 : index
    %c0_8 = arith.constant 0 : index
    %9 = vector.load %arg6[%c0_6, %c0_7, %c0_8] : memref<1x16x64xbf16, #tpu.memory_space<vmem>>, vector<1x16x64xbf16>
    %10 = vector.shape_cast %9 : vector<1x16x64xbf16> to vector<16x64xbf16>
    %11 = vector.shape_cast %8 : vector<16x64xbf16> to vector<1x16x64xbf16>
    tpu.vector_store %arg6[%c0_6, %c0_7, %c0_8], %11 {strides = array<i32>} : memref<1x16x64xbf16, #tpu.memory_space<vmem>>, vector<1x16x64xbf16>,
    return
  }
  func.func @transform_0(%arg0: i32, %arg1: i32, %arg2: i32) -> (i32, i32, i32) {
    %c0_i32 = arith.constant 0 : i32
    %c0_i32_0 = arith.constant 0 : i32
    return %arg0, %arg1, %c0_i32 : i32, i32, i32
  }
  func.func @transform_1(%arg0: i32, %arg1: i32, %arg2: i32) -> (i32, i32) {
    %c0_i32 = arith.constant 0 : i32
    %c0_i32_0 = arith.constant 0 : i32
    return %c0_i32, %arg2 : i32, i32
  }
  func.func @transform_2(%arg0: i32, %arg1: i32, %arg2: i32) -> (i32, i32) {
    %c0_i32 = arith.constant 0 : i32
    %c0_i32_0 = arith.constant 0 : i32
    return %c0_i32, %arg2 : i32, i32
  }
  func.func @transform_3(%arg0: i32, %arg1: i32, %arg2: i32) -> (i32, i32, i32) {
    %c0_i32 = arith.constant 0 : i32
    return %arg0, %arg1, %arg2 : i32, i32, i32
  }
}

module attributes {stable_mosaic.version = 11 : i64} {
  func.func @kernel(%arg0: i32, %arg1: i32, %arg2: i32, %arg3: memref<1x8x64xf32, #tpu.memory_space<vmem>>, %arg4: memref<64x64xbf16, #tpu.memory_space<vmem>>, %arg5: memref<64x64xbf16, #tpu.memory_space<vmem>>, %arg6: memref<1x64xf32, #tpu.memory_space<vmem>>, %arg7: memref<1x64xf32, #tpu.memory_space<vmem>>, %arg8: memref<1x8x64xbf16, #tpu.memory_space<vmem>>, %arg9: memref<1x8x64xbf16, #tpu.memory_space<vmem>>) attributes {dimension_semantics = [#tpu.dimension_semantics<parallel>, #tpu.dimension_semantics<parallel>, #tpu.dimension_semantics<parallel>], iteration_bounds = array<i64: 2, 1, 1>, scalar_prefetch = 0 : i64, scratch_operands = 0 : i64, tpu.core_type = #tpu.core_type<tc>, window_params = [{transform_indices = @transform_0, window_bounds = array<i64: 1, 8, 64>}, {transform_indices = @transform_1, window_bounds = array<i64: 64, 64>}, {transform_indices = @transform_2, window_bounds = array<i64: 64, 64>}, {transform_indices = @transform_3, window_bounds = array<i64: 1, 64>}, {transform_indices = @transform_4, window_bounds = array<i64: 1, 64>}, {transform_indices = @transform_5, window_bounds = array<i64: 1, 8, 64>}, {transform_indices = @transform_6, window_bounds = array<i64: 1, 8, 64>}]} {
    %c0 = arith.constant 0 : index
    %c0_0 = arith.constant 0 : index
    %c0_1 = arith.constant 0 : index
    %0 = vector.load %arg3[%c0, %c0_0, %c0_1] : memref<1x8x64xf32, #tpu.memory_space<vmem>>, vector<1x8x64xf32>
    %1 = vector.shape_cast %0 : vector<1x8x64xf32> to vector<8x64xf32>
    %2 = arith.truncf %1 : vector<8x64xf32> to vector<8x64xbf16>
    %c0_2 = arith.constant 0 : index
    %c0_3 = arith.constant 0 : index
    %3 = vector.load %arg4[%c0_2, %c0_3] : memref<64x64xbf16, #tpu.memory_space<vmem>>, vector<64x64xbf16>
    %cst = arith.constant dense<0.000000e+00> : vector<8x64xf32>
    %4 = tpu.matmul %2, %3, %cst {dimension_numbers = #tpu.dot_dimension_numbers<[1], [0], [0], [1], [0, 0, 1, 1], [], []>} : vector<8x64xbf16>, vector<64x64xbf16>, vector<8x64xf32> -> vector<8x64xf32>
    %c0_4 = arith.constant 0 : index
    %c0_5 = arith.constant 0 : index
    %5 = vector.load %arg6[%c0_4, %c0_5] : memref<1x64xf32, #tpu.memory_space<vmem>>, vector<1x64xf32>
    %6 = vector.broadcast %5 : vector<1x64xf32> to vector<8x64xf32>
    %7 = arith.addf %4, %6 : vector<8x64xf32>
    %8 = arith.truncf %7 : vector<8x64xf32> to vector<8x64xbf16>
    %c0_6 = arith.constant 0 : index
    %c0_7 = arith.constant 0 : index
    %c0_8 = arith.constant 0 : index
    %9 = vector.load %arg8[%c0_6, %c0_7, %c0_8] : memref<1x8x64xbf16, #tpu.memory_space<vmem>>, vector<1x8x64xbf16>
    %10 = vector.shape_cast %9 : vector<1x8x64xbf16> to vector<8x64xbf16>
    %11 = vector.shape_cast %8 : vector<8x64xbf16> to vector<1x8x64xbf16>
    tpu.vector_store %arg8[%c0_6, %c0_7, %c0_8], %11 {strides = array<i32>} : memref<1x8x64xbf16, #tpu.memory_space<vmem>>, vector<1x8x64xbf16>,
    %c0_9 = arith.constant 0 : index
    %c0_10 = arith.constant 0 : index
    %12 = vector.load %arg5[%c0_9, %c0_10] : memref<64x64xbf16, #tpu.memory_space<vmem>>, vector<64x64xbf16>
    %cst_11 = arith.constant dense<0.000000e+00> : vector<8x64xf32>
    %13 = tpu.matmul %2, %12, %cst_11 {dimension_numbers = #tpu.dot_dimension_numbers<[1], [0], [0], [1], [0, 0, 1, 1], [], []>} : vector<8x64xbf16>, vector<64x64xbf16>, vector<8x64xf32> -> vector<8x64xf32>
    %c0_12 = arith.constant 0 : index
    %c0_13 = arith.constant 0 : index
    %14 = vector.load %arg7[%c0_12, %c0_13] : memref<1x64xf32, #tpu.memory_space<vmem>>, vector<1x64xf32>
    %15 = vector.broadcast %14 : vector<1x64xf32> to vector<8x64xf32>
    %16 = arith.addf %13, %15 : vector<8x64xf32>
    %17 = arith.truncf %16 : vector<8x64xf32> to vector<8x64xbf16>
    %c0_14 = arith.constant 0 : index
    %c0_15 = arith.constant 0 : index
    %c0_16 = arith.constant 0 : index
    %18 = vector.load %arg9[%c0_14, %c0_15, %c0_16] : memref<1x8x64xbf16, #tpu.memory_space<vmem>>, vector<1x8x64xbf16>
    %19 = vector.shape_cast %18 : vector<1x8x64xbf16> to vector<8x64xbf16>
    %20 = vector.shape_cast %17 : vector<8x64xbf16> to vector<1x8x64xbf16>
    tpu.vector_store %arg9[%c0_14, %c0_15, %c0_16], %20 {strides = array<i32>} : memref<1x8x64xbf16, #tpu.memory_space<vmem>>, vector<1x8x64xbf16>,
    return
  }
  func.func @transform_0(%arg0: i32, %arg1: i32, %arg2: i32) -> (i32, i32, i32) {
    %c0_i32 = arith.constant 0 : i32
    %c0_i32_0 = arith.constant 0 : i32
    return %arg0, %arg1, %c0_i32 : i32, i32, i32
  }
  func.func @transform_1(%arg0: i32, %arg1: i32, %arg2: i32) -> (i32, i32) {
    %c0_i32 = arith.constant 0 : i32
    %c0_i32_0 = arith.constant 0 : i32
    return %c0_i32, %arg2 : i32, i32
  }
  func.func @transform_2(%arg0: i32, %arg1: i32, %arg2: i32) -> (i32, i32) {
    %c0_i32 = arith.constant 0 : i32
    %c0_i32_0 = arith.constant 0 : i32
    return %c0_i32, %arg2 : i32, i32
  }
  func.func @transform_3(%arg0: i32, %arg1: i32, %arg2: i32) -> (i32, i32) {
    %c0_i32 = arith.constant 0 : i32
    %c0_i32_0 = arith.constant 0 : i32
    return %c0_i32, %arg2 : i32, i32
  }
  func.func @transform_4(%arg0: i32, %arg1: i32, %arg2: i32) -> (i32, i32) {
    %c0_i32 = arith.constant 0 : i32
    %c0_i32_0 = arith.constant 0 : i32
    return %c0_i32, %arg2 : i32, i32
  }
  func.func @transform_5(%arg0: i32, %arg1: i32, %arg2: i32) -> (i32, i32, i32) {
    %c0_i32 = arith.constant 0 : i32
    return %arg0, %arg1, %arg2 : i32, i32, i32
  }
  func.func @transform_6(%arg0: i32, %arg1: i32, %arg2: i32) -> (i32, i32, i32) {
    %c0_i32 = arith.constant 0 : i32
    return %arg0, %arg1, %arg2 : i32, i32, i32
  }
}

module attributes {stable_mosaic.version = 11 : i64} {
  func.func @kernel(%arg0: i32, %arg1: i32, %arg2: memref<1x16x64xbf16, #tpu.memory_space<vmem>>, %arg3: memref<1x8x64xbf16, #tpu.memory_space<vmem>>, %arg4: memref<1x8x64xbf16, #tpu.memory_space<vmem>>, %arg5: memref<1x16x64xbf16, #tpu.memory_space<vmem>>, %arg6: memref<16x64xf32, #tpu.memory_space<vmem>>) attributes {dimension_semantics = [#tpu.dimension_semantics<parallel>, #tpu.dimension_semantics<parallel>], iteration_bounds = array<i64: 2, 1>, scalar_prefetch = 0 : i64, scratch_operands = 1 : i64, tpu.core_type = #tpu.core_type<tc>, window_params = [{transform_indices = @transform_0, window_bounds = array<i64: 1, 16, 64>}, {transform_indices = @transform_1, window_bounds = array<i64: 1, 8, 64>}, {transform_indices = @transform_2, window_bounds = array<i64: 1, 8, 64>}, {transform_indices = @transform_3, window_bounds = array<i64: 1, 16, 64>}]} {
    %c0 = arith.constant 0 : index
    %c0_0 = arith.constant 0 : index
    %c0_1 = arith.constant 0 : index
    %0 = vector.load %arg2[%c0, %c0_0, %c0_1] : memref<1x16x64xbf16, #tpu.memory_space<vmem>>, vector<1x16x16xbf16>
    %1 = vector.shape_cast %0 : vector<1x16x16xbf16> to vector<16x16xbf16>
    %c0_2 = arith.constant 0 : index
    %c0_3 = arith.constant 0 : index
    %c0_4 = arith.constant 0 : index
    %2 = vector.load %arg3[%c0_2, %c0_3, %c0_4] : memref<1x8x64xbf16, #tpu.memory_space<vmem>>, vector<1x8x16xbf16>
    %3 = vector.shape_cast %2 : vector<1x8x16xbf16> to vector<8x16xbf16>
    %c0_5 = arith.constant 0 : index
    %c0_6 = arith.constant 0 : index
    %c0_7 = arith.constant 0 : index
    %4 = vector.load %arg4[%c0_5, %c0_6, %c0_7] : memref<1x8x64xbf16, #tpu.memory_space<vmem>>, vector<1x8x16xbf16>
    %5 = vector.shape_cast %4 : vector<1x8x16xbf16> to vector<8x16xbf16>
    %cst = arith.constant dense<0.000000e+00> : vector<16x8xf32>
    %6 = tpu.matmul %1, %3, %cst {dimension_numbers = #tpu.dot_dimension_numbers<[1], [1], [0], [0], [0, 0, 1, 0], [], []>} : vector<16x16xbf16>, vector<8x16xbf16>, vector<16x8xf32> -> vector<16x8xf32>
    %cst_8 = arith.constant 2.500000e-01 : f32
    %7 = vector.broadcast %cst_8 : f32 to vector<16x8xf32>
    %8 = arith.mulf %6, %7 : vector<16x8xf32>
    %cst_9 = arith.constant dense<0xFF800000> : vector<16xf32>
    %9 = vector.multi_reduction <maximumf>, %8, %cst_9 [1] : vector<16x8xf32> to vector<16xf32>
    %10 = vector.shape_cast %9 : vector<16xf32> to vector<16x1xf32>
    %11 = vector.broadcast %10 : vector<16x1xf32> to vector<16x8xf32>
    %12 = arith.subf %8, %11 : vector<16x8xf32>
    %13 = math.exp %12 : vector<16x8xf32>
    %cst_10 = arith.constant dense<0.000000e+00> : vector<16xf32>
    %14 = vector.multi_reduction <add>, %13, %cst_10 [1] : vector<16x8xf32> to vector<16xf32>
    %15 = vector.shape_cast %14 : vector<16xf32> to vector<16x1xf32>
    %16 = arith.truncf %13 : vector<16x8xf32> to vector<16x8xbf16>
    %cst_11 = arith.constant dense<0.000000e+00> : vector<16x16xf32>
    %17 = tpu.matmul %16, %5, %cst_11 {dimension_numbers = #tpu.dot_dimension_numbers<[1], [0], [0], [1], [0, 0, 1, 1], [], []>} : vector<16x8xbf16>, vector<8x16xbf16>, vector<16x16xf32> -> vector<16x16xf32>
    %18 = tpu.reciprocal %15 : vector<16x1xf32> -> vector<16x1xf32>
    %19 = vector.broadcast %18 : vector<16x1xf32> to vector<16x16xf32>
    %20 = arith.mulf %17, %19 : vector<16x16xf32>
    %c0_12 = arith.constant 0 : index
    %c0_13 = arith.constant 0 : index
    %21 = vector.load %arg6[%c0_12, %c0_13] : memref<16x64xf32, #tpu.memory_space<vmem>>, vector<16x16xf32>
    tpu.vector_store %arg6[%c0_12, %c0_13], %20 {strides = array<i32>} : memref<16x64xf32, #tpu.memory_space<vmem>>, vector<16x16xf32>,
    %c0_14 = arith.constant 0 : index
    %c0_15 = arith.constant 0 : index
    %c16 = arith.constant 16 : index
    %22 = vector.load %arg2[%c0_14, %c0_15, %c16] : memref<1x16x64xbf16, #tpu.memory_space<vmem>>, vector<1x16x16xbf16>
    %23 = vector.shape_cast %22 : vector<1x16x16xbf16> to vector<16x16xbf16>
    %c0_16 = arith.constant 0 : index
    %c0_17 = arith.constant 0 : index
    %c16_18 = arith.constant 16 : index
    %24 = vector.load %arg3[%c0_16, %c0_17, %c16_18] : memref<1x8x64xbf16, #tpu.memory_space<vmem>>, vector<1x8x16xbf16>
    %25 = vector.shape_cast %24 : vector<1x8x16xbf16> to vector<8x16xbf16>
    %c0_19 = arith.constant 0 : index
    %c0_20 = arith.constant 0 : index
    %c16_21 = arith.constant 16 : index
    %26 = vector.load %arg4[%c0_19, %c0_20, %c16_21] : memref<1x8x64xbf16, #tpu.memory_space<vmem>>, vector<1x8x16xbf16>
    %27 = vector.shape_cast %26 : vector<1x8x16xbf16> to vector<8x16xbf16>
    %cst_22 = arith.constant dense<0.000000e+00> : vector<16x8xf32>
    %28 = tpu.matmul %23, %25, %cst_22 {dimension_numbers = #tpu.dot_dimension_numbers<[1], [1], [0], [0], [0, 0, 1, 0], [], []>} : vector<16x16xbf16>, vector<8x16xbf16>, vector<16x8xf32> -> vector<16x8xf32>
    %cst_23 = arith.constant 2.500000e-01 : f32
    %29 = vector.broadcast %cst_23 : f32 to vector<16x8xf32>
    %30 = arith.mulf %28, %29 : vector<16x8xf32>
    %cst_24 = arith.constant dense<0xFF800000> : vector<16xf32>
    %31 = vector.multi_reduction <maximumf>, %30, %cst_24 [1] : vector<16x8xf32> to vector<16xf32>
    %32 = vector.shape_cast %31 : vector<16xf32> to vector<16x1xf32>
    %33 = vector.broadcast %32 : vector<16x1xf32> to vector<16x8xf32>
    %34 = arith.subf %30, %33 : vector<16x8xf32>
    %35 = math.exp %34 : vector<16x8xf32>
    %cst_25 = arith.constant dense<0.000000e+00> : vector<16xf32>
    %36 = vector.multi_reduction <add>, %35, %cst_25 [1] : vector<16x8xf32> to vector<16xf32>
    %37 = vector.shape_cast %36 : vector<16xf32> to vector<16x1xf32>
    %38 = arith.truncf %35 : vector<16x8xf32> to vector<16x8xbf16>
    %cst_26 = arith.constant dense<0.000000e+00> : vector<16x16xf32>
    %39 = tpu.matmul %38, %27, %cst_26 {dimension_numbers = #tpu.dot_dimension_numbers<[1], [0], [0], [1], [0, 0, 1, 1], [], []>} : vector<16x8xbf16>, vector<8x16xbf16>, vector<16x16xf32> -> vector<16x16xf32>
    %40 = tpu.reciprocal %37 : vector<16x1xf32> -> vector<16x1xf32>
    %41 = vector.broadcast %40 : vector<16x1xf32> to vector<16x16xf32>
    %42 = arith.mulf %39, %41 : vector<16x16xf32>
    %c0_27 = arith.constant 0 : index
    %c16_28 = arith.constant 16 : index
    %43 = vector.load %arg6[%c0_27, %c16_28] : memref<16x64xf32, #tpu.memory_space<vmem>>, vector<16x16xf32>
    tpu.vector_store %arg6[%c0_27, %c16_28], %42 {strides = array<i32>} : memref<16x64xf32, #tpu.memory_space<vmem>>, vector<16x16xf32>,
    %c0_29 = arith.constant 0 : index
    %c0_30 = arith.constant 0 : index
    %c32 = arith.constant 32 : index
    %44 = vector.load %arg2[%c0_29, %c0_30, %c32] : memref<1x16x64xbf16, #tpu.memory_space<vmem>>, vector<1x16x16xbf16>
    %45 = vector.shape_cast %44 : vector<1x16x16xbf16> to vector<16x16xbf16>
    %c0_31 = arith.constant 0 : index
    %c0_32 = arith.constant 0 : index
    %c32_33 = arith.constant 32 : index
    %46 = vector.load %arg3[%c0_31, %c0_32, %c32_33] : memref<1x8x64xbf16, #tpu.memory_space<vmem>>, vector<1x8x16xbf16>
    %47 = vector.shape_cast %46 : vector<1x8x16xbf16> to vector<8x16xbf16>
    %c0_34 = arith.constant 0 : index
    %c0_35 = arith.constant 0 : index
    %c32_36 = arith.constant 32 : index
    %48 = vector.load %arg4[%c0_34, %c0_35, %c32_36] : memref<1x8x64xbf16, #tpu.memory_space<vmem>>, vector<1x8x16xbf16>
    %49 = vector.shape_cast %48 : vector<1x8x16xbf16> to vector<8x16xbf16>
    %cst_37 = arith.constant dense<0.000000e+00> : vector<16x8xf32>
    %50 = tpu.matmul %45, %47, %cst_37 {dimension_numbers = #tpu.dot_dimension_numbers<[1], [1], [0], [0], [0, 0, 1, 0], [], []>} : vector<16x16xbf16>, vector<8x16xbf16>, vector<16x8xf32> -> vector<16x8xf32>
    %cst_38 = arith.constant 2.500000e-01 : f32
    %51 = vector.broadcast %cst_38 : f32 to vector<16x8xf32>
    %52 = arith.mulf %50, %51 : vector<16x8xf32>
    %cst_39 = arith.constant dense<0xFF800000> : vector<16xf32>
    %53 = vector.multi_reduction <maximumf>, %52, %cst_39 [1] : vector<16x8xf32> to vector<16xf32>
    %54 = vector.shape_cast %53 : vector<16xf32> to vector<16x1xf32>
    %55 = vector.broadcast %54 : vector<16x1xf32> to vector<16x8xf32>
    %56 = arith.subf %52, %55 : vector<16x8xf32>
    %57 = math.exp %56 : vector<16x8xf32>
    %cst_40 = arith.constant dense<0.000000e+00> : vector<16xf32>
    %58 = vector.multi_reduction <add>, %57, %cst_40 [1] : vector<16x8xf32> to vector<16xf32>
    %59 = vector.shape_cast %58 : vector<16xf32> to vector<16x1xf32>
    %60 = arith.truncf %57 : vector<16x8xf32> to vector<16x8xbf16>
    %cst_41 = arith.constant dense<0.000000e+00> : vector<16x16xf32>
    %61 = tpu.matmul %60, %49, %cst_41 {dimension_numbers = #tpu.dot_dimension_numbers<[1], [0], [0], [1], [0, 0, 1, 1], [], []>} : vector<16x8xbf16>, vector<8x16xbf16>, vector<16x16xf32> -> vector<16x16xf32>
    %62 = tpu.reciprocal %59 : vector<16x1xf32> -> vector<16x1xf32>
    %63 = vector.broadcast %62 : vector<16x1xf32> to vector<16x16xf32>
    %64 = arith.mulf %61, %63 : vector<16x16xf32>
    %c0_42 = arith.constant 0 : index
    %c32_43 = arith.constant 32 : index
    %65 = vector.load %arg6[%c0_42, %c32_43] : memref<16x64xf32, #tpu.memory_space<vmem>>, vector<16x16xf32>
    tpu.vector_store %arg6[%c0_42, %c32_43], %64 {strides = array<i32>} : memref<16x64xf32, #tpu.memory_space<vmem>>, vector<16x16xf32>,
    %c0_44 = arith.constant 0 : index
    %c0_45 = arith.constant 0 : index
    %c48 = arith.constant 48 : index
    %66 = vector.load %arg2[%c0_44, %c0_45, %c48] : memref<1x16x64xbf16, #tpu.memory_space<vmem>>, vector<1x16x16xbf16>
    %67 = vector.shape_cast %66 : vector<1x16x16xbf16> to vector<16x16xbf16>
    %c0_46 = arith.constant 0 : index
    %c0_47 = arith.constant 0 : index
    %c48_48 = arith.constant 48 : index
    %68 = vector.load %arg3[%c0_46, %c0_47, %c48_48] : memref<1x8x64xbf16, #tpu.memory_space<vmem>>, vector<1x8x16xbf16>
    %69 = vector.shape_cast %68 : vector<1x8x16xbf16> to vector<8x16xbf16>
    %c0_49 = arith.constant 0 : index
    %c0_50 = arith.constant 0 : index
    %c48_51 = arith.constant 48 : index
    %70 = vector.load %arg4[%c0_49, %c0_50, %c48_51] : memref<1x8x64xbf16, #tpu.memory_space<vmem>>, vector<1x8x16xbf16>
    %71 = vector.shape_cast %70 : vector<1x8x16xbf16> to vector<8x16xbf16>
    %cst_52 = arith.constant dense<0.000000e+00> : vector<16x8xf32>
    %72 = tpu.matmul %67, %69, %cst_52 {dimension_numbers = #tpu.dot_dimension_numbers<[1], [1], [0], [0], [0, 0, 1, 0], [], []>} : vector<16x16xbf16>, vector<8x16xbf16>, vector<16x8xf32> -> vector<16x8xf32>
    %cst_53 = arith.constant 2.500000e-01 : f32
    %73 = vector.broadcast %cst_53 : f32 to vector<16x8xf32>
    %74 = arith.mulf %72, %73 : vector<16x8xf32>
    %cst_54 = arith.constant dense<0xFF800000> : vector<16xf32>
    %75 = vector.multi_reduction <maximumf>, %74, %cst_54 [1] : vector<16x8xf32> to vector<16xf32>
    %76 = vector.shape_cast %75 : vector<16xf32> to vector<16x1xf32>
    %77 = vector.broadcast %76 : vector<16x1xf32> to vector<16x8xf32>
    %78 = arith.subf %74, %77 : vector<16x8xf32>
    %79 = math.exp %78 : vector<16x8xf32>
    %cst_55 = arith.constant dense<0.000000e+00> : vector<16xf32>
    %80 = vector.multi_reduction <add>, %79, %cst_55 [1] : vector<16x8xf32> to vector<16xf32>
    %81 = vector.shape_cast %80 : vector<16xf32> to vector<16x1xf32>
    %82 = arith.truncf %79 : vector<16x8xf32> to vector<16x8xbf16>
    %cst_56 = arith.constant dense<0.000000e+00> : vector<16x16xf32>
    %83 = tpu.matmul %82, %71, %cst_56 {dimension_numbers = #tpu.dot_dimension_numbers<[1], [0], [0], [1], [0, 0, 1, 1], [], []>} : vector<16x8xbf16>, vector<8x16xbf16>, vector<16x16xf32> -> vector<16x16xf32>
    %84 = tpu.reciprocal %81 : vector<16x1xf32> -> vector<16x1xf32>
    %85 = vector.broadcast %84 : vector<16x1xf32> to vector<16x16xf32>
    %86 = arith.mulf %83, %85 : vector<16x16xf32>
    %c0_57 = arith.constant 0 : index
    %c48_58 = arith.constant 48 : index
    %87 = vector.load %arg6[%c0_57, %c48_58] : memref<16x64xf32, #tpu.memory_space<vmem>>, vector<16x16xf32>
    tpu.vector_store %arg6[%c0_57, %c48_58], %86 {strides = array<i32>} : memref<16x64xf32, #tpu.memory_space<vmem>>, vector<16x16xf32>,
    %c0_59 = arith.constant 0 : index
    %c0_60 = arith.constant 0 : index
    %88 = vector.load %arg6[%c0_59, %c0_60] : memref<16x64xf32, #tpu.memory_space<vmem>>, vector<16x64xf32>
    %89 = arith.truncf %88 : vector<16x64xf32> to vector<16x64xbf16>
    %c0_61 = arith.constant 0 : index
    %c0_62 = arith.constant 0 : index
    %c0_63 = arith.constant 0 : index
    %90 = vector.load %arg5[%c0_61, %c0_62, %c0_63] : memref<1x16x64xbf16, #tpu.memory_space<vmem>>, vector<1x16x64xbf16>
    %91 = vector.shape_cast %90 : vector<1x16x64xbf16> to vector<16x64xbf16>
    %92 = vector.shape_cast %89 : vector<16x64xbf16> to vector<1x16x64xbf16>
    tpu.vector_store %arg5[%c0_61, %c0_62, %c0_63], %92 {strides = array<i32>} : memref<1x16x64xbf16, #tpu.memory_space<vmem>>, vector<1x16x64xbf16>,
    return
  }
  func.func @transform_0(%arg0: i32, %arg1: i32) -> (i32, i32, i32) {
    %c0_i32 = arith.constant 0 : i32
    %c0_i32_0 = arith.constant 0 : i32
    return %arg0, %arg1, %c0_i32 : i32, i32, i32
  }
  func.func @transform_1(%arg0: i32, %arg1: i32) -> (i32, i32, i32) {
    %c0_i32 = arith.constant 0 : i32
    %c0_i32_0 = arith.constant 0 : i32
    %c0_i32_1 = arith.constant 0 : i32
    return %arg0, %c0_i32, %c0_i32_0 : i32, i32, i32
  }
  func.func @transform_2(%arg0: i32, %arg1: i32) -> (i32, i32, i32) {
    %c0_i32 = arith.constant 0 : i32
    %c0_i32_0 = arith.constant 0 : i32
    %c0_i32_1 = arith.constant 0 : i32
    return %arg0, %c0_i32, %c0_i32_0 : i32, i32, i32
  }
  func.func @transform_3(%arg0: i32, %arg1: i32) -> (i32, i32, i32) {
    %c0_i32 = arith.constant 0 : i32
    %c0_i32_0 = arith.constant 0 : i32
    return %arg0, %arg1, %c0_i32 : i32, i32, i32
  }
}

module attributes {stable_mosaic.version = 11 : i64} {
  func.func @kernel(%arg0: i32, %arg1: i32, %arg2: i32, %arg3: i32, %arg4: memref<1x16x64xbf16, #tpu.memory_space<vmem>>, %arg5: memref<64x64xbf16, #tpu.memory_space<vmem>>, %arg6: memref<1x64xf32, #tpu.memory_space<vmem>>, %arg7: memref<1x16x64xf32, #tpu.memory_space<vmem>>, %arg8: memref<1x16x64xf32, #tpu.memory_space<vmem>>) attributes {dimension_semantics = [#tpu.dimension_semantics<parallel>, #tpu.dimension_semantics<parallel>, #tpu.dimension_semantics<parallel>, #tpu.dimension_semantics<arbitrary>], iteration_bounds = array<i64: 2, 1, 1, 1>, scalar_prefetch = 0 : i64, scratch_operands = 0 : i64, tpu.core_type = #tpu.core_type<tc>, window_params = [{transform_indices = @transform_0, window_bounds = array<i64: 1, 16, 64>}, {transform_indices = @transform_1, window_bounds = array<i64: 64, 64>}, {transform_indices = @transform_2, window_bounds = array<i64: 1, 64>}, {transform_indices = @transform_3, window_bounds = array<i64: 1, 16, 64>}, {transform_indices = @transform_4, window_bounds = array<i64: 1, 16, 64>}]} {
    %c0_i32 = arith.constant 0 : i32
    %0 = arith.cmpi eq, %arg3, %c0_i32 : i32
    %1 = arith.extui %0 : i1 to i32
    %c0_i32_0 = arith.constant 0 : i32
    %2 = arith.cmpi ne, %1, %c0_i32_0 : i32
    scf.if %2 {
      %cst_13 = arith.constant 0.000000e+00 : f32
      %16 = vector.broadcast %cst_13 : f32 to vector<16x64xf32>
      %c0_14 = arith.constant 0 : index
      %c0_15 = arith.constant 0 : index
      %c0_16 = arith.constant 0 : index
      %17 = vector.load %arg8[%c0_14, %c0_15, %c0_16] : memref<1x16x64xf32, #tpu.memory_space<vmem>>, vector<1x16x64xf32>
      %18 = vector.shape_cast %17 : vector<1x16x64xf32> to vector<16x64xf32>
      %19 = vector.shape_cast %16 : vector<16x64xf32> to vector<1x16x64xf32>
      tpu.vector_store %arg8[%c0_14, %c0_15, %c0_16], %19 {strides = array<i32>} : memref<1x16x64xf32, #tpu.memory_space<vmem>>, vector<1x16x64xf32>,
    } else {
    }
    %c0 = arith.constant 0 : index
    %c0_1 = arith.constant 0 : index
    %c0_2 = arith.constant 0 : index
    %3 = vector.load %arg4[%c0, %c0_1, %c0_2] : memref<1x16x64xbf16, #tpu.memory_space<vmem>>, vector<1x16x64xbf16>
    %4 = vector.shape_cast %3 : vector<1x16x64xbf16> to vector<16x64xbf16>
    %c0_3 = arith.constant 0 : index
    %c0_4 = arith.constant 0 : index
    %c0_5 = arith.constant 0 : index
    %5 = vector.load %arg8[%c0_3, %c0_4, %c0_5] : memref<1x16x64xf32, #tpu.memory_space<vmem>>, vector<1x16x64xf32>
    %6 = vector.shape_cast %5 : vector<1x16x64xf32> to vector<16x64xf32>
    %c0_6 = arith.constant 0 : index
    %c0_7 = arith.constant 0 : index
    %7 = vector.load %arg5[%c0_6, %c0_7] : memref<64x64xbf16, #tpu.memory_space<vmem>>, vector<64x64xbf16>
    %cst = arith.constant dense<0.000000e+00> : vector<16x64xf32>
    %8 = tpu.matmul %4, %7, %cst {dimension_numbers = #tpu.dot_dimension_numbers<[1], [0], [0], [1], [0, 0, 1, 1], [], []>} : vector<16x64xbf16>, vector<64x64xbf16>, vector<16x64xf32> -> vector<16x64xf32>
    %9 = arith.addf %6, %8 : vector<16x64xf32>
    %c0_8 = arith.constant 0 : index
    %c0_9 = arith.constant 0 : index
    %c0_10 = arith.constant 0 : index
    %10 = vector.load %arg8[%c0_8, %c0_9, %c0_10] : memref<1x16x64xf32, #tpu.memory_space<vmem>>, vector<1x16x64xf32>
    %11 = vector.shape_cast %10 : vector<1x16x64xf32> to vector<16x64xf32>
    %12 = vector.shape_cast %9 : vector<16x64xf32> to vector<1x16x64xf32>
    tpu.vector_store %arg8[%c0_8, %c0_9, %c0_10], %12 {strides = array<i32>} : memref<1x16x64xf32, #tpu.memory_space<vmem>>, vector<1x16x64xf32>,
    %c0_i32_11 = arith.constant 0 : i32
    %13 = arith.cmpi eq, %arg3, %c0_i32_11 : i32
    %14 = arith.extui %13 : i1 to i32
    %c0_i32_12 = arith.constant 0 : i32
    %15 = arith.cmpi ne, %14, %c0_i32_12 : i32
    scf.if %15 {
      %c0_13 = arith.constant 0 : index
      %c0_14 = arith.constant 0 : index
      %c0_15 = arith.constant 0 : index
      %16 = vector.load %arg8[%c0_13, %c0_14, %c0_15] : memref<1x16x64xf32, #tpu.memory_space<vmem>>, vector<1x16x64xf32>
      %17 = vector.shape_cast %16 : vector<1x16x64xf32> to vector<16x64xf32>
      %c0_16 = arith.constant 0 : index
      %c0_17 = arith.constant 0 : index
      %18 = vector.load %arg6[%c0_16, %c0_17] : memref<1x64xf32, #tpu.memory_space<vmem>>, vector<1x64xf32>
      %19 = vector.broadcast %18 : vector<1x64xf32> to vector<16x64xf32>
      %20 = arith.addf %17, %19 : vector<16x64xf32>
      %c0_18 = arith.constant 0 : index
      %c0_19 = arith.constant 0 : index
      %c0_20 = arith.constant 0 : index
      %21 = vector.load %arg7[%c0_18, %c0_19, %c0_20] : memref<1x16x64xf32, #tpu.memory_space<vmem>>, vector<1x16x64xf32>
      %22 = vector.shape_cast %21 : vector<1x16x64xf32> to vector<16x64xf32>
      %23 = arith.addf %22, %20 : vector<16x64xf32>
      %c0_21 = arith.constant 0 : index
      %c0_22 = arith.constant 0 : index
      %c0_23 = arith.constant 0 : index
      %24 = vector.load %arg8[%c0_21, %c0_22, %c0_23] : memref<1x16x64xf32, #tpu.memory_space<vmem>>, vector<1x16x64xf32>
      %25 = vector.shape_cast %24 : vector<1x16x64xf32> to vector<16x64xf32>
      %26 = vector.shape_cast %23 : vector<16x64xf32> to vector<1x16x64xf32>
      tpu.vector_store %arg8[%c0_21, %c0_22, %c0_23], %26 {strides = array<i32>} : memref<1x16x64xf32, #tpu.memory_space<vmem>>, vector<1x16x64xf32>,
    } else {
    }
    return
  }
  func.func @transform_0(%arg0: i32, %arg1: i32, %arg2: i32, %arg3: i32) -> (i32, i32, i32) {
    %c0_i32 = arith.constant 0 : i32
    return %arg0, %arg1, %arg3 : i32, i32, i32
  }
  func.func @transform_1(%arg0: i32, %arg1: i32, %arg2: i32, %arg3: i32) -> (i32, i32) {
    %c0_i32 = arith.constant 0 : i32
    return %arg3, %arg2 : i32, i32
  }
  func.func @transform_2(%arg0: i32, %arg1: i32, %arg2: i32, %arg3: i32) -> (i32, i32) {
    %c0_i32 = arith.constant 0 : i32
    %c0_i32_0 = arith.constant 0 : i32
    return %c0_i32, %arg2 : i32, i32
  }
  func.func @transform_3(%arg0: i32, %arg1: i32, %arg2: i32, %arg3: i32) -> (i32, i32, i32) {
    %c0_i32 = arith.constant 0 : i32
    return %arg0, %arg1, %arg2 : i32, i32, i32
  }
  func.func @transform_4(%arg0: i32, %arg1: i32, %arg2: i32, %arg3: i32) -> (i32, i32, i32) {
    %c0_i32 = arith.constant 0 : i32
    return %arg0, %arg1, %arg2 : i32, i32, i32
  }
}

module attributes {stable_mosaic.version = 11 : i64} {
  func.func @kernel(%arg0: i32, %arg1: i32, %arg2: i32, %arg3: memref<1x16x64xf32, #tpu.memory_space<vmem>>, %arg4: memref<1x1x64xf32, #tpu.memory_space<vmem>>, %arg5: memref<1x1x64xf32, #tpu.memory_space<vmem>>, %arg6: memref<64x256xbf16, #tpu.memory_space<vmem>>, %arg7: memref<1x256xf32, #tpu.memory_space<vmem>>, %arg8: memref<1x16x256xbf16, #tpu.memory_space<vmem>>, %arg9: memref<16x64xbf16, #tpu.memory_space<vmem>>) attributes {dimension_semantics = [#tpu.dimension_semantics<parallel>, #tpu.dimension_semantics<parallel>, #tpu.dimension_semantics<arbitrary>], iteration_bounds = array<i64: 2, 1, 1>, scalar_prefetch = 0 : i64, scratch_operands = 1 : i64, tpu.core_type = #tpu.core_type<tc>, window_params = [{transform_indices = @transform_0, window_bounds = array<i64: 1, 16, 64>}, {transform_indices = @transform_1, window_bounds = array<i64: 1, 1, 64>}, {transform_indices = @transform_2, window_bounds = array<i64: 1, 1, 64>}, {transform_indices = @transform_3, window_bounds = array<i64: 64, 256>}, {transform_indices = @transform_4, window_bounds = array<i64: 1, 256>}, {transform_indices = @transform_5, window_bounds = array<i64: 1, 16, 256>}]} {
    %c0_i32 = arith.constant 0 : i32
    %0 = arith.cmpi eq, %arg2, %c0_i32 : i32
    %1 = arith.extui %0 : i1 to i32
    %c0_i32_0 = arith.constant 0 : i32
    %2 = arith.cmpi ne, %1, %c0_i32_0 : i32
    scf.if %2 {
      %c0_13 = arith.constant 0 : index
      %c0_14 = arith.constant 0 : index
      %c0_15 = arith.constant 0 : index
      %26 = vector.load %arg3[%c0_13, %c0_14, %c0_15] : memref<1x16x64xf32, #tpu.memory_space<vmem>>, vector<1x16x64xf32>
      %27 = vector.shape_cast %26 : vector<1x16x64xf32> to vector<16x64xf32>
      %cst_16 = arith.constant dense<0.000000e+00> : vector<16xf32>
      %28 = vector.multi_reduction <add>, %27, %cst_16 [1] : vector<16x64xf32> to vector<16xf32>
      %29 = vector.shape_cast %28 : vector<16xf32> to vector<16x1xf32>
      %cst_17 = arith.constant 6.400000e+01 : f32
      %30 = vector.broadcast %cst_17 : f32 to vector<16x1xf32>
      %31 = arith.divf %29, %30 : vector<16x1xf32>
      %32 = vector.broadcast %31 : vector<16x1xf32> to vector<16x64xf32>
      %33 = arith.subf %27, %32 : vector<16x64xf32>
      %34 = arith.mulf %33, %33 : vector<16x64xf32>
      %cst_18 = arith.constant dense<0.000000e+00> : vector<16xf32>
      %35 = vector.multi_reduction <add>, %34, %cst_18 [1] : vector<16x64xf32> to vector<16xf32>
      %36 = vector.shape_cast %35 : vector<16xf32> to vector<16x1xf32>
      %cst_19 = arith.constant 6.400000e+01 : f32
      %37 = vector.broadcast %cst_19 : f32 to vector<16x1xf32>
      %38 = arith.divf %36, %37 : vector<16x1xf32>
      %39 = vector.broadcast %31 : vector<16x1xf32> to vector<16x64xf32>
      %40 = arith.subf %27, %39 : vector<16x64xf32>
      %cst_20 = arith.constant 9.99999997E-7 : f32
      %41 = vector.broadcast %cst_20 : f32 to vector<16x1xf32>
      %42 = arith.addf %38, %41 : vector<16x1xf32>
      %43 = math.rsqrt %42 : vector<16x1xf32>
      %44 = vector.broadcast %43 : vector<16x1xf32> to vector<16x64xf32>
      %45 = arith.mulf %40, %44 : vector<16x64xf32>
      %c0_21 = arith.constant 0 : index
      %c0_22 = arith.constant 0 : index
      %c0_23 = arith.constant 0 : index
      %46 = vector.load %arg5[%c0_21, %c0_22, %c0_23] : memref<1x1x64xf32, #tpu.memory_space<vmem>>, vector<1x1x64xf32>
      %47 = vector.shape_cast %46 : vector<1x1x64xf32> to vector<1x64xf32>
      %cst_24 = arith.constant 1.000000e+00 : f32
      %48 = vector.broadcast %cst_24 : f32 to vector<1x64xf32>
      %49 = arith.addf %48, %47 : vector<1x64xf32>
      %50 = vector.broadcast %49 : vector<1x64xf32> to vector<16x64xf32>
      %51 = arith.mulf %45, %50 : vector<16x64xf32>
      %c0_25 = arith.constant 0 : index
      %c0_26 = arith.constant 0 : index
      %c0_27 = arith.constant 0 : index
      %52 = vector.load %arg4[%c0_25, %c0_26, %c0_27] : memref<1x1x64xf32, #tpu.memory_space<vmem>>, vector<1x1x64xf32>
      %53 = vector.shape_cast %52 : vector<1x1x64xf32> to vector<1x64xf32>
      %54 = vector.broadcast %53 : vector<1x64xf32> to vector<16x64xf32>
      %55 = arith.addf %51, %54 : vector<16x64xf32>
      %56 = arith.truncf %55 : vector<16x64xf32> to vector<16x64xbf16>
      %c0_28 = arith.constant 0 : index
      %c0_29 = arith.constant 0 : index
      %57 = vector.load %arg9[%c0_28, %c0_29] : memref<16x64xbf16, #tpu.memory_space<vmem>>, vector<16x64xbf16>
      tpu.vector_store %arg9[%c0_28, %c0_29], %56 {strides = array<i32>} : memref<16x64xbf16, #tpu.memory_space<vmem>>, vector<16x64xbf16>,
    } else {
    }
    %c0 = arith.constant 0 : index
    %c0_1 = arith.constant 0 : index
    %3 = vector.load %arg9[%c0, %c0_1] : memref<16x64xbf16, #tpu.memory_space<vmem>>, vector<16x64xbf16>
    %c0_2 = arith.constant 0 : index
    %c0_3 = arith.constant 0 : index
    %4 = vector.load %arg6[%c0_2, %c0_3] : memref<64x256xbf16, #tpu.memory_space<vmem>>, vector<64x256xbf16>
    %cst = arith.constant dense<0.000000e+00> : vector<16x256xf32>
    %5 = tpu.matmul %3, %4, %cst {dimension_numbers = #tpu.dot_dimension_numbers<[1], [0], [0], [1], [0, 0, 1, 1], [], []>} : vector<16x64xbf16>, vector<64x256xbf16>, vector<16x256xf32> -> vector<16x256xf32>
    %c0_4 = arith.constant 0 : index
    %c0_5 = arith.constant 0 : index
    %6 = vector.load %arg7[%c0_4, %c0_5] : memref<1x256xf32, #tpu.memory_space<vmem>>, vector<1x256xf32>
    %7 = vector.broadcast %6 : vector<1x256xf32> to vector<16x256xf32>
    %8 = arith.addf %5, %7 : vector<16x256xf32>
    %cst_6 = arith.constant 5.000000e-01 : f32
    %9 = vector.broadcast %cst_6 : f32 to vector<16x256xf32>
    %10 = arith.mulf %9, %8 : vector<16x256xf32>
    %cst_7 = arith.constant 4.471500e-02 : f32
    %11 = vector.broadcast %cst_7 : f32 to vector<16x256xf32>
    %12 = arith.mulf %11, %8 : vector<16x256xf32>
    %13 = arith.mulf %12, %8 : vector<16x256xf32>
    %14 = arith.mulf %13, %8 : vector<16x256xf32>
    %15 = arith.addf %8, %14 : vector<16x256xf32>
    %cst_8 = arith.constant 0.797884583 : f32
    %16 = vector.broadcast %cst_8 : f32 to vector<16x256xf32>
    %17 = arith.mulf %16, %15 : vector<16x256xf32>
    %18 = math.tanh %17 : vector<16x256xf32>
    %cst_9 = arith.constant 1.000000e+00 : f32
    %19 = vector.broadcast %cst_9 : f32 to vector<16x256xf32>
    %20 = arith.addf %19, %18 : vector<16x256xf32>
    %21 = arith.mulf %10, %20 : vector<16x256xf32>
    %22 = arith.truncf %21 : vector<16x256xf32> to vector<16x256xbf16>
    %c0_10 = arith.constant 0 : index
    %c0_11 = arith.constant 0 : index
    %c0_12 = arith.constant 0 : index
    %23 = vector.load %arg8[%c0_10, %c0_11, %c0_12] : memref<1x16x256xbf16, #tpu.memory_space<vmem>>, vector<1x16x256xbf16>
    %24 = vector.shape_cast %23 : vector<1x16x256xbf16> to vector<16x256xbf16>
    %25 = vector.shape_cast %22 : vector<16x256xbf16> to vector<1x16x256xbf16>
    tpu.vector_store %arg8[%c0_10, %c0_11, %c0_12], %25 {strides = array<i32>} : memref<1x16x256xbf16, #tpu.memory_space<vmem>>, vector<1x16x256xbf16>,
    return
  }
  func.func @transform_0(%arg0: i32, %arg1: i32, %arg2: i32) -> (i32, i32, i32) {
    %c0_i32 = arith.constant 0 : i32
    %c0_i32_0 = arith.constant 0 : i32
    return %arg0, %arg1, %c0_i32 : i32, i32, i32
  }
  func.func @transform_1(%arg0: i32, %arg1: i32, %arg2: i32) -> (i32, i32, i32) {
    %c0_i32 = arith.constant 0 : i32
    %c0_i32_0 = arith.constant 0 : i32
    %c0_i32_1 = arith.constant 0 : i32
    return %arg0, %c0_i32, %c0_i32_0 : i32, i32, i32
  }
  func.func @transform_2(%arg0: i32, %arg1: i32, %arg2: i32) -> (i32, i32, i32) {
    %c0_i32 = arith.constant 0 : i32
    %c0_i32_0 = arith.constant 0 : i32
    %c0_i32_1 = arith.constant 0 : i32
    return %arg0, %c0_i32, %c0_i32_0 : i32, i32, i32
  }
  func.func @transform_3(%arg0: i32, %arg1: i32, %arg2: i32) -> (i32, i32) {
    %c0_i32 = arith.constant 0 : i32
    %c0_i32_0 = arith.constant 0 : i32
    return %c0_i32, %arg2 : i32, i32
  }
  func.func @transform_4(%arg0: i32, %arg1: i32, %arg2: i32) -> (i32, i32) {
    %c0_i32 = arith.constant 0 : i32
    %c0_i32_0 = arith.constant 0 : i32
    return %c0_i32, %arg2 : i32, i32
  }
  func.func @transform_5(%arg0: i32, %arg1: i32, %arg2: i32) -> (i32, i32, i32) {
    %c0_i32 = arith.constant 0 : i32
    return %arg0, %arg1, %arg2 : i32, i32, i32
  }
}

module attributes {stable_mosaic.version = 11 : i64} {
  func.func @kernel(%arg0: i32, %arg1: i32, %arg2: i32, %arg3: i32, %arg4: memref<1x16x256xbf16, #tpu.memory_space<vmem>>, %arg5: memref<256x64xbf16, #tpu.memory_space<vmem>>, %arg6: memref<1x64xf32, #tpu.memory_space<vmem>>, %arg7: memref<1x16x64xf32, #tpu.memory_space<vmem>>, %arg8: memref<1x1x64xf32, #tpu.memory_space<vmem>>, %arg9: memref<1x16x64xf32, #tpu.memory_space<vmem>>) attributes {dimension_semantics = [#tpu.dimension_semantics<parallel>, #tpu.dimension_semantics<parallel>, #tpu.dimension_semantics<parallel>, #tpu.dimension_semantics<arbitrary>], iteration_bounds = array<i64: 2, 1, 1, 1>, scalar_prefetch = 0 : i64, scratch_operands = 0 : i64, tpu.core_type = #tpu.core_type<tc>, window_params = [{transform_indices = @transform_0, window_bounds = array<i64: 1, 16, 256>}, {transform_indices = @transform_1, window_bounds = array<i64: 256, 64>}, {transform_indices = @transform_2, window_bounds = array<i64: 1, 64>}, {transform_indices = @transform_3, window_bounds = array<i64: 1, 16, 64>}, {transform_indices = @transform_4, window_bounds = array<i64: 1, 1, 64>}, {transform_indices = @transform_5, window_bounds = array<i64: 1, 16, 64>}]} {
    %c0_i32 = arith.constant 0 : i32
    %0 = arith.cmpi eq, %arg3, %c0_i32 : i32
    %1 = arith.extui %0 : i1 to i32
    %c0_i32_0 = arith.constant 0 : i32
    %2 = arith.cmpi ne, %1, %c0_i32_0 : i32
    scf.if %2 {
      %cst_13 = arith.constant 0.000000e+00 : f32
      %16 = vector.broadcast %cst_13 : f32 to vector<16x64xf32>
      %c0_14 = arith.constant 0 : index
      %c0_15 = arith.constant 0 : index
      %c0_16 = arith.constant 0 : index
      %17 = vector.load %arg9[%c0_14, %c0_15, %c0_16] : memref<1x16x64xf32, #tpu.memory_space<vmem>>, vector<1x16x64xf32>
      %18 = vector.shape_cast %17 : vector<1x16x64xf32> to vector<16x64xf32>
      %19 = vector.shape_cast %16 : vector<16x64xf32> to vector<1x16x64xf32>
      tpu.vector_store %arg9[%c0_14, %c0_15, %c0_16], %19 {strides = array<i32>} : memref<1x16x64xf32, #tpu.memory_space<vmem>>, vector<1x16x64xf32>,
    } else {
    }
    %c0 = arith.constant 0 : index
    %c0_1 = arith.constant 0 : index
    %c0_2 = arith.constant 0 : index
    %3 = vector.load %arg4[%c0, %c0_1, %c0_2] : memref<1x16x256xbf16, #tpu.memory_space<vmem>>, vector<1x16x256xbf16>
    %4 = vector.shape_cast %3 : vector<1x16x256xbf16> to vector<16x256xbf16>
    %c0_3 = arith.constant 0 : index
    %c0_4 = arith.constant 0 : index
    %c0_5 = arith.constant 0 : index
    %5 = vector.load %arg9[%c0_3, %c0_4, %c0_5] : memref<1x16x64xf32, #tpu.memory_space<vmem>>, vector<1x16x64xf32>
    %6 = vector.shape_cast %5 : vector<1x16x64xf32> to vector<16x64xf32>
    %c0_6 = arith.constant 0 : index
    %c0_7 = arith.constant 0 : index
    %7 = vector.load %arg5[%c0_6, %c0_7] : memref<256x64xbf16, #tpu.memory_space<vmem>>, vector<256x64xbf16>
    %cst = arith.constant dense<0.000000e+00> : vector<16x64xf32>
    %8 = tpu.matmul %4, %7, %cst {dimension_numbers = #tpu.dot_dimension_numbers<[1], [0], [0], [1], [0, 0, 1, 1], [], []>} : vector<16x256xbf16>, vector<256x64xbf16>, vector<16x64xf32> -> vector<16x64xf32>
    %9 = arith.addf %6, %8 : vector<16x64xf32>
    %c0_8 = arith.constant 0 : index
    %c0_9 = arith.constant 0 : index
    %c0_10 = arith.constant 0 : index
    %10 = vector.load %arg9[%c0_8, %c0_9, %c0_10] : memref<1x16x64xf32, #tpu.memory_space<vmem>>, vector<1x16x64xf32>
    %11 = vector.shape_cast %10 : vector<1x16x64xf32> to vector<16x64xf32>
    %12 = vector.shape_cast %9 : vector<16x64xf32> to vector<1x16x64xf32>
    tpu.vector_store %arg9[%c0_8, %c0_9, %c0_10], %12 {strides = array<i32>} : memref<1x16x64xf32, #tpu.memory_space<vmem>>, vector<1x16x64xf32>,
    %c0_i32_11 = arith.constant 0 : i32
    %13 = arith.cmpi eq, %arg3, %c0_i32_11 : i32
    %14 = arith.extui %13 : i1 to i32
    %c0_i32_12 = arith.constant 0 : i32
    %15 = arith.cmpi ne, %14, %c0_i32_12 : i32
    scf.if %15 {
      %c0_13 = arith.constant 0 : index
      %c0_14 = arith.constant 0 : index
      %c0_15 = arith.constant 0 : index
      %16 = vector.load %arg9[%c0_13, %c0_14, %c0_15] : memref<1x16x64xf32, #tpu.memory_space<vmem>>, vector<1x16x64xf32>
      %17 = vector.shape_cast %16 : vector<1x16x64xf32> to vector<16x64xf32>
      %c0_16 = arith.constant 0 : index
      %c0_17 = arith.constant 0 : index
      %18 = vector.load %arg6[%c0_16, %c0_17] : memref<1x64xf32, #tpu.memory_space<vmem>>, vector<1x64xf32>
      %19 = vector.broadcast %18 : vector<1x64xf32> to vector<16x64xf32>
      %20 = arith.addf %17, %19 : vector<16x64xf32>
      %c0_18 = arith.constant 0 : index
      %c0_19 = arith.constant 0 : index
      %c0_20 = arith.constant 0 : index
      %21 = vector.load %arg8[%c0_18, %c0_19, %c0_20] : memref<1x1x64xf32, #tpu.memory_space<vmem>>, vector<1x1x64xf32>
      %22 = vector.shape_cast %21 : vector<1x1x64xf32> to vector<1x64xf32>
      %23 = vector.broadcast %22 : vector<1x64xf32> to vector<16x64xf32>
      %24 = arith.mulf %20, %23 : vector<16x64xf32>
      %c0_21 = arith.constant 0 : index
      %c0_22 = arith.constant 0 : index
      %c0_23 = arith.constant 0 : index
      %25 = vector.load %arg7[%c0_21, %c0_22, %c0_23] : memref<1x16x64xf32, #tpu.memory_space<vmem>>, vector<1x16x64xf32>
      %26 = vector.shape_cast %25 : vector<1x16x64xf32> to vector<16x64xf32>
      %27 = arith.addf %26, %24 : vector<16x64xf32>
      %c0_24 = arith.constant 0 : index
      %c0_25 = arith.constant 0 : index
      %c0_26 = arith.constant 0 : index
      %28 = vector.load %arg9[%c0_24, %c0_25, %c0_26] : memref<1x16x64xf32, #tpu.memory_space<vmem>>, vector<1x16x64xf32>
      %29 = vector.shape_cast %28 : vector<1x16x64xf32> to vector<16x64xf32>
      %30 = vector.shape_cast %27 : vector<16x64xf32> to vector<1x16x64xf32>
      tpu.vector_store %arg9[%c0_24, %c0_25, %c0_26], %30 {strides = array<i32>} : memref<1x16x64xf32, #tpu.memory_space<vmem>>, vector<1x16x64xf32>,
    } else {
    }
    return
  }
  func.func @transform_0(%arg0: i32, %arg1: i32, %arg2: i32, %arg3: i32) -> (i32, i32, i32) {
    %c0_i32 = arith.constant 0 : i32
    return %arg0, %arg1, %arg3 : i32, i32, i32
  }
  func.func @transform_1(%arg0: i32, %arg1: i32, %arg2: i32, %arg3: i32) -> (i32, i32) {
    %c0_i32 = arith.constant 0 : i32
    return %arg3, %arg2 : i32, i32
  }
  func.func @transform_2(%arg0: i32, %arg1: i32, %arg2: i32, %arg3: i32) -> (i32, i32) {
    %c0_i32 = arith.constant 0 : i32
    %c0_i32_0 = arith.constant 0 : i32
    return %c0_i32, %arg2 : i32, i32
  }
  func.func @transform_3(%arg0: i32, %arg1: i32, %arg2: i32, %arg3: i32) -> (i32, i32, i32) {
    %c0_i32 = arith.constant 0 : i32
    return %arg0, %arg1, %arg2 : i32, i32, i32
  }
  func.func @transform_4(%arg0: i32, %arg1: i32, %arg2: i32, %arg3: i32) -> (i32, i32, i32) {
    %c0_i32 = arith.constant 0 : i32
    %c0_i32_0 = arith.constant 0 : i32
    return %arg0, %c0_i32, %arg2 : i32, i32, i32
  }
  func.func @transform_5(%arg0: i32, %arg1: i32, %arg2: i32, %arg3: i32) -> (i32, i32, i32) {
    %c0_i32 = arith.constant 0 : i32
    return %arg0, %arg1, %arg2 : i32, i32, i32
  }
}

module attributes {stable_mosaic.version = 11 : i64} {
  func.func @kernel(%arg0: i32, %arg1: i32, %arg2: i32, %arg3: memref<1x16x64xf32, #tpu.memory_space<vmem>>, %arg4: memref<1x1x64xf32, #tpu.memory_space<vmem>>, %arg5: memref<1x1x64xf32, #tpu.memory_space<vmem>>, %arg6: memref<64x16xbf16, #tpu.memory_space<vmem>>, %arg7: memref<1x16xf32, #tpu.memory_space<vmem>>, %arg8: memref<1x16x16xf32, #tpu.memory_space<vmem>>, %arg9: memref<16x64xbf16, #tpu.memory_space<vmem>>) attributes {dimension_semantics = [#tpu.dimension_semantics<parallel>, #tpu.dimension_semantics<parallel>, #tpu.dimension_semantics<arbitrary>], iteration_bounds = array<i64: 2, 1, 1>, scalar_prefetch = 0 : i64, scratch_operands = 1 : i64, tpu.core_type = #tpu.core_type<tc>, window_params = [{transform_indices = @transform_0, window_bounds = array<i64: 1, 16, 64>}, {transform_indices = @transform_1, window_bounds = array<i64: 1, 1, 64>}, {transform_indices = @transform_2, window_bounds = array<i64: 1, 1, 64>}, {transform_indices = @transform_3, window_bounds = array<i64: 64, 16>}, {transform_indices = @transform_4, window_bounds = array<i64: 1, 16>}, {transform_indices = @transform_5, window_bounds = array<i64: 1, 16, 16>}]} {
    %c0_i32 = arith.constant 0 : i32
    %0 = arith.cmpi eq, %arg2, %c0_i32 : i32
    %1 = arith.extui %0 : i1 to i32
    %c0_i32_0 = arith.constant 0 : i32
    %2 = arith.cmpi ne, %1, %c0_i32_0 : i32
    scf.if %2 {
      %c0_9 = arith.constant 0 : index
      %c0_10 = arith.constant 0 : index
      %c0_11 = arith.constant 0 : index
      %12 = vector.load %arg3[%c0_9, %c0_10, %c0_11] : memref<1x16x64xf32, #tpu.memory_space<vmem>>, vector<1x16x64xf32>
      %13 = vector.shape_cast %12 : vector<1x16x64xf32> to vector<16x64xf32>
      %cst_12 = arith.constant dense<0.000000e+00> : vector<16xf32>
      %14 = vector.multi_reduction <add>, %13, %cst_12 [1] : vector<16x64xf32> to vector<16xf32>
      %15 = vector.shape_cast %14 : vector<16xf32> to vector<16x1xf32>
      %cst_13 = arith.constant 6.400000e+01 : f32
      %16 = vector.broadcast %cst_13 : f32 to vector<16x1xf32>
      %17 = arith.divf %15, %16 : vector<16x1xf32>
      %18 = vector.broadcast %17 : vector<16x1xf32> to vector<16x64xf32>
      %19 = arith.subf %13, %18 : vector<16x64xf32>
      %20 = arith.mulf %19, %19 : vector<16x64xf32>
      %cst_14 = arith.constant dense<0.000000e+00> : vector<16xf32>
      %21 = vector.multi_reduction <add>, %20, %cst_14 [1] : vector<16x64xf32> to vector<16xf32>
      %22 = vector.shape_cast %21 : vector<16xf32> to vector<16x1xf32>
      %cst_15 = arith.constant 6.400000e+01 : f32
      %23 = vector.broadcast %cst_15 : f32 to vector<16x1xf32>
      %24 = arith.divf %22, %23 : vector<16x1xf32>
      %25 = vector.broadcast %17 : vector<16x1xf32> to vector<16x64xf32>
      %26 = arith.subf %13, %25 : vector<16x64xf32>
      %cst_16 = arith.constant 9.99999997E-7 : f32
      %27 = vector.broadcast %cst_16 : f32 to vector<16x1xf32>
      %28 = arith.addf %24, %27 : vector<16x1xf32>
      %29 = math.rsqrt %28 : vector<16x1xf32>
      %30 = vector.broadcast %29 : vector<16x1xf32> to vector<16x64xf32>
      %31 = arith.mulf %26, %30 : vector<16x64xf32>
      %c0_17 = arith.constant 0 : index
      %c0_18 = arith.constant 0 : index
      %c0_19 = arith.constant 0 : index
      %32 = vector.load %arg5[%c0_17, %c0_18, %c0_19] : memref<1x1x64xf32, #tpu.memory_space<vmem>>, vector<1x1x64xf32>
      %33 = vector.shape_cast %32 : vector<1x1x64xf32> to vector<1x64xf32>
      %cst_20 = arith.constant 1.000000e+00 : f32
      %34 = vector.broadcast %cst_20 : f32 to vector<1x64xf32>
      %35 = arith.addf %34, %33 : vector<1x64xf32>
      %36 = vector.broadcast %35 : vector<1x64xf32> to vector<16x64xf32>
      %37 = arith.mulf %31, %36 : vector<16x64xf32>
      %c0_21 = arith.constant 0 : index
      %c0_22 = arith.constant 0 : index
      %c0_23 = arith.constant 0 : index
      %38 = vector.load %arg4[%c0_21, %c0_22, %c0_23] : memref<1x1x64xf32, #tpu.memory_space<vmem>>, vector<1x1x64xf32>
      %39 = vector.shape_cast %38 : vector<1x1x64xf32> to vector<1x64xf32>
      %40 = vector.broadcast %39 : vector<1x64xf32> to vector<16x64xf32>
      %41 = arith.addf %37, %40 : vector<16x64xf32>
      %42 = arith.truncf %41 : vector<16x64xf32> to vector<16x64xbf16>
      %c0_24 = arith.constant 0 : index
      %c0_25 = arith.constant 0 : index
      %43 = vector.load %arg9[%c0_24, %c0_25] : memref<16x64xbf16, #tpu.memory_space<vmem>>, vector<16x64xbf16>
      tpu.vector_store %arg9[%c0_24, %c0_25], %42 {strides = array<i32>} : memref<16x64xbf16, #tpu.memory_space<vmem>>, vector<16x64xbf16>,
    } else {
    }
    %c0 = arith.constant 0 : index
    %c0_1 = arith.constant 0 : index
    %3 = vector.load %arg9[%c0, %c0_1] : memref<16x64xbf16, #tpu.memory_space<vmem>>, vector<16x64xbf16>
    %c0_2 = arith.constant 0 : index
    %c0_3 = arith.constant 0 : index
    %4 = vector.load %arg6[%c0_2, %c0_3] : memref<64x16xbf16, #tpu.memory_space<vmem>>, vector<64x16xbf16>
    %cst = arith.constant dense<0.000000e+00> : vector<16x16xf32>
    %5 = tpu.matmul %3, %4, %cst {dimension_numbers = #tpu.dot_dimension_numbers<[1], [0], [0], [1], [0, 0, 1, 1], [], []>} : vector<16x64xbf16>, vector<64x16xbf16>, vector<16x16xf32> -> vector<16x16xf32>
    %c0_4 = arith.constant 0 : index
    %c0_5 = arith.constant 0 : index
    %6 = vector.load %arg7[%c0_4, %c0_5] : memref<1x16xf32, #tpu.memory_space<vmem>>, vector<1x16xf32>
    %7 = vector.broadcast %6 : vector<1x16xf32> to vector<16x16xf32>
    %8 = arith.addf %5, %7 : vector<16x16xf32>
    %c0_6 = arith.constant 0 : index
    %c0_7 = arith.constant 0 : index
    %c0_8 = arith.constant 0 : index
    %9 = vector.load %arg8[%c0_6, %c0_7, %c0_8] : memref<1x16x16xf32, #tpu.memory_space<vmem>>, vector<1x16x16xf32>
    %10 = vector.shape_cast %9 : vector<1x16x16xf32> to vector<16x16xf32>
    %11 = vector.shape_cast %8 : vector<16x16xf32> to vector<1x16x16xf32>
    tpu.vector_store %arg8[%c0_6, %c0_7, %c0_8], %11 {strides = array<i32>} : memref<1x16x16xf32, #tpu.memory_space<vmem>>, vector<1x16x16xf32>,
    return
  }
  func.func @transform_0(%arg0: i32, %arg1: i32, %arg2: i32) -> (i32, i32, i32) {
    %c0_i32 = arith.constant 0 : i32
    %c0_i32_0 = arith.constant 0 : i32
    return %arg0, %arg1, %c0_i32 : i32, i32, i32
  }
  func.func @transform_1(%arg0: i32, %arg1: i32, %arg2: i32) -> (i32, i32, i32) {
    %c0_i32 = arith.constant 0 : i32
    %c0_i32_0 = arith.constant 0 : i32
    %c0_i32_1 = arith.constant 0 : i32
    return %arg0, %c0_i32, %c0_i32_0 : i32, i32, i32
  }
  func.func @transform_2(%arg0: i32, %arg1: i32, %arg2: i32) -> (i32, i32, i32) {
    %c0_i32 = arith.constant 0 : i32
    %c0_i32_0 = arith.constant 0 : i32
    %c0_i32_1 = arith.constant 0 : i32
    return %arg0, %c0_i32, %c0_i32_0 : i32, i32, i32
  }
  func.func @transform_3(%arg0: i32, %arg1: i32, %arg2: i32) -> (i32, i32) {
    %c0_i32 = arith.constant 0 : i32
    %c0_i32_0 = arith.constant 0 : i32
    return %c0_i32, %arg2 : i32, i32
  }
  func.func @transform_4(%arg0: i32, %arg1: i32, %arg2: i32) -> (i32, i32) {
    %c0_i32 = arith.constant 0 : i32
    %c0_i32_0 = arith.constant 0 : i32
    return %c0_i32, %arg2 : i32, i32
  }
  func.func @transform_5(%arg0: i32, %arg1: i32, %arg2: i32) -> (i32, i32, i32) {
    %c0_i32 = arith.constant 0 : i32
    return %arg0, %arg1, %arg2 : i32, i32, i32
  }
}

</mosaic_0001>

<llo_original>
// kernel: _lambda_.10
$region0: #{_lambda_.10}
  #allocation0 [shape = 'u32[]', space=smem, size = 0x4, offset = 0x4, fixed_abs, tag = 'smem constant byte address 0x4 - core index']
  #allocation1 [shape = 'u32[144,128]{1,0:T(1,128)}', space=vmem, size = 0x12000, scoped, tag = 'internal scratch']
  %s0 = inlined_call_operand.vmem [shape: f32[2,32], index: 0, kind: input, shape index: {}]
  %s1 = inlined_call_operand.vmem [shape: bf16[32,64], index: 1, kind: input, shape index: {}]
  %s2 = inlined_call_operand.vmem [shape: f32[1,64], index: 2, kind: input, shape index: {}]
  %s3 = inlined_call_operand.vmem [shape: f32[2,64], index: 3, kind: output, shape index: {}]
  %s4 = sld [smem:[#allocation0]]
  $region30: #{_lambda_.10} parent=0
    _
  %s6 = ssub.s32 1, %s4
  %s7 = scalar_select 0, %s6, %s4
  // Predicated region
  $region2: #{_lambda_.10} parent=0 // pred_check
    _
  $region3: #{_lambda_.10} parent=0 // pred_check_branch
    %9 = sbr.rel (0) target = $region5
  $region4: #{_lambda_.10} parent=0 // pred_region
    _
  $region5: #{_lambda_.10} parent=0 // pred_fallthru
    _
  // Predicated region
  $region6: #{_lambda_.10} parent=0 // pred_check
    _
  $region7: #{_lambda_.10} parent=0 // pred_check_branch
    %11 = sbr.rel (0) target = $region9
  $region8: #{_lambda_.10} parent=0 // pred_region
    _
  $region9: #{_lambda_.10} parent=0 // pred_fallthru
    _
  // Predicated region
  $region10: #{_lambda_.10} parent=0 // pred_check
    _
  $region11: #{_lambda_.10} parent=0 // pred_check_branch
    %13 = sbr.rel (0) target = $region13
  $region12: #{_lambda_.10} parent=0 // pred_region
    _
  $region13: #{_lambda_.10} parent=0 // pred_fallthru
    _
  %p15 = scmp.eq.s32.totalorder 0, 0
  // Predicated region
  $region14: #{_lambda_.10} parent=0 // pred_check
    %p16 = pneg %p15
  $region15: #{_lambda_.10} parent=0 // pred_check_branch
    %18 = sbr.rel (%p16) target = $region17
  $region16: #{_lambda_.10} parent=0 // pred_region
    %vm19 = vcmask 517120
    %20 = vst.msk [vmem:[%s3] sm:$0x3] %vm19, 0.0
  $region17: #{_lambda_.10} parent=0 // pred_fallthru
    _
  %v21 = vld [vmem:[%s0] sm:$0x3]
  %v22 = vld [vmem:[%s3] sm:$0x3]
  %v23 = vpack.c.bf16 %v21, %v21
  %v24 = vld [vmem:[%s1] sm:$0xf]
  %v25 = vld [vmem:[%s1 + $0x4] sm:$0xf]
  %v26 = vld [vmem:[%s1 + $0x8] sm:$0xf]
  %v27 = vld [vmem:[%s1 + $0xc] sm:$0xf]
  %v32 = vunpack.c.l.b16 %v24
  %v33 = vunpack.c.l.b16 %v25
  %v34 = vunpack.c.l.b16 %v26
  %v35 = vunpack.c.l.b16 %v27
  %v36 = vpack.c.b16 %v33, %v32
  %v37 = vpack.c.b16 %v35, %v34
  %vm40 = vcmask 261120
  %v42 = vsel %vm40, %v23, 0
  %44 = vmatprep.subr.bf16.mxu0 0
  %45 = vmatpush1.bf16.msra.mxu0 %v36
  %46 = vmatprep.subr.bf16.mxu0 0
  %47 = vmatpush1.bf16.msra.mxu0 %v37
  %48 = vmatprep.subr.bf16.mxu0 0
  %49 = vmatpush1.bf16.msra.mxu0 0
  %50 = vmatprep.subr.bf16.mxu0 0
  %51 = vmatpush1.bf16.msra.mxu0 0
  %52 = vmatprep.subr.bf16.mxu0 0
  %53 = vmatpush1.bf16.msra.mxu0 0
  %54 = vmatprep.subr.bf16.mxu0 0
  %55 = vmatpush1.bf16.msra.mxu0 0
  %56 = vmatprep.subr.bf16.mxu0 0
  %57 = vmatpush1.bf16.msra.mxu0 0
  %58 = vmatprep.subr.bf16.mxu0 0
  %59 = vmatpush1.bf16.msra.mxu0 0
  %60 = vmatprep.subr.bf16.mxu0 0
  %61 = vmatpush1.bf16.msra.mxu0 0
  %62 = vmatprep.subr.bf16.mxu0 0
  %63 = vmatpush1.bf16.msra.mxu0 0
  %64 = vmatprep.subr.bf16.mxu0 0
  %65 = vmatpush1.bf16.msra.mxu0 0
  %66 = vmatprep.subr.bf16.mxu0 0
  %67 = vmatpush1.bf16.msra.mxu0 0
  %68 = vmatprep.subr.bf16.mxu0 0
  %69 = vmatpush1.bf16.msra.mxu0 0
  %70 = vmatprep.subr.bf16.mxu0 0
  %71 = vmatpush1.bf16.msra.mxu0 0
  %72 = vmatprep.subr.bf16.mxu0 0
  %73 = vmatpush1.bf16.msra.mxu0 0
  %74 = vmatprep.subr.bf16.mxu0 0
  %75 = vmatpush1.bf16.msra.mxu0 0
  %76 = vmatprep.mubr.bf16.mxu0 0
  %77 = vmatmul.mubr.bf16.gmra.mrb[0].mxu0 %v42
  %v78 = vpop.f32.mrb[0].mxu0
  %v79 = vadd.f32 0.0, %v78
  %v80 = vpop.f32.mrb[0].mxu0
  %v81 = vpop.f32.mrb[0].mxu0
  %v82 = vpop.f32.mrb[0].mxu0
  %83 = vdwg.mxu0
  %v84 = vadd.f32 %v22, %v79
  %vm85 = vcmask 517120
  %86 = vst.msk [vmem:[%s3] sm:$0x3] %vm85, %v84
  // Predicated region
  $region18: #{_lambda_.10} parent=0 // pred_check
    %p87 = pneg %p15
  $region19: #{_lambda_.10} parent=0 // pred_check_branch
    %89 = sbr.rel (%p87) target = $region21
  $region20: #{_lambda_.10} parent=0 // pred_region
    %v90 = vld [vmem:[%s3] sm:$0x3]
    %v91 = vld [vmem:[%s2] sm:$0x1]
    %v93 = vlaneseq
    %v94 = vshrl.u32 %v93, 7
    %v95 = vsub.s32 0, %v94
    %v96 = vrot.slane %v91, %v95
    %v98 = vadd.f32 %v90, %v96
    %v99 = vmul.f32 %v98, 0.5
    %v100 = vmul.f32 %v98, 0.044715
    %v101 = vmul.f32 %v100, %v98
    %v102 = vmul.f32 %v101, %v98
    %v103 = vadd.f32 %v98, %v102
    %v104 = vmul.f32 %v103, 0.7978846
    %v105 = vtanh.pop %v104
    %v106 = vadd.f32 %v105, 1.0
    %v107 = vmul.f32 %v99, %v106
    %108 = vst.msk [vmem:[%s3] sm:$0x3] %vm85, %v107
  $region21: #{_lambda_.10} parent=0 // pred_fallthru
    _
  // Predicated region
  $region22: #{_lambda_.10} parent=0 // pred_check
    _
  $region23: #{_lambda_.10} parent=0 // pred_check_branch
    %110 = sbr.rel (0) target = $region25
  $region24: #{_lambda_.10} parent=0 // pred_region
    _
  $region25: #{_lambda_.10} parent=0 // pred_fallthru
    _
  // Predicated region
  $region26: #{_lambda_.10} parent=0 // pred_check
    _
  $region27: #{_lambda_.10} parent=0 // pred_check_branch
    %112 = sbr.rel (0) target = $region29
  $region28: #{_lambda_.10} parent=0 // pred_region
    _
  $region29: #{_lambda_.10} parent=0 // pred_fallthru
    _

// kernel: _lambda_.9
$region0: #{_lambda_.9}
  #allocation0 [shape = 'u32[]', space=smem, size = 0x4, offset = 0x4, fixed_abs, tag = 'smem constant byte address 0x4 - core index']
  #allocation1 [shape = 'u32[144,128]{1,0:T(1,128)}', space=vmem, size = 0x12000, scoped, tag = 'internal scratch']
  %s0 = inlined_call_operand.vmem [shape: f32[32,16], index: 0, kind: input, shape index: {}]
  %s1 = inlined_call_operand.vmem [shape: bf16[16,64], index: 1, kind: input, shape index: {}]
  %s2 = inlined_call_operand.vmem [shape: f32[1,64], index: 2, kind: input, shape index: {}]
  %s3 = inlined_call_operand.vmem [shape: f32[32,64], index: 3, kind: output, shape index: {}]
  %s4 = sld [smem:[#allocation0]]
  $region30: #{_lambda_.9} parent=0
    _
  %s6 = ssub.s32 1, %s4
  %s7 = scalar_select 0, %s6, %s4
  // Predicated region
  $region2: #{_lambda_.9} parent=0 // pred_check
    _
  $region3: #{_lambda_.9} parent=0 // pred_check_branch
    %9 = sbr.rel (0) target = $region5
  $region4: #{_lambda_.9} parent=0 // pred_region
    _
  $region5: #{_lambda_.9} parent=0 // pred_fallthru
    _
  // Predicated region
  $region6: #{_lambda_.9} parent=0 // pred_check
    _
  $region7: #{_lambda_.9} parent=0 // pred_check_branch
    %11 = sbr.rel (0) target = $region9
  $region8: #{_lambda_.9} parent=0 // pred_region
    _
  $region9: #{_lambda_.9} parent=0 // pred_fallthru
    _
  // Predicated region
  $region10: #{_lambda_.9} parent=0 // pred_check
    _
  $region11: #{_lambda_.9} parent=0 // pred_check_branch
    %13 = sbr.rel (0) target = $region13
  $region12: #{_lambda_.9} parent=0 // pred_region
    _
  $region13: #{_lambda_.9} parent=0 // pred_fallthru
    _
  %p15 = scmp.eq.s32.totalorder 0, 0
  // Predicated region
  $region14: #{_lambda_.9} parent=0 // pred_check
    %p16 = pneg %p15
  $region15: #{_lambda_.9} parent=0 // pred_check_branch
    %18 = sbr.rel (%p16) target = $region17
  $region16: #{_lambda_.9} parent=0 // pred_region
    %vm19 = vcmask 523264
    %20 = vst.msk [vmem:[%s3] sm:$0xff] %vm19, 0.0
    %21 = vst.msk [vmem:[%s3 + $0x8] sm:$0xff] %vm19, 0.0
    %22 = vst.msk [vmem:[%s3 + $0x10] sm:$0xff] %vm19, 0.0
    %23 = vst.msk [vmem:[%s3 + $0x18] sm:$0xff] %vm19, 0.0
  $region17: #{_lambda_.9} parent=0 // pred_fallthru
    _
  %v24 = vld [vmem:[%s0] sm:$0xff]
  %v25 = vld [vmem:[%s0 + $0x8] sm:$0xff]
  %v26 = vld [vmem:[%s0 + $0x10] sm:$0xff]
  %v27 = vld [vmem:[%s0 + $0x18] sm:$0xff]
  %v28 = vld [vmem:[%s3] sm:$0xff]
  %v29 = vld [vmem:[%s3 + $0x8] sm:$0xff]
  %v30 = vld [vmem:[%s3 + $0x10] sm:$0xff]
  %v31 = vld [vmem:[%s3 + $0x18] sm:$0xff]
  %v32 = vpack.c.bf16 %v25, %v24
  %v33 = vpack.c.bf16 %v27, %v26
  %v34 = vld [vmem:[%s1] sm:$0xf]
  %v35 = vld [vmem:[%s1 + $0x4] sm:$0xf]
  %v38 = vunpack.c.l.b16 %v34
  %v39 = vunpack.c.l.b16 %v35
  %v40 = vpack.c.b16 %v39, %v38
  %vm42 = vcmask 130048
  %v44 = vsel %vm42, %v32, 0
  %v47 = vsel %vm42, %v33, 0
  %49 = vmatprep.subr.bf16.mxu0 0
  %50 = vmatpush1.bf16.msra.mxu0 %v40
  %51 = vmatprep.subr.bf16.mxu0 0
  %52 = vmatpush1.bf16.msra.mxu0 0
  %53 = vmatprep.subr.bf16.mxu0 0
  %54 = vmatpush1.bf16.msra.mxu0 0
  %55 = vmatprep.subr.bf16.mxu0 0
  %56 = vmatpush1.bf16.msra.mxu0 0
  %57 = vmatprep.subr.bf16.mxu0 0
  %58 = vmatpush1.bf16.msra.mxu0 0
  %59 = vmatprep.subr.bf16.mxu0 0
  %60 = vmatpush1.bf16.msra.mxu0 0
  %61 = vmatprep.subr.bf16.mxu0 0
  %62 = vmatpush1.bf16.msra.mxu0 0
  %63 = vmatprep.subr.bf16.mxu0 0
  %64 = vmatpush1.bf16.msra.mxu0 0
  %65 = vmatprep.subr.bf16.mxu0 0
  %66 = vmatpush1.bf16.msra.mxu0 0
  %67 = vmatprep.subr.bf16.mxu0 0
  %68 = vmatpush1.bf16.msra.mxu0 0
  %69 = vmatprep.subr.bf16.mxu0 0
  %70 = vmatpush1.bf16.msra.mxu0 0
  %71 = vmatprep.subr.bf16.mxu0 0
  %72 = vmatpush1.bf16.msra.mxu0 0
  %73 = vmatprep.subr.bf16.mxu0 0
  %74 = vmatpush1.bf16.msra.mxu0 0
  %75 = vmatprep.subr.bf16.mxu0 0
  %76 = vmatpush1.bf16.msra.mxu0 0
  %77 = vmatprep.subr.bf16.mxu0 0
  %78 = vmatpush1.bf16.msra.mxu0 0
  %79 = vmatprep.subr.bf16.mxu0 0
  %80 = vmatpush1.bf16.msra.mxu0 0
  %81 = vmatprep.mubr.bf16.mxu0 0
  %82 = vmatmul.mubr.bf16.gmra.mrb[0].mxu0 %v44
  %v83 = vpop.f32.mrb[0].mxu0
  %v84 = vadd.f32 0.0, %v83
  %v85 = vpop.f32.mrb[0].mxu0
  %v86 = vpop.f32.mrb[0].mxu0
  %v87 = vadd.f32 0.0, %v86
  %v88 = vpop.f32.mrb[0].mxu0
  %89 = vmatprep.mubr.bf16.mxu0 0
  %90 = vmatmul.mubr.bf16.gmra.mrb[0].mxu0 %v47
  %v91 = vpop.f32.mrb[0].mxu0
  %v92 = vadd.f32 0.0, %v91
  %v93 = vpop.f32.mrb[0].mxu0
  %v94 = vpop.f32.mrb[0].mxu0
  %v95 = vadd.f32 0.0, %v94
  %v96 = vpop.f32.mrb[0].mxu0
  %97 = vdwg.mxu0
  %v98 = vadd.f32 %v28, %v84
  %v99 = vadd.f32 %v29, %v87
  %v100 = vadd.f32 %v30, %v92
  %v101 = vadd.f32 %v31, %v95
  %vm102 = vcmask 523264
  %103 = vst.msk [vmem:[%s3] sm:$0xff] %vm102, %v98
  %104 = vst.msk [vmem:[%s3 + $0x8] sm:$0xff] %vm102, %v99
  %105 = vst.msk [vmem:[%s3 + $0x10] sm:$0xff] %vm102, %v100
  %106 = vst.msk [vmem:[%s3 + $0x18] sm:$0xff] %vm102, %v101
  // Predicated region
  $region18: #{_lambda_.9} parent=0 // pred_check
    %p107 = pneg %p15
  $region19: #{_lambda_.9} parent=0 // pred_check_branch
    %109 = sbr.rel (%p107) target = $region21
  $region20: #{_lambda_.9} parent=0 // pred_region
    %v110 = vld [vmem:[%s3] sm:$0xff]
    %v111 = vld [vmem:[%s3 + $0x8] sm:$0xff]
    %v112 = vld [vmem:[%s3 + $0x10] sm:$0xff]
    %v113 = vld [vmem:[%s3 + $0x18] sm:$0xff]
    %v114 = vld [vmem:[%s2] sm:$0x1]
    %v116 = vlaneseq
    %v117 = vshrl.u32 %v116, 7
    %v118 = vsub.s32 0, %v117
    %v119 = vrot.slane %v114, %v118
    %v121 = vadd.f32 %v110, %v119
    %v122 = vadd.f32 %v111, %v119
    %v123 = vadd.f32 %v112, %v119
    %v124 = vadd.f32 %v113, %v119
    %125 = vst.msk [vmem:[%s3] sm:$0xff] %vm102, %v121
    %126 = vst.msk [vmem:[%s3 + $0x8] sm:$0xff] %vm102, %v122
    %127 = vst.msk [vmem:[%s3 + $0x10] sm:$0xff] %vm102, %v123
    %128 = vst.msk [vmem:[%s3 + $0x18] sm:$0xff] %vm102, %v124
  $region21: #{_lambda_.9} parent=0 // pred_fallthru
    _
  // Predicated region
  $region22: #{_lambda_.9} parent=0 // pred_check
    _
  $region23: #{_lambda_.9} parent=0 // pred_check_branch
    %130 = sbr.rel (0) target = $region25
  $region24: #{_lambda_.9} parent=0 // pred_region
    _
  $region25: #{_lambda_.9} parent=0 // pred_fallthru
    _
  // Predicated region
  $region26: #{_lambda_.9} parent=0 // pred_check
    _
  $region27: #{_lambda_.9} parent=0 // pred_check_branch
    %132 = sbr.rel (0) target = $region29
  $region28: #{_lambda_.9} parent=0 // pred_region
    _
  $region29: #{_lambda_.9} parent=0 // pred_fallthru
    _

// kernel: _lambda_.11
$region0: #{_lambda_.11}
  #allocation0 [shape = 'u32[]', space=smem, size = 0x4, offset = 0x4, fixed_abs, tag = 'smem constant byte address 0x4 - core index']
  #allocation1 [shape = 'u32[144,128]{1,0:T(1,128)}', space=vmem, size = 0x12000, scoped, tag = 'internal scratch']
  %s0 = inlined_call_operand.vmem [shape: f32[2,64], index: 0, kind: input, shape index: {}]
  %s1 = inlined_call_operand.vmem [shape: bf16[64,64], index: 1, kind: input, shape index: {}]
  %s2 = inlined_call_operand.vmem [shape: f32[1,64], index: 2, kind: input, shape index: {}]
  %s3 = inlined_call_operand.vmem [shape: f32[2,64], index: 3, kind: output, shape index: {}]
  %s4 = sld [smem:[#allocation0]]
  $region30: #{_lambda_.11} parent=0
    _
  %s6 = ssub.s32 1, %s4
  %s7 = scalar_select 0, %s6, %s4
  // Predicated region
  $region2: #{_lambda_.11} parent=0 // pred_check
    _
  $region3: #{_lambda_.11} parent=0 // pred_check_branch
    %9 = sbr.rel (0) target = $region5
  $region4: #{_lambda_.11} parent=0 // pred_region
    _
  $region5: #{_lambda_.11} parent=0 // pred_fallthru
    _
  // Predicated region
  $region6: #{_lambda_.11} parent=0 // pred_check
    _
  $region7: #{_lambda_.11} parent=0 // pred_check_branch
    %11 = sbr.rel (0) target = $region9
  $region8: #{_lambda_.11} parent=0 // pred_region
    _
  $region9: #{_lambda_.11} parent=0 // pred_fallthru
    _
  // Predicated region
  $region10: #{_lambda_.11} parent=0 // pred_check
    _
  $region11: #{_lambda_.11} parent=0 // pred_check_branch
    %13 = sbr.rel (0) target = $region13
  $region12: #{_lambda_.11} parent=0 // pred_region
    _
  $region13: #{_lambda_.11} parent=0 // pred_fallthru
    _
  %p15 = scmp.eq.s32.totalorder 0, 0
  // Predicated region
  $region14: #{_lambda_.11} parent=0 // pred_check
    %p16 = pneg %p15
  $region15: #{_lambda_.11} parent=0 // pred_check_branch
    %18 = sbr.rel (%p16) target = $region17
  $region16: #{_lambda_.11} parent=0 // pred_region
    %vm19 = vcmask 517120
    %20 = vst.msk [vmem:[%s3] sm:$0x3] %vm19, 0.0
  $region17: #{_lambda_.11} parent=0 // pred_fallthru
    _
  %v21 = vld [vmem:[%s0] sm:$0x3]
  %v22 = vld [vmem:[%s3] sm:$0x3]
  %v23 = vpack.c.bf16 %v21, %v21
  %v24 = vld [vmem:[%s1] sm:$0xf]
  %v25 = vld [vmem:[%s1 + $0x4] sm:$0xf]
  %v26 = vld [vmem:[%s1 + $0x8] sm:$0xf]
  %v27 = vld [vmem:[%s1 + $0xc] sm:$0xf]
  %v28 = vld [vmem:[%s1 + $0x10] sm:$0xf]
  %v29 = vld [vmem:[%s1 + $0x14] sm:$0xf]
  %v30 = vld [vmem:[%s1 + $0x18] sm:$0xf]
  %v31 = vld [vmem:[%s1 + $0x1c] sm:$0xf]
  %v40 = vunpack.c.l.b16 %v24
  %v41 = vunpack.c.l.b16 %v25
  %v42 = vunpack.c.l.b16 %v26
  %v43 = vunpack.c.l.b16 %v27
  %v44 = vunpack.c.l.b16 %v28
  %v45 = vunpack.c.l.b16 %v29
  %v46 = vunpack.c.l.b16 %v30
  %v47 = vunpack.c.l.b16 %v31
  %v48 = vpack.c.b16 %v41, %v40
  %v49 = vpack.c.b16 %v43, %v42
  %v50 = vpack.c.b16 %v45, %v44
  %v51 = vpack.c.b16 %v47, %v46
  %vm56 = vcmask 523264
  %v58 = vsel %vm56, %v23, 0
  %60 = vmatprep.subr.bf16.mxu0 0
  %61 = vmatpush1.bf16.msra.mxu0 %v48
  %62 = vmatprep.subr.bf16.mxu0 0
  %63 = vmatpush1.bf16.msra.mxu0 %v49
  %64 = vmatprep.subr.bf16.mxu0 0
  %65 = vmatpush1.bf16.msra.mxu0 %v50
  %66 = vmatprep.subr.bf16.mxu0 0
  %67 = vmatpush1.bf16.msra.mxu0 %v51
  %68 = vmatprep.subr.bf16.mxu0 0
  %69 = vmatpush1.bf16.msra.mxu0 0
  %70 = vmatprep.subr.bf16.mxu0 0
  %71 = vmatpush1.bf16.msra.mxu0 0
  %72 = vmatprep.subr.bf16.mxu0 0
  %73 = vmatpush1.bf16.msra.mxu0 0
  %74 = vmatprep.subr.bf16.mxu0 0
  %75 = vmatpush1.bf16.msra.mxu0 0
  %76 = vmatprep.subr.bf16.mxu0 0
  %77 = vmatpush1.bf16.msra.mxu0 0
  %78 = vmatprep.subr.bf16.mxu0 0
  %79 = vmatpush1.bf16.msra.mxu0 0
  %80 = vmatprep.subr.bf16.mxu0 0
  %81 = vmatpush1.bf16.msra.mxu0 0
  %82 = vmatprep.subr.bf16.mxu0 0
  %83 = vmatpush1.bf16.msra.mxu0 0
  %84 = vmatprep.subr.bf16.mxu0 0
  %85 = vmatpush1.bf16.msra.mxu0 0
  %86 = vmatprep.subr.bf16.mxu0 0
  %87 = vmatpush1.bf16.msra.mxu0 0
  %88 = vmatprep.subr.bf16.mxu0 0
  %89 = vmatpush1.bf16.msra.mxu0 0
  %90 = vmatprep.subr.bf16.mxu0 0
  %91 = vmatpush1.bf16.msra.mxu0 0
  %92 = vmatprep.mubr.bf16.mxu0 0
  %93 = vmatmul.mubr.bf16.gmra.mrb[0].mxu0 %v58
  %v94 = vpop.f32.mrb[0].mxu0
  %v95 = vadd.f32 0.0, %v94
  %v96 = vpop.f32.mrb[0].mxu0
  %v97 = vpop.f32.mrb[0].mxu0
  %v98 = vpop.f32.mrb[0].mxu0
  %99 = vdwg.mxu0
  %v100 = vadd.f32 %v22, %v95
  %vm101 = vcmask 517120
  %102 = vst.msk [vmem:[%s3] sm:$0x3] %vm101, %v100
  // Predicated region
  $region18: #{_lambda_.11} parent=0 // pred_check
    %p103 = pneg %p15
  $region19: #{_lambda_.11} parent=0 // pred_check_branch
    %105 = sbr.rel (%p103) target = $region21
  $region20: #{_lambda_.11} parent=0 // pred_region
    %v106 = vld [vmem:[%s3] sm:$0x3]
    %v107 = vld [vmem:[%s2] sm:$0x1]
    %v109 = vlaneseq
    %v110 = vshrl.u32 %v109, 7
    %v111 = vsub.s32 0, %v110
    %v112 = vrot.slane %v107, %v111
    %v114 = vadd.f32 %v106, %v112
    %115 = vst.msk [vmem:[%s3] sm:$0x3] %vm101, %v114
  $region21: #{_lambda_.11} parent=0 // pred_fallthru
    _
  // Predicated region
  $region22: #{_lambda_.11} parent=0 // pred_check
    _
  $region23: #{_lambda_.11} parent=0 // pred_check_branch
    %117 = sbr.rel (0) target = $region25
  $region24: #{_lambda_.11} parent=0 // pred_region
    _
  $region25: #{_lambda_.11} parent=0 // pred_fallthru
    _
  // Predicated region
  $region26: #{_lambda_.11} parent=0 // pred_check
    _
  $region27: #{_lambda_.11} parent=0 // pred_check_branch
    %119 = sbr.rel (0) target = $region29
  $region28: #{_lambda_.11} parent=0 // pred_region
    _
  $region29: #{_lambda_.11} parent=0 // pred_fallthru
    _

// kernel: _lambda_.8
$region0: #{_lambda_.8}
  #allocation0 [shape = 'u32[]', space=smem, size = 0x4, offset = 0x4, fixed_abs, tag = 'smem constant byte address 0x4 - core index']
  #allocation1 [shape = 'u32[144,128]{1,0:T(1,128)}', space=vmem, size = 0x12000, scoped, tag = 'internal scratch']
  %s0 = inlined_call_operand.vmem [shape: f32[2,512], index: 0, kind: input, shape index: {}]
  %s1 = inlined_call_operand.hbm [shape: bf16[512,256], index: 1, kind: input, shape index: {}]
  %s2 = inlined_call_operand.vmem [shape: f32[1,256], index: 2, kind: input, shape index: {}]
  %s3 = inlined_call_operand.vmem [shape: f32[2,256], index: 3, kind: output, shape index: {}]
  %s4 = sld [smem:[#allocation0]]
  $region34: #{_lambda_.8} parent=0
    _
  %s6 = ssub.s32 1, %s4
  %s7 = scalar_select 0, %s6, %s4
  $region1: #{_lambda_.8} parent=0
    #allocation2 [shape = 'u8[262144]{0}', space=vmem, size = 0x40000, scoped, tag = 'input window, operand 1, single buffered']
    #allocation3 [shape = 's32[1]{0}', space=sflag, size = 0x4, scoped, tag = 'scoped memory for _lambda_.8']
    %8 = vsyncpa [#allocation3], 0
    // Predicated region
    $region2: #{_lambda_.8} parent=1 // pred_check
      _
    $region3: #{_lambda_.8} parent=1 // pred_check_branch
      %10 = sbr.rel (0) target = $region5
    $region4: #{_lambda_.8} parent=1 // pred_region
      _
    $region5: #{_lambda_.8} parent=1 // pred_fallthru
      _
    // Predicated region
    $region6: #{_lambda_.8} parent=1 // pred_check
      _
    $region7: #{_lambda_.8} parent=1 // pred_check_branch
      %12 = sbr.rel (0) target = $region9
    $region8: #{_lambda_.8} parent=1 // pred_region
      %s14 = ssub.s32 8192, 8192
      %15 = vsyncadd [#allocation3], %s14
      %s16 = sshll.u32 [#allocation2], 4
      %s17 = int_to_ptr.vmem [resolvable:$true] %s16
      %22 = dma.hbm_to_vmem [thread:$0]  %s1, 8192, %s17, [#allocation3], 128, 128, 8
    $region9: #{_lambda_.8} parent=1 // pred_fallthru
      _
    // Predicated region
    $region10: #{_lambda_.8} parent=1 // pred_check
      _
    $region11: #{_lambda_.8} parent=1 // pred_check_branch
      %24 = sbr.rel (0) target = $region13
    $region12: #{_lambda_.8} parent=1 // pred_region
      _
    $region13: #{_lambda_.8} parent=1 // pred_fallthru
      _
    // Predicated region
    $region14: #{_lambda_.8} parent=1 // pred_check
      _
    $region15: #{_lambda_.8} parent=1 // pred_check_branch
      %26 = sbr.rel (0) target = $region17
    $region16: #{_lambda_.8} parent=1 // pred_region
      %27 = dma.done [#allocation3], 8192
    $region17: #{_lambda_.8} parent=1 // pred_fallthru
      _
    %p28 = scmp.eq.s32.totalorder 0, 0
    // Predicated region
    $region18: #{_lambda_.8} parent=1 // pred_check
      %p29 = pneg %p28
    $region19: #{_lambda_.8} parent=1 // pred_check_branch
      %31 = sbr.rel (%p29) target = $region21
    $region20: #{_lambda_.8} parent=1 // pred_region
      %32 = vst [vmem:[%s3] sm:$0xf] 0.0
    $region21: #{_lambda_.8} parent=1 // pred_fallthru
      _
    %v33 = vld [vmem:[%s0] sm:$0xff]
    %v34 = vld [vmem:[%s3] sm:$0xf]
    %v36 = vcombine.high %v33, %v33
    %v38 = vunpack.c.l.s4 1983009808
    %v39 = vunpack.c.0.s8 %v38
    %v40 = vlaneseq
    %v41 = vshrl.u32 %v40, 7
    %v42 = vsub.s32 %v39, %v41
    %v43 = vrot.slane %v33, %v42
    %v45 = vunpack.c.l.s4 1983009808
    %v46 = vunpack.c.0.s8 %v45
    %v47 = vlaneseq
    %v48 = vshrl.u32 %v47, 7
    %v49 = vsub.s32 %v46, %v48
    %v50 = vrot.slane %v36, %v49
    %v51 = vcombine.high %v43, %v43
    %v52 = vcombine.high %v50, %v50
    %v57 = vpack.c.bf16 %v43, %v43
    %v58 = vpack.c.bf16 %v51, %v51
    %v59 = vpack.c.bf16 %v50, %v50
    %v60 = vpack.c.bf16 %v52, %v52
    %v61 = vld [vmem:[#allocation2] sm:$0xff]
    %v62 = vld [vmem:[#allocation2 + $0x8] sm:$0xff]
    %v63 = vld [vmem:[#allocation2 + $0x10] sm:$0xff]
    %v64 = vld [vmem:[#allocation2 + $0x18] sm:$0xff]
    %v65 = vld [vmem:[#allocation2 + $0x20] sm:$0xff]
    %v66 = vld [vmem:[#allocation2 + $0x28] sm:$0xff]
    %v67 = vld [vmem:[#allocation2 + $0x30] sm:$0xff]
    %v68 = vld [vmem:[#allocation2 + $0x38] sm:$0xff]
    %v69 = vld [vmem:[#allocation2 + $0x40] sm:$0xff]
    %v70 = vld [vmem:[#allocation2 + $0x48] sm:$0xff]
    %v71 = vld [vmem:[#allocation2 + $0x50] sm:$0xff]
    %v72 = vld [vmem:[#allocation2 + $0x58] sm:$0xff]
    %v73 = vld [vmem:[#allocation2 + $0x60] sm:$0xff]
    %v74 = vld [vmem:[#allocation2 + $0x68] sm:$0xff]
    %v75 = vld [vmem:[#allocation2 + $0x70] sm:$0xff]
    %v76 = vld [vmem:[#allocation2 + $0x78] sm:$0xff]
    %v77 = vld [vmem:[#allocation2 + $0x80] sm:$0xff]
    %v78 = vld [vmem:[#allocation2 + $0x88] sm:$0xff]
    %v79 = vld [vmem:[#allocation2 + $0x90] sm:$0xff]
    %v80 = vld [vmem:[#allocation2 + $0x98] sm:$0xff]
    %v81 = vld [vmem:[#allocation2 + $0xa0] sm:$0xff]
    %v82 = vld [vmem:[#allocation2 + $0xa8] sm:$0xff]
    %v83 = vld [vmem:[#allocation2 + $0xb0] sm:$0xff]
    %v84 = vld [vmem:[#allocation2 + $0xb8] sm:$0xff]
    %v85 = vld [vmem:[#allocation2 + $0xc0] sm:$0xff]
    %v86 = vld [vmem:[#allocation2 + $0xc8] sm:$0xff]
    %v87 = vld [vmem:[#allocation2 + $0xd0] sm:$0xff]
    %v88 = vld [vmem:[#allocation2 + $0xd8] sm:$0xff]
    %v89 = vld [vmem:[#allocation2 + $0xe0] sm:$0xff]
    %v90 = vld [vmem:[#allocation2 + $0xe8] sm:$0xff]
    %v91 = vld [vmem:[#allocation2 + $0xf0] sm:$0xff]
    %v92 = vld [vmem:[#allocation2 + $0xf8] sm:$0xff]
    %v93 = vld [vmem:[#allocation2 + $0x100] sm:$0xff]
    %v94 = vld [vmem:[#allocation2 + $0x108] sm:$0xff]
    %v95 = vld [vmem:[#allocation2 + $0x110] sm:$0xff]
    %v96 = vld [vmem:[#allocation2 + $0x118] sm:$0xff]
    %v97 = vld [vmem:[#allocation2 + $0x120] sm:$0xff]
    %v98 = vld [vmem:[#allocation2 + $0x128] sm:$0xff]
    %v99 = vld [vmem:[#allocation2 + $0x130] sm:$0xff]
    %v100 = vld [vmem:[#allocation2 + $0x138] sm:$0xff]
    %v101 = vld [vmem:[#allocation2 + $0x140] sm:$0xff]
    %v102 = vld [vmem:[#allocation2 + $0x148] sm:$0xff]
    %v103 = vld [vmem:[#allocation2 + $0x150] sm:$0xff]
    %v104 = vld [vmem:[#allocation2 + $0x158] sm:$0xff]
    %v105 = vld [vmem:[#allocation2 + $0x160] sm:$0xff]
    %v106 = vld [vmem:[#allocation2 + $0x168] sm:$0xff]
    %v107 = vld [vmem:[#allocation2 + $0x170] sm:$0xff]
    %v108 = vld [vmem:[#allocation2 + $0x178] sm:$0xff]
    %v109 = vld [vmem:[#allocation2 + $0x180] sm:$0xff]
    %v110 = vld [vmem:[#allocation2 + $0x188] sm:$0xff]
    %v111 = vld [vmem:[#allocation2 + $0x190] sm:$0xff]
    %v112 = vld [vmem:[#allocation2 + $0x198] sm:$0xff]
    %v113 = vld [vmem:[#allocation2 + $0x1a0] sm:$0xff]
    %v114 = vld [vmem:[#allocation2 + $0x1a8] sm:$0xff]
    %v115 = vld [vmem:[#allocation2 + $0x1b0] sm:$0xff]
    %v116 = vld [vmem:[#allocation2 + $0x1b8] sm:$0xff]
    %v117 = vld [vmem:[#allocation2 + $0x1c0] sm:$0xff]
    %v118 = vld [vmem:[#allocation2 + $0x1c8] sm:$0xff]
    %v119 = vld [vmem:[#allocation2 + $0x1d0] sm:$0xff]
    %v120 = vld [vmem:[#allocation2 + $0x1d8] sm:$0xff]
    %v121 = vld [vmem:[#allocation2 + $0x1e0] sm:$0xff]
    %v122 = vld [vmem:[#allocation2 + $0x1e8] sm:$0xff]
    %v123 = vld [vmem:[#allocation2 + $0x1f0] sm:$0xff]
    %v124 = vld [vmem:[#allocation2 + $0x1f8] sm:$0xff]
    %v189 = vunpack.c.l.b16 %v61
    %v190 = vunpack.c.h.b16 %v61
    %v191 = vunpack.c.l.b16 %v62
    %v192 = vunpack.c.h.b16 %v62
    %v193 = vunpack.c.l.b16 %v63
    %v194 = vunpack.c.h.b16 %v63
    %v195 = vunpack.c.l.b16 %v64
    %v196 = vunpack.c.h.b16 %v64
    %v197 = vunpack.c.l.b16 %v65
    %v198 = vunpack.c.h.b16 %v65
    %v199 = vunpack.c.l.b16 %v66
    %v200 = vunpack.c.h.b16 %v66
    %v201 = vunpack.c.l.b16 %v67
    %v202 = vunpack.c.h.b16 %v67
    %v203 = vunpack.c.l.b16 %v68
    %v204 = vunpack.c.h.b16 %v68
    %v205 = vunpack.c.l.b16 %v69
    %v206 = vunpack.c.h.b16 %v69
    %v207 = vunpack.c.l.b16 %v70
    %v208 = vunpack.c.h.b16 %v70
    %v209 = vunpack.c.l.b16 %v71
    %v210 = vunpack.c.h.b16 %v71
    %v211 = vunpack.c.l.b16 %v72
    %v212 = vunpack.c.h.b16 %v72
    %v213 = vunpack.c.l.b16 %v73
    %v214 = vunpack.c.h.b16 %v73
    %v215 = vunpack.c.l.b16 %v74
    %v216 = vunpack.c.h.b16 %v74
    %v217 = vunpack.c.l.b16 %v75
    %v218 = vunpack.c.h.b16 %v75
    %v219 = vunpack.c.l.b16 %v76
    %v220 = vunpack.c.h.b16 %v76
    %v221 = vunpack.c.l.b16 %v77
    %v222 = vunpack.c.h.b16 %v77
    %v223 = vunpack.c.l.b16 %v78
    %v224 = vunpack.c.h.b16 %v78
    %v225 = vunpack.c.l.b16 %v79
    %v226 = vunpack.c.h.b16 %v79
    %v227 = vunpack.c.l.b16 %v80
    %v228 = vunpack.c.h.b16 %v80
    %v229 = vunpack.c.l.b16 %v81
    %v230 = vunpack.c.h.b16 %v81
    %v231 = vunpack.c.l.b16 %v82
    %v232 = vunpack.c.h.b16 %v82
    %v233 = vunpack.c.l.b16 %v83
    %v234 = vunpack.c.h.b16 %v83
    %v235 = vunpack.c.l.b16 %v84
    %v236 = vunpack.c.h.b16 %v84
    %v237 = vunpack.c.l.b16 %v85
    %v238 = vunpack.c.h.b16 %v85
    %v239 = vunpack.c.l.b16 %v86
    %v240 = vunpack.c.h.b16 %v86
    %v241 = vunpack.c.l.b16 %v87
    %v242 = vunpack.c.h.b16 %v87
    %v243 = vunpack.c.l.b16 %v88
    %v244 = vunpack.c.h.b16 %v88
    %v245 = vunpack.c.l.b16 %v89
    %v246 = vunpack.c.h.b16 %v89
    %v247 = vunpack.c.l.b16 %v90
    %v248 = vunpack.c.h.b16 %v90
    %v249 = vunpack.c.l.b16 %v91
    %v250 = vunpack.c.h.b16 %v91
    %v251 = vunpack.c.l.b16 %v92
    %v252 = vunpack.c.h.b16 %v92
    %v253 = vunpack.c.l.b16 %v93
    %v254 = vunpack.c.h.b16 %v93
    %v255 = vunpack.c.l.b16 %v94
    %v256 = vunpack.c.h.b16 %v94
    %v257 = vunpack.c.l.b16 %v95
    %v258 = vunpack.c.h.b16 %v95
    %v259 = vunpack.c.l.b16 %v96
    %v260 = vunpack.c.h.b16 %v96
    %v261 = vunpack.c.l.b16 %v97
    %v262 = vunpack.c.h.b16 %v97
    %v263 = vunpack.c.l.b16 %v98
    %v264 = vunpack.c.h.b16 %v98
    %v265 = vunpack.c.l.b16 %v99
    %v266 = vunpack.c.h.b16 %v99
    %v267 = vunpack.c.l.b16 %v100
    %v268 = vunpack.c.h.b16 %v100
    %v269 = vunpack.c.l.b16 %v101
    %v270 = vunpack.c.h.b16 %v101
    %v271 = vunpack.c.l.b16 %v102
    %v272 = vunpack.c.h.b16 %v102
    %v273 = vunpack.c.l.b16 %v103
    %v274 = vunpack.c.h.b16 %v103
    %v275 = vunpack.c.l.b16 %v104
    %v276 = vunpack.c.h.b16 %v104
    %v277 = vunpack.c.l.b16 %v105
    %v278 = vunpack.c.h.b16 %v105
    %v279 = vunpack.c.l.b16 %v106
    %v280 = vunpack.c.h.b16 %v106
    %v281 = vunpack.c.l.b16 %v107
    %v282 = vunpack.c.h.b16 %v107
    %v283 = vunpack.c.l.b16 %v108
    %v284 = vunpack.c.h.b16 %v108
    %v285 = vunpack.c.l.b16 %v109
    %v286 = vunpack.c.h.b16 %v109
    %v287 = vunpack.c.l.b16 %v110
    %v288 = vunpack.c.h.b16 %v110
    %v289 = vunpack.c.l.b16 %v111
    %v290 = vunpack.c.h.b16 %v111
    %v291 = vunpack.c.l.b16 %v112
    %v292 = vunpack.c.h.b16 %v112
    %v293 = vunpack.c.l.b16 %v113
    %v294 = vunpack.c.h.b16 %v113
    %v295 = vunpack.c.l.b16 %v114
    %v296 = vunpack.c.h.b16 %v114
    %v297 = vunpack.c.l.b16 %v115
    %v298 = vunpack.c.h.b16 %v115
    %v299 = vunpack.c.l.b16 %v116
    %v300 = vunpack.c.h.b16 %v116
    %v301 = vunpack.c.l.b16 %v117
    %v302 = vunpack.c.h.b16 %v117
    %v303 = vunpack.c.l.b16 %v118
    %v304 = vunpack.c.h.b16 %v118
    %v305 = vunpack.c.l.b16 %v119
    %v306 = vunpack.c.h.b16 %v119
    %v307 = vunpack.c.l.b16 %v120
    %v308 = vunpack.c.h.b16 %v120
    %v309 = vunpack.c.l.b16 %v121
    %v310 = vunpack.c.h.b16 %v121
    %v311 = vunpack.c.l.b16 %v122
    %v312 = vunpack.c.h.b16 %v122
    %v313 = vunpack.c.l.b16 %v123
    %v314 = vunpack.c.h.b16 %v123
    %v315 = vunpack.c.l.b16 %v124
    %v316 = vunpack.c.h.b16 %v124
    %v317 = vpack.c.b16 %v191, %v189
    %v318 = vpack.c.b16 %v192, %v190
    %v319 = vpack.c.b16 %v195, %v193
    %v320 = vpack.c.b16 %v196, %v194
    %v321 = vpack.c.b16 %v199, %v197
    %v322 = vpack.c.b16 %v200, %v198
    %v323 = vpack.c.b16 %v203, %v201
    %v324 = vpack.c.b16 %v204, %v202
    %v325 = vpack.c.b16 %v207, %v205
    %v326 = vpack.c.b16 %v208, %v206
    %v327 = vpack.c.b16 %v211, %v209
    %v328 = vpack.c.b16 %v212, %v210
    %v329 = vpack.c.b16 %v215, %v213
    %v330 = vpack.c.b16 %v216, %v214
    %v331 = vpack.c.b16 %v219, %v217
    %v332 = vpack.c.b16 %v220, %v218
    %v333 = vpack.c.b16 %v223, %v221
    %v334 = vpack.c.b16 %v224, %v222
    %v335 = vpack.c.b16 %v227, %v225
    %v336 = vpack.c.b16 %v228, %v226
    %v337 = vpack.c.b16 %v231, %v229
    %v338 = vpack.c.b16 %v232, %v230
    %v339 = vpack.c.b16 %v235, %v233
    %v340 = vpack.c.b16 %v236, %v234
    %v341 = vpack.c.b16 %v239, %v237
    %v342 = vpack.c.b16 %v240, %v238
    %v343 = vpack.c.b16 %v243, %v241
    %v344 = vpack.c.b16 %v244, %v242
    %v345 = vpack.c.b16 %v247, %v245
    %v346 = vpack.c.b16 %v248, %v246
    %v347 = vpack.c.b16 %v251, %v249
    %v348 = vpack.c.b16 %v252, %v250
    %v349 = vpack.c.b16 %v255, %v253
    %v350 = vpack.c.b16 %v256, %v254
    %v351 = vpack.c.b16 %v259, %v257
    %v352 = vpack.c.b16 %v260, %v258
    %v353 = vpack.c.b16 %v263, %v261
    %v354 = vpack.c.b16 %v264, %v262
    %v355 = vpack.c.b16 %v267, %v265
    %v356 = vpack.c.b16 %v268, %v266
    %v357 = vpack.c.b16 %v271, %v269
    %v358 = vpack.c.b16 %v272, %v270
    %v359 = vpack.c.b16 %v275, %v273
    %v360 = vpack.c.b16 %v276, %v274
    %v361 = vpack.c.b16 %v279, %v277
    %v362 = vpack.c.b16 %v280, %v278
    %v363 = vpack.c.b16 %v283, %v281
    %v364 = vpack.c.b16 %v284, %v282
    %v365 = vpack.c.b16 %v287, %v285
    %v366 = vpack.c.b16 %v288, %v286
    %v367 = vpack.c.b16 %v291, %v289
    %v368 = vpack.c.b16 %v292, %v290
    %v369 = vpack.c.b16 %v295, %v293
    %v370 = vpack.c.b16 %v296, %v294
    %v371 = vpack.c.b16 %v299, %v297
    %v372 = vpack.c.b16 %v300, %v298
    %v373 = vpack.c.b16 %v303, %v301
    %v374 = vpack.c.b16 %v304, %v302
    %v375 = vpack.c.b16 %v307, %v305
    %v376 = vpack.c.b16 %v308, %v306
    %v377 = vpack.c.b16 %v311, %v309
    %v378 = vpack.c.b16 %v312, %v310
    %v379 = vpack.c.b16 %v315, %v313
    %v380 = vpack.c.b16 %v316, %v314
    %445 = vmatprep.subr.bf16.mxu0 %v318
    %446 = vmatpush1.bf16.msra.mxu0 %v317
    %447 = vmatprep.subr.bf16.mxu0 %v320
    %448 = vmatpush1.bf16.msra.mxu0 %v319
    %449 = vmatprep.subr.bf16.mxu0 %v322
    %450 = vmatpush1.bf16.msra.mxu0 %v321
    %451 = vmatprep.subr.bf16.mxu0 %v324
    %452 = vmatpush1.bf16.msra.mxu0 %v323
    %453 = vmatprep.subr.bf16.mxu0 %v326
    %454 = vmatpush1.bf16.msra.mxu0 %v325
    %455 = vmatprep.subr.bf16.mxu0 %v328
    %456 = vmatpush1.bf16.msra.mxu0 %v327
    %457 = vmatprep.subr.bf16.mxu0 %v330
    %458 = vmatpush1.bf16.msra.mxu0 %v329
    %459 = vmatprep.subr.bf16.mxu0 %v332
    %460 = vmatpush1.bf16.msra.mxu0 %v331
    %461 = vmatprep.subr.bf16.mxu0 %v334
    %462 = vmatpush1.bf16.msra.mxu0 %v333
    %463 = vmatprep.subr.bf16.mxu0 %v336
    %464 = vmatpush1.bf16.msra.mxu0 %v335
    %465 = vmatprep.subr.bf16.mxu0 %v338
    %466 = vmatpush1.bf16.msra.mxu0 %v337
    %467 = vmatprep.subr.bf16.mxu0 %v340
    %468 = vmatpush1.bf16.msra.mxu0 %v339
    %469 = vmatprep.subr.bf16.mxu0 %v342
    %470 = vmatpush1.bf16.msra.mxu0 %v341
    %471 = vmatprep.subr.bf16.mxu0 %v344
    %472 = vmatpush1.bf16.msra.mxu0 %v343
    %473 = vmatprep.subr.bf16.mxu0 %v346
    %474 = vmatpush1.bf16.msra.mxu0 %v345
    %475 = vmatprep.subr.bf16.mxu0 %v348
    %476 = vmatpush1.bf16.msra.mxu0 %v347
    %477 = vmatprep.mubr.bf16.mxu0 %v58
    %478 = vmatmul.mubr.bf16.gmra.mrb[0].mxu0 %v57
    %v479 = vpop.f32.mrb[0].mxu0
    %v480 = vadd.f32 0.0, %v479
    %v481 = vpop.f32.mrb[0].mxu0
    %v482 = vadd.f32 0.0, %v481
    %v483 = vpop.f32.mrb[0].mxu0
    %v484 = vpop.f32.mrb[0].mxu0
    %485 = vdwg.mxu0
    %486 = vmatprep.subr.bf16.mxu0 %v350
    %487 = vmatpush1.bf16.msra.mxu0 %v349
    %488 = vmatprep.subr.bf16.mxu0 %v352
    %489 = vmatpush1.bf16.msra.mxu0 %v351
    %490 = vmatprep.subr.bf16.mxu0 %v354
    %491 = vmatpush1.bf16.msra.mxu0 %v353
    %492 = vmatprep.subr.bf16.mxu0 %v356
    %493 = vmatpush1.bf16.msra.mxu0 %v355
    %494 = vmatprep.subr.bf16.mxu0 %v358
    %495 = vmatpush1.bf16.msra.mxu0 %v357
    %496 = vmatprep.subr.bf16.mxu0 %v360
    %497 = vmatpush1.bf16.msra.mxu0 %v359
    %498 = vmatprep.subr.bf16.mxu0 %v362
    %499 = vmatpush1.bf16.msra.mxu0 %v361
    %500 = vmatprep.subr.bf16.mxu0 %v364
    %501 = vmatpush1.bf16.msra.mxu0 %v363
    %502 = vmatprep.subr.bf16.mxu0 %v366
    %503 = vmatpush1.bf16.msra.mxu0 %v365
    %504 = vmatprep.subr.bf16.mxu0 %v368
    %505 = vmatpush1.bf16.msra.mxu0 %v367
    %506 = vmatprep.subr.bf16.mxu0 %v370
    %507 = vmatpush1.bf16.msra.mxu0 %v369
    %508 = vmatprep.subr.bf16.mxu0 %v372
    %509 = vmatpush1.bf16.msra.mxu0 %v371
    %510 = vmatprep.subr.bf16.mxu0 %v374
    %511 = vmatpush1.bf16.msra.mxu0 %v373
    %512 = vmatprep.subr.bf16.mxu0 %v376
    %513 = vmatpush1.bf16.msra.mxu0 %v375
    %514 = vmatprep.subr.bf16.mxu0 %v378
    %515 = vmatpush1.bf16.msra.mxu0 %v377
    %516 = vmatprep.subr.bf16.mxu0 %v380
    %517 = vmatpush1.bf16.msra.mxu0 %v379
    %518 = vmatprep.mubr.bf16.mxu0 %v60
    %519 = vmatmul.mubr.bf16.gmra.mrb[0].mxu0 %v59
    %v520 = vpop.f32.mrb[0].mxu0
    %v521 = vadd.f32 %v480, %v520
    %v522 = vpop.f32.mrb[0].mxu0
    %v523 = vadd.f32 %v482, %v522
    %v524 = vpop.f32.mrb[0].mxu0
    %v525 = vpop.f32.mrb[0].mxu0
    %526 = vdwg.mxu0
    %v529 = vcombine.low %v521, %v523
    %v531 = vunpack.c.l.s4 1983009808
    %v532 = vunpack.c.0.s8 %v531
    %v533 = vlaneseq
    %v534 = vshrl.u32 %v533, 7
    %v535 = vsub.s32 %v532, %v534
    %v536 = vrot.slane %v529, %v535
    %v538 = vadd.f32 %v34, %v536
    %539 = vst [vmem:[%s3] sm:$0xf] %v538
    // Predicated region
    $region22: #{_lambda_.8} parent=1 // pred_check
      %p540 = pneg %p28
    $region23: #{_lambda_.8} parent=1 // pred_check_branch
      %542 = sbr.rel (%p540) target = $region25
    $region24: #{_lambda_.8} parent=1 // pred_region
      %v543 = vld [vmem:[%s3] sm:$0xf]
      %v544 = vld [vmem:[%s2] sm:$0x3]
      %v546 = vlaneseq
      %v547 = vshrl.u32 %v546, 7
      %v548 = vsub.s32 0, %v547
      %v549 = vrot.slane %v544, %v548
      %v550 = vlaneseq
      %v551 = vshrl.u32 %v550, 7
      %v552 = vsub.s32 1, %v551
      %v553 = vrot.slane %v544, %v552
      %v554 = vcombine.low %v549, %v553
      %v556 = vunpack.c.l.s4 1983009808
      %v557 = vunpack.c.0.s8 %v556
      %v558 = vlaneseq
      %v559 = vshrl.u32 %v558, 7
      %v560 = vsub.s32 %v557, %v559
      %v561 = vrot.slane %v554, %v560
      %v563 = vadd.f32 %v543, %v561
      %564 = vst [vmem:[%s3] sm:$0xf] %v563
    $region25: #{_lambda_.8} parent=1 // pred_fallthru
      _
    // Predicated region
    $region26: #{_lambda_.8} parent=1 // pred_check
      _
    $region27: #{_lambda_.8} parent=1 // pred_check_branch
      %566 = sbr.rel (0) target = $region29
    $region28: #{_lambda_.8} parent=1 // pred_region
      _
    $region29: #{_lambda_.8} parent=1 // pred_fallthru
      _
    // Predicated region
    $region30: #{_lambda_.8} parent=1 // pred_check
      _
    $region31: #{_lambda_.8} parent=1 // pred_check_branch
      %568 = sbr.rel (0) target = $region33
    $region32: #{_lambda_.8} parent=1 // pred_region
      _
    $region33: #{_lambda_.8} parent=1 // pred_fallthru
      _
    %569 = vsyncpa [#allocation3], 1

// kernel: _lambda_.14
$region0: #{_lambda_.14}
  #allocation0 [shape = 'u32[]', space=smem, size = 0x4, offset = 0x4, fixed_abs, tag = 'smem constant byte address 0x4 - core index']
  #allocation1 [shape = 'u32[144,128]{1,0:T(1,128)}', space=vmem, size = 0x12000, scoped, tag = 'internal scratch']
  %s0 = inlined_call_operand.vmem [shape: f32[2,64], index: 0, kind: input, shape index: {}]
  %s1 = inlined_call_operand.vmem [shape: bf16[64,384], index: 1, kind: input, shape index: {}]
  %s2 = inlined_call_operand.vmem [shape: f32[1,384], index: 2, kind: input, shape index: {}]
  %s3 = inlined_call_operand.vmem [shape: f32[2,384], index: 3, kind: output, shape index: {}]
  %s4 = sld [smem:[#allocation0]]
  $region30: #{_lambda_.14} parent=0
    _
  %s6 = ssub.s32 1, %s4
  %s7 = scalar_select 0, %s6, %s4
  // Predicated region
  $region2: #{_lambda_.14} parent=0 // pred_check
    _
  $region3: #{_lambda_.14} parent=0 // pred_check_branch
    %9 = sbr.rel (0) target = $region5
  $region4: #{_lambda_.14} parent=0 // pred_region
    _
  $region5: #{_lambda_.14} parent=0 // pred_fallthru
    _
  // Predicated region
  $region6: #{_lambda_.14} parent=0 // pred_check
    _
  $region7: #{_lambda_.14} parent=0 // pred_check_branch
    %11 = sbr.rel (0) target = $region9
  $region8: #{_lambda_.14} parent=0 // pred_region
    _
  $region9: #{_lambda_.14} parent=0 // pred_fallthru
    _
  // Predicated region
  $region10: #{_lambda_.14} parent=0 // pred_check
    _
  $region11: #{_lambda_.14} parent=0 // pred_check_branch
    %13 = sbr.rel (0) target = $region13
  $region12: #{_lambda_.14} parent=0 // pred_region
    _
  $region13: #{_lambda_.14} parent=0 // pred_fallthru
    _
  %p15 = scmp.eq.s32.totalorder 0, 0
  // Predicated region
  $region14: #{_lambda_.14} parent=0 // pred_check
    %p16 = pneg %p15
  $region15: #{_lambda_.14} parent=0 // pred_check_branch
    %18 = sbr.rel (%p16) target = $region17
  $region16: #{_lambda_.14} parent=0 // pred_region
    %19 = vst [vmem:[%s3] sm:$0x3f] 0.0
  $region17: #{_lambda_.14} parent=0 // pred_fallthru
    _
  %v20 = vld [vmem:[%s0] sm:$0x3]
  %v21 = vsub.f32 0.0, %v20
  %v22 = vmul.f32 %v21, 1.442695
  %v23 = vpow.pop %v22
  %v24 = vadd.f32 %v23, 1.0
  %v25 = vrcp.pop %v24
  %v26 = vmul.f32 1.0, %v25
  %v27 = vmul.f32 %v20, %v26
  %v28 = vld [vmem:[%s3] sm:$0x3f]
  %v29 = vpack.c.bf16 %v27, %v27
  %v30 = vld [vmem:[%s1] sm:$0xff]
  %v31 = vld [vmem:[%s1 + $0x8] sm:$0xf]
  %v32 = vld [vmem:[%s1 + $0xc] sm:$0xff]
  %v33 = vld [vmem:[%s1 + $0x14] sm:$0xf]
  %v34 = vld [vmem:[%s1 + $0x18] sm:$0xff]
  %v35 = vld [vmem:[%s1 + $0x20] sm:$0xf]
  %v36 = vld [vmem:[%s1 + $0x24] sm:$0xff]
  %v37 = vld [vmem:[%s1 + $0x2c] sm:$0xf]
  %v38 = vld [vmem:[%s1 + $0x30] sm:$0xff]
  %v39 = vld [vmem:[%s1 + $0x38] sm:$0xf]
  %v40 = vld [vmem:[%s1 + $0x3c] sm:$0xff]
  %v41 = vld [vmem:[%s1 + $0x44] sm:$0xf]
  %v42 = vld [vmem:[%s1 + $0x48] sm:$0xff]
  %v43 = vld [vmem:[%s1 + $0x50] sm:$0xf]
  %v44 = vld [vmem:[%s1 + $0x54] sm:$0xff]
  %v45 = vld [vmem:[%s1 + $0x5c] sm:$0xf]
  %v62 = vunpack.c.l.b16 %v30
  %v63 = vunpack.c.h.b16 %v30
  %v64 = vunpack.c.l.b16 %v31
  %v65 = vunpack.c.l.b16 %v32
  %v66 = vunpack.c.h.b16 %v32
  %v67 = vunpack.c.l.b16 %v33
  %v68 = vunpack.c.l.b16 %v34
  %v69 = vunpack.c.h.b16 %v34
  %v70 = vunpack.c.l.b16 %v35
  %v71 = vunpack.c.l.b16 %v36
  %v72 = vunpack.c.h.b16 %v36
  %v73 = vunpack.c.l.b16 %v37
  %v74 = vunpack.c.l.b16 %v38
  %v75 = vunpack.c.h.b16 %v38
  %v76 = vunpack.c.l.b16 %v39
  %v77 = vunpack.c.l.b16 %v40
  %v78 = vunpack.c.h.b16 %v40
  %v79 = vunpack.c.l.b16 %v41
  %v80 = vunpack.c.l.b16 %v42
  %v81 = vunpack.c.h.b16 %v42
  %v82 = vunpack.c.l.b16 %v43
  %v83 = vunpack.c.l.b16 %v44
  %v84 = vunpack.c.h.b16 %v44
  %v85 = vunpack.c.l.b16 %v45
  %v86 = vpack.c.b16 %v65, %v62
  %v87 = vpack.c.b16 %v66, %v63
  %v88 = vpack.c.b16 %v67, %v64
  %v89 = vpack.c.b16 %v71, %v68
  %v90 = vpack.c.b16 %v72, %v69
  %v91 = vpack.c.b16 %v73, %v70
  %v92 = vpack.c.b16 %v77, %v74
  %v93 = vpack.c.b16 %v78, %v75
  %v94 = vpack.c.b16 %v79, %v76
  %v95 = vpack.c.b16 %v83, %v80
  %v96 = vpack.c.b16 %v84, %v81
  %v97 = vpack.c.b16 %v85, %v82
  %vm110 = vcmask 523264
  %v112 = vsel %vm110, %v29, 0
  %114 = vmatprep.subr.bf16.mxu0 %v87
  %115 = vmatpush1.bf16.msra.mxu0 %v86
  %116 = vmatprep.subr.bf16.mxu0 %v90
  %117 = vmatpush1.bf16.msra.mxu0 %v89
  %118 = vmatprep.subr.bf16.mxu0 %v93
  %119 = vmatpush1.bf16.msra.mxu0 %v92
  %120 = vmatprep.subr.bf16.mxu0 %v96
  %121 = vmatpush1.bf16.msra.mxu0 %v95
  %122 = vmatprep.subr.bf16.mxu0 0
  %123 = vmatpush1.bf16.msra.mxu0 0
  %124 = vmatprep.subr.bf16.mxu0 0
  %125 = vmatpush1.bf16.msra.mxu0 0
  %126 = vmatprep.subr.bf16.mxu0 0
  %127 = vmatpush1.bf16.msra.mxu0 0
  %128 = vmatprep.subr.bf16.mxu0 0
  %129 = vmatpush1.bf16.msra.mxu0 0
  %130 = vmatprep.subr.bf16.mxu0 0
  %131 = vmatpush1.bf16.msra.mxu0 0
  %132 = vmatprep.subr.bf16.mxu0 0
  %133 = vmatpush1.bf16.msra.mxu0 0
  %134 = vmatprep.subr.bf16.mxu0 0
  %135 = vmatpush1.bf16.msra.mxu0 0
  %136 = vmatprep.subr.bf16.mxu0 0
  %137 = vmatpush1.bf16.msra.mxu0 0
  %138 = vmatprep.subr.bf16.mxu0 0
  %139 = vmatpush1.bf16.msra.mxu0 0
  %140 = vmatprep.subr.bf16.mxu0 0
  %141 = vmatpush1.bf16.msra.mxu0 0
  %142 = vmatprep.subr.bf16.mxu0 0
  %143 = vmatpush1.bf16.msra.mxu0 0
  %144 = vmatprep.subr.bf16.mxu0 0
  %145 = vmatpush1.bf16.msra.mxu0 0
  %146 = vmatprep.mubr.bf16.mxu0 0
  %147 = vmatmul.mubr.bf16.gmra.mrb[0].mxu0 %v112
  %v148 = vpop.f32.mrb[0].mxu0
  %v149 = vadd.f32 0.0, %v148
  %v150 = vpop.f32.mrb[0].mxu0
  %v151 = vadd.f32 0.0, %v150
  %v152 = vpop.f32.mrb[0].mxu0
  %v153 = vpop.f32.mrb[0].mxu0
  %154 = vdwg.mxu0
  %155 = vmatprep.subr.bf16.mxu0 0
  %156 = vmatpush1.bf16.msra.mxu0 %v88
  %157 = vmatprep.subr.bf16.mxu0 0
  %158 = vmatpush1.bf16.msra.mxu0 %v91
  %159 = vmatprep.subr.bf16.mxu0 0
  %160 = vmatpush1.bf16.msra.mxu0 %v94
  %161 = vmatprep.subr.bf16.mxu0 0
  %162 = vmatpush1.bf16.msra.mxu0 %v97
  %163 = vmatprep.subr.bf16.mxu0 0
  %164 = vmatpush1.bf16.msra.mxu0 0
  %165 = vmatprep.subr.bf16.mxu0 0
  %166 = vmatpush1.bf16.msra.mxu0 0
  %167 = vmatprep.subr.bf16.mxu0 0
  %168 = vmatpush1.bf16.msra.mxu0 0
  %169 = vmatprep.subr.bf16.mxu0 0
  %170 = vmatpush1.bf16.msra.mxu0 0
  %171 = vmatprep.subr.bf16.mxu0 0
  %172 = vmatpush1.bf16.msra.mxu0 0
  %173 = vmatprep.subr.bf16.mxu0 0
  %174 = vmatpush1.bf16.msra.mxu0 0
  %175 = vmatprep.subr.bf16.mxu0 0
  %176 = vmatpush1.bf16.msra.mxu0 0
  %177 = vmatprep.subr.bf16.mxu0 0
  %178 = vmatpush1.bf16.msra.mxu0 0
  %179 = vmatprep.subr.bf16.mxu0 0
  %180 = vmatpush1.bf16.msra.mxu0 0
  %181 = vmatprep.subr.bf16.mxu0 0
  %182 = vmatpush1.bf16.msra.mxu0 0
  %183 = vmatprep.subr.bf16.mxu0 0
  %184 = vmatpush1.bf16.msra.mxu0 0
  %185 = vmatprep.subr.bf16.mxu0 0
  %186 = vmatpush1.bf16.msra.mxu0 0
  %187 = vmatprep.mubr.bf16.mxu0 0
  %188 = vmatmul.mubr.bf16.gmra.mrb[0].mxu0 %v112
  %v189 = vpop.f32.mrb[0].mxu0
  %v190 = vadd.f32 0.0, %v189
  %v191 = vpop.f32.mrb[0].mxu0
  %v192 = vpop.f32.mrb[0].mxu0
  %v193 = vpop.f32.mrb[0].mxu0
  %194 = vdwg.mxu0
  %v198 = vcombine.low %v149, %v151
  %v200 = vunpack.c.l.s4 1983009808
  %v201 = vunpack.c.0.s8 %v200
  %v202 = vlaneseq
  %v203 = vshrl.u32 %v202, 7
  %v204 = vsub.s32 %v201, %v203
  %v205 = vrot.slane %v198, %v204
  %v207 = vunpack.c.l.s4 1983009808
  %v208 = vunpack.c.0.s8 %v207
  %v209 = vlaneseq
  %v210 = vshrl.u32 %v209, 7
  %v211 = vsub.s32 %v208, %v210
  %v212 = vrot.slane %v190, %v211
  %v213 = vcombine.low %v205, %v212
  %v215 = vadd.f32 %v28, %v213
  %216 = vst [vmem:[%s3] sm:$0x3f] %v215
  // Predicated region
  $region18: #{_lambda_.14} parent=0 // pred_check
    %p217 = pneg %p15
  $region19: #{_lambda_.14} parent=0 // pred_check_branch
    %219 = sbr.rel (%p217) target = $region21
  $region20: #{_lambda_.14} parent=0 // pred_region
    %v220 = vld [vmem:[%s3] sm:$0x3f]
    %v221 = vld [vmem:[%s2] sm:$0x7]
    %v223 = vlaneseq
    %v224 = vshrl.u32 %v223, 7
    %v225 = vsub.s32 0, %v224
    %v226 = vrot.slane %v221, %v225
    %v227 = vlaneseq
    %v228 = vshrl.u32 %v227, 7
    %v229 = vsub.s32 1, %v228
    %v230 = vrot.slane %v221, %v229
    %v231 = vlaneseq
    %v232 = vshrl.u32 %v231, 7
    %v233 = vsub.s32 2, %v232
    %v234 = vrot.slane %v221, %v233
    %v235 = vcombine.low %v226, %v230
    %v237 = vunpack.c.l.s4 1983009808
    %v238 = vunpack.c.0.s8 %v237
    %v239 = vlaneseq
    %v240 = vshrl.u32 %v239, 7
    %v241 = vsub.s32 %v238, %v240
    %v242 = vrot.slane %v235, %v241
    %v244 = vunpack.c.l.s4 1983009808
    %v245 = vunpack.c.0.s8 %v244
    %v246 = vlaneseq
    %v247 = vshrl.u32 %v246, 7
    %v248 = vsub.s32 %v245, %v247
    %v249 = vrot.slane %v234, %v248
    %v250 = vcombine.low %v242, %v249
    %v252 = vadd.f32 %v220, %v250
    %253 = vst [vmem:[%s3] sm:$0x3f] %v252
  $region21: #{_lambda_.14} parent=0 // pred_fallthru
    _
  // Predicated region
  $region22: #{_lambda_.14} parent=0 // pred_check
    _
  $region23: #{_lambda_.14} parent=0 // pred_check_branch
    %255 = sbr.rel (0) target = $region25
  $region24: #{_lambda_.14} parent=0 // pred_region
    _
  $region25: #{_lambda_.14} parent=0 // pred_fallthru
    _
  // Predicated region
  $region26: #{_lambda_.14} parent=0 // pred_check
    _
  $region27: #{_lambda_.14} parent=0 // pred_check_branch
    %257 = sbr.rel (0) target = $region29
  $region28: #{_lambda_.14} parent=0 // pred_region
    _
  $region29: #{_lambda_.14} parent=0 // pred_fallthru
    _

// kernel: _lambda_.12
$region0: #{_lambda_.12}
  #allocation0 [shape = 'u32[]', space=smem, size = 0x4, offset = 0x4, fixed_abs, tag = 'smem constant byte address 0x4 - core index']
  #allocation1 [shape = 'u32[144,128]{1,0:T(1,128)}', space=vmem, size = 0x12000, scoped, tag = 'internal scratch']
  %s0 = inlined_call_operand.vmem [shape: f32[16,32], index: 0, kind: input, shape index: {}]
  %s1 = inlined_call_operand.vmem [shape: bf16[32,64], index: 1, kind: input, shape index: {}]
  %s2 = inlined_call_operand.vmem [shape: f32[1,64], index: 2, kind: input, shape index: {}]
  %s3 = inlined_call_operand.vmem [shape: f32[16,64], index: 3, kind: output, shape index: {}]
  %s4 = sld [smem:[#allocation0]]
  $region30: #{_lambda_.12} parent=0
    _
  %s6 = ssub.s32 1, %s4
  %s7 = scalar_select 0, %s6, %s4
  // Predicated region
  $region2: #{_lambda_.12} parent=0 // pred_check
    _
  $region3: #{_lambda_.12} parent=0 // pred_check_branch
    %9 = sbr.rel (0) target = $region5
  $region4: #{_lambda_.12} parent=0 // pred_region
    _
  $region5: #{_lambda_.12} parent=0 // pred_fallthru
    _
  // Predicated region
  $region6: #{_lambda_.12} parent=0 // pred_check
    _
  $region7: #{_lambda_.12} parent=0 // pred_check_branch
    %11 = sbr.rel (0) target = $region9
  $region8: #{_lambda_.12} parent=0 // pred_region
    _
  $region9: #{_lambda_.12} parent=0 // pred_fallthru
    _
  // Predicated region
  $region10: #{_lambda_.12} parent=0 // pred_check
    _
  $region11: #{_lambda_.12} parent=0 // pred_check_branch
    %13 = sbr.rel (0) target = $region13
  $region12: #{_lambda_.12} parent=0 // pred_region
    _
  $region13: #{_lambda_.12} parent=0 // pred_fallthru
    _
  %p15 = scmp.eq.s32.totalorder 0, 0
  // Predicated region
  $region14: #{_lambda_.12} parent=0 // pred_check
    %p16 = pneg %p15
  $region15: #{_lambda_.12} parent=0 // pred_check_branch
    %18 = sbr.rel (%p16) target = $region17
  $region16: #{_lambda_.12} parent=0 // pred_region
    %vm19 = vcmask 523264
    %20 = vst.msk [vmem:[%s3] sm:$0xff] %vm19, 0.0
    %21 = vst.msk [vmem:[%s3 + $0x8] sm:$0xff] %vm19, 0.0
  $region17: #{_lambda_.12} parent=0 // pred_fallthru
    _
  %v22 = vld [vmem:[%s0] sm:$0xff]
  %v23 = vld [vmem:[%s0 + $0x8] sm:$0xff]
  %v24 = vld [vmem:[%s3] sm:$0xff]
  %v25 = vld [vmem:[%s3 + $0x8] sm:$0xff]
  %v26 = vpack.c.bf16 %v23, %v22
  %v27 = vld [vmem:[%s1] sm:$0xf]
  %v28 = vld [vmem:[%s1 + $0x4] sm:$0xf]
  %v29 = vld [vmem:[%s1 + $0x8] sm:$0xf]
  %v30 = vld [vmem:[%s1 + $0xc] sm:$0xf]
  %v35 = vunpack.c.l.b16 %v27
  %v36 = vunpack.c.l.b16 %v28
  %v37 = vunpack.c.l.b16 %v29
  %v38 = vunpack.c.l.b16 %v30
  %v39 = vpack.c.b16 %v36, %v35
  %v40 = vpack.c.b16 %v38, %v37
  %vm43 = vcmask 261120
  %v45 = vsel %vm43, %v26, 0
  %47 = vmatprep.subr.bf16.mxu0 0
  %48 = vmatpush1.bf16.msra.mxu0 %v39
  %49 = vmatprep.subr.bf16.mxu0 0
  %50 = vmatpush1.bf16.msra.mxu0 %v40
  %51 = vmatprep.subr.bf16.mxu0 0
  %52 = vmatpush1.bf16.msra.mxu0 0
  %53 = vmatprep.subr.bf16.mxu0 0
  %54 = vmatpush1.bf16.msra.mxu0 0
  %55 = vmatprep.subr.bf16.mxu0 0
  %56 = vmatpush1.bf16.msra.mxu0 0
  %57 = vmatprep.subr.bf16.mxu0 0
  %58 = vmatpush1.bf16.msra.mxu0 0
  %59 = vmatprep.subr.bf16.mxu0 0
  %60 = vmatpush1.bf16.msra.mxu0 0
  %61 = vmatprep.subr.bf16.mxu0 0
  %62 = vmatpush1.bf16.msra.mxu0 0
  %63 = vmatprep.subr.bf16.mxu0 0
  %64 = vmatpush1.bf16.msra.mxu0 0
  %65 = vmatprep.subr.bf16.mxu0 0
  %66 = vmatpush1.bf16.msra.mxu0 0
  %67 = vmatprep.subr.bf16.mxu0 0
  %68 = vmatpush1.bf16.msra.mxu0 0
  %69 = vmatprep.subr.bf16.mxu0 0
  %70 = vmatpush1.bf16.msra.mxu0 0
  %71 = vmatprep.subr.bf16.mxu0 0
  %72 = vmatpush1.bf16.msra.mxu0 0
  %73 = vmatprep.subr.bf16.mxu0 0
  %74 = vmatpush1.bf16.msra.mxu0 0
  %75 = vmatprep.subr.bf16.mxu0 0
  %76 = vmatpush1.bf16.msra.mxu0 0
  %77 = vmatprep.subr.bf16.mxu0 0
  %78 = vmatpush1.bf16.msra.mxu0 0
  %79 = vmatprep.mubr.bf16.mxu0 0
  %80 = vmatmul.mubr.bf16.gmra.mrb[0].mxu0 %v45
  %v81 = vpop.f32.mrb[0].mxu0
  %v82 = vadd.f32 0.0, %v81
  %v83 = vpop.f32.mrb[0].mxu0
  %v84 = vpop.f32.mrb[0].mxu0
  %v85 = vadd.f32 0.0, %v84
  %v86 = vpop.f32.mrb[0].mxu0
  %87 = vdwg.mxu0
  %v88 = vadd.f32 %v24, %v82
  %v89 = vadd.f32 %v25, %v85
  %vm90 = vcmask 523264
  %91 = vst.msk [vmem:[%s3] sm:$0xff] %vm90, %v88
  %92 = vst.msk [vmem:[%s3 + $0x8] sm:$0xff] %vm90, %v89
  // Predicated region
  $region18: #{_lambda_.12} parent=0 // pred_check
    %p93 = pneg %p15
  $region19: #{_lambda_.12} parent=0 // pred_check_branch
    %95 = sbr.rel (%p93) target = $region21
  $region20: #{_lambda_.12} parent=0 // pred_region
    %v96 = vld [vmem:[%s3] sm:$0xff]
    %v97 = vld [vmem:[%s3 + $0x8] sm:$0xff]
    %v98 = vld [vmem:[%s2] sm:$0x1]
    %v100 = vlaneseq
    %v101 = vshrl.u32 %v100, 7
    %v102 = vsub.s32 0, %v101
    %v103 = vrot.slane %v98, %v102
    %v105 = vadd.f32 %v96, %v103
    %v106 = vadd.f32 %v97, %v103
    %v107 = vmul.f32 %v105, 0.5
    %v108 = vmul.f32 %v106, 0.5
    %v109 = vmul.f32 %v105, 0.044715
    %v110 = vmul.f32 %v106, 0.044715
    %v111 = vmul.f32 %v109, %v105
    %v112 = vmul.f32 %v110, %v106
    %v113 = vmul.f32 %v111, %v105
    %v114 = vmul.f32 %v112, %v106
    %v115 = vadd.f32 %v105, %v113
    %v116 = vadd.f32 %v106, %v114
    %v117 = vmul.f32 %v115, 0.7978846
    %v118 = vmul.f32 %v116, 0.7978846
    %v119 = vtanh.pop %v117
    %v120 = vtanh.pop %v118
    %v121 = vadd.f32 %v119, 1.0
    %v122 = vadd.f32 %v120, 1.0
    %v123 = vmul.f32 %v107, %v121
    %v124 = vmul.f32 %v108, %v122
    %125 = vst.msk [vmem:[%s3] sm:$0xff] %vm90, %v123
    %126 = vst.msk [vmem:[%s3 + $0x8] sm:$0xff] %vm90, %v124
  $region21: #{_lambda_.12} parent=0 // pred_fallthru
    _
  // Predicated region
  $region22: #{_lambda_.12} parent=0 // pred_check
    _
  $region23: #{_lambda_.12} parent=0 // pred_check_branch
    %128 = sbr.rel (0) target = $region25
  $region24: #{_lambda_.12} parent=0 // pred_region
    _
  $region25: #{_lambda_.12} parent=0 // pred_fallthru
    _
  // Predicated region
  $region26: #{_lambda_.12} parent=0 // pred_check
    _
  $region27: #{_lambda_.12} parent=0 // pred_check_branch
    %130 = sbr.rel (0) target = $region29
  $region28: #{_lambda_.12} parent=0 // pred_region
    _
  $region29: #{_lambda_.12} parent=0 // pred_fallthru
    _

// kernel: _lambda_.13
$region0: #{_lambda_.13}
  #allocation0 [shape = 'u32[]', space=smem, size = 0x4, offset = 0x4, fixed_abs, tag = 'smem constant byte address 0x4 - core index']
  #allocation1 [shape = 'u32[144,128]{1,0:T(1,128)}', space=vmem, size = 0x12000, scoped, tag = 'internal scratch']
  %s0 = inlined_call_operand.vmem [shape: f32[16,64], index: 0, kind: input, shape index: {}]
  %s1 = inlined_call_operand.vmem [shape: bf16[64,64], index: 1, kind: input, shape index: {}]
  %s2 = inlined_call_operand.vmem [shape: f32[1,64], index: 2, kind: input, shape index: {}]
  %s3 = inlined_call_operand.vmem [shape: f32[16,64], index: 3, kind: output, shape index: {}]
  %s4 = sld [smem:[#allocation0]]
  $region30: #{_lambda_.13} parent=0
    _
  %s6 = ssub.s32 1, %s4
  %s7 = scalar_select 0, %s6, %s4
  // Predicated region
  $region2: #{_lambda_.13} parent=0 // pred_check
    _
  $region3: #{_lambda_.13} parent=0 // pred_check_branch
    %9 = sbr.rel (0) target = $region5
  $region4: #{_lambda_.13} parent=0 // pred_region
    _
  $region5: #{_lambda_.13} parent=0 // pred_fallthru
    _
  // Predicated region
  $region6: #{_lambda_.13} parent=0 // pred_check
    _
  $region7: #{_lambda_.13} parent=0 // pred_check_branch
    %11 = sbr.rel (0) target = $region9
  $region8: #{_lambda_.13} parent=0 // pred_region
    _
  $region9: #{_lambda_.13} parent=0 // pred_fallthru
    _
  // Predicated region
  $region10: #{_lambda_.13} parent=0 // pred_check
    _
  $region11: #{_lambda_.13} parent=0 // pred_check_branch
    %13 = sbr.rel (0) target = $region13
  $region12: #{_lambda_.13} parent=0 // pred_region
    _
  $region13: #{_lambda_.13} parent=0 // pred_fallthru
    _
  %p15 = scmp.eq.s32.totalorder 0, 0
  // Predicated region
  $region14: #{_lambda_.13} parent=0 // pred_check
    %p16 = pneg %p15
  $region15: #{_lambda_.13} parent=0 // pred_check_branch
    %18 = sbr.rel (%p16) target = $region17
  $region16: #{_lambda_.13} parent=0 // pred_region
    %vm19 = vcmask 523264
    %20 = vst.msk [vmem:[%s3] sm:$0xff] %vm19, 0.0
    %21 = vst.msk [vmem:[%s3 + $0x8] sm:$0xff] %vm19, 0.0
  $region17: #{_lambda_.13} parent=0 // pred_fallthru
    _
  %v22 = vld [vmem:[%s0] sm:$0xff]
  %v23 = vld [vmem:[%s0 + $0x8] sm:$0xff]
  %v24 = vld [vmem:[%s3] sm:$0xff]
  %v25 = vld [vmem:[%s3 + $0x8] sm:$0xff]
  %v26 = vpack.c.bf16 %v23, %v22
  %v27 = vld [vmem:[%s1] sm:$0xf]
  %v28 = vld [vmem:[%s1 + $0x4] sm:$0xf]
  %v29 = vld [vmem:[%s1 + $0x8] sm:$0xf]
  %v30 = vld [vmem:[%s1 + $0xc] sm:$0xf]
  %v31 = vld [vmem:[%s1 + $0x10] sm:$0xf]
  %v32 = vld [vmem:[%s1 + $0x14] sm:$0xf]
  %v33 = vld [vmem:[%s1 + $0x18] sm:$0xf]
  %v34 = vld [vmem:[%s1 + $0x1c] sm:$0xf]
  %v43 = vunpack.c.l.b16 %v27
  %v44 = vunpack.c.l.b16 %v28
  %v45 = vunpack.c.l.b16 %v29
  %v46 = vunpack.c.l.b16 %v30
  %v47 = vunpack.c.l.b16 %v31
  %v48 = vunpack.c.l.b16 %v32
  %v49 = vunpack.c.l.b16 %v33
  %v50 = vunpack.c.l.b16 %v34
  %v51 = vpack.c.b16 %v44, %v43
  %v52 = vpack.c.b16 %v46, %v45
  %v53 = vpack.c.b16 %v48, %v47
  %v54 = vpack.c.b16 %v50, %v49
  %vm59 = vcmask 523264
  %v61 = vsel %vm59, %v26, 0
  %63 = vmatprep.subr.bf16.mxu0 0
  %64 = vmatpush1.bf16.msra.mxu0 %v51
  %65 = vmatprep.subr.bf16.mxu0 0
  %66 = vmatpush1.bf16.msra.mxu0 %v52
  %67 = vmatprep.subr.bf16.mxu0 0
  %68 = vmatpush1.bf16.msra.mxu0 %v53
  %69 = vmatprep.subr.bf16.mxu0 0
  %70 = vmatpush1.bf16.msra.mxu0 %v54
  %71 = vmatprep.subr.bf16.mxu0 0
  %72 = vmatpush1.bf16.msra.mxu0 0
  %73 = vmatprep.subr.bf16.mxu0 0
  %74 = vmatpush1.bf16.msra.mxu0 0
  %75 = vmatprep.subr.bf16.mxu0 0
  %76 = vmatpush1.bf16.msra.mxu0 0
  %77 = vmatprep.subr.bf16.mxu0 0
  %78 = vmatpush1.bf16.msra.mxu0 0
  %79 = vmatprep.subr.bf16.mxu0 0
  %80 = vmatpush1.bf16.msra.mxu0 0
  %81 = vmatprep.subr.bf16.mxu0 0
  %82 = vmatpush1.bf16.msra.mxu0 0
  %83 = vmatprep.subr.bf16.mxu0 0
  %84 = vmatpush1.bf16.msra.mxu0 0
  %85 = vmatprep.subr.bf16.mxu0 0
  %86 = vmatpush1.bf16.msra.mxu0 0
  %87 = vmatprep.subr.bf16.mxu0 0
  %88 = vmatpush1.bf16.msra.mxu0 0
  %89 = vmatprep.subr.bf16.mxu0 0
  %90 = vmatpush1.bf16.msra.mxu0 0
  %91 = vmatprep.subr.bf16.mxu0 0
  %92 = vmatpush1.bf16.msra.mxu0 0
  %93 = vmatprep.subr.bf16.mxu0 0
  %94 = vmatpush1.bf16.msra.mxu0 0
  %95 = vmatprep.mubr.bf16.mxu0 0
  %96 = vmatmul.mubr.bf16.gmra.mrb[0].mxu0 %v61
  %v97 = vpop.f32.mrb[0].mxu0
  %v98 = vadd.f32 0.0, %v97
  %v99 = vpop.f32.mrb[0].mxu0
  %v100 = vpop.f32.mrb[0].mxu0
  %v101 = vadd.f32 0.0, %v100
  %v102 = vpop.f32.mrb[0].mxu0
  %103 = vdwg.mxu0
  %v104 = vadd.f32 %v24, %v98
  %v105 = vadd.f32 %v25, %v101
  %106 = vst.msk [vmem:[%s3] sm:$0xff] %vm59, %v104
  %107 = vst.msk [vmem:[%s3 + $0x8] sm:$0xff] %vm59, %v105
  // Predicated region
  $region18: #{_lambda_.13} parent=0 // pred_check
    %p108 = pneg %p15
  $region19: #{_lambda_.13} parent=0 // pred_check_branch
    %110 = sbr.rel (%p108) target = $region21
  $region20: #{_lambda_.13} parent=0 // pred_region
    %v111 = vld [vmem:[%s3] sm:$0xff]
    %v112 = vld [vmem:[%s3 + $0x8] sm:$0xff]
    %v113 = vld [vmem:[%s2] sm:$0x1]
    %v115 = vlaneseq
    %v116 = vshrl.u32 %v115, 7
    %v117 = vsub.s32 0, %v116
    %v118 = vrot.slane %v113, %v117
    %v120 = vadd.f32 %v111, %v118
    %v121 = vadd.f32 %v112, %v118
    %122 = vst.msk [vmem:[%s3] sm:$0xff] %vm59, %v120
    %123 = vst.msk [vmem:[%s3 + $0x8] sm:$0xff] %vm59, %v121
  $region21: #{_lambda_.13} parent=0 // pred_fallthru
    _
  // Predicated region
  $region22: #{_lambda_.13} parent=0 // pred_check
    _
  $region23: #{_lambda_.13} parent=0 // pred_check_branch
    %125 = sbr.rel (0) target = $region25
  $region24: #{_lambda_.13} parent=0 // pred_region
    _
  $region25: #{_lambda_.13} parent=0 // pred_fallthru
    _
  // Predicated region
  $region26: #{_lambda_.13} parent=0 // pred_check
    _
  $region27: #{_lambda_.13} parent=0 // pred_check_branch
    %127 = sbr.rel (0) target = $region29
  $region28: #{_lambda_.13} parent=0 // pred_region
    _
  $region29: #{_lambda_.13} parent=0 // pred_fallthru
    _

// kernel: closed_call.30
$region0: #{closed_call.30}
  #allocation0 [shape = 'u32[]', space=smem, size = 0x4, offset = 0x4, fixed_abs, tag = 'smem constant byte address 0x4 - core index']
  #allocation1 [shape = 'u32[144,128]{1,0:T(1,128)}', space=vmem, size = 0x12000, scoped, tag = 'internal scratch']
  %s0 = inlined_call_operand.vmem [shape: bf16[2,16,64], index: 0, kind: input, shape index: {}]
  %s1 = inlined_call_operand.vmem [shape: bf16[64,64], index: 1, kind: input, shape index: {}]
  %s2 = inlined_call_operand.vmem [shape: f32[1,64], index: 2, kind: input, shape index: {}]
  %s3 = inlined_call_operand.vmem [shape: f32[2,16,64], index: 3, kind: input, shape index: {}]
  %s4 = inlined_call_operand.vmem [shape: f32[2,1,64], index: 4, kind: input, shape index: {}]
  %s5 = inlined_call_operand.vmem [shape: f32[2,16,64], index: 5, kind: output, shape index: {}]
  %s6 = sld [smem:[#allocation0]]
  $region61: #{closed_call.30} parent=0
    _
  %s8 = ssub.s32 1, %s6
  %s9 = scalar_select 0, %s8, %s6
  loop: start=0, step=1, limit=4
  $region2: #{closed_call.30} parent=0 // loop_pre_header
    _
  $region3: #{closed_call.30} parent=0 // loop_header
    %s11 = sphi 0, %s15
    %p12 = scmp.ge.s32.totalorder %s11, 4
    %s18 = sphi 0, %s44
    %s19 = sphi 0, %s40
    %s20 = sphi 0, %s36
    %s21 = sphi 0, %s32
    %s22 = sphi 0, %s18
    %s23 = sphi 0, %s19
    %s24 = sphi 0, %s20
    %s25 = sphi 0, %s21
    %s26 = sphi 0, %s22
    %s27 = sphi 0, %s23
    %s28 = sphi 0, %s24
    %s29 = sphi 0, %s25
    %s51 = sphi 0, %s53
    %s54 = sphi 0, %s51
    %s55 = sphi 0, %s54
    %s71 = sphi 0, %s55
    %s79 = sphi 0, %s81
    %s82 = sphi 0, %s79
    %s83 = sphi 0, %s82
    %s99 = sphi 0, %s83
    %s105 = sphi 0, %s107
    %s108 = sphi 0, %s105
    %s109 = sphi 0, %s108
    %s125 = sphi 0, %s109
    %s135 = sphi 0, %s137
    %s138 = sphi 0, %s135
    %s139 = sphi 0, %s138
    %s155 = sphi 0, %s139
    %s163 = sphi 0, %s165
    %s166 = sphi 0, %s163
    %s167 = sphi 0, %s166
    %s183 = sphi 0, %s167
    %s193 = sphi 0, %s195
    %s196 = sphi 0, %s193
    %s197 = sphi 0, %s196
    %s213 = sphi 0, %s197
  $region4: #{closed_call.30} parent=0 // loop_header_branch
    %14 = sbr.rel (%p12) target = $region8
  $region5: #{closed_call.30} parent=0 // loop_body
    %s16 = ssub.s32 %s11, 1
    %s17 = ssub.s32 %s11, 2
    %s30 = sadd.s32 1, %s21
    %p31 = scmp.ge.s32.totalorder %s30, 1
    %s32 = scalar_select %p31, 0, %s30
    %s33 = sadd.s32 1, %s20
    %s34 = scalar_select %p31, %s33, %s20
    %p35 = scmp.ge.s32.totalorder %s34, 1
    %s36 = scalar_select %p35, 0, %s34
    %s37 = sadd.s32 1, %s19
    %s38 = scalar_select %p35, %s37, %s19
    %p39 = scmp.ge.s32.totalorder %s38, 1
    %s40 = scalar_select %p39, 0, %s38
    %s41 = sadd.s32 1, %s18
    %s42 = scalar_select %p39, %s41, %s18
    %p43 = scmp.ge.s32.totalorder %s42, 2
    %s44 = scalar_select %p43, 0, %s42
    %s45 = ssub.s32 %s18, %s44
    %s46 = ssub.s32 %s19, %s40
    %s47 = sor.u32 %s45, %s46
    %s48 = ssub.s32 %s21, %s32
    %s49 = sor.u32 %s47, %s48
    %p50 = scmp.eq.s32.totalorder %s49, 0
    %s52 = sadd.s32 %s51, 1
    %s53 = scalar_select %p50, %s51, %s52
    %p56 = pneg %p50
    %p57 = scmp.eq.s32.totalorder %s11, 1
    %p58 = por %p56, %p57
    %p59 = scmp.ne.s32.totalorder %s51, %s54
    %p60 = scmp.eq.s32.totalorder %s11, 0
    %p61 = por %p59, %p60
    %p62 = scmp.ne.s32.totalorder %s51, %s54
    %p63 = scmp.eq.s32.totalorder %s16, 1
    %p64 = por %p62, %p63
    %p65 = scmp.ne.s32.totalorder %s54, %s55
    %p66 = scmp.eq.s32.totalorder %s16, 0
    %p67 = por %p65, %p66
    %p68 = scmp.ne.s32.totalorder %s54, %s55
    %p69 = scmp.eq.s32.totalorder %s17, 1
    %p70 = por %p68, %p69
    %p72 = scmp.ne.s32.totalorder %s55, %s71
    %p73 = scmp.eq.s32.totalorder %s17, 0
    %p74 = por %p72, %p73
    %s75 = ssub.s32 %s21, %s32
    %s76 = ssub.s32 %s20, %s36
    %s77 = sor.u32 %s75, %s76
    %p78 = scmp.eq.s32.totalorder %s77, 0
    %s80 = sadd.s32 %s79, 1
    %s81 = scalar_select %p78, %s79, %s80
    %p84 = pneg %p78
    %p85 = scmp.eq.s32.totalorder %s11, 1
    %p86 = por %p84, %p85
    %p87 = scmp.ne.s32.totalorder %s79, %s82
    %p88 = scmp.eq.s32.totalorder %s11, 0
    %p89 = por %p87, %p88
    %p90 = scmp.ne.s32.totalorder %s79, %s82
    %p91 = scmp.eq.s32.totalorder %s16, 1
    %p92 = por %p90, %p91
    %p93 = scmp.ne.s32.totalorder %s82, %s83
    %p94 = scmp.eq.s32.totalorder %s16, 0
    %p95 = por %p93, %p94
    %p96 = scmp.ne.s32.totalorder %s82, %s83
    %p97 = scmp.eq.s32.totalorder %s17, 1
    %p98 = por %p96, %p97
    %p100 = scmp.ne.s32.totalorder %s83, %s99
    %p101 = scmp.eq.s32.totalorder %s17, 0
    %p102 = por %p100, %p101
    %s103 = ssub.s32 %s20, %s36
    %p104 = scmp.eq.s32.totalorder %s103, 0
    %s106 = sadd.s32 %s105, 1
    %s107 = scalar_select %p104, %s105, %s106
    %p110 = pneg %p104
    %p111 = scmp.eq.s32.totalorder %s11, 1
    %p112 = por %p110, %p111
    %p113 = scmp.ne.s32.totalorder %s105, %s108
    %p114 = scmp.eq.s32.totalorder %s11, 0
    %p115 = por %p113, %p114
    %p116 = scmp.ne.s32.totalorder %s105, %s108
    %p117 = scmp.eq.s32.totalorder %s16, 1
    %p118 = por %p116, %p117
    %p119 = scmp.ne.s32.totalorder %s108, %s109
    %p120 = scmp.eq.s32.totalorder %s16, 0
    %p121 = por %p119, %p120
    %p122 = scmp.ne.s32.totalorder %s108, %s109
    %p123 = scmp.eq.s32.totalorder %s17, 1
    %p124 = por %p122, %p123
    %p126 = scmp.ne.s32.totalorder %s109, %s125
    %p127 = scmp.eq.s32.totalorder %s17, 0
    %p128 = por %p126, %p127
    %s129 = ssub.s32 %s18, %s44
    %s130 = ssub.s32 %s19, %s40
    %s131 = sor.u32 %s129, %s130
    %s132 = ssub.s32 %s20, %s36
    %s133 = sor.u32 %s131, %s132
    %p134 = scmp.eq.s32.totalorder %s133, 0
    %s136 = sadd.s32 %s135, 1
    %s137 = scalar_select %p134, %s135, %s136
    %p140 = pneg %p134
    %p141 = scmp.eq.s32.totalorder %s11, 1
    %p142 = por %p140, %p141
    %p143 = scmp.ne.s32.totalorder %s135, %s138
    %p144 = scmp.eq.s32.totalorder %s11, 0
    %p145 = por %p143, %p144
    %p146 = scmp.ne.s32.totalorder %s135, %s138
    %p147 = scmp.eq.s32.totalorder %s16, 1
    %p148 = por %p146, %p147
    %p149 = scmp.ne.s32.totalorder %s138, %s139
    %p150 = scmp.eq.s32.totalorder %s16, 0
    %p151 = por %p149, %p150
    %p152 = scmp.ne.s32.totalorder %s138, %s139
    %p153 = scmp.eq.s32.totalorder %s17, 1
    %p154 = por %p152, %p153
    %p156 = scmp.ne.s32.totalorder %s139, %s155
    %p157 = scmp.eq.s32.totalorder %s17, 0
    %p158 = por %p156, %p157
    %s159 = ssub.s32 %s18, %s44
    %s160 = ssub.s32 %s20, %s36
    %s161 = sor.u32 %s159, %s160
    %p162 = scmp.eq.s32.totalorder %s161, 0
    %s164 = sadd.s32 %s163, 1
    %s165 = scalar_select %p162, %s163, %s164
    %p168 = pneg %p162
    %p169 = scmp.eq.s32.totalorder %s11, 1
    %p170 = por %p168, %p169
    %p171 = scmp.ne.s32.totalorder %s163, %s166
    %p172 = scmp.eq.s32.totalorder %s11, 0
    %p173 = por %p171, %p172
    %p174 = scmp.ne.s32.totalorder %s163, %s166
    %p175 = scmp.eq.s32.totalorder %s16, 1
    %p176 = por %p174, %p175
    %p177 = scmp.ne.s32.totalorder %s166, %s167
    %p178 = scmp.eq.s32.totalorder %s16, 0
    %p179 = por %p177, %p178
    %p180 = scmp.ne.s32.totalorder %s166, %s167
    %p181 = scmp.eq.s32.totalorder %s17, 1
    %p182 = por %p180, %p181
    %p184 = scmp.ne.s32.totalorder %s167, %s183
    %p185 = scmp.eq.s32.totalorder %s17, 0
    %p186 = por %p184, %p185
    %s187 = ssub.s32 %s18, %s44
    %s188 = ssub.s32 %s19, %s40
    %s189 = sor.u32 %s187, %s188
    %s190 = ssub.s32 %s20, %s36
    %s191 = sor.u32 %s189, %s190
    %p192 = scmp.eq.s32.totalorder %s191, 0
    %s194 = sadd.s32 %s193, 1
    %s195 = scalar_select %p192, %s193, %s194
    %p198 = pneg %p192
    %p199 = scmp.eq.s32.totalorder %s11, 1
    %p200 = por %p198, %p199
    %p201 = scmp.ne.s32.totalorder %s193, %s196
    %p202 = scmp.eq.s32.totalorder %s11, 0
    %p203 = por %p201, %p202
    %p204 = scmp.ne.s32.totalorder %s193, %s196
    %p205 = scmp.eq.s32.totalorder %s16, 1
    %p206 = por %p204, %p205
    %p207 = scmp.ne.s32.totalorder %s196, %s197
    %p208 = scmp.eq.s32.totalorder %s16, 0
    %p209 = por %p207, %p208
    %p210 = scmp.ne.s32.totalorder %s196, %s197
    %p211 = scmp.eq.s32.totalorder %s17, 1
    %p212 = por %p210, %p211
    %p214 = scmp.ne.s32.totalorder %s197, %s213
    %p215 = scmp.eq.s32.totalorder %s17, 0
    %p216 = por %p214, %p215
    %p217 = scmp.le.s32.totalorder 1, %s11
    %p218 = scmp.lt.s32.totalorder %s11, 3
    %p219 = pnand %p217, %p218
    %p220 = pneg %p219
    // Predicated region
    $region9: #{closed_call.30} parent=5 // pred_check
      _
    $region10: #{closed_call.30} parent=5 // pred_check_branch
      %222 = sbr.rel (%p219) target = $region12
    $region11: #{closed_call.30} parent=5 // pred_region
      %s223 = ssub.s32 %s11, 1
      // Predicated region
      $region13: #{closed_call.30} parent=11 // pred_check
        %p224 = pneg %p95
      $region14: #{closed_call.30} parent=11 // pred_check_branch
        %226 = sbr.rel (%p224) target = $region16
      $region15: #{closed_call.30} parent=11 // pred_region
        %s227 = smul.u32 8, %s25
        %p228 = scmp.lt.s32.totalorder %s227, 7
        %s229 = scalar_select %p228, %s227, 7
        %p230 = scmp.lt.s32.totalorder %s24, 0
        %s231 = scalar_select %p230, %s24, 0
        %s232 = sadd.s32 %s231, %s229
        %s233 = smul.addr %s232, 4
        %s234 = scalar_lea.vmem %s1, %s233
        %s235 = smul.u32 8, %s25
      $region16: #{closed_call.30} parent=11 // pred_fallthru
        _
      // Predicated region
      $region17: #{closed_call.30} parent=11 // pred_check
        %p236 = pneg %p121
      $region18: #{closed_call.30} parent=11 // pred_check_branch
        %238 = sbr.rel (%p236) target = $region20
      $region19: #{closed_call.30} parent=11 // pred_region
        %p239 = scmp.lt.s32.totalorder %s24, 0
        %s240 = scalar_select %p239, %s24, 0
        %s241 = scalar_lea.vmem %s2, %s240
      $region20: #{closed_call.30} parent=11 // pred_fallthru
        _
    $region12: #{closed_call.30} parent=5 // pred_fallthru
      _
    %p242 = scmp.lt.s32.totalorder %s11, 2
    // Predicated region
    $region21: #{closed_call.30} parent=5 // pred_check
      %p243 = pneg %p242
    $region22: #{closed_call.30} parent=5 // pred_check_branch
      %245 = sbr.rel (%p243) target = $region24
    $region23: #{closed_call.30} parent=5 // pred_region
      // Predicated region
      $region25: #{closed_call.30} parent=23 // pred_check
        %p246 = pneg %p61
      $region26: #{closed_call.30} parent=23 // pred_check_branch
        %248 = sbr.rel (%p246) target = $region28
      $region27: #{closed_call.30} parent=23 // pred_region
        %s249 = smul.u32 2, %s19
        %p250 = scmp.lt.s32.totalorder %s18, 1
        %s251 = scalar_select %p250, %s18, 1
        %p252 = scmp.lt.s32.totalorder %s249, 1
        %s253 = scalar_select %p252, %s249, 1
        %p254 = scmp.lt.s32.totalorder %s21, 0
        %s255 = scalar_select %p254, %s21, 0
        %s256 = sadd.s32 %s255, %s253
        %s257 = smul.addr %s251, 2
        %s258 = sadd.s32 %s256, %s257
        %s259 = smul.addr %s258, 4
        %s260 = scalar_lea.vmem %s0, %s259
        %s261 = smul.u32 2, %s19
      $region28: #{closed_call.30} parent=23 // pred_fallthru
        _
      // Predicated region
      $region29: #{closed_call.30} parent=23 // pred_check
        %p262 = pneg %p145
      $region30: #{closed_call.30} parent=23 // pred_check_branch
        %264 = sbr.rel (%p262) target = $region32
      $region31: #{closed_call.30} parent=23 // pred_region
        %s265 = smul.u32 2, %s19
        %p266 = scmp.lt.s32.totalorder %s18, 1
        %s267 = scalar_select %p266, %s18, 1
        %p268 = scmp.lt.s32.totalorder %s265, 1
        %s269 = scalar_select %p268, %s265, 1
        %p270 = scmp.lt.s32.totalorder %s20, 0
        %s271 = scalar_select %p270, %s20, 0
        %s272 = sadd.s32 %s271, %s269
        %s273 = smul.addr %s267, 2
        %s274 = sadd.s32 %s272, %s273
        %s275 = smul.addr %s274, 8
        %s276 = scalar_lea.vmem %s3, %s275
        %s277 = smul.u32 2, %s19
      $region32: #{closed_call.30} parent=23 // pred_fallthru
        _
      // Predicated region
      $region33: #{closed_call.30} parent=23 // pred_check
        %p278 = pneg %p173
      $region34: #{closed_call.30} parent=23 // pred_check_branch
        %280 = sbr.rel (%p278) target = $region36
      $region35: #{closed_call.30} parent=23 // pred_region
        %p281 = scmp.lt.s32.totalorder %s18, 1
        %s282 = scalar_select %p281, %s18, 1
        %p283 = scmp.lt.s32.totalorder %s20, 0
        %s284 = scalar_select %p283, %s20, 0
        %s285 = sadd.s32 %s284, %s282
        %s286 = scalar_lea.vmem %s4, %s285
      $region36: #{closed_call.30} parent=23 // pred_fallthru
        _
    $region24: #{closed_call.30} parent=5 // pred_fallthru
      _
    %p287 = scmp.le.s32.totalorder 1, %s11
    %p288 = scmp.lt.s32.totalorder %s11, 3
    %p289 = pnand %p287, %p288
    %p290 = pneg %p289
    // Predicated region
    $region37: #{closed_call.30} parent=5 // pred_check
      _
    $region38: #{closed_call.30} parent=5 // pred_check_branch
      %292 = sbr.rel (%p289) target = $region40
    $region39: #{closed_call.30} parent=5 // pred_region
      %s293 = ssub.s32 %s11, 1
      %s294 = smul.u32 2, %s23
      %p295 = scmp.lt.s32.totalorder %s22, 1
      %s296 = scalar_select %p295, %s22, 1
      %p297 = scmp.lt.s32.totalorder %s294, 1
      %s298 = scalar_select %p297, %s294, 1
      %p299 = scmp.lt.s32.totalorder %s25, 0
      %s300 = scalar_select %p299, %s25, 0
      %s301 = sadd.s32 %s300, %s298
      %s302 = smul.addr %s296, 2
      %s303 = sadd.s32 %s301, %s302
      %s304 = smul.addr %s303, 4
      %s305 = scalar_lea.vmem %s0, %s304
      %p306 = pneg %p67
      %p307 = pneg %p64
      %s308 = smul.u32 8, %s25
      %p309 = scmp.lt.s32.totalorder %s308, 7
      %s310 = scalar_select %p309, %s308, 7
      %p311 = scmp.lt.s32.totalorder %s24, 0
      %s312 = scalar_select %p311, %s24, 0
      %s313 = sadd.s32 %s312, %s310
      %s314 = smul.addr %s313, 4
      %s315 = scalar_lea.vmem %s1, %s314
      %p316 = pneg %p95
      %p317 = pneg %p92
      %p318 = scmp.lt.s32.totalorder %s24, 0
      %s319 = scalar_select %p318, %s24, 0
      %s320 = scalar_lea.vmem %s2, %s319
      %p321 = pneg %p121
      %p322 = pneg %p118
      %s323 = smul.u32 2, %s23
      %p324 = scmp.lt.s32.totalorder %s22, 1
      %s325 = scalar_select %p324, %s22, 1
      %p326 = scmp.lt.s32.totalorder %s323, 1
      %s327 = scalar_select %p326, %s323, 1
      %p328 = scmp.lt.s32.totalorder %s24, 0
      %s329 = scalar_select %p328, %s24, 0
      %s330 = sadd.s32 %s329, %s327
      %s331 = smul.addr %s325, 2
      %s332 = sadd.s32 %s330, %s331
      %s333 = smul.addr %s332, 8
      %s334 = scalar_lea.vmem %s3, %s333
      %p335 = pneg %p151
      %p336 = pneg %p148
      %p337 = scmp.lt.s32.totalorder %s22, 1
      %s338 = scalar_select %p337, %s22, 1
      %p339 = scmp.lt.s32.totalorder %s24, 0
      %s340 = scalar_select %p339, %s24, 0
      %s341 = sadd.s32 %s340, %s338
      %s342 = scalar_lea.vmem %s4, %s341
      %p343 = pneg %p179
      %p344 = pneg %p176
      %p345 = pneg %p209
      %p346 = pneg %p206
      %s347 = smul.u32 2, %s23
      %p348 = scmp.lt.s32.totalorder %s22, 1
      %s349 = scalar_select %p348, %s22, 1
      %p350 = scmp.lt.s32.totalorder %s347, 1
      %s351 = scalar_select %p350, %s347, 1
      %p352 = scmp.lt.s32.totalorder %s24, 0
      %s353 = scalar_select %p352, %s24, 0
      %s354 = sadd.s32 %s353, %s351
      %s355 = smul.addr %s349, 2
      %s356 = sadd.s32 %s354, %s355
      %s357 = smul.addr %s356, 8
      %s358 = scalar_lea.vmem %s5, %s357
      %s359 = smul.u32 2, %s23
      %p360 = scmp.lt.s32.totalorder %s22, 1
      %s361 = scalar_select %p360, %s22, 1
      %p362 = scmp.lt.s32.totalorder %s359, 1
      %s363 = scalar_select %p362, %s359, 1
      %p364 = scmp.lt.s32.totalorder %s25, 0
      %s365 = scalar_select %p364, %s25, 0
      %s366 = sadd.s32 %s365, %s363
      %s367 = smul.addr %s361, 2
      %s368 = sadd.s32 %s366, %s367
      %s369 = smul.addr %s368, 4
      %s370 = scalar_lea.vmem %s0, %s369
      %s371 = smul.u32 2, %s23
      %s372 = smul.u32 8, %s25
      %p373 = scmp.lt.s32.totalorder %s372, 7
      %s374 = scalar_select %p373, %s372, 7
      %p375 = scmp.lt.s32.totalorder %s24, 0
      %s376 = scalar_select %p375, %s24, 0
      %s377 = sadd.s32 %s376, %s374
      %s378 = smul.addr %s377, 4
      %s379 = scalar_lea.vmem %s1, %s378
      %s380 = smul.u32 8, %s25
      %p381 = scmp.lt.s32.totalorder %s24, 0
      %s382 = scalar_select %p381, %s24, 0
      %s383 = scalar_lea.vmem %s2, %s382
      %s384 = smul.u32 2, %s23
      %p385 = scmp.lt.s32.totalorder %s22, 1
      %s386 = scalar_select %p385, %s22, 1
      %p387 = scmp.lt.s32.totalorder %s384, 1
      %s388 = scalar_select %p387, %s384, 1
      %p389 = scmp.lt.s32.totalorder %s24, 0
      %s390 = scalar_select %p389, %s24, 0
      %s391 = sadd.s32 %s390, %s388
      %s392 = smul.addr %s386, 2
      %s393 = sadd.s32 %s391, %s392
      %s394 = smul.addr %s393, 8
      %s395 = scalar_lea.vmem %s3, %s394
      %s396 = smul.u32 2, %s23
      %p397 = scmp.lt.s32.totalorder %s22, 1
      %s398 = scalar_select %p397, %s22, 1
      %p399 = scmp.lt.s32.totalorder %s24, 0
      %s400 = scalar_select %p399, %s24, 0
      %s401 = sadd.s32 %s400, %s398
      %s402 = scalar_lea.vmem %s4, %s401
      %s403 = smul.u32 2, %s23
      %p404 = scmp.lt.s32.totalorder %s22, 1
      %s405 = scalar_select %p404, %s22, 1
      %p406 = scmp.lt.s32.totalorder %s403, 1
      %s407 = scalar_select %p406, %s403, 1
      %p408 = scmp.lt.s32.totalorder %s24, 0
      %s409 = scalar_select %p408, %s24, 0
      %s410 = sadd.s32 %s409, %s407
      %s411 = smul.addr %s405, 2
      %s412 = sadd.s32 %s410, %s411
      %s413 = smul.addr %s412, 8
      %s414 = scalar_lea.vmem %s5, %s413
      %s415 = smul.u32 2, %s23
      %p417 = scmp.eq.s32.totalorder %s25, 0
      // Predicated region
      $region41: #{closed_call.30} parent=39 // pred_check
        %p418 = pneg %p417
      $region42: #{closed_call.30} parent=39 // pred_check_branch
        %420 = sbr.rel (%p418) target = $region44
      $region43: #{closed_call.30} parent=39 // pred_region
        %vm421 = vcmask 523264
        %422 = vst.msk [vmem:[%s414] sm:$0xff] %vm421, 0.0
        %423 = vst.msk [vmem:[%s414 + $0x8] sm:$0xff] %vm421, 0.0
      $region44: #{closed_call.30} parent=39 // pred_fallthru
        _
      %v424 = vld [vmem:[%s370] sm:$0xf]
      %v425 = vld [vmem:[%s370 + $0x4] sm:$0xf]
      %v426 = vld [vmem:[%s414] sm:$0xff]
      %v427 = vld [vmem:[%s414 + $0x8] sm:$0xff]
      %v428 = vld [vmem:[%s379] sm:$0xf]
      %v429 = vld [vmem:[%s379 + $0x4] sm:$0xf]
      %v430 = vld [vmem:[%s379 + $0x8] sm:$0xf]
      %v431 = vld [vmem:[%s379 + $0xc] sm:$0xf]
      %v432 = vld [vmem:[%s379 + $0x10] sm:$0xf]
      %v433 = vld [vmem:[%s379 + $0x14] sm:$0xf]
      %v434 = vld [vmem:[%s379 + $0x18] sm:$0xf]
      %v435 = vld [vmem:[%s379 + $0x1c] sm:$0xf]
      %v438 = vunpack.c.l.b16 %v424
      %v439 = vunpack.c.l.b16 %v425
      %v440 = vpack.c.b16 %v439, %v438
      %v449 = vunpack.c.l.b16 %v428
      %v450 = vunpack.c.l.b16 %v429
      %v451 = vunpack.c.l.b16 %v430
      %v452 = vunpack.c.l.b16 %v431
      %v453 = vunpack.c.l.b16 %v432
      %v454 = vunpack.c.l.b16 %v433
      %v455 = vunpack.c.l.b16 %v434
      %v456 = vunpack.c.l.b16 %v435
      %v457 = vpack.c.b16 %v450, %v449
      %v458 = vpack.c.b16 %v452, %v451
      %v459 = vpack.c.b16 %v454, %v453
      %v460 = vpack.c.b16 %v456, %v455
      %vm465 = vcmask 523264
      %v467 = vsel %vm465, %v440, 0
      %469 = vmatprep.subr.bf16.mxu0 0
      %470 = vmatpush1.bf16.msra.mxu0 %v457
      %471 = vmatprep.subr.bf16.mxu0 0
      %472 = vmatpush1.bf16.msra.mxu0 %v458
      %473 = vmatprep.subr.bf16.mxu0 0
      %474 = vmatpush1.bf16.msra.mxu0 %v459
      %475 = vmatprep.subr.bf16.mxu0 0
      %476 = vmatpush1.bf16.msra.mxu0 %v460
      %477 = vmatprep.subr.bf16.mxu0 0
      %478 = vmatpush1.bf16.msra.mxu0 0
      %479 = vmatprep.subr.bf16.mxu0 0
      %480 = vmatpush1.bf16.msra.mxu0 0
      %481 = vmatprep.subr.bf16.mxu0 0
      %482 = vmatpush1.bf16.msra.mxu0 0
      %483 = vmatprep.subr.bf16.mxu0 0
      %484 = vmatpush1.bf16.msra.mxu0 0
      %485 = vmatprep.subr.bf16.mxu0 0
      %486 = vmatpush1.bf16.msra.mxu0 0
      %487 = vmatprep.subr.bf16.mxu0 0
      %488 = vmatpush1.bf16.msra.mxu0 0
      %489 = vmatprep.subr.bf16.mxu0 0
      %490 = vmatpush1.bf16.msra.mxu0 0
      %491 = vmatprep.subr.bf16.mxu0 0
      %492 = vmatpush1.bf16.msra.mxu0 0
      %493 = vmatprep.subr.bf16.mxu0 0
      %494 = vmatpush1.bf16.msra.mxu0 0
      %495 = vmatprep.subr.bf16.mxu0 0
      %496 = vmatpush1.bf16.msra.mxu0 0
      %497 = vmatprep.subr.bf16.mxu0 0
      %498 = vmatpush1.bf16.msra.mxu0 0
      %499 = vmatprep.subr.bf16.mxu0 0
      %500 = vmatpush1.bf16.msra.mxu0 0
      %501 = vmatprep.mubr.bf16.mxu0 0
      %502 = vmatmul.mubr.bf16.gmra.mrb[0].mxu0 %v467
      %v503 = vpop.f32.mrb[0].mxu0
      %v504 = vadd.f32 0.0, %v503
      %v505 = vpop.f32.mrb[0].mxu0
      %v506 = vpop.f32.mrb[0].mxu0
      %v507 = vadd.f32 0.0, %v506
      %v508 = vpop.f32.mrb[0].mxu0
      %509 = vdwg.mxu0
      %v510 = vadd.f32 %v426, %v504
      %v511 = vadd.f32 %v427, %v507
      %512 = vst.msk [vmem:[%s414] sm:$0xff] %vm465, %v510
      %513 = vst.msk [vmem:[%s414 + $0x8] sm:$0xff] %vm465, %v511
      // Predicated region
      $region45: #{closed_call.30} parent=39 // pred_check
        %p514 = pneg %p417
      $region46: #{closed_call.30} parent=39 // pred_check_branch
        %516 = sbr.rel (%p514) target = $region48
      $region47: #{closed_call.30} parent=39 // pred_region
        %v517 = vld [vmem:[%s414] sm:$0xff]
        %v518 = vld [vmem:[%s414 + $0x8] sm:$0xff]
        %v519 = vld [vmem:[%s383] sm:$0x1]
        %v521 = vlaneseq
        %v522 = vshrl.u32 %v521, 7
        %v523 = vsub.s32 0, %v522
        %v524 = vrot.slane %v519, %v523
        %v526 = vadd.f32 %v517, %v524
        %v527 = vadd.f32 %v518, %v524
        %v528 = vld [vmem:[%s402] sm:$0x1]
        %v530 = vlaneseq
        %v531 = vshrl.u32 %v530, 7
        %v532 = vsub.s32 0, %v531
        %v533 = vrot.slane %v528, %v532
        %v535 = vmul.f32 %v526, %v533
        %v536 = vmul.f32 %v527, %v533
        %v537 = vld [vmem:[%s395] sm:$0xff]
        %v538 = vld [vmem:[%s395 + $0x8] sm:$0xff]
        %v539 = vadd.f32 %v537, %v535
        %v540 = vadd.f32 %v538, %v536
        %541 = vst.msk [vmem:[%s414] sm:$0xff] %vm465, %v539
        %542 = vst.msk [vmem:[%s414 + $0x8] sm:$0xff] %vm465, %v540
      $region48: #{closed_call.30} parent=39 // pred_fallthru
        _
      %s543 = smul.u32 2, %s23
      %p544 = scmp.lt.s32.totalorder %s22, 1
      %s545 = scalar_select %p544, %s22, 1
      %p546 = scmp.lt.s32.totalorder %s543, 1
      %s547 = scalar_select %p546, %s543, 1
      %p548 = scmp.lt.s32.totalorder %s24, 0
      %s549 = scalar_select %p548, %s24, 0
      %s550 = sadd.s32 %s549, %s547
      %s551 = smul.addr %s545, 2
      %s552 = sadd.s32 %s550, %s551
      %s553 = smul.addr %s552, 8
      %s554 = scalar_lea.vmem %s5, %s553
      // Predicated region
      $region49: #{closed_call.30} parent=39 // pred_check
        %p555 = pneg %p206
      $region50: #{closed_call.30} parent=39 // pred_check_branch
        %557 = sbr.rel (%p555) target = $region52
      $region51: #{closed_call.30} parent=39 // pred_region
        %s558 = smul.u32 2, %s23
      $region52: #{closed_call.30} parent=39 // pred_fallthru
        _
    $region40: #{closed_call.30} parent=5 // pred_fallthru
      _
    %p559 = scmp.le.s32.totalorder 2, %s11
    // Predicated region
    $region53: #{closed_call.30} parent=5 // pred_check
      %p560 = pneg %p559
    $region54: #{closed_call.30} parent=5 // pred_check_branch
      %562 = sbr.rel (%p560) target = $region56
    $region55: #{closed_call.30} parent=5 // pred_region
      %s563 = ssub.s32 %s11, 2
      // Predicated region
      $region57: #{closed_call.30} parent=55 // pred_check
        %p564 = pneg %p212
      $region58: #{closed_call.30} parent=55 // pred_check_branch
        %566 = sbr.rel (%p564) target = $region60
      $region59: #{closed_call.30} parent=55 // pred_region
        %s567 = smul.u32 2, %s27
        %p568 = scmp.lt.s32.totalorder %s26, 1
        %s569 = scalar_select %p568, %s26, 1
        %p570 = scmp.lt.s32.totalorder %s567, 1
        %s571 = scalar_select %p570, %s567, 1
        %p572 = scmp.lt.s32.totalorder %s28, 0
        %s573 = scalar_select %p572, %s28, 0
        %s574 = sadd.s32 %s573, %s571
        %s575 = smul.addr %s569, 2
        %s576 = sadd.s32 %s574, %s575
        %s577 = smul.addr %s576, 8
        %s578 = scalar_lea.vmem %s5, %s577
      $region60: #{closed_call.30} parent=55 // pred_fallthru
        _
    $region56: #{closed_call.30} parent=5 // pred_fallthru
      _
  $region6: #{closed_call.30} parent=0 // loop_footer
    %s15 = sadd.s32 1, %s11
  $region7: #{closed_call.30} parent=0 // loop_footer_branch
    %10 = sbr.rel target = $region3
  $region8: #{closed_call.30} parent=0 // loop_exit
    _

// kernel: closed_call.31
$region0: #{closed_call.31}
  #allocation0 [shape = 'u32[]', space=smem, size = 0x4, offset = 0x4, fixed_abs, tag = 'smem constant byte address 0x4 - core index']
  #allocation1 [shape = 'u32[144,128]{1,0:T(1,128)}', space=vmem, size = 0x12000, scoped, tag = 'internal scratch']
  %s0 = inlined_call_operand.vmem [shape: f32[2,16,64], index: 0, kind: input, shape index: {}]
  %s1 = inlined_call_operand.vmem [shape: bf16[64,64], index: 1, kind: input, shape index: {}]
  %s2 = inlined_call_operand.vmem [shape: f32[1,64], index: 2, kind: input, shape index: {}]
  %s3 = inlined_call_operand.vmem [shape: bf16[2,16,64], index: 3, kind: output, shape index: {}]
  %s4 = sld [smem:[#allocation0]]
  $region45: #{closed_call.31} parent=0
    _
  %s6 = ssub.s32 1, %s4
  %s7 = scalar_select 0, %s6, %s4
  loop: start=0, step=1, limit=4
  $region2: #{closed_call.31} parent=0 // loop_pre_header
    _
  $region3: #{closed_call.31} parent=0 // loop_header
    %s9 = sphi 0, %s13
    %p10 = scmp.ge.s32.totalorder %s9, 4
    %s16 = sphi 0, %s35
    %s17 = sphi 0, %s31
    %s18 = sphi 0, %s27
    %s19 = sphi 0, %s16
    %s20 = sphi 0, %s17
    %s21 = sphi 0, %s18
    %s22 = sphi 0, %s19
    %s23 = sphi 0, %s20
    %s24 = sphi 0, %s21
    %s40 = sphi 0, %s42
    %s43 = sphi 0, %s40
    %s44 = sphi 0, %s43
    %s60 = sphi 0, %s44
    %s66 = sphi 0, %s68
    %s69 = sphi 0, %s66
    %s70 = sphi 0, %s69
    %s86 = sphi 0, %s70
    %s92 = sphi 0, %s94
    %s95 = sphi 0, %s92
    %s96 = sphi 0, %s95
    %s112 = sphi 0, %s96
    %s122 = sphi 0, %s124
    %s125 = sphi 0, %s122
    %s126 = sphi 0, %s125
    %s142 = sphi 0, %s126
  $region4: #{closed_call.31} parent=0 // loop_header_branch
    %12 = sbr.rel (%p10) target = $region8
  $region5: #{closed_call.31} parent=0 // loop_body
    %s14 = ssub.s32 %s9, 1
    %s15 = ssub.s32 %s9, 2
    %s25 = sadd.s32 1, %s18
    %p26 = scmp.ge.s32.totalorder %s25, 1
    %s27 = scalar_select %p26, 0, %s25
    %s28 = sadd.s32 1, %s17
    %s29 = scalar_select %p26, %s28, %s17
    %p30 = scmp.ge.s32.totalorder %s29, 1
    %s31 = scalar_select %p30, 0, %s29
    %s32 = sadd.s32 1, %s16
    %s33 = scalar_select %p30, %s32, %s16
    %p34 = scmp.ge.s32.totalorder %s33, 2
    %s35 = scalar_select %p34, 0, %s33
    %s36 = ssub.s32 %s16, %s35
    %s37 = ssub.s32 %s17, %s31
    %s38 = sor.u32 %s36, %s37
    %p39 = scmp.eq.s32.totalorder %s38, 0
    %s41 = sadd.s32 %s40, 1
    %s42 = scalar_select %p39, %s40, %s41
    %p45 = pneg %p39
    %p46 = scmp.eq.s32.totalorder %s9, 1
    %p47 = por %p45, %p46
    %p48 = scmp.ne.s32.totalorder %s40, %s43
    %p49 = scmp.eq.s32.totalorder %s9, 0
    %p50 = por %p48, %p49
    %p51 = scmp.ne.s32.totalorder %s40, %s43
    %p52 = scmp.eq.s32.totalorder %s14, 1
    %p53 = por %p51, %p52
    %p54 = scmp.ne.s32.totalorder %s43, %s44
    %p55 = scmp.eq.s32.totalorder %s14, 0
    %p56 = por %p54, %p55
    %p57 = scmp.ne.s32.totalorder %s43, %s44
    %p58 = scmp.eq.s32.totalorder %s15, 1
    %p59 = por %p57, %p58
    %p61 = scmp.ne.s32.totalorder %s44, %s60
    %p62 = scmp.eq.s32.totalorder %s15, 0
    %p63 = por %p61, %p62
    %s64 = ssub.s32 %s18, %s27
    %p65 = scmp.eq.s32.totalorder %s64, 0
    %s67 = sadd.s32 %s66, 1
    %s68 = scalar_select %p65, %s66, %s67
    %p71 = pneg %p65
    %p72 = scmp.eq.s32.totalorder %s9, 1
    %p73 = por %p71, %p72
    %p74 = scmp.ne.s32.totalorder %s66, %s69
    %p75 = scmp.eq.s32.totalorder %s9, 0
    %p76 = por %p74, %p75
    %p77 = scmp.ne.s32.totalorder %s66, %s69
    %p78 = scmp.eq.s32.totalorder %s14, 1
    %p79 = por %p77, %p78
    %p80 = scmp.ne.s32.totalorder %s69, %s70
    %p81 = scmp.eq.s32.totalorder %s14, 0
    %p82 = por %p80, %p81
    %p83 = scmp.ne.s32.totalorder %s69, %s70
    %p84 = scmp.eq.s32.totalorder %s15, 1
    %p85 = por %p83, %p84
    %p87 = scmp.ne.s32.totalorder %s70, %s86
    %p88 = scmp.eq.s32.totalorder %s15, 0
    %p89 = por %p87, %p88
    %s90 = ssub.s32 %s18, %s27
    %p91 = scmp.eq.s32.totalorder %s90, 0
    %s93 = sadd.s32 %s92, 1
    %s94 = scalar_select %p91, %s92, %s93
    %p97 = pneg %p91
    %p98 = scmp.eq.s32.totalorder %s9, 1
    %p99 = por %p97, %p98
    %p100 = scmp.ne.s32.totalorder %s92, %s95
    %p101 = scmp.eq.s32.totalorder %s9, 0
    %p102 = por %p100, %p101
    %p103 = scmp.ne.s32.totalorder %s92, %s95
    %p104 = scmp.eq.s32.totalorder %s14, 1
    %p105 = por %p103, %p104
    %p106 = scmp.ne.s32.totalorder %s95, %s96
    %p107 = scmp.eq.s32.totalorder %s14, 0
    %p108 = por %p106, %p107
    %p109 = scmp.ne.s32.totalorder %s95, %s96
    %p110 = scmp.eq.s32.totalorder %s15, 1
    %p111 = por %p109, %p110
    %p113 = scmp.ne.s32.totalorder %s96, %s112
    %p114 = scmp.eq.s32.totalorder %s15, 0
    %p115 = por %p113, %p114
    %s116 = ssub.s32 %s16, %s35
    %s117 = ssub.s32 %s17, %s31
    %s118 = sor.u32 %s116, %s117
    %s119 = ssub.s32 %s18, %s27
    %s120 = sor.u32 %s118, %s119
    %p121 = scmp.eq.s32.totalorder %s120, 0
    %s123 = sadd.s32 %s122, 1
    %s124 = scalar_select %p121, %s122, %s123
    %p127 = pneg %p121
    %p128 = scmp.eq.s32.totalorder %s9, 1
    %p129 = por %p127, %p128
    %p130 = scmp.ne.s32.totalorder %s122, %s125
    %p131 = scmp.eq.s32.totalorder %s9, 0
    %p132 = por %p130, %p131
    %p133 = scmp.ne.s32.totalorder %s122, %s125
    %p134 = scmp.eq.s32.totalorder %s14, 1
    %p135 = por %p133, %p134
    %p136 = scmp.ne.s32.totalorder %s125, %s126
    %p137 = scmp.eq.s32.totalorder %s14, 0
    %p138 = por %p136, %p137
    %p139 = scmp.ne.s32.totalorder %s125, %s126
    %p140 = scmp.eq.s32.totalorder %s15, 1
    %p141 = por %p139, %p140
    %p143 = scmp.ne.s32.totalorder %s126, %s142
    %p144 = scmp.eq.s32.totalorder %s15, 0
    %p145 = por %p143, %p144
    %p146 = scmp.le.s32.totalorder 1, %s9
    %p147 = scmp.lt.s32.totalorder %s9, 3
    %p148 = pnand %p146, %p147
    %p149 = pneg %p148
    // Predicated region
    $region9: #{closed_call.31} parent=5 // pred_check
      _
    $region10: #{closed_call.31} parent=5 // pred_check_branch
      %151 = sbr.rel (%p148) target = $region12
    $region11: #{closed_call.31} parent=5 // pred_region
      %s152 = ssub.s32 %s9, 1
      // Predicated region
      $region13: #{closed_call.31} parent=11 // pred_check
        %p153 = pneg %p82
      $region14: #{closed_call.31} parent=11 // pred_check_branch
        %155 = sbr.rel (%p153) target = $region16
      $region15: #{closed_call.31} parent=11 // pred_region
        %p156 = scmp.lt.s32.totalorder %s21, 0
        %s157 = scalar_select %p156, %s21, 0
        %s158 = smul.addr %s157, 4
        %s159 = scalar_lea.vmem %s1, %s158
      $region16: #{closed_call.31} parent=11 // pred_fallthru
        _
      // Predicated region
      $region17: #{closed_call.31} parent=11 // pred_check
        %p160 = pneg %p108
      $region18: #{closed_call.31} parent=11 // pred_check_branch
        %162 = sbr.rel (%p160) target = $region20
      $region19: #{closed_call.31} parent=11 // pred_region
        %p163 = scmp.lt.s32.totalorder %s21, 0
        %s164 = scalar_select %p163, %s21, 0
        %s165 = scalar_lea.vmem %s2, %s164
      $region20: #{closed_call.31} parent=11 // pred_fallthru
        _
    $region12: #{closed_call.31} parent=5 // pred_fallthru
      _
    %p166 = scmp.lt.s32.totalorder %s9, 2
    // Predicated region
    $region21: #{closed_call.31} parent=5 // pred_check
      %p167 = pneg %p166
    $region22: #{closed_call.31} parent=5 // pred_check_branch
      %169 = sbr.rel (%p167) target = $region24
    $region23: #{closed_call.31} parent=5 // pred_region
      // Predicated region
      $region25: #{closed_call.31} parent=23 // pred_check
        %p170 = pneg %p50
      $region26: #{closed_call.31} parent=23 // pred_check_branch
        %172 = sbr.rel (%p170) target = $region28
      $region27: #{closed_call.31} parent=23 // pred_region
        %s173 = smul.u32 2, %s17
        %p174 = scmp.lt.s32.totalorder %s16, 1
        %s175 = scalar_select %p174, %s16, 1
        %p176 = scmp.lt.s32.totalorder %s173, 1
        %s177 = scalar_select %p176, %s173, 1
        %s178 = smul.addr %s175, 2
        %s179 = sadd.s32 %s177, %s178
        %s180 = smul.addr %s179, 8
        %s181 = scalar_lea.vmem %s0, %s180
        %s182 = smul.u32 2, %s17
      $region28: #{closed_call.31} parent=23 // pred_fallthru
        _
    $region24: #{closed_call.31} parent=5 // pred_fallthru
      _
    %p183 = scmp.le.s32.totalorder 1, %s9
    %p184 = scmp.lt.s32.totalorder %s9, 3
    %p185 = pnand %p183, %p184
    %p186 = pneg %p185
    // Predicated region
    $region29: #{closed_call.31} parent=5 // pred_check
      _
    $region30: #{closed_call.31} parent=5 // pred_check_branch
      %188 = sbr.rel (%p185) target = $region32
    $region31: #{closed_call.31} parent=5 // pred_region
      %s189 = ssub.s32 %s9, 1
      %s190 = smul.u32 2, %s20
      %p191 = scmp.lt.s32.totalorder %s19, 1
      %s192 = scalar_select %p191, %s19, 1
      %p193 = scmp.lt.s32.totalorder %s190, 1
      %s194 = scalar_select %p193, %s190, 1
      %s195 = smul.addr %s192, 2
      %s196 = sadd.s32 %s194, %s195
      %s197 = smul.addr %s196, 8
      %s198 = scalar_lea.vmem %s0, %s197
      %p199 = pneg %p56
      %p200 = pneg %p53
      %p201 = scmp.lt.s32.totalorder %s21, 0
      %s202 = scalar_select %p201, %s21, 0
      %s203 = smul.addr %s202, 4
      %s204 = scalar_lea.vmem %s1, %s203
      %p205 = pneg %p82
      %p206 = pneg %p79
      %p207 = scmp.lt.s32.totalorder %s21, 0
      %s208 = scalar_select %p207, %s21, 0
      %s209 = scalar_lea.vmem %s2, %s208
      %p210 = pneg %p108
      %p211 = pneg %p105
      %p212 = pneg %p138
      %p213 = pneg %p135
      %s214 = smul.u32 2, %s20
      %p215 = scmp.lt.s32.totalorder %s19, 1
      %s216 = scalar_select %p215, %s19, 1
      %p217 = scmp.lt.s32.totalorder %s214, 1
      %s218 = scalar_select %p217, %s214, 1
      %p219 = scmp.lt.s32.totalorder %s21, 0
      %s220 = scalar_select %p219, %s21, 0
      %s221 = sadd.s32 %s220, %s218
      %s222 = smul.addr %s216, 2
      %s223 = sadd.s32 %s221, %s222
      %s224 = smul.addr %s223, 4
      %s225 = scalar_lea.vmem %s3, %s224
      %s226 = smul.u32 2, %s20
      %p227 = scmp.lt.s32.totalorder %s19, 1
      %s228 = scalar_select %p227, %s19, 1
      %p229 = scmp.lt.s32.totalorder %s226, 1
      %s230 = scalar_select %p229, %s226, 1
      %s231 = smul.addr %s228, 2
      %s232 = sadd.s32 %s230, %s231
      %s233 = smul.addr %s232, 8
      %s234 = scalar_lea.vmem %s0, %s233
      %s235 = smul.u32 2, %s20
      %p236 = scmp.lt.s32.totalorder %s21, 0
      %s237 = scalar_select %p236, %s21, 0
      %s238 = smul.addr %s237, 4
      %s239 = scalar_lea.vmem %s1, %s238
      %p240 = scmp.lt.s32.totalorder %s21, 0
      %s241 = scalar_select %p240, %s21, 0
      %s242 = scalar_lea.vmem %s2, %s241
      %s243 = smul.u32 2, %s20
      %p244 = scmp.lt.s32.totalorder %s19, 1
      %s245 = scalar_select %p244, %s19, 1
      %p246 = scmp.lt.s32.totalorder %s243, 1
      %s247 = scalar_select %p246, %s243, 1
      %p248 = scmp.lt.s32.totalorder %s21, 0
      %s249 = scalar_select %p248, %s21, 0
      %s250 = sadd.s32 %s249, %s247
      %s251 = smul.addr %s245, 2
      %s252 = sadd.s32 %s250, %s251
      %s253 = smul.addr %s252, 4
      %s254 = scalar_lea.vmem %s3, %s253
      %s255 = smul.u32 2, %s20
      %v257 = vld [vmem:[%s234] sm:$0xff]
      %v258 = vld [vmem:[%s234 + $0x8] sm:$0xff]
      %v259 = vpack.c.bf16 %v258, %v257
      %v260 = vld [vmem:[%s239] sm:$0xf]
      %v261 = vld [vmem:[%s239 + $0x4] sm:$0xf]
      %v262 = vld [vmem:[%s239 + $0x8] sm:$0xf]
      %v263 = vld [vmem:[%s239 + $0xc] sm:$0xf]
      %v264 = vld [vmem:[%s239 + $0x10] sm:$0xf]
      %v265 = vld [vmem:[%s239 + $0x14] sm:$0xf]
      %v266 = vld [vmem:[%s239 + $0x18] sm:$0xf]
      %v267 = vld [vmem:[%s239 + $0x1c] sm:$0xf]
      %v268 = vld [vmem:[%s242] sm:$0x1]
      %v270 = vlaneseq
      %v271 = vshrl.u32 %v270, 7
      %v272 = vsub.s32 0, %v271
      %v273 = vrot.slane %v268, %v272
      %v283 = vunpack.c.l.b16 %v260
      %v284 = vunpack.c.l.b16 %v261
      %v285 = vunpack.c.l.b16 %v262
      %v286 = vunpack.c.l.b16 %v263
      %v287 = vunpack.c.l.b16 %v264
      %v288 = vunpack.c.l.b16 %v265
      %v289 = vunpack.c.l.b16 %v266
      %v290 = vunpack.c.l.b16 %v267
      %v291 = vpack.c.b16 %v284, %v283
      %v292 = vpack.c.b16 %v286, %v285
      %v293 = vpack.c.b16 %v288, %v287
      %v294 = vpack.c.b16 %v290, %v289
      %vm299 = vcmask 523264
      %v301 = vsel %vm299, %v259, 0
      %303 = vmatprep.subr.bf16.mxu0 0
      %304 = vmatpush1.bf16.msra.mxu0 %v291
      %305 = vmatprep.subr.bf16.mxu0 0
      %306 = vmatpush1.bf16.msra.mxu0 %v292
      %307 = vmatprep.subr.bf16.mxu0 0
      %308 = vmatpush1.bf16.msra.mxu0 %v293
      %309 = vmatprep.subr.bf16.mxu0 0
      %310 = vmatpush1.bf16.msra.mxu0 %v294
      %311 = vmatprep.subr.bf16.mxu0 0
      %312 = vmatpush1.bf16.msra.mxu0 0
      %313 = vmatprep.subr.bf16.mxu0 0
      %314 = vmatpush1.bf16.msra.mxu0 0
      %315 = vmatprep.subr.bf16.mxu0 0
      %316 = vmatpush1.bf16.msra.mxu0 0
      %317 = vmatprep.subr.bf16.mxu0 0
      %318 = vmatpush1.bf16.msra.mxu0 0
      %319 = vmatprep.subr.bf16.mxu0 0
      %320 = vmatpush1.bf16.msra.mxu0 0
      %321 = vmatprep.subr.bf16.mxu0 0
      %322 = vmatpush1.bf16.msra.mxu0 0
      %323 = vmatprep.subr.bf16.mxu0 0
      %324 = vmatpush1.bf16.msra.mxu0 0
      %325 = vmatprep.subr.bf16.mxu0 0
      %326 = vmatpush1.bf16.msra.mxu0 0
      %327 = vmatprep.subr.bf16.mxu0 0
      %328 = vmatpush1.bf16.msra.mxu0 0
      %329 = vmatprep.subr.bf16.mxu0 0
      %330 = vmatpush1.bf16.msra.mxu0 0
      %331 = vmatprep.subr.bf16.mxu0 0
      %332 = vmatpush1.bf16.msra.mxu0 0
      %333 = vmatprep.subr.bf16.mxu0 0
      %334 = vmatpush1.bf16.msra.mxu0 0
      %335 = vmatprep.mubr.bf16.mxu0 0
      %336 = vmatmul.mubr.bf16.gmra.mrb[0].mxu0 %v301
      %v337 = vpop.f32.mrb[0].mxu0
      %v338 = vadd.f32 %v273, %v337
      %v339 = vpop.f32.mrb[0].mxu0
      %v340 = vpop.f32.mrb[0].mxu0
      %v341 = vadd.f32 %v273, %v340
      %v342 = vpop.f32.mrb[0].mxu0
      %343 = vdwg.mxu0
      %v344 = vpack.c.bf16 %v341, %v338
      %v346 = vunpack.c.l.b16 %v344
      %v347 = vunpack.c.h.b16 %v344
      %v348 = vpack.c.b16 %v346, %v346
      %v349 = vpack.c.b16 %v347, %v347
      %vm352 = vcmask 519168
      %353 = vst.msk [vmem:[%s254] sm:$0xf] %vm352, %v348
      %354 = vst.msk [vmem:[%s254 + $0x4] sm:$0xf] %vm352, %v349
      %s355 = smul.u32 2, %s20
      %p356 = scmp.lt.s32.totalorder %s19, 1
      %s357 = scalar_select %p356, %s19, 1
      %p358 = scmp.lt.s32.totalorder %s355, 1
      %s359 = scalar_select %p358, %s355, 1
      %p360 = scmp.lt.s32.totalorder %s21, 0
      %s361 = scalar_select %p360, %s21, 0
      %s362 = sadd.s32 %s361, %s359
      %s363 = smul.addr %s357, 2
      %s364 = sadd.s32 %s362, %s363
      %s365 = smul.addr %s364, 4
      %s366 = scalar_lea.vmem %s3, %s365
      // Predicated region
      $region33: #{closed_call.31} parent=31 // pred_check
        %p367 = pneg %p135
      $region34: #{closed_call.31} parent=31 // pred_check_branch
        %369 = sbr.rel (%p367) target = $region36
      $region35: #{closed_call.31} parent=31 // pred_region
        %s370 = smul.u32 2, %s20
      $region36: #{closed_call.31} parent=31 // pred_fallthru
        _
    $region32: #{closed_call.31} parent=5 // pred_fallthru
      _
    %p371 = scmp.le.s32.totalorder 2, %s9
    // Predicated region
    $region37: #{closed_call.31} parent=5 // pred_check
      %p372 = pneg %p371
    $region38: #{closed_call.31} parent=5 // pred_check_branch
      %374 = sbr.rel (%p372) target = $region40
    $region39: #{closed_call.31} parent=5 // pred_region
      %s375 = ssub.s32 %s9, 2
      // Predicated region
      $region41: #{closed_call.31} parent=39 // pred_check
        %p376 = pneg %p141
      $region42: #{closed_call.31} parent=39 // pred_check_branch
        %378 = sbr.rel (%p376) target = $region44
      $region43: #{closed_call.31} parent=39 // pred_region
        %s379 = smul.u32 2, %s23
        %p380 = scmp.lt.s32.totalorder %s22, 1
        %s381 = scalar_select %p380, %s22, 1
        %p382 = scmp.lt.s32.totalorder %s379, 1
        %s383 = scalar_select %p382, %s379, 1
        %p384 = scmp.lt.s32.totalorder %s24, 0
        %s385 = scalar_select %p384, %s24, 0
        %s386 = sadd.s32 %s385, %s383
        %s387 = smul.addr %s381, 2
        %s388 = sadd.s32 %s386, %s387
        %s389 = smul.addr %s388, 4
        %s390 = scalar_lea.vmem %s3, %s389
      $region44: #{closed_call.31} parent=39 // pred_fallthru
        _
    $region40: #{closed_call.31} parent=5 // pred_fallthru
      _
  $region6: #{closed_call.31} parent=0 // loop_footer
    %s13 = sadd.s32 1, %s9
  $region7: #{closed_call.31} parent=0 // loop_footer_branch
    %8 = sbr.rel target = $region3
  $region8: #{closed_call.31} parent=0 // loop_exit
    _

// kernel: closed_call.28
$region0: #{closed_call.28}
  #allocation0 [shape = 'u32[]', space=smem, size = 0x4, offset = 0x4, fixed_abs, tag = 'smem constant byte address 0x4 - core index']
  #allocation1 [shape = 'u32[144,128]{1,0:T(1,128)}', space=vmem, size = 0x12000, scoped, tag = 'internal scratch']
  #allocation2 [shape = 'bf16[16,64]{1,0:T(16,128)(2,1)}', space=vmem, size = 0x1000, scoped, tag = 'scratch operand']
  %s0 = inlined_call_operand.vmem [shape: f32[2,16,64], index: 0, kind: input, shape index: {}]
  %s1 = inlined_call_operand.vmem [shape: f32[2,1,64], index: 1, kind: input, shape index: {}]
  %s2 = inlined_call_operand.vmem [shape: f32[2,1,64], index: 2, kind: input, shape index: {}]
  %s3 = inlined_call_operand.vmem [shape: bf16[64,64], index: 3, kind: input, shape index: {}]
  %s4 = inlined_call_operand.vmem [shape: bf16[64,64], index: 4, kind: input, shape index: {}]
  %s5 = inlined_call_operand.vmem [shape: bf16[64,64], index: 5, kind: input, shape index: {}]
  %s6 = inlined_call_operand.vmem [shape: f32[1,64], index: 6, kind: input, shape index: {}]
  %s7 = inlined_call_operand.vmem [shape: f32[1,64], index: 7, kind: input, shape index: {}]
  %s8 = inlined_call_operand.vmem [shape: f32[1,64], index: 8, kind: input, shape index: {}]
  %s9 = inlined_call_operand.vmem [shape: bf16[2,16,64], index: 9, kind: output, shape index: {0}]
  %s10 = inlined_call_operand.vmem [shape: bf16[2,16,64], index: 10, kind: output, shape index: {1}]
  %s11 = inlined_call_operand.vmem [shape: bf16[2,16,64], index: 11, kind: output, shape index: {2}]
  %12 = xla_tuple %s9, %s10, %s11
  %s13 = sld [smem:[#allocation0]]
  $region89: #{closed_call.28} parent=0
    _
  %s15 = ssub.s32 1, %s13
  %s16 = scalar_select 0, %s15, %s13
  loop: start=0, step=1, limit=4
  $region2: #{closed_call.28} parent=0 // loop_pre_header
    _
  $region3: #{closed_call.28} parent=0 // loop_header
    %s18 = sphi 0, %s22
    %p19 = scmp.ge.s32.totalorder %s18, 4
    %s25 = sphi 0, %s44
    %s26 = sphi 0, %s40
    %s27 = sphi 0, %s36
    %s28 = sphi 0, %s25
    %s29 = sphi 0, %s26
    %s30 = sphi 0, %s27
    %s31 = sphi 0, %s28
    %s32 = sphi 0, %s29
    %s33 = sphi 0, %s30
    %s49 = sphi 0, %s51
    %s52 = sphi 0, %s49
    %s53 = sphi 0, %s52
    %s69 = sphi 0, %s53
    %s75 = sphi 0, %s77
    %s78 = sphi 0, %s75
    %s79 = sphi 0, %s78
    %s95 = sphi 0, %s79
    %s101 = sphi 0, %s103
    %s104 = sphi 0, %s101
    %s105 = sphi 0, %s104
    %s121 = sphi 0, %s105
    %s127 = sphi 0, %s129
    %s130 = sphi 0, %s127
    %s131 = sphi 0, %s130
    %s147 = sphi 0, %s131
    %s153 = sphi 0, %s155
    %s156 = sphi 0, %s153
    %s157 = sphi 0, %s156
    %s173 = sphi 0, %s157
    %s179 = sphi 0, %s181
    %s182 = sphi 0, %s179
    %s183 = sphi 0, %s182
    %s199 = sphi 0, %s183
    %s205 = sphi 0, %s207
    %s208 = sphi 0, %s205
    %s209 = sphi 0, %s208
    %s225 = sphi 0, %s209
    %s231 = sphi 0, %s233
    %s234 = sphi 0, %s231
    %s235 = sphi 0, %s234
    %s251 = sphi 0, %s235
    %s257 = sphi 0, %s259
    %s260 = sphi 0, %s257
    %s261 = sphi 0, %s260
    %s277 = sphi 0, %s261
    %s287 = sphi 0, %s289
    %s290 = sphi 0, %s287
    %s291 = sphi 0, %s290
    %s307 = sphi 0, %s291
    %s317 = sphi 0, %s319
    %s320 = sphi 0, %s317
    %s321 = sphi 0, %s320
    %s337 = sphi 0, %s321
    %s347 = sphi 0, %s349
    %s350 = sphi 0, %s347
    %s351 = sphi 0, %s350
    %s367 = sphi 0, %s351
  $region4: #{closed_call.28} parent=0 // loop_header_branch
    %21 = sbr.rel (%p19) target = $region8
  $region5: #{closed_call.28} parent=0 // loop_body
    %s23 = ssub.s32 %s18, 1
    %s24 = ssub.s32 %s18, 2
    %s34 = sadd.s32 1, %s27
    %p35 = scmp.ge.s32.totalorder %s34, 1
    %s36 = scalar_select %p35, 0, %s34
    %s37 = sadd.s32 1, %s26
    %s38 = scalar_select %p35, %s37, %s26
    %p39 = scmp.ge.s32.totalorder %s38, 1
    %s40 = scalar_select %p39, 0, %s38
    %s41 = sadd.s32 1, %s25
    %s42 = scalar_select %p39, %s41, %s25
    %p43 = scmp.ge.s32.totalorder %s42, 2
    %s44 = scalar_select %p43, 0, %s42
    %s45 = ssub.s32 %s25, %s44
    %s46 = ssub.s32 %s26, %s40
    %s47 = sor.u32 %s45, %s46
    %p48 = scmp.eq.s32.totalorder %s47, 0
    %s50 = sadd.s32 %s49, 1
    %s51 = scalar_select %p48, %s49, %s50
    %p54 = pneg %p48
    %p55 = scmp.eq.s32.totalorder %s18, 1
    %p56 = por %p54, %p55
    %p57 = scmp.ne.s32.totalorder %s49, %s52
    %p58 = scmp.eq.s32.totalorder %s18, 0
    %p59 = por %p57, %p58
    %p60 = scmp.ne.s32.totalorder %s49, %s52
    %p61 = scmp.eq.s32.totalorder %s23, 1
    %p62 = por %p60, %p61
    %p63 = scmp.ne.s32.totalorder %s52, %s53
    %p64 = scmp.eq.s32.totalorder %s23, 0
    %p65 = por %p63, %p64
    %p66 = scmp.ne.s32.totalorder %s52, %s53
    %p67 = scmp.eq.s32.totalorder %s24, 1
    %p68 = por %p66, %p67
    %p70 = scmp.ne.s32.totalorder %s53, %s69
    %p71 = scmp.eq.s32.totalorder %s24, 0
    %p72 = por %p70, %p71
    %s73 = ssub.s32 %s25, %s44
    %p74 = scmp.eq.s32.totalorder %s73, 0
    %s76 = sadd.s32 %s75, 1
    %s77 = scalar_select %p74, %s75, %s76
    %p80 = pneg %p74
    %p81 = scmp.eq.s32.totalorder %s18, 1
    %p82 = por %p80, %p81
    %p83 = scmp.ne.s32.totalorder %s75, %s78
    %p84 = scmp.eq.s32.totalorder %s18, 0
    %p85 = por %p83, %p84
    %p86 = scmp.ne.s32.totalorder %s75, %s78
    %p87 = scmp.eq.s32.totalorder %s23, 1
    %p88 = por %p86, %p87
    %p89 = scmp.ne.s32.totalorder %s78, %s79
    %p90 = scmp.eq.s32.totalorder %s23, 0
    %p91 = por %p89, %p90
    %p92 = scmp.ne.s32.totalorder %s78, %s79
    %p93 = scmp.eq.s32.totalorder %s24, 1
    %p94 = por %p92, %p93
    %p96 = scmp.ne.s32.totalorder %s79, %s95
    %p97 = scmp.eq.s32.totalorder %s24, 0
    %p98 = por %p96, %p97
    %s99 = ssub.s32 %s25, %s44
    %p100 = scmp.eq.s32.totalorder %s99, 0
    %s102 = sadd.s32 %s101, 1
    %s103 = scalar_select %p100, %s101, %s102
    %p106 = pneg %p100
    %p107 = scmp.eq.s32.totalorder %s18, 1
    %p108 = por %p106, %p107
    %p109 = scmp.ne.s32.totalorder %s101, %s104
    %p110 = scmp.eq.s32.totalorder %s18, 0
    %p111 = por %p109, %p110
    %p112 = scmp.ne.s32.totalorder %s101, %s104
    %p113 = scmp.eq.s32.totalorder %s23, 1
    %p114 = por %p112, %p113
    %p115 = scmp.ne.s32.totalorder %s104, %s105
    %p116 = scmp.eq.s32.totalorder %s23, 0
    %p117 = por %p115, %p116
    %p118 = scmp.ne.s32.totalorder %s104, %s105
    %p119 = scmp.eq.s32.totalorder %s24, 1
    %p120 = por %p118, %p119
    %p122 = scmp.ne.s32.totalorder %s105, %s121
    %p123 = scmp.eq.s32.totalorder %s24, 0
    %p124 = por %p122, %p123
    %s125 = ssub.s32 %s27, %s36
    %p126 = scmp.eq.s32.totalorder %s125, 0
    %s128 = sadd.s32 %s127, 1
    %s129 = scalar_select %p126, %s127, %s128
    %p132 = pneg %p126
    %p133 = scmp.eq.s32.totalorder %s18, 1
    %p134 = por %p132, %p133
    %p135 = scmp.ne.s32.totalorder %s127, %s130
    %p136 = scmp.eq.s32.totalorder %s18, 0
    %p137 = por %p135, %p136
    %p138 = scmp.ne.s32.totalorder %s127, %s130
    %p139 = scmp.eq.s32.totalorder %s23, 1
    %p140 = por %p138, %p139
    %p141 = scmp.ne.s32.totalorder %s130, %s131
    %p142 = scmp.eq.s32.totalorder %s23, 0
    %p143 = por %p141, %p142
    %p144 = scmp.ne.s32.totalorder %s130, %s131
    %p145 = scmp.eq.s32.totalorder %s24, 1
    %p146 = por %p144, %p145
    %p148 = scmp.ne.s32.totalorder %s131, %s147
    %p149 = scmp.eq.s32.totalorder %s24, 0
    %p150 = por %p148, %p149
    %s151 = ssub.s32 %s27, %s36
    %p152 = scmp.eq.s32.totalorder %s151, 0
    %s154 = sadd.s32 %s153, 1
    %s155 = scalar_select %p152, %s153, %s154
    %p158 = pneg %p152
    %p159 = scmp.eq.s32.totalorder %s18, 1
    %p160 = por %p158, %p159
    %p161 = scmp.ne.s32.totalorder %s153, %s156
    %p162 = scmp.eq.s32.totalorder %s18, 0
    %p163 = por %p161, %p162
    %p164 = scmp.ne.s32.totalorder %s153, %s156
    %p165 = scmp.eq.s32.totalorder %s23, 1
    %p166 = por %p164, %p165
    %p167 = scmp.ne.s32.totalorder %s156, %s157
    %p168 = scmp.eq.s32.totalorder %s23, 0
    %p169 = por %p167, %p168
    %p170 = scmp.ne.s32.totalorder %s156, %s157
    %p171 = scmp.eq.s32.totalorder %s24, 1
    %p172 = por %p170, %p171
    %p174 = scmp.ne.s32.totalorder %s157, %s173
    %p175 = scmp.eq.s32.totalorder %s24, 0
    %p176 = por %p174, %p175
    %s177 = ssub.s32 %s27, %s36
    %p178 = scmp.eq.s32.totalorder %s177, 0
    %s180 = sadd.s32 %s179, 1
    %s181 = scalar_select %p178, %s179, %s180
    %p184 = pneg %p178
    %p185 = scmp.eq.s32.totalorder %s18, 1
    %p186 = por %p184, %p185
    %p187 = scmp.ne.s32.totalorder %s179, %s182
    %p188 = scmp.eq.s32.totalorder %s18, 0
    %p189 = por %p187, %p188
    %p190 = scmp.ne.s32.totalorder %s179, %s182
    %p191 = scmp.eq.s32.totalorder %s23, 1
    %p192 = por %p190, %p191
    %p193 = scmp.ne.s32.totalorder %s182, %s183
    %p194 = scmp.eq.s32.totalorder %s23, 0
    %p195 = por %p193, %p194
    %p196 = scmp.ne.s32.totalorder %s182, %s183
    %p197 = scmp.eq.s32.totalorder %s24, 1
    %p198 = por %p196, %p197
    %p200 = scmp.ne.s32.totalorder %s183, %s199
    %p201 = scmp.eq.s32.totalorder %s24, 0
    %p202 = por %p200, %p201
    %s203 = ssub.s32 %s27, %s36
    %p204 = scmp.eq.s32.totalorder %s203, 0
    %s206 = sadd.s32 %s205, 1
    %s207 = scalar_select %p204, %s205, %s206
    %p210 = pneg %p204
    %p211 = scmp.eq.s32.totalorder %s18, 1
    %p212 = por %p210, %p211
    %p213 = scmp.ne.s32.totalorder %s205, %s208
    %p214 = scmp.eq.s32.totalorder %s18, 0
    %p215 = por %p213, %p214
    %p216 = scmp.ne.s32.totalorder %s205, %s208
    %p217 = scmp.eq.s32.totalorder %s23, 1
    %p218 = por %p216, %p217
    %p219 = scmp.ne.s32.totalorder %s208, %s209
    %p220 = scmp.eq.s32.totalorder %s23, 0
    %p221 = por %p219, %p220
    %p222 = scmp.ne.s32.totalorder %s208, %s209
    %p223 = scmp.eq.s32.totalorder %s24, 1
    %p224 = por %p222, %p223
    %p226 = scmp.ne.s32.totalorder %s209, %s225
    %p227 = scmp.eq.s32.totalorder %s24, 0
    %p228 = por %p226, %p227
    %s229 = ssub.s32 %s27, %s36
    %p230 = scmp.eq.s32.totalorder %s229, 0
    %s232 = sadd.s32 %s231, 1
    %s233 = scalar_select %p230, %s231, %s232
    %p236 = pneg %p230
    %p237 = scmp.eq.s32.totalorder %s18, 1
    %p238 = por %p236, %p237
    %p239 = scmp.ne.s32.totalorder %s231, %s234
    %p240 = scmp.eq.s32.totalorder %s18, 0
    %p241 = por %p239, %p240
    %p242 = scmp.ne.s32.totalorder %s231, %s234
    %p243 = scmp.eq.s32.totalorder %s23, 1
    %p244 = por %p242, %p243
    %p245 = scmp.ne.s32.totalorder %s234, %s235
    %p246 = scmp.eq.s32.totalorder %s23, 0
    %p247 = por %p245, %p246
    %p248 = scmp.ne.s32.totalorder %s234, %s235
    %p249 = scmp.eq.s32.totalorder %s24, 1
    %p250 = por %p248, %p249
    %p252 = scmp.ne.s32.totalorder %s235, %s251
    %p253 = scmp.eq.s32.totalorder %s24, 0
    %p254 = por %p252, %p253
    %s255 = ssub.s32 %s27, %s36
    %p256 = scmp.eq.s32.totalorder %s255, 0
    %s258 = sadd.s32 %s257, 1
    %s259 = scalar_select %p256, %s257, %s258
    %p262 = pneg %p256
    %p263 = scmp.eq.s32.totalorder %s18, 1
    %p264 = por %p262, %p263
    %p265 = scmp.ne.s32.totalorder %s257, %s260
    %p266 = scmp.eq.s32.totalorder %s18, 0
    %p267 = por %p265, %p266
    %p268 = scmp.ne.s32.totalorder %s257, %s260
    %p269 = scmp.eq.s32.totalorder %s23, 1
    %p270 = por %p268, %p269
    %p271 = scmp.ne.s32.totalorder %s260, %s261
    %p272 = scmp.eq.s32.totalorder %s23, 0
    %p273 = por %p271, %p272
    %p274 = scmp.ne.s32.totalorder %s260, %s261
    %p275 = scmp.eq.s32.totalorder %s24, 1
    %p276 = por %p274, %p275
    %p278 = scmp.ne.s32.totalorder %s261, %s277
    %p279 = scmp.eq.s32.totalorder %s24, 0
    %p280 = por %p278, %p279
    %s281 = ssub.s32 %s25, %s44
    %s282 = ssub.s32 %s26, %s40
    %s283 = sor.u32 %s281, %s282
    %s284 = ssub.s32 %s27, %s36
    %s285 = sor.u32 %s283, %s284
    %p286 = scmp.eq.s32.totalorder %s285, 0
    %s288 = sadd.s32 %s287, 1
    %s289 = scalar_select %p286, %s287, %s288
    %p292 = pneg %p286
    %p293 = scmp.eq.s32.totalorder %s18, 1
    %p294 = por %p292, %p293
    %p295 = scmp.ne.s32.totalorder %s287, %s290
    %p296 = scmp.eq.s32.totalorder %s18, 0
    %p297 = por %p295, %p296
    %p298 = scmp.ne.s32.totalorder %s287, %s290
    %p299 = scmp.eq.s32.totalorder %s23, 1
    %p300 = por %p298, %p299
    %p301 = scmp.ne.s32.totalorder %s290, %s291
    %p302 = scmp.eq.s32.totalorder %s23, 0
    %p303 = por %p301, %p302
    %p304 = scmp.ne.s32.totalorder %s290, %s291
    %p305 = scmp.eq.s32.totalorder %s24, 1
    %p306 = por %p304, %p305
    %p308 = scmp.ne.s32.totalorder %s291, %s307
    %p309 = scmp.eq.s32.totalorder %s24, 0
    %p310 = por %p308, %p309
    %s311 = ssub.s32 %s25, %s44
    %s312 = ssub.s32 %s26, %s40
    %s313 = sor.u32 %s311, %s312
    %s314 = ssub.s32 %s27, %s36
    %s315 = sor.u32 %s313, %s314
    %p316 = scmp.eq.s32.totalorder %s315, 0
    %s318 = sadd.s32 %s317, 1
    %s319 = scalar_select %p316, %s317, %s318
    %p322 = pneg %p316
    %p323 = scmp.eq.s32.totalorder %s18, 1
    %p324 = por %p322, %p323
    %p325 = scmp.ne.s32.totalorder %s317, %s320
    %p326 = scmp.eq.s32.totalorder %s18, 0
    %p327 = por %p325, %p326
    %p328 = scmp.ne.s32.totalorder %s317, %s320
    %p329 = scmp.eq.s32.totalorder %s23, 1
    %p330 = por %p328, %p329
    %p331 = scmp.ne.s32.totalorder %s320, %s321
    %p332 = scmp.eq.s32.totalorder %s23, 0
    %p333 = por %p331, %p332
    %p334 = scmp.ne.s32.totalorder %s320, %s321
    %p335 = scmp.eq.s32.totalorder %s24, 1
    %p336 = por %p334, %p335
    %p338 = scmp.ne.s32.totalorder %s321, %s337
    %p339 = scmp.eq.s32.totalorder %s24, 0
    %p340 = por %p338, %p339
    %s341 = ssub.s32 %s25, %s44
    %s342 = ssub.s32 %s26, %s40
    %s343 = sor.u32 %s341, %s342
    %s344 = ssub.s32 %s27, %s36
    %s345 = sor.u32 %s343, %s344
    %p346 = scmp.eq.s32.totalorder %s345, 0
    %s348 = sadd.s32 %s347, 1
    %s349 = scalar_select %p346, %s347, %s348
    %p352 = pneg %p346
    %p353 = scmp.eq.s32.totalorder %s18, 1
    %p354 = por %p352, %p353
    %p355 = scmp.ne.s32.totalorder %s347, %s350
    %p356 = scmp.eq.s32.totalorder %s18, 0
    %p357 = por %p355, %p356
    %p358 = scmp.ne.s32.totalorder %s347, %s350
    %p359 = scmp.eq.s32.totalorder %s23, 1
    %p360 = por %p358, %p359
    %p361 = scmp.ne.s32.totalorder %s350, %s351
    %p362 = scmp.eq.s32.totalorder %s23, 0
    %p363 = por %p361, %p362
    %p364 = scmp.ne.s32.totalorder %s350, %s351
    %p365 = scmp.eq.s32.totalorder %s24, 1
    %p366 = por %p364, %p365
    %p368 = scmp.ne.s32.totalorder %s351, %s367
    %p369 = scmp.eq.s32.totalorder %s24, 0
    %p370 = por %p368, %p369
    %p371 = scmp.le.s32.totalorder 1, %s18
    %p372 = scmp.lt.s32.totalorder %s18, 3
    %p373 = pnand %p371, %p372
    %p374 = pneg %p373
    // Predicated region
    $region9: #{closed_call.28} parent=5 // pred_check
      _
    $region10: #{closed_call.28} parent=5 // pred_check_branch
      %376 = sbr.rel (%p373) target = $region12
    $region11: #{closed_call.28} parent=5 // pred_region
      %s377 = ssub.s32 %s18, 1
      // Predicated region
      $region13: #{closed_call.28} parent=11 // pred_check
        %p378 = pneg %p143
      $region14: #{closed_call.28} parent=11 // pred_check_branch
        %380 = sbr.rel (%p378) target = $region16
      $region15: #{closed_call.28} parent=11 // pred_region
        %p381 = scmp.lt.s32.totalorder %s30, 0
        %s382 = scalar_select %p381, %s30, 0
        %s383 = smul.addr %s382, 4
        %s384 = scalar_lea.vmem %s3, %s383
      $region16: #{closed_call.28} parent=11 // pred_fallthru
        _
      // Predicated region
      $region17: #{closed_call.28} parent=11 // pred_check
        %p385 = pneg %p169
      $region18: #{closed_call.28} parent=11 // pred_check_branch
        %387 = sbr.rel (%p385) target = $region20
      $region19: #{closed_call.28} parent=11 // pred_region
        %p388 = scmp.lt.s32.totalorder %s30, 0
        %s389 = scalar_select %p388, %s30, 0
        %s390 = smul.addr %s389, 4
        %s391 = scalar_lea.vmem %s4, %s390
      $region20: #{closed_call.28} parent=11 // pred_fallthru
        _
      // Predicated region
      $region21: #{closed_call.28} parent=11 // pred_check
        %p392 = pneg %p195
      $region22: #{closed_call.28} parent=11 // pred_check_branch
        %394 = sbr.rel (%p392) target = $region24
      $region23: #{closed_call.28} parent=11 // pred_region
        %p395 = scmp.lt.s32.totalorder %s30, 0
        %s396 = scalar_select %p395, %s30, 0
        %s397 = smul.addr %s396, 4
        %s398 = scalar_lea.vmem %s5, %s397
      $region24: #{closed_call.28} parent=11 // pred_fallthru
        _
      // Predicated region
      $region25: #{closed_call.28} parent=11 // pred_check
        %p399 = pneg %p221
      $region26: #{closed_call.28} parent=11 // pred_check_branch
        %401 = sbr.rel (%p399) target = $region28
      $region27: #{closed_call.28} parent=11 // pred_region
        %p402 = scmp.lt.s32.totalorder %s30, 0
        %s403 = scalar_select %p402, %s30, 0
        %s404 = scalar_lea.vmem %s6, %s403
      $region28: #{closed_call.28} parent=11 // pred_fallthru
        _
      // Predicated region
      $region29: #{closed_call.28} parent=11 // pred_check
        %p405 = pneg %p247
      $region30: #{closed_call.28} parent=11 // pred_check_branch
        %407 = sbr.rel (%p405) target = $region32
      $region31: #{closed_call.28} parent=11 // pred_region
        %p408 = scmp.lt.s32.totalorder %s30, 0
        %s409 = scalar_select %p408, %s30, 0
        %s410 = scalar_lea.vmem %s7, %s409
      $region32: #{closed_call.28} parent=11 // pred_fallthru
        _
      // Predicated region
      $region33: #{closed_call.28} parent=11 // pred_check
        %p411 = pneg %p273
      $region34: #{closed_call.28} parent=11 // pred_check_branch
        %413 = sbr.rel (%p411) target = $region36
      $region35: #{closed_call.28} parent=11 // pred_region
        %p414 = scmp.lt.s32.totalorder %s30, 0
        %s415 = scalar_select %p414, %s30, 0
        %s416 = scalar_lea.vmem %s8, %s415
      $region36: #{closed_call.28} parent=11 // pred_fallthru
        _
    $region12: #{closed_call.28} parent=5 // pred_fallthru
      _
    %p417 = scmp.lt.s32.totalorder %s18, 2
    // Predicated region
    $region37: #{closed_call.28} parent=5 // pred_check
      %p418 = pneg %p417
    $region38: #{closed_call.28} parent=5 // pred_check_branch
      %420 = sbr.rel (%p418) target = $region40
    $region39: #{closed_call.28} parent=5 // pred_region
      // Predicated region
      $region41: #{closed_call.28} parent=39 // pred_check
        %p421 = pneg %p59
      $region42: #{closed_call.28} parent=39 // pred_check_branch
        %423 = sbr.rel (%p421) target = $region44
      $region43: #{closed_call.28} parent=39 // pred_region
        %s424 = smul.u32 2, %s26
        %p425 = scmp.lt.s32.totalorder %s25, 1
        %s426 = scalar_select %p425, %s25, 1
        %p427 = scmp.lt.s32.totalorder %s424, 1
        %s428 = scalar_select %p427, %s424, 1
        %s429 = smul.addr %s426, 2
        %s430 = sadd.s32 %s428, %s429
        %s431 = smul.addr %s430, 8
        %s432 = scalar_lea.vmem %s0, %s431
        %s433 = smul.u32 2, %s26
      $region44: #{closed_call.28} parent=39 // pred_fallthru
        _
      // Predicated region
      $region45: #{closed_call.28} parent=39 // pred_check
        %p434 = pneg %p85
      $region46: #{closed_call.28} parent=39 // pred_check_branch
        %436 = sbr.rel (%p434) target = $region48
      $region47: #{closed_call.28} parent=39 // pred_region
        %p437 = scmp.lt.s32.totalorder %s25, 1
        %s438 = scalar_select %p437, %s25, 1
        %s439 = scalar_lea.vmem %s1, %s438
      $region48: #{closed_call.28} parent=39 // pred_fallthru
        _
      // Predicated region
      $region49: #{closed_call.28} parent=39 // pred_check
        %p440 = pneg %p111
      $region50: #{closed_call.28} parent=39 // pred_check_branch
        %442 = sbr.rel (%p440) target = $region52
      $region51: #{closed_call.28} parent=39 // pred_region
        %p443 = scmp.lt.s32.totalorder %s25, 1
        %s444 = scalar_select %p443, %s25, 1
        %s445 = scalar_lea.vmem %s2, %s444
      $region52: #{closed_call.28} parent=39 // pred_fallthru
        _
    $region40: #{closed_call.28} parent=5 // pred_fallthru
      _
    %p446 = scmp.le.s32.totalorder 1, %s18
    %p447 = scmp.lt.s32.totalorder %s18, 3
    %p448 = pnand %p446, %p447
    %p449 = pneg %p448
    // Predicated region
    $region53: #{closed_call.28} parent=5 // pred_check
      _
    $region54: #{closed_call.28} parent=5 // pred_check_branch
      %451 = sbr.rel (%p448) target = $region56
    $region55: #{closed_call.28} parent=5 // pred_region
      %s452 = ssub.s32 %s18, 1
      %s453 = smul.u32 2, %s29
      %p454 = scmp.lt.s32.totalorder %s28, 1
      %s455 = scalar_select %p454, %s28, 1
      %p456 = scmp.lt.s32.totalorder %s453, 1
      %s457 = scalar_select %p456, %s453, 1
      %s458 = smul.addr %s455, 2
      %s459 = sadd.s32 %s457, %s458
      %s460 = smul.addr %s459, 8
      %s461 = scalar_lea.vmem %s0, %s460
      %p462 = pneg %p65
      %p463 = pneg %p62
      %p464 = scmp.lt.s32.totalorder %s28, 1
      %s465 = scalar_select %p464, %s28, 1
      %s466 = scalar_lea.vmem %s1, %s465
      %p467 = pneg %p91
      %p468 = pneg %p88
      %p469 = scmp.lt.s32.totalorder %s28, 1
      %s470 = scalar_select %p469, %s28, 1
      %s471 = scalar_lea.vmem %s2, %s470
      %p472 = pneg %p117
      %p473 = pneg %p114
      %p474 = scmp.lt.s32.totalorder %s30, 0
      %s475 = scalar_select %p474, %s30, 0
      %s476 = smul.addr %s475, 4
      %s477 = scalar_lea.vmem %s3, %s476
      %p478 = pneg %p143
      %p479 = pneg %p140
      %p480 = scmp.lt.s32.totalorder %s30, 0
      %s481 = scalar_select %p480, %s30, 0
      %s482 = smul.addr %s481, 4
      %s483 = scalar_lea.vmem %s4, %s482
      %p484 = pneg %p169
      %p485 = pneg %p166
      %p486 = scmp.lt.s32.totalorder %s30, 0
      %s487 = scalar_select %p486, %s30, 0
      %s488 = smul.addr %s487, 4
      %s489 = scalar_lea.vmem %s5, %s488
      %p490 = pneg %p195
      %p491 = pneg %p192
      %p492 = scmp.lt.s32.totalorder %s30, 0
      %s493 = scalar_select %p492, %s30, 0
      %s494 = scalar_lea.vmem %s6, %s493
      %p495 = pneg %p221
      %p496 = pneg %p218
      %p497 = scmp.lt.s32.totalorder %s30, 0
      %s498 = scalar_select %p497, %s30, 0
      %s499 = scalar_lea.vmem %s7, %s498
      %p500 = pneg %p247
      %p501 = pneg %p244
      %p502 = scmp.lt.s32.totalorder %s30, 0
      %s503 = scalar_select %p502, %s30, 0
      %s504 = scalar_lea.vmem %s8, %s503
      %p505 = pneg %p273
      %p506 = pneg %p270
      %p507 = pneg %p303
      %p508 = pneg %p300
      %s509 = smul.u32 2, %s29
      %p510 = scmp.lt.s32.totalorder %s28, 1
      %s511 = scalar_select %p510, %s28, 1
      %p512 = scmp.lt.s32.totalorder %s509, 1
      %s513 = scalar_select %p512, %s509, 1
      %p514 = scmp.lt.s32.totalorder %s30, 0
      %s515 = scalar_select %p514, %s30, 0
      %s516 = sadd.s32 %s515, %s513
      %s517 = smul.addr %s511, 2
      %s518 = sadd.s32 %s516, %s517
      %s519 = smul.addr %s518, 4
      %s520 = scalar_lea.vmem %s9, %s519
      %p521 = pneg %p333
      %p522 = pneg %p330
      %s523 = smul.u32 2, %s29
      %p524 = scmp.lt.s32.totalorder %s28, 1
      %s525 = scalar_select %p524, %s28, 1
      %p526 = scmp.lt.s32.totalorder %s523, 1
      %s527 = scalar_select %p526, %s523, 1
      %p528 = scmp.lt.s32.totalorder %s30, 0
      %s529 = scalar_select %p528, %s30, 0
      %s530 = sadd.s32 %s529, %s527
      %s531 = smul.addr %s525, 2
      %s532 = sadd.s32 %s530, %s531
      %s533 = smul.addr %s532, 4
      %s534 = scalar_lea.vmem %s10, %s533
      %p535 = pneg %p363
      %p536 = pneg %p360
      %s537 = smul.u32 2, %s29
      %p538 = scmp.lt.s32.totalorder %s28, 1
      %s539 = scalar_select %p538, %s28, 1
      %p540 = scmp.lt.s32.totalorder %s537, 1
      %s541 = scalar_select %p540, %s537, 1
      %p542 = scmp.lt.s32.totalorder %s30, 0
      %s543 = scalar_select %p542, %s30, 0
      %s544 = sadd.s32 %s543, %s541
      %s545 = smul.addr %s539, 2
      %s546 = sadd.s32 %s544, %s545
      %s547 = smul.addr %s546, 4
      %s548 = scalar_lea.vmem %s11, %s547
      %s549 = smul.u32 2, %s29
      %p550 = scmp.lt.s32.totalorder %s28, 1
      %s551 = scalar_select %p550, %s28, 1
      %p552 = scmp.lt.s32.totalorder %s549, 1
      %s553 = scalar_select %p552, %s549, 1
      %s554 = smul.addr %s551, 2
      %s555 = sadd.s32 %s553, %s554
      %s556 = smul.addr %s555, 8
      %s557 = scalar_lea.vmem %s0, %s556
      %s558 = smul.u32 2, %s29
      %p559 = scmp.lt.s32.totalorder %s28, 1
      %s560 = scalar_select %p559, %s28, 1
      %s561 = scalar_lea.vmem %s1, %s560
      %p562 = scmp.lt.s32.totalorder %s28, 1
      %s563 = scalar_select %p562, %s28, 1
      %s564 = scalar_lea.vmem %s2, %s563
      %p565 = scmp.lt.s32.totalorder %s30, 0
      %s566 = scalar_select %p565, %s30, 0
      %s567 = smul.addr %s566, 4
      %s568 = scalar_lea.vmem %s3, %s567
      %p569 = scmp.lt.s32.totalorder %s30, 0
      %s570 = scalar_select %p569, %s30, 0
      %s571 = smul.addr %s570, 4
      %s572 = scalar_lea.vmem %s4, %s571
      %p573 = scmp.lt.s32.totalorder %s30, 0
      %s574 = scalar_select %p573, %s30, 0
      %s575 = smul.addr %s574, 4
      %s576 = scalar_lea.vmem %s5, %s575
      %p577 = scmp.lt.s32.totalorder %s30, 0
      %s578 = scalar_select %p577, %s30, 0
      %s579 = scalar_lea.vmem %s6, %s578
      %p580 = scmp.lt.s32.totalorder %s30, 0
      %s581 = scalar_select %p580, %s30, 0
      %s582 = scalar_lea.vmem %s7, %s581
      %p583 = scmp.lt.s32.totalorder %s30, 0
      %s584 = scalar_select %p583, %s30, 0
      %s585 = scalar_lea.vmem %s8, %s584
      %s586 = smul.u32 2, %s29
      %p587 = scmp.lt.s32.totalorder %s28, 1
      %s588 = scalar_select %p587, %s28, 1
      %p589 = scmp.lt.s32.totalorder %s586, 1
      %s590 = scalar_select %p589, %s586, 1
      %p591 = scmp.lt.s32.totalorder %s30, 0
      %s592 = scalar_select %p591, %s30, 0
      %s593 = sadd.s32 %s592, %s590
      %s594 = smul.addr %s588, 2
      %s595 = sadd.s32 %s593, %s594
      %s596 = smul.addr %s595, 4
      %s597 = scalar_lea.vmem %s9, %s596
      %s598 = smul.u32 2, %s29
      %s599 = smul.u32 2, %s29
      %p600 = scmp.lt.s32.totalorder %s28, 1
      %s601 = scalar_select %p600, %s28, 1
      %p602 = scmp.lt.s32.totalorder %s599, 1
      %s603 = scalar_select %p602, %s599, 1
      %p604 = scmp.lt.s32.totalorder %s30, 0
      %s605 = scalar_select %p604, %s30, 0
      %s606 = sadd.s32 %s605, %s603
      %s607 = smul.addr %s601, 2
      %s608 = sadd.s32 %s606, %s607
      %s609 = smul.addr %s608, 4
      %s610 = scalar_lea.vmem %s10, %s609
      %s611 = smul.u32 2, %s29
      %s612 = smul.u32 2, %s29
      %p613 = scmp.lt.s32.totalorder %s28, 1
      %s614 = scalar_select %p613, %s28, 1
      %p615 = scmp.lt.s32.totalorder %s612, 1
      %s616 = scalar_select %p615, %s612, 1
      %p617 = scmp.lt.s32.totalorder %s30, 0
      %s618 = scalar_select %p617, %s30, 0
      %s619 = sadd.s32 %s618, %s616
      %s620 = smul.addr %s614, 2
      %s621 = sadd.s32 %s619, %s620
      %s622 = smul.addr %s621, 4
      %s623 = scalar_lea.vmem %s11, %s622
      %s624 = smul.u32 2, %s29
      %p626 = scmp.eq.s32.totalorder %s30, 0
      // Predicated region
      $region57: #{closed_call.28} parent=55 // pred_check
        %p627 = pneg %p626
      $region58: #{closed_call.28} parent=55 // pred_check_branch
        %629 = sbr.rel (%p627) target = $region60
      $region59: #{closed_call.28} parent=55 // pred_region
        %v630 = vld [vmem:[%s557] sm:$0xff]
        %v631 = vld [vmem:[%s557 + $0x8] sm:$0xff]
        %vm632 = vcmask 523264
        %v633 = vsel %vm632, %v630, 0.0
        %634 = vadd.xlane.f32.xlu0 %v633
        %v635 = vpop.xlane.xlu0 %634
        %v636 = vsel %vm632, %v631, 0.0
        %637 = vadd.xlane.f32.xlu0 %v636
        %v638 = vpop.xlane.xlu0 %637
        %v639 = vrcp.pop 64.0
        %v640 = vmul.f32 %v635, %v639
        %v641 = vmul.f32 %v638, %v639
        %v642 = vsub.f32 %v630, %v640
        %v643 = vsub.f32 %v631, %v641
        %v644 = vmul.f32 %v642, %v642
        %v645 = vmul.f32 %v643, %v643
        %v646 = vsel %vm632, %v644, 0.0
        %647 = vadd.xlane.f32.xlu0 %v646
        %v648 = vpop.xlane.xlu0 %647
        %v649 = vsel %vm632, %v645, 0.0
        %650 = vadd.xlane.f32.xlu0 %v649
        %v651 = vpop.xlane.xlu0 %650
        %v652 = vmul.f32 %v648, %v639
        %v653 = vmul.f32 %v651, %v639
        %v654 = vadd.f32 %v652, 1e-06
        %v655 = vadd.f32 %v653, 1e-06
        %v656 = vrsqrt.pop %v654
        %v657 = vrsqrt.pop %v655
        %v658 = vmul.f32 %v642, %v656
        %v659 = vmul.f32 %v643, %v657
        %v660 = vld [vmem:[%s564] sm:$0x1]
        %v661 = vadd.f32 %v660, 1.0
        %v663 = vlaneseq
        %v664 = vshrl.u32 %v663, 7
        %v665 = vsub.s32 0, %v664
        %v666 = vrot.slane %v661, %v665
        %v668 = vmul.f32 %v658, %v666
        %v669 = vmul.f32 %v659, %v666
        %v670 = vld [vmem:[%s561] sm:$0x1]
        %v672 = vlaneseq
        %v673 = vshrl.u32 %v672, 7
        %v674 = vsub.s32 0, %v673
        %v675 = vrot.slane %v670, %v674
        %v677 = vadd.f32 %v668, %v675
        %v678 = vadd.f32 %v669, %v675
        %v679 = vpack.c.bf16 %v678, %v677
        %680 = vst.msk [vmem:[#allocation2] sm:$0xff] %vm632, %v679
      $region60: #{closed_call.28} parent=55 // pred_fallthru
        _
      %v681 = vld [vmem:[#allocation2] sm:$0xff]
      %v682 = vld [vmem:[%s568] sm:$0xf]
      %v683 = vld [vmem:[%s568 + $0x4] sm:$0xf]
      %v684 = vld [vmem:[%s568 + $0x8] sm:$0xf]
      %v685 = vld [vmem:[%s568 + $0xc] sm:$0xf]
      %v686 = vld [vmem:[%s568 + $0x10] sm:$0xf]
      %v687 = vld [vmem:[%s568 + $0x14] sm:$0xf]
      %v688 = vld [vmem:[%s568 + $0x18] sm:$0xf]
      %v689 = vld [vmem:[%s568 + $0x1c] sm:$0xf]
      %v690 = vld [vmem:[%s579] sm:$0x1]
      %v692 = vlaneseq
      %v693 = vshrl.u32 %v692, 7
      %v694 = vsub.s32 0, %v693
      %v695 = vrot.slane %v690, %v694
      %v705 = vunpack.c.l.b16 %v682
      %v706 = vunpack.c.l.b16 %v683
      %v707 = vunpack.c.l.b16 %v684
      %v708 = vunpack.c.l.b16 %v685
      %v709 = vunpack.c.l.b16 %v686
      %v710 = vunpack.c.l.b16 %v687
      %v711 = vunpack.c.l.b16 %v688
      %v712 = vunpack.c.l.b16 %v689
      %v713 = vpack.c.b16 %v706, %v705
      %v714 = vpack.c.b16 %v708, %v707
      %v715 = vpack.c.b16 %v710, %v709
      %v716 = vpack.c.b16 %v712, %v711
      %vm721 = vcmask 523264
      %v723 = vsel %vm721, %v681, 0
      %725 = vmatprep.subr.bf16.mxu0 0
      %726 = vmatpush1.bf16.msra.mxu0 %v713
      %727 = vmatprep.subr.bf16.mxu0 0
      %728 = vmatpush1.bf16.msra.mxu0 %v714
      %729 = vmatprep.subr.bf16.mxu0 0
      %730 = vmatpush1.bf16.msra.mxu0 %v715
      %731 = vmatprep.subr.bf16.mxu0 0
      %732 = vmatpush1.bf16.msra.mxu0 %v716
      %733 = vmatprep.subr.bf16.mxu0 0
      %734 = vmatpush1.bf16.msra.mxu0 0
      %735 = vmatprep.subr.bf16.mxu0 0
      %736 = vmatpush1.bf16.msra.mxu0 0
      %737 = vmatprep.subr.bf16.mxu0 0
      %738 = vmatpush1.bf16.msra.mxu0 0
      %739 = vmatprep.subr.bf16.mxu0 0
      %740 = vmatpush1.bf16.msra.mxu0 0
      %741 = vmatprep.subr.bf16.mxu0 0
      %742 = vmatpush1.bf16.msra.mxu0 0
      %743 = vmatprep.subr.bf16.mxu0 0
      %744 = vmatpush1.bf16.msra.mxu0 0
      %745 = vmatprep.subr.bf16.mxu0 0
      %746 = vmatpush1.bf16.msra.mxu0 0
      %747 = vmatprep.subr.bf16.mxu0 0
      %748 = vmatpush1.bf16.msra.mxu0 0
      %749 = vmatprep.subr.bf16.mxu0 0
      %750 = vmatpush1.bf16.msra.mxu0 0
      %751 = vmatprep.subr.bf16.mxu0 0
      %752 = vmatpush1.bf16.msra.mxu0 0
      %753 = vmatprep.subr.bf16.mxu0 0
      %754 = vmatpush1.bf16.msra.mxu0 0
      %755 = vmatprep.subr.bf16.mxu0 0
      %756 = vmatpush1.bf16.msra.mxu0 0
      %757 = vmatprep.mubr.bf16.mxu0 0
      %758 = vmatmul.mubr.bf16.gmra.mrb[0].mxu0 %v723
      %v759 = vpop.f32.mrb[0].mxu0
      %v760 = vadd.f32 %v695, %v759
      %v761 = vpop.f32.mrb[0].mxu0
      %v762 = vpop.f32.mrb[0].mxu0
      %v763 = vadd.f32 %v695, %v762
      %v764 = vpop.f32.mrb[0].mxu0
      %765 = vdwg.mxu0
      %v766 = vpack.c.bf16 %v763, %v760
      %v768 = vunpack.c.l.b16 %v766
      %v769 = vunpack.c.h.b16 %v766
      %v770 = vpack.c.b16 %v768, %v768
      %v771 = vpack.c.b16 %v769, %v769
      %vm774 = vcmask 519168
      %775 = vst.msk [vmem:[%s597] sm:$0xf] %vm774, %v770
      %776 = vst.msk [vmem:[%s597 + $0x4] sm:$0xf] %vm774, %v771
      %v777 = vld [vmem:[%s572] sm:$0xf]
      %v778 = vld [vmem:[%s572 + $0x4] sm:$0xf]
      %v779 = vld [vmem:[%s572 + $0x8] sm:$0xf]
      %v780 = vld [vmem:[%s572 + $0xc] sm:$0xf]
      %v781 = vld [vmem:[%s572 + $0x10] sm:$0xf]
      %v782 = vld [vmem:[%s572 + $0x14] sm:$0xf]
      %v783 = vld [vmem:[%s572 + $0x18] sm:$0xf]
      %v784 = vld [vmem:[%s572 + $0x1c] sm:$0xf]
      %v785 = vld [vmem:[%s582] sm:$0x1]
      %v787 = vlaneseq
      %v788 = vshrl.u32 %v787, 7
      %v789 = vsub.s32 0, %v788
      %v790 = vrot.slane %v785, %v789
      %v800 = vunpack.c.l.b16 %v777
      %v801 = vunpack.c.l.b16 %v778
      %v802 = vunpack.c.l.b16 %v779
      %v803 = vunpack.c.l.b16 %v780
      %v804 = vunpack.c.l.b16 %v781
      %v805 = vunpack.c.l.b16 %v782
      %v806 = vunpack.c.l.b16 %v783
      %v807 = vunpack.c.l.b16 %v784
      %v808 = vpack.c.b16 %v801, %v800
      %v809 = vpack.c.b16 %v803, %v802
      %v810 = vpack.c.b16 %v805, %v804
      %v811 = vpack.c.b16 %v807, %v806
      %816 = vmatprep.subr.bf16.mxu0 0
      %817 = vmatpush1.bf16.msra.mxu0 %v808
      %818 = vmatprep.subr.bf16.mxu0 0
      %819 = vmatpush1.bf16.msra.mxu0 %v809
      %820 = vmatprep.subr.bf16.mxu0 0
      %821 = vmatpush1.bf16.msra.mxu0 %v810
      %822 = vmatprep.subr.bf16.mxu0 0
      %823 = vmatpush1.bf16.msra.mxu0 %v811
      %824 = vmatprep.subr.bf16.mxu0 0
      %825 = vmatpush1.bf16.msra.mxu0 0
      %826 = vmatprep.subr.bf16.mxu0 0
      %827 = vmatpush1.bf16.msra.mxu0 0
      %828 = vmatprep.subr.bf16.mxu0 0
      %829 = vmatpush1.bf16.msra.mxu0 0
      %830 = vmatprep.subr.bf16.mxu0 0
      %831 = vmatpush1.bf16.msra.mxu0 0
      %832 = vmatprep.subr.bf16.mxu0 0
      %833 = vmatpush1.bf16.msra.mxu0 0
      %834 = vmatprep.subr.bf16.mxu0 0
      %835 = vmatpush1.bf16.msra.mxu0 0
      %836 = vmatprep.subr.bf16.mxu0 0
      %837 = vmatpush1.bf16.msra.mxu0 0
      %838 = vmatprep.subr.bf16.mxu0 0
      %839 = vmatpush1.bf16.msra.mxu0 0
      %840 = vmatprep.subr.bf16.mxu0 0
      %841 = vmatpush1.bf16.msra.mxu0 0
      %842 = vmatprep.subr.bf16.mxu0 0
      %843 = vmatpush1.bf16.msra.mxu0 0
      %844 = vmatprep.subr.bf16.mxu0 0
      %845 = vmatpush1.bf16.msra.mxu0 0
      %846 = vmatprep.subr.bf16.mxu0 0
      %847 = vmatpush1.bf16.msra.mxu0 0
      %848 = vmatprep.mubr.bf16.mxu0 0
      %849 = vmatmul.mubr.bf16.gmra.mrb[0].mxu0 %v723
      %v850 = vpop.f32.mrb[0].mxu0
      %v851 = vadd.f32 %v790, %v850
      %v852 = vpop.f32.mrb[0].mxu0
      %v853 = vpop.f32.mrb[0].mxu0
      %v854 = vadd.f32 %v790, %v853
      %v855 = vpop.f32.mrb[0].mxu0
      %856 = vdwg.mxu0
      %v857 = vpack.c.bf16 %v854, %v851
      %v859 = vunpack.c.l.b16 %v857
      %v860 = vunpack.c.h.b16 %v857
      %v861 = vpack.c.b16 %v859, %v859
      %v862 = vpack.c.b16 %v860, %v860
      %865 = vst.msk [vmem:[%s610] sm:$0xf] %vm774, %v861
      %866 = vst.msk [vmem:[%s610 + $0x4] sm:$0xf] %vm774, %v862
      %v867 = vld [vmem:[%s576] sm:$0xf]
      %v868 = vld [vmem:[%s576 + $0x4] sm:$0xf]
      %v869 = vld [vmem:[%s576 + $0x8] sm:$0xf]
      %v870 = vld [vmem:[%s576 + $0xc] sm:$0xf]
      %v871 = vld [vmem:[%s576 + $0x10] sm:$0xf]
      %v872 = vld [vmem:[%s576 + $0x14] sm:$0xf]
      %v873 = vld [vmem:[%s576 + $0x18] sm:$0xf]
      %v874 = vld [vmem:[%s576 + $0x1c] sm:$0xf]
      %v875 = vld [vmem:[%s585] sm:$0x1]
      %v877 = vlaneseq
      %v878 = vshrl.u32 %v877, 7
      %v879 = vsub.s32 0, %v878
      %v880 = vrot.slane %v875, %v879
      %v890 = vunpack.c.l.b16 %v867
      %v891 = vunpack.c.l.b16 %v868
      %v892 = vunpack.c.l.b16 %v869
      %v893 = vunpack.c.l.b16 %v870
      %v894 = vunpack.c.l.b16 %v871
      %v895 = vunpack.c.l.b16 %v872
      %v896 = vunpack.c.l.b16 %v873
      %v897 = vunpack.c.l.b16 %v874
      %v898 = vpack.c.b16 %v891, %v890
      %v899 = vpack.c.b16 %v893, %v892
      %v900 = vpack.c.b16 %v895, %v894
      %v901 = vpack.c.b16 %v897, %v896
      %906 = vmatprep.subr.bf16.mxu0 0
      %907 = vmatpush1.bf16.msra.mxu0 %v898
      %908 = vmatprep.subr.bf16.mxu0 0
      %909 = vmatpush1.bf16.msra.mxu0 %v899
      %910 = vmatprep.subr.bf16.mxu0 0
      %911 = vmatpush1.bf16.msra.mxu0 %v900
      %912 = vmatprep.subr.bf16.mxu0 0
      %913 = vmatpush1.bf16.msra.mxu0 %v901
      %914 = vmatprep.subr.bf16.mxu0 0
      %915 = vmatpush1.bf16.msra.mxu0 0
      %916 = vmatprep.subr.bf16.mxu0 0
      %917 = vmatpush1.bf16.msra.mxu0 0
      %918 = vmatprep.subr.bf16.mxu0 0
      %919 = vmatpush1.bf16.msra.mxu0 0
      %920 = vmatprep.subr.bf16.mxu0 0
      %921 = vmatpush1.bf16.msra.mxu0 0
      %922 = vmatprep.subr.bf16.mxu0 0
      %923 = vmatpush1.bf16.msra.mxu0 0
      %924 = vmatprep.subr.bf16.mxu0 0
      %925 = vmatpush1.bf16.msra.mxu0 0
      %926 = vmatprep.subr.bf16.mxu0 0
      %927 = vmatpush1.bf16.msra.mxu0 0
      %928 = vmatprep.subr.bf16.mxu0 0
      %929 = vmatpush1.bf16.msra.mxu0 0
      %930 = vmatprep.subr.bf16.mxu0 0
      %931 = vmatpush1.bf16.msra.mxu0 0
      %932 = vmatprep.subr.bf16.mxu0 0
      %933 = vmatpush1.bf16.msra.mxu0 0
      %934 = vmatprep.subr.bf16.mxu0 0
      %935 = vmatpush1.bf16.msra.mxu0 0
      %936 = vmatprep.subr.bf16.mxu0 0
      %937 = vmatpush1.bf16.msra.mxu0 0
      %938 = vmatprep.mubr.bf16.mxu0 0
      %939 = vmatmul.mubr.bf16.gmra.mrb[0].mxu0 %v723
      %v940 = vpop.f32.mrb[0].mxu0
      %v941 = vadd.f32 %v880, %v940
      %v942 = vpop.f32.mrb[0].mxu0
      %v943 = vpop.f32.mrb[0].mxu0
      %v944 = vadd.f32 %v880, %v943
      %v945 = vpop.f32.mrb[0].mxu0
      %946 = vdwg.mxu0
      %v947 = vpack.c.bf16 %v944, %v941
      %v949 = vunpack.c.l.b16 %v947
      %v950 = vunpack.c.h.b16 %v947
      %v951 = vpack.c.b16 %v949, %v949
      %v952 = vpack.c.b16 %v950, %v950
      %955 = vst.msk [vmem:[%s623] sm:$0xf] %vm774, %v951
      %956 = vst.msk [vmem:[%s623 + $0x4] sm:$0xf] %vm774, %v952
      %s957 = smul.u32 2, %s29
      %p958 = scmp.lt.s32.totalorder %s28, 1
      %s959 = scalar_select %p958, %s28, 1
      %p960 = scmp.lt.s32.totalorder %s957, 1
      %s961 = scalar_select %p960, %s957, 1
      %p962 = scmp.lt.s32.totalorder %s30, 0
      %s963 = scalar_select %p962, %s30, 0
      %s964 = sadd.s32 %s963, %s961
      %s965 = smul.addr %s959, 2
      %s966 = sadd.s32 %s964, %s965
      %s967 = smul.addr %s966, 4
      %s968 = scalar_lea.vmem %s9, %s967
      %s969 = smul.u32 2, %s29
      %p970 = scmp.lt.s32.totalorder %s28, 1
      %s971 = scalar_select %p970, %s28, 1
      %p972 = scmp.lt.s32.totalorder %s969, 1
      %s973 = scalar_select %p972, %s969, 1
      %p974 = scmp.lt.s32.totalorder %s30, 0
      %s975 = scalar_select %p974, %s30, 0
      %s976 = sadd.s32 %s975, %s973
      %s977 = smul.addr %s971, 2
      %s978 = sadd.s32 %s976, %s977
      %s979 = smul.addr %s978, 4
      %s980 = scalar_lea.vmem %s10, %s979
      %s981 = smul.u32 2, %s29
      %p982 = scmp.lt.s32.totalorder %s28, 1
      %s983 = scalar_select %p982, %s28, 1
      %p984 = scmp.lt.s32.totalorder %s981, 1
      %s985 = scalar_select %p984, %s981, 1
      %p986 = scmp.lt.s32.totalorder %s30, 0
      %s987 = scalar_select %p986, %s30, 0
      %s988 = sadd.s32 %s987, %s985
      %s989 = smul.addr %s983, 2
      %s990 = sadd.s32 %s988, %s989
      %s991 = smul.addr %s990, 4
      %s992 = scalar_lea.vmem %s11, %s991
      // Predicated region
      $region61: #{closed_call.28} parent=55 // pred_check
        %p993 = pneg %p300
      $region62: #{closed_call.28} parent=55 // pred_check_branch
        %995 = sbr.rel (%p993) target = $region64
      $region63: #{closed_call.28} parent=55 // pred_region
        %s996 = smul.u32 2, %s29
      $region64: #{closed_call.28} parent=55 // pred_fallthru
        _
      // Predicated region
      $region65: #{closed_call.28} parent=55 // pred_check
        %p997 = pneg %p330
      $region66: #{closed_call.28} parent=55 // pred_check_branch
        %999 = sbr.rel (%p997) target = $region68
      $region67: #{closed_call.28} parent=55 // pred_region
        %s1000 = smul.u32 2, %s29
      $region68: #{closed_call.28} parent=55 // pred_fallthru
        _
      // Predicated region
      $region69: #{closed_call.28} parent=55 // pred_check
        %p1001 = pneg %p360
      $region70: #{closed_call.28} parent=55 // pred_check_branch
        %1003 = sbr.rel (%p1001) target = $region72
      $region71: #{closed_call.28} parent=55 // pred_region
        %s1004 = smul.u32 2, %s29
      $region72: #{closed_call.28} parent=55 // pred_fallthru
        _
    $region56: #{closed_call.28} parent=5 // pred_fallthru
      _
    %p1005 = scmp.le.s32.totalorder 2, %s18
    // Predicated region
    $region73: #{closed_call.28} parent=5 // pred_check
      %p1006 = pneg %p1005
    $region74: #{closed_call.28} parent=5 // pred_check_branch
      %1008 = sbr.rel (%p1006) target = $region76
    $region75: #{closed_call.28} parent=5 // pred_region
      %s1009 = ssub.s32 %s18, 2
      // Predicated region
      $region77: #{closed_call.28} parent=75 // pred_check
        %p1010 = pneg %p306
      $region78: #{closed_call.28} parent=75 // pred_check_branch
        %1012 = sbr.rel (%p1010) target = $region80
      $region79: #{closed_call.28} parent=75 // pred_region
        %s1013 = smul.u32 2, %s32
        %p1014 = scmp.lt.s32.totalorder %s31, 1
        %s1015 = scalar_select %p1014, %s31, 1
        %p1016 = scmp.lt.s32.totalorder %s1013, 1
        %s1017 = scalar_select %p1016, %s1013, 1
        %p1018 = scmp.lt.s32.totalorder %s33, 0
        %s1019 = scalar_select %p1018, %s33, 0
        %s1020 = sadd.s32 %s1019, %s1017
        %s1021 = smul.addr %s1015, 2
        %s1022 = sadd.s32 %s1020, %s1021
        %s1023 = smul.addr %s1022, 4
        %s1024 = scalar_lea.vmem %s9, %s1023
      $region80: #{closed_call.28} parent=75 // pred_fallthru
        _
      // Predicated region
      $region81: #{closed_call.28} parent=75 // pred_check
        %p1025 = pneg %p336
      $region82: #{closed_call.28} parent=75 // pred_check_branch
        %1027 = sbr.rel (%p1025) target = $region84
      $region83: #{closed_call.28} parent=75 // pred_region
        %s1028 = smul.u32 2, %s32
        %p1029 = scmp.lt.s32.totalorder %s31, 1
        %s1030 = scalar_select %p1029, %s31, 1
        %p1031 = scmp.lt.s32.totalorder %s1028, 1
        %s1032 = scalar_select %p1031, %s1028, 1
        %p1033 = scmp.lt.s32.totalorder %s33, 0
        %s1034 = scalar_select %p1033, %s33, 0
        %s1035 = sadd.s32 %s1034, %s1032
        %s1036 = smul.addr %s1030, 2
        %s1037 = sadd.s32 %s1035, %s1036
        %s1038 = smul.addr %s1037, 4
        %s1039 = scalar_lea.vmem %s10, %s1038
      $region84: #{closed_call.28} parent=75 // pred_fallthru
        _
      // Predicated region
      $region85: #{closed_call.28} parent=75 // pred_check
        %p1040 = pneg %p366
      $region86: #{closed_call.28} parent=75 // pred_check_branch
        %1042 = sbr.rel (%p1040) target = $region88
      $region87: #{closed_call.28} parent=75 // pred_region
        %s1043 = smul.u32 2, %s32
        %p1044 = scmp.lt.s32.totalorder %s31, 1
        %s1045 = scalar_select %p1044, %s31, 1
        %p1046 = scmp.lt.s32.totalorder %s1043, 1
        %s1047 = scalar_select %p1046, %s1043, 1
        %p1048 = scmp.lt.s32.totalorder %s33, 0
        %s1049 = scalar_select %p1048, %s33, 0
        %s1050 = sadd.s32 %s1049, %s1047
        %s1051 = smul.addr %s1045, 2
        %s1052 = sadd.s32 %s1050, %s1051
        %s1053 = smul.addr %s1052, 4
        %s1054 = scalar_lea.vmem %s11, %s1053
      $region88: #{closed_call.28} parent=75 // pred_fallthru
        _
    $region76: #{closed_call.28} parent=5 // pred_fallthru
      _
  $region6: #{closed_call.28} parent=0 // loop_footer
    %s22 = sadd.s32 1, %s18
  $region7: #{closed_call.28} parent=0 // loop_footer_branch
    %17 = sbr.rel target = $region3
  $region8: #{closed_call.28} parent=0 // loop_exit
    _

// kernel: closed_call.29
$region0: #{closed_call.29}
  #allocation0 [shape = 'u32[]', space=smem, size = 0x4, offset = 0x4, fixed_abs, tag = 'smem constant byte address 0x4 - core index']
  #allocation1 [shape = 'u32[144,128]{1,0:T(1,128)}', space=vmem, size = 0x12000, scoped, tag = 'internal scratch']
  #allocation2 [shape = 'f32[16,64]{1,0:T(8,128)}', space=vmem, size = 0x2000, scoped, tag = 'scratch operand']
  %s0 = inlined_call_operand.vmem [shape: bf16[2,16,64], index: 0, kind: input, shape index: {}]
  %s1 = inlined_call_operand.vmem [shape: bf16[2,16,64], index: 1, kind: input, shape index: {}]
  %s2 = inlined_call_operand.vmem [shape: bf16[2,16,64], index: 2, kind: input, shape index: {}]
  %s3 = inlined_call_operand.vmem [shape: bf16[2,16,64], index: 3, kind: output, shape index: {}]
  %s4 = sld [smem:[#allocation0]]
  $region45: #{closed_call.29} parent=0
    _
  %s6 = ssub.s32 1, %s4
  %s7 = scalar_select 0, %s6, %s4
  loop: start=0, step=1, limit=4
  $region2: #{closed_call.29} parent=0 // loop_pre_header
    _
  $region3: #{closed_call.29} parent=0 // loop_header
    %s9 = sphi 0, %s13
    %p10 = scmp.ge.s32.totalorder %s9, 4
    %s16 = sphi 0, %s28
    %s17 = sphi 0, %s24
    %s18 = sphi 0, %s16
    %s19 = sphi 0, %s17
    %s20 = sphi 0, %s18
    %s21 = sphi 0, %s19
    %s33 = sphi 0, %s35
    %s36 = sphi 0, %s33
    %s37 = sphi 0, %s36
    %s53 = sphi 0, %s37
    %s59 = sphi 0, %s61
    %s62 = sphi 0, %s59
    %s63 = sphi 0, %s62
    %s79 = sphi 0, %s63
    %s85 = sphi 0, %s87
    %s88 = sphi 0, %s85
    %s89 = sphi 0, %s88
    %s105 = sphi 0, %s89
    %s113 = sphi 0, %s115
    %s116 = sphi 0, %s113
    %s117 = sphi 0, %s116
    %s133 = sphi 0, %s117
  $region4: #{closed_call.29} parent=0 // loop_header_branch
    %12 = sbr.rel (%p10) target = $region8
  $region5: #{closed_call.29} parent=0 // loop_body
    %s14 = ssub.s32 %s9, 1
    %s15 = ssub.s32 %s9, 2
    %s22 = sadd.s32 1, %s17
    %p23 = scmp.ge.s32.totalorder %s22, 1
    %s24 = scalar_select %p23, 0, %s22
    %s25 = sadd.s32 1, %s16
    %s26 = scalar_select %p23, %s25, %s16
    %p27 = scmp.ge.s32.totalorder %s26, 2
    %s28 = scalar_select %p27, 0, %s26
    %s29 = ssub.s32 %s16, %s28
    %s30 = ssub.s32 %s17, %s24
    %s31 = sor.u32 %s29, %s30
    %p32 = scmp.eq.s32.totalorder %s31, 0
    %s34 = sadd.s32 %s33, 1
    %s35 = scalar_select %p32, %s33, %s34
    %p38 = pneg %p32
    %p39 = scmp.eq.s32.totalorder %s9, 1
    %p40 = por %p38, %p39
    %p41 = scmp.ne.s32.totalorder %s33, %s36
    %p42 = scmp.eq.s32.totalorder %s9, 0
    %p43 = por %p41, %p42
    %p44 = scmp.ne.s32.totalorder %s33, %s36
    %p45 = scmp.eq.s32.totalorder %s14, 1
    %p46 = por %p44, %p45
    %p47 = scmp.ne.s32.totalorder %s36, %s37
    %p48 = scmp.eq.s32.totalorder %s14, 0
    %p49 = por %p47, %p48
    %p50 = scmp.ne.s32.totalorder %s36, %s37
    %p51 = scmp.eq.s32.totalorder %s15, 1
    %p52 = por %p50, %p51
    %p54 = scmp.ne.s32.totalorder %s37, %s53
    %p55 = scmp.eq.s32.totalorder %s15, 0
    %p56 = por %p54, %p55
    %s57 = ssub.s32 %s16, %s28
    %p58 = scmp.eq.s32.totalorder %s57, 0
    %s60 = sadd.s32 %s59, 1
    %s61 = scalar_select %p58, %s59, %s60
    %p64 = pneg %p58
    %p65 = scmp.eq.s32.totalorder %s9, 1
    %p66 = por %p64, %p65
    %p67 = scmp.ne.s32.totalorder %s59, %s62
    %p68 = scmp.eq.s32.totalorder %s9, 0
    %p69 = por %p67, %p68
    %p70 = scmp.ne.s32.totalorder %s59, %s62
    %p71 = scmp.eq.s32.totalorder %s14, 1
    %p72 = por %p70, %p71
    %p73 = scmp.ne.s32.totalorder %s62, %s63
    %p74 = scmp.eq.s32.totalorder %s14, 0
    %p75 = por %p73, %p74
    %p76 = scmp.ne.s32.totalorder %s62, %s63
    %p77 = scmp.eq.s32.totalorder %s15, 1
    %p78 = por %p76, %p77
    %p80 = scmp.ne.s32.totalorder %s63, %s79
    %p81 = scmp.eq.s32.totalorder %s15, 0
    %p82 = por %p80, %p81
    %s83 = ssub.s32 %s16, %s28
    %p84 = scmp.eq.s32.totalorder %s83, 0
    %s86 = sadd.s32 %s85, 1
    %s87 = scalar_select %p84, %s85, %s86
    %p90 = pneg %p84
    %p91 = scmp.eq.s32.totalorder %s9, 1
    %p92 = por %p90, %p91
    %p93 = scmp.ne.s32.totalorder %s85, %s88
    %p94 = scmp.eq.s32.totalorder %s9, 0
    %p95 = por %p93, %p94
    %p96 = scmp.ne.s32.totalorder %s85, %s88
    %p97 = scmp.eq.s32.totalorder %s14, 1
    %p98 = por %p96, %p97
    %p99 = scmp.ne.s32.totalorder %s88, %s89
    %p100 = scmp.eq.s32.totalorder %s14, 0
    %p101 = por %p99, %p100
    %p102 = scmp.ne.s32.totalorder %s88, %s89
    %p103 = scmp.eq.s32.totalorder %s15, 1
    %p104 = por %p102, %p103
    %p106 = scmp.ne.s32.totalorder %s89, %s105
    %p107 = scmp.eq.s32.totalorder %s15, 0
    %p108 = por %p106, %p107
    %s109 = ssub.s32 %s16, %s28
    %s110 = ssub.s32 %s17, %s24
    %s111 = sor.u32 %s109, %s110
    %p112 = scmp.eq.s32.totalorder %s111, 0
    %s114 = sadd.s32 %s113, 1
    %s115 = scalar_select %p112, %s113, %s114
    %p118 = pneg %p112
    %p119 = scmp.eq.s32.totalorder %s9, 1
    %p120 = por %p118, %p119
    %p121 = scmp.ne.s32.totalorder %s113, %s116
    %p122 = scmp.eq.s32.totalorder %s9, 0
    %p123 = por %p121, %p122
    %p124 = scmp.ne.s32.totalorder %s113, %s116
    %p125 = scmp.eq.s32.totalorder %s14, 1
    %p126 = por %p124, %p125
    %p127 = scmp.ne.s32.totalorder %s116, %s117
    %p128 = scmp.eq.s32.totalorder %s14, 0
    %p129 = por %p127, %p128
    %p130 = scmp.ne.s32.totalorder %s116, %s117
    %p131 = scmp.eq.s32.totalorder %s15, 1
    %p132 = por %p130, %p131
    %p134 = scmp.ne.s32.totalorder %s117, %s133
    %p135 = scmp.eq.s32.totalorder %s15, 0
    %p136 = por %p134, %p135
    %p137 = scmp.le.s32.totalorder 1, %s9
    %p138 = scmp.lt.s32.totalorder %s9, 3
    %p139 = pnand %p137, %p138
    %p140 = pneg %p139
    // Predicated region
    $region9: #{closed_call.29} parent=5 // pred_check
      _
    $region10: #{closed_call.29} parent=5 // pred_check_branch
      %142 = sbr.rel (%p139) target = $region12
    $region11: #{closed_call.29} parent=5 // pred_region
      %s143 = ssub.s32 %s9, 1
    $region12: #{closed_call.29} parent=5 // pred_fallthru
      _
    %p144 = scmp.lt.s32.totalorder %s9, 2
    // Predicated region
    $region13: #{closed_call.29} parent=5 // pred_check
      %p145 = pneg %p144
    $region14: #{closed_call.29} parent=5 // pred_check_branch
      %147 = sbr.rel (%p145) target = $region16
    $region15: #{closed_call.29} parent=5 // pred_region
      // Predicated region
      $region17: #{closed_call.29} parent=15 // pred_check
        %p148 = pneg %p43
      $region18: #{closed_call.29} parent=15 // pred_check_branch
        %150 = sbr.rel (%p148) target = $region20
      $region19: #{closed_call.29} parent=15 // pred_region
        %s151 = smul.u32 2, %s17
        %p152 = scmp.lt.s32.totalorder %s16, 1
        %s153 = scalar_select %p152, %s16, 1
        %p154 = scmp.lt.s32.totalorder %s151, 1
        %s155 = scalar_select %p154, %s151, 1
        %s156 = smul.addr %s153, 2
        %s157 = sadd.s32 %s155, %s156
        %s158 = smul.addr %s157, 4
        %s159 = scalar_lea.vmem %s0, %s158
        %s160 = smul.u32 2, %s17
      $region20: #{closed_call.29} parent=15 // pred_fallthru
        _
      // Predicated region
      $region21: #{closed_call.29} parent=15 // pred_check
        %p161 = pneg %p69
      $region22: #{closed_call.29} parent=15 // pred_check_branch
        %163 = sbr.rel (%p161) target = $region24
      $region23: #{closed_call.29} parent=15 // pred_region
        %p164 = scmp.lt.s32.totalorder %s16, 1
        %s165 = scalar_select %p164, %s16, 1
        %s166 = smul.addr %s165, 2
        %s167 = smul.addr %s166, 4
        %s168 = scalar_lea.vmem %s1, %s167
      $region24: #{closed_call.29} parent=15 // pred_fallthru
        _
      // Predicated region
      $region25: #{closed_call.29} parent=15 // pred_check
        %p169 = pneg %p95
      $region26: #{closed_call.29} parent=15 // pred_check_branch
        %171 = sbr.rel (%p169) target = $region28
      $region27: #{closed_call.29} parent=15 // pred_region
        %p172 = scmp.lt.s32.totalorder %s16, 1
        %s173 = scalar_select %p172, %s16, 1
        %s174 = smul.addr %s173, 2
        %s175 = smul.addr %s174, 4
        %s176 = scalar_lea.vmem %s2, %s175
      $region28: #{closed_call.29} parent=15 // pred_fallthru
        _
    $region16: #{closed_call.29} parent=5 // pred_fallthru
      _
    %p177 = scmp.le.s32.totalorder 1, %s9
    %p178 = scmp.lt.s32.totalorder %s9, 3
    %p179 = pnand %p177, %p178
    %p180 = pneg %p179
    // Predicated region
    $region29: #{closed_call.29} parent=5 // pred_check
      _
    $region30: #{closed_call.29} parent=5 // pred_check_branch
      %182 = sbr.rel (%p179) target = $region32
    $region31: #{closed_call.29} parent=5 // pred_region
      %s183 = ssub.s32 %s9, 1
      %s184 = smul.u32 2, %s19
      %p185 = scmp.lt.s32.totalorder %s18, 1
      %s186 = scalar_select %p185, %s18, 1
      %p187 = scmp.lt.s32.totalorder %s184, 1
      %s188 = scalar_select %p187, %s184, 1
      %s189 = smul.addr %s186, 2
      %s190 = sadd.s32 %s188, %s189
      %s191 = smul.addr %s190, 4
      %s192 = scalar_lea.vmem %s0, %s191
      %p193 = pneg %p49
      %p194 = pneg %p46
      %p195 = scmp.lt.s32.totalorder %s18, 1
      %s196 = scalar_select %p195, %s18, 1
      %s197 = smul.addr %s196, 2
      %s198 = smul.addr %s197, 4
      %s199 = scalar_lea.vmem %s1, %s198
      %p200 = pneg %p75
      %p201 = pneg %p72
      %p202 = scmp.lt.s32.totalorder %s18, 1
      %s203 = scalar_select %p202, %s18, 1
      %s204 = smul.addr %s203, 2
      %s205 = smul.addr %s204, 4
      %s206 = scalar_lea.vmem %s2, %s205
      %p207 = pneg %p101
      %p208 = pneg %p98
      %p209 = pneg %p129
      %p210 = pneg %p126
      %s211 = smul.u32 2, %s19
      %p212 = scmp.lt.s32.totalorder %s18, 1
      %s213 = scalar_select %p212, %s18, 1
      %p214 = scmp.lt.s32.totalorder %s211, 1
      %s215 = scalar_select %p214, %s211, 1
      %s216 = smul.addr %s213, 2
      %s217 = sadd.s32 %s215, %s216
      %s218 = smul.addr %s217, 4
      %s219 = scalar_lea.vmem %s3, %s218
      %s220 = smul.u32 2, %s19
      %p221 = scmp.lt.s32.totalorder %s18, 1
      %s222 = scalar_select %p221, %s18, 1
      %p223 = scmp.lt.s32.totalorder %s220, 1
      %s224 = scalar_select %p223, %s220, 1
      %s225 = smul.addr %s222, 2
      %s226 = sadd.s32 %s224, %s225
      %s227 = smul.addr %s226, 4
      %s228 = scalar_lea.vmem %s0, %s227
      %s229 = smul.u32 2, %s19
      %p230 = scmp.lt.s32.totalorder %s18, 1
      %s231 = scalar_select %p230, %s18, 1
      %s232 = smul.addr %s231, 2
      %s233 = smul.addr %s232, 4
      %s234 = scalar_lea.vmem %s1, %s233
      %p235 = scmp.lt.s32.totalorder %s18, 1
      %s236 = scalar_select %p235, %s18, 1
      %s237 = smul.addr %s236, 2
      %s238 = smul.addr %s237, 4
      %s239 = scalar_lea.vmem %s2, %s238
      %s240 = smul.u32 2, %s19
      %p241 = scmp.lt.s32.totalorder %s18, 1
      %s242 = scalar_select %p241, %s18, 1
      %p243 = scmp.lt.s32.totalorder %s240, 1
      %s244 = scalar_select %p243, %s240, 1
      %s245 = smul.addr %s242, 2
      %s246 = sadd.s32 %s244, %s245
      %s247 = smul.addr %s246, 4
      %s248 = scalar_lea.vmem %s3, %s247
      %s249 = smul.u32 2, %s19
      %v251 = vld [vmem:[%s228] sm:$0xf]
      %v252 = vld [vmem:[%s228 + $0x4] sm:$0xf]
      %v253 = vld [vmem:[%s234] sm:$0xf]
      %v254 = vld [vmem:[%s234 + $0x4] sm:$0xf]
      %v255 = vld [vmem:[%s239] sm:$0xf]
      %v256 = vld [vmem:[%s239 + $0x4] sm:$0xf]
      %v259 = vunpack.c.l.b16 %v251
      %v260 = vunpack.c.l.b16 %v252
      %v261 = vpack.c.b16 %v260, %v259
      %v264 = vunpack.c.l.b16 %v253
      %v265 = vunpack.c.l.b16 %v254
      %v266 = vpack.c.b16 %v265, %v264
      %vm267 = vcmask 130048
      %v269 = vsel %vm267, %v261, 0
      %v272 = vsel %vm267, %v266, 0
      %274 = vmatprep.subr.bf16.mxu0 0
      %275 = vmatpush1.bf16.xpose.msra.mxu0 %v272
      %276 = vmatprep.subr.bf16.mxu0 0
      %277 = vmatpush1.bf16.xpose.msra.mxu0 0
      %278 = vmatprep.subr.bf16.mxu0 0
      %279 = vmatpush1.bf16.xpose.msra.mxu0 0
      %280 = vmatprep.subr.bf16.mxu0 0
      %281 = vmatpush1.bf16.xpose.msra.mxu0 0
      %282 = vmatprep.subr.bf16.mxu0 0
      %283 = vmatpush1.bf16.xpose.msra.mxu0 0
      %284 = vmatprep.subr.bf16.mxu0 0
      %285 = vmatpush1.bf16.xpose.msra.mxu0 0
      %286 = vmatprep.subr.bf16.mxu0 0
      %287 = vmatpush1.bf16.xpose.msra.mxu0 0
      %288 = vmatprep.subr.bf16.mxu0 0
      %289 = vmatpush1.bf16.xpose.msra.mxu0 0
      %290 = vmatprep.subr.bf16.mxu0 0
      %291 = vmatpush1.bf16.xpose.msra.mxu0 0
      %292 = vmatprep.subr.bf16.mxu0 0
      %293 = vmatpush1.bf16.xpose.msra.mxu0 0
      %294 = vmatprep.subr.bf16.mxu0 0
      %295 = vmatpush1.bf16.xpose.msra.mxu0 0
      %296 = vmatprep.subr.bf16.mxu0 0
      %297 = vmatpush1.bf16.xpose.msra.mxu0 0
      %298 = vmatprep.subr.bf16.mxu0 0
      %299 = vmatpush1.bf16.xpose.msra.mxu0 0
      %300 = vmatprep.subr.bf16.mxu0 0
      %301 = vmatpush1.bf16.xpose.msra.mxu0 0
      %302 = vmatprep.subr.bf16.mxu0 0
      %303 = vmatpush1.bf16.xpose.msra.mxu0 0
      %304 = vmatprep.subr.bf16.mxu0 0
      %305 = vmatpush1.bf16.xpose.msra.mxu0 0
      %306 = vmatprep.mubr.bf16.mxu0 0
      %307 = vmatmul.mubr.bf16.gmra.mrb[0].mxu0 %v269
      %v308 = vpop.f32.mrb[0].mxu0
      %v309 = vadd.f32 0.0, %v308
      %v310 = vpop.f32.mrb[0].mxu0
      %v311 = vpop.f32.mrb[0].mxu0
      %v312 = vadd.f32 0.0, %v311
      %v313 = vpop.f32.mrb[0].mxu0
      %314 = vdwg.mxu0
      %v315 = vmul.f32 %v309, 0.25
      %v316 = vmul.f32 %v312, 0.25
      %v317 = vsel %vm267, %v315, -inf
      %318 = vmax.xlane.f32.xlu0 %v317
      %v319 = vpop.xlane.xlu0 %318
      %v320 = vsel %vm267, %v316, -inf
      %321 = vmax.xlane.f32.xlu0 %v320
      %v322 = vpop.xlane.xlu0 %321
      %v323 = vsub.f32 %v315, %v319
      %v324 = vsub.f32 %v316, %v322
      %v325 = vmul.f32 %v323, 1.442695
      %v326 = vpow.pop %v325
      %v327 = vmul.f32 %v324, 1.442695
      %v328 = vpow.pop %v327
      %v329 = vsel %vm267, %v326, 0.0
      %330 = vadd.xlane.f32.xlu0 %v329
      %v331 = vpop.xlane.xlu0 %330
      %v332 = vsel %vm267, %v328, 0.0
      %333 = vadd.xlane.f32.xlu0 %v332
      %v334 = vpop.xlane.xlu0 %333
      %v335 = vpack.c.bf16 %v328, %v326
      %v338 = vunpack.c.l.b16 %v255
      %v339 = vunpack.c.l.b16 %v256
      %v340 = vpack.c.b16 %v339, %v338
      %v343 = vsel %vm267, %v335, 0
      %345 = vmatprep.subr.bf16.mxu0 0
      %346 = vmatpush1.bf16.msra.mxu0 %v340
      %347 = vmatprep.subr.bf16.mxu0 0
      %348 = vmatpush1.bf16.msra.mxu0 0
      %349 = vmatprep.subr.bf16.mxu0 0
      %350 = vmatpush1.bf16.msra.mxu0 0
      %351 = vmatprep.subr.bf16.mxu0 0
      %352 = vmatpush1.bf16.msra.mxu0 0
      %353 = vmatprep.subr.bf16.mxu0 0
      %354 = vmatpush1.bf16.msra.mxu0 0
      %355 = vmatprep.subr.bf16.mxu0 0
      %356 = vmatpush1.bf16.msra.mxu0 0
      %357 = vmatprep.subr.bf16.mxu0 0
      %358 = vmatpush1.bf16.msra.mxu0 0
      %359 = vmatprep.subr.bf16.mxu0 0
      %360 = vmatpush1.bf16.msra.mxu0 0
      %361 = vmatprep.subr.bf16.mxu0 0
      %362 = vmatpush1.bf16.msra.mxu0 0
      %363 = vmatprep.subr.bf16.mxu0 0
      %364 = vmatpush1.bf16.msra.mxu0 0
      %365 = vmatprep.subr.bf16.mxu0 0
      %366 = vmatpush1.bf16.msra.mxu0 0
      %367 = vmatprep.subr.bf16.mxu0 0
      %368 = vmatpush1.bf16.msra.mxu0 0
      %369 = vmatprep.subr.bf16.mxu0 0
      %370 = vmatpush1.bf16.msra.mxu0 0
      %371 = vmatprep.subr.bf16.mxu0 0
      %372 = vmatpush1.bf16.msra.mxu0 0
      %373 = vmatprep.subr.bf16.mxu0 0
      %374 = vmatpush1.bf16.msra.mxu0 0
      %375 = vmatprep.subr.bf16.mxu0 0
      %376 = vmatpush1.bf16.msra.mxu0 0
      %377 = vmatprep.mubr.bf16.mxu0 0
      %378 = vmatmul.mubr.bf16.gmra.mrb[0].mxu0 %v343
      %v379 = vpop.f32.mrb[0].mxu0
      %v380 = vadd.f32 0.0, %v379
      %v381 = vpop.f32.mrb[0].mxu0
      %v382 = vpop.f32.mrb[0].mxu0
      %v383 = vadd.f32 0.0, %v382
      %v384 = vpop.f32.mrb[0].mxu0
      %385 = vdwg.mxu0
      %v386 = vrcp.pop %v331
      %v387 = vrcp.pop %v334
      %v388 = vmul.f32 %v380, %v386
      %v389 = vmul.f32 %v383, %v387
      %390 = vst.msk [vmem:[#allocation2] sm:$0xff] %vm267, %v388
      %391 = vst.msk [vmem:[#allocation2 + $0x8] sm:$0xff] %vm267, %v389
      %v392 = vld [vmem:[%s228] sm:$0xf]
      %v393 = vld [vmem:[%s228 + $0x4] sm:$0xf]
      %v394 = vld [vmem:[%s234] sm:$0xf]
      %v395 = vld [vmem:[%s234 + $0x4] sm:$0xf]
      %v396 = vld [vmem:[%s239] sm:$0xf]
      %v397 = vld [vmem:[%s239 + $0x4] sm:$0xf]
      %v400 = vunpack.c.l.b16 %v392
      %v401 = vunpack.c.l.b16 %v393
      %v402 = vpack.c.b16 %v401, %v400
      %403 = vrot.lane.b32.xlu0 %v402, 112
      %v404 = vpop.permute.xlu0 %403
      %v407 = vunpack.c.l.b16 %v394
      %v408 = vunpack.c.l.b16 %v395
      %v409 = vpack.c.b16 %v408, %v407
      %410 = vrot.lane.b32.xlu0 %v409, 112
      %v411 = vpop.permute.xlu0 %410
      %v413 = vsel %vm267, %v404, 0
      %v416 = vsel %vm267, %v411, 0
      %418 = vmatprep.subr.bf16.mxu0 0
      %419 = vmatpush1.bf16.xpose.msra.mxu0 %v416
      %420 = vmatprep.subr.bf16.mxu0 0
      %421 = vmatpush1.bf16.xpose.msra.mxu0 0
      %422 = vmatprep.subr.bf16.mxu0 0
      %423 = vmatpush1.bf16.xpose.msra.mxu0 0
      %424 = vmatprep.subr.bf16.mxu0 0
      %425 = vmatpush1.bf16.xpose.msra.mxu0 0
      %426 = vmatprep.subr.bf16.mxu0 0
      %427 = vmatpush1.bf16.xpose.msra.mxu0 0
      %428 = vmatprep.subr.bf16.mxu0 0
      %429 = vmatpush1.bf16.xpose.msra.mxu0 0
      %430 = vmatprep.subr.bf16.mxu0 0
      %431 = vmatpush1.bf16.xpose.msra.mxu0 0
      %432 = vmatprep.subr.bf16.mxu0 0
      %433 = vmatpush1.bf16.xpose.msra.mxu0 0
      %434 = vmatprep.subr.bf16.mxu0 0
      %435 = vmatpush1.bf16.xpose.msra.mxu0 0
      %436 = vmatprep.subr.bf16.mxu0 0
      %437 = vmatpush1.bf16.xpose.msra.mxu0 0
      %438 = vmatprep.subr.bf16.mxu0 0
      %439 = vmatpush1.bf16.xpose.msra.mxu0 0
      %440 = vmatprep.subr.bf16.mxu0 0
      %441 = vmatpush1.bf16.xpose.msra.mxu0 0
      %442 = vmatprep.subr.bf16.mxu0 0
      %443 = vmatpush1.bf16.xpose.msra.mxu0 0
      %444 = vmatprep.subr.bf16.mxu0 0
      %445 = vmatpush1.bf16.xpose.msra.mxu0 0
      %446 = vmatprep.subr.bf16.mxu0 0
      %447 = vmatpush1.bf16.xpose.msra.mxu0 0
      %448 = vmatprep.subr.bf16.mxu0 0
      %449 = vmatpush1.bf16.xpose.msra.mxu0 0
      %450 = vmatprep.mubr.bf16.mxu0 0
      %451 = vmatmul.mubr.bf16.gmra.mrb[0].mxu0 %v413
      %v452 = vpop.f32.mrb[0].mxu0
      %v453 = vadd.f32 0.0, %v452
      %v454 = vpop.f32.mrb[0].mxu0
      %v455 = vpop.f32.mrb[0].mxu0
      %v456 = vadd.f32 0.0, %v455
      %v457 = vpop.f32.mrb[0].mxu0
      %458 = vdwg.mxu0
      %v459 = vmul.f32 %v453, 0.25
      %v460 = vmul.f32 %v456, 0.25
      %v461 = vsel %vm267, %v459, -inf
      %462 = vmax.xlane.f32.xlu0 %v461
      %v463 = vpop.xlane.xlu0 %462
      %v464 = vsel %vm267, %v460, -inf
      %465 = vmax.xlane.f32.xlu0 %v464
      %v466 = vpop.xlane.xlu0 %465
      %v467 = vsub.f32 %v459, %v463
      %v468 = vsub.f32 %v460, %v466
      %v469 = vmul.f32 %v467, 1.442695
      %v470 = vpow.pop %v469
      %v471 = vmul.f32 %v468, 1.442695
      %v472 = vpow.pop %v471
      %v473 = vsel %vm267, %v470, 0.0
      %474 = vadd.xlane.f32.xlu0 %v473
      %v475 = vpop.xlane.xlu0 %474
      %v476 = vsel %vm267, %v472, 0.0
      %477 = vadd.xlane.f32.xlu0 %v476
      %v478 = vpop.xlane.xlu0 %477
      %v479 = vpack.c.bf16 %v472, %v470
      %v482 = vunpack.c.l.b16 %v396
      %v483 = vunpack.c.l.b16 %v397
      %v484 = vpack.c.b16 %v483, %v482
      %485 = vrot.lane.b32.xlu0 %v484, 112
      %v486 = vpop.permute.xlu0 %485
      %v489 = vsel %vm267, %v479, 0
      %491 = vmatprep.subr.bf16.mxu0 0
      %492 = vmatpush1.bf16.msra.mxu0 %v486
      %493 = vmatprep.subr.bf16.mxu0 0
      %494 = vmatpush1.bf16.msra.mxu0 0
      %495 = vmatprep.subr.bf16.mxu0 0
      %496 = vmatpush1.bf16.msra.mxu0 0
      %497 = vmatprep.subr.bf16.mxu0 0
      %498 = vmatpush1.bf16.msra.mxu0 0
      %499 = vmatprep.subr.bf16.mxu0 0
      %500 = vmatpush1.bf16.msra.mxu0 0
      %501 = vmatprep.subr.bf16.mxu0 0
      %502 = vmatpush1.bf16.msra.mxu0 0
      %503 = vmatprep.subr.bf16.mxu0 0
      %504 = vmatpush1.bf16.msra.mxu0 0
      %505 = vmatprep.subr.bf16.mxu0 0
      %506 = vmatpush1.bf16.msra.mxu0 0
      %507 = vmatprep.subr.bf16.mxu0 0
      %508 = vmatpush1.bf16.msra.mxu0 0
      %509 = vmatprep.subr.bf16.mxu0 0
      %510 = vmatpush1.bf16.msra.mxu0 0
      %511 = vmatprep.subr.bf16.mxu0 0
      %512 = vmatpush1.bf16.msra.mxu0 0
      %513 = vmatprep.subr.bf16.mxu0 0
      %514 = vmatpush1.bf16.msra.mxu0 0
      %515 = vmatprep.subr.bf16.mxu0 0
      %516 = vmatpush1.bf16.msra.mxu0 0
      %517 = vmatprep.subr.bf16.mxu0 0
      %518 = vmatpush1.bf16.msra.mxu0 0
      %519 = vmatprep.subr.bf16.mxu0 0
      %520 = vmatpush1.bf16.msra.mxu0 0
      %521 = vmatprep.subr.bf16.mxu0 0
      %522 = vmatpush1.bf16.msra.mxu0 0
      %523 = vmatprep.mubr.bf16.mxu0 0
      %524 = vmatmul.mubr.bf16.gmra.mrb[0].mxu0 %v489
      %v525 = vpop.f32.mrb[0].mxu0
      %v526 = vadd.f32 0.0, %v525
      %v527 = vpop.f32.mrb[0].mxu0
      %v528 = vpop.f32.mrb[0].mxu0
      %v529 = vadd.f32 0.0, %v528
      %v530 = vpop.f32.mrb[0].mxu0
      %531 = vdwg.mxu0
      %v532 = vrcp.pop %v475
      %v533 = vrcp.pop %v478
      %v534 = vmul.f32 %v526, %v532
      %v535 = vmul.f32 %v529, %v533
      %538 = vrot.lane.b32.xlu0 %v534, 16
      %v539 = vpop.permute.xlu0 %538
      %540 = vrot.lane.b32.xlu0 %v535, 16
      %v541 = vpop.permute.xlu0 %540
      %vm544 = vcmask 261248
      %545 = vst.msk [vmem:[#allocation2] sm:$0xff] %vm544, %v539
      %546 = vst.msk [vmem:[#allocation2 + $0x8] sm:$0xff] %vm544, %v541
      %v547 = vld [vmem:[%s228] sm:$0xf]
      %v548 = vld [vmem:[%s228 + $0x4] sm:$0xf]
      %v549 = vld [vmem:[%s234] sm:$0xf]
      %v550 = vld [vmem:[%s234 + $0x4] sm:$0xf]
      %v551 = vld [vmem:[%s239] sm:$0xf]
      %v552 = vld [vmem:[%s239 + $0x4] sm:$0xf]
      %v555 = vunpack.c.l.b16 %v547
      %v556 = vunpack.c.l.b16 %v548
      %v557 = vpack.c.b16 %v556, %v555
      %558 = vrot.lane.b32.xlu0 %v557, 96
      %v559 = vpop.permute.xlu0 %558
      %v562 = vunpack.c.l.b16 %v549
      %v563 = vunpack.c.l.b16 %v550
      %v564 = vpack.c.b16 %v563, %v562
      %565 = vrot.lane.b32.xlu0 %v564, 96
      %v566 = vpop.permute.xlu0 %565
      %v568 = vsel %vm267, %v559, 0
      %v571 = vsel %vm267, %v566, 0
      %573 = vmatprep.subr.bf16.mxu0 0
      %574 = vmatpush1.bf16.xpose.msra.mxu0 %v571
      %575 = vmatprep.subr.bf16.mxu0 0
      %576 = vmatpush1.bf16.xpose.msra.mxu0 0
      %577 = vmatprep.subr.bf16.mxu0 0
      %578 = vmatpush1.bf16.xpose.msra.mxu0 0
      %579 = vmatprep.subr.bf16.mxu0 0
      %580 = vmatpush1.bf16.xpose.msra.mxu0 0
      %581 = vmatprep.subr.bf16.mxu0 0
      %582 = vmatpush1.bf16.xpose.msra.mxu0 0
      %583 = vmatprep.subr.bf16.mxu0 0
      %584 = vmatpush1.bf16.xpose.msra.mxu0 0
      %585 = vmatprep.subr.bf16.mxu0 0
      %586 = vmatpush1.bf16.xpose.msra.mxu0 0
      %587 = vmatprep.subr.bf16.mxu0 0
      %588 = vmatpush1.bf16.xpose.msra.mxu0 0
      %589 = vmatprep.subr.bf16.mxu0 0
      %590 = vmatpush1.bf16.xpose.msra.mxu0 0
      %591 = vmatprep.subr.bf16.mxu0 0
      %592 = vmatpush1.bf16.xpose.msra.mxu0 0
      %593 = vmatprep.subr.bf16.mxu0 0
      %594 = vmatpush1.bf16.xpose.msra.mxu0 0
      %595 = vmatprep.subr.bf16.mxu0 0
      %596 = vmatpush1.bf16.xpose.msra.mxu0 0
      %597 = vmatprep.subr.bf16.mxu0 0
      %598 = vmatpush1.bf16.xpose.msra.mxu0 0
      %599 = vmatprep.subr.bf16.mxu0 0
      %600 = vmatpush1.bf16.xpose.msra.mxu0 0
      %601 = vmatprep.subr.bf16.mxu0 0
      %602 = vmatpush1.bf16.xpose.msra.mxu0 0
      %603 = vmatprep.subr.bf16.mxu0 0
      %604 = vmatpush1.bf16.xpose.msra.mxu0 0
      %605 = vmatprep.mubr.bf16.mxu0 0
      %606 = vmatmul.mubr.bf16.gmra.mrb[0].mxu0 %v568
      %v607 = vpop.f32.mrb[0].mxu0
      %v608 = vadd.f32 0.0, %v607
      %v609 = vpop.f32.mrb[0].mxu0
      %v610 = vpop.f32.mrb[0].mxu0
      %v611 = vadd.f32 0.0, %v610
      %v612 = vpop.f32.mrb[0].mxu0
      %613 = vdwg.mxu0
      %v614 = vmul.f32 %v608, 0.25
      %v615 = vmul.f32 %v611, 0.25
      %v616 = vsel %vm267, %v614, -inf
      %617 = vmax.xlane.f32.xlu0 %v616
      %v618 = vpop.xlane.xlu0 %617
      %v619 = vsel %vm267, %v615, -inf
      %620 = vmax.xlane.f32.xlu0 %v619
      %v621 = vpop.xlane.xlu0 %620
      %v622 = vsub.f32 %v614, %v618
      %v623 = vsub.f32 %v615, %v621
      %v624 = vmul.f32 %v622, 1.442695
      %v625 = vpow.pop %v624
      %v626 = vmul.f32 %v623, 1.442695
      %v627 = vpow.pop %v626
      %v628 = vsel %vm267, %v625, 0.0
      %629 = vadd.xlane.f32.xlu0 %v628
      %v630 = vpop.xlane.xlu0 %629
      %v631 = vsel %vm267, %v627, 0.0
      %632 = vadd.xlane.f32.xlu0 %v631
      %v633 = vpop.xlane.xlu0 %632
      %v634 = vpack.c.bf16 %v627, %v625
      %v637 = vunpack.c.l.b16 %v551
      %v638 = vunpack.c.l.b16 %v552
      %v639 = vpack.c.b16 %v638, %v637
      %640 = vrot.lane.b32.xlu0 %v639, 96
      %v641 = vpop.permute.xlu0 %640
      %v644 = vsel %vm267, %v634, 0
      %646 = vmatprep.subr.bf16.mxu0 0
      %647 = vmatpush1.bf16.msra.mxu0 %v641
      %648 = vmatprep.subr.bf16.mxu0 0
      %649 = vmatpush1.bf16.msra.mxu0 0
      %650 = vmatprep.subr.bf16.mxu0 0
      %651 = vmatpush1.bf16.msra.mxu0 0
      %652 = vmatprep.subr.bf16.mxu0 0
      %653 = vmatpush1.bf16.msra.mxu0 0
      %654 = vmatprep.subr.bf16.mxu0 0
      %655 = vmatpush1.bf16.msra.mxu0 0
      %656 = vmatprep.subr.bf16.mxu0 0
      %657 = vmatpush1.bf16.msra.mxu0 0
      %658 = vmatprep.subr.bf16.mxu0 0
      %659 = vmatpush1.bf16.msra.mxu0 0
      %660 = vmatprep.subr.bf16.mxu0 0
      %661 = vmatpush1.bf16.msra.mxu0 0
      %662 = vmatprep.subr.bf16.mxu0 0
      %663 = vmatpush1.bf16.msra.mxu0 0
      %664 = vmatprep.subr.bf16.mxu0 0
      %665 = vmatpush1.bf16.msra.mxu0 0
      %666 = vmatprep.subr.bf16.mxu0 0
      %667 = vmatpush1.bf16.msra.mxu0 0
      %668 = vmatprep.subr.bf16.mxu0 0
      %669 = vmatpush1.bf16.msra.mxu0 0
      %670 = vmatprep.subr.bf16.mxu0 0
      %671 = vmatpush1.bf16.msra.mxu0 0
      %672 = vmatprep.subr.bf16.mxu0 0
      %673 = vmatpush1.bf16.msra.mxu0 0
      %674 = vmatprep.subr.bf16.mxu0 0
      %675 = vmatpush1.bf16.msra.mxu0 0
      %676 = vmatprep.subr.bf16.mxu0 0
      %677 = vmatpush1.bf16.msra.mxu0 0
      %678 = vmatprep.mubr.bf16.mxu0 0
      %679 = vmatmul.mubr.bf16.gmra.mrb[0].mxu0 %v644
      %v680 = vpop.f32.mrb[0].mxu0
      %v681 = vadd.f32 0.0, %v680
      %v682 = vpop.f32.mrb[0].mxu0
      %v683 = vpop.f32.mrb[0].mxu0
      %v684 = vadd.f32 0.0, %v683
      %v685 = vpop.f32.mrb[0].mxu0
      %686 = vdwg.mxu0
      %v687 = vrcp.pop %v630
      %v688 = vrcp.pop %v633
      %v689 = vmul.f32 %v681, %v687
      %v690 = vmul.f32 %v684, %v688
      %693 = vrot.lane.b32.xlu0 %v689, 32
      %v694 = vpop.permute.xlu0 %693
      %695 = vrot.lane.b32.xlu0 %v690, 32
      %v696 = vpop.permute.xlu0 %695
      %vm699 = vcmask 392448
      %700 = vst.msk [vmem:[#allocation2] sm:$0xff] %vm699, %v694
      %701 = vst.msk [vmem:[#allocation2 + $0x8] sm:$0xff] %vm699, %v696
      %v702 = vld [vmem:[%s228] sm:$0xf]
      %v703 = vld [vmem:[%s228 + $0x4] sm:$0xf]
      %v704 = vld [vmem:[%s234] sm:$0xf]
      %v705 = vld [vmem:[%s234 + $0x4] sm:$0xf]
      %v706 = vld [vmem:[%s239] sm:$0xf]
      %v707 = vld [vmem:[%s239 + $0x4] sm:$0xf]
      %v710 = vunpack.c.l.b16 %v702
      %v711 = vunpack.c.l.b16 %v703
      %v712 = vpack.c.b16 %v711, %v710
      %713 = vrot.lane.b32.xlu0 %v712, 80
      %v714 = vpop.permute.xlu0 %713
      %v717 = vunpack.c.l.b16 %v704
      %v718 = vunpack.c.l.b16 %v705
      %v719 = vpack.c.b16 %v718, %v717
      %720 = vrot.lane.b32.xlu0 %v719, 80
      %v721 = vpop.permute.xlu0 %720
      %v723 = vsel %vm267, %v714, 0
      %v726 = vsel %vm267, %v721, 0
      %728 = vmatprep.subr.bf16.mxu0 0
      %729 = vmatpush1.bf16.xpose.msra.mxu0 %v726
      %730 = vmatprep.subr.bf16.mxu0 0
      %731 = vmatpush1.bf16.xpose.msra.mxu0 0
      %732 = vmatprep.subr.bf16.mxu0 0
      %733 = vmatpush1.bf16.xpose.msra.mxu0 0
      %734 = vmatprep.subr.bf16.mxu0 0
      %735 = vmatpush1.bf16.xpose.msra.mxu0 0
      %736 = vmatprep.subr.bf16.mxu0 0
      %737 = vmatpush1.bf16.xpose.msra.mxu0 0
      %738 = vmatprep.subr.bf16.mxu0 0
      %739 = vmatpush1.bf16.xpose.msra.mxu0 0
      %740 = vmatprep.subr.bf16.mxu0 0
      %741 = vmatpush1.bf16.xpose.msra.mxu0 0
      %742 = vmatprep.subr.bf16.mxu0 0
      %743 = vmatpush1.bf16.xpose.msra.mxu0 0
      %744 = vmatprep.subr.bf16.mxu0 0
      %745 = vmatpush1.bf16.xpose.msra.mxu0 0
      %746 = vmatprep.subr.bf16.mxu0 0
      %747 = vmatpush1.bf16.xpose.msra.mxu0 0
      %748 = vmatprep.subr.bf16.mxu0 0
      %749 = vmatpush1.bf16.xpose.msra.mxu0 0
      %750 = vmatprep.subr.bf16.mxu0 0
      %751 = vmatpush1.bf16.xpose.msra.mxu0 0
      %752 = vmatprep.subr.bf16.mxu0 0
      %753 = vmatpush1.bf16.xpose.msra.mxu0 0
      %754 = vmatprep.subr.bf16.mxu0 0
      %755 = vmatpush1.bf16.xpose.msra.mxu0 0
      %756 = vmatprep.subr.bf16.mxu0 0
      %757 = vmatpush1.bf16.xpose.msra.mxu0 0
      %758 = vmatprep.subr.bf16.mxu0 0
      %759 = vmatpush1.bf16.xpose.msra.mxu0 0
      %760 = vmatprep.mubr.bf16.mxu0 0
      %761 = vmatmul.mubr.bf16.gmra.mrb[0].mxu0 %v723
      %v762 = vpop.f32.mrb[0].mxu0
      %v763 = vadd.f32 0.0, %v762
      %v764 = vpop.f32.mrb[0].mxu0
      %v765 = vpop.f32.mrb[0].mxu0
      %v766 = vadd.f32 0.0, %v765
      %v767 = vpop.f32.mrb[0].mxu0
      %768 = vdwg.mxu0
      %v769 = vmul.f32 %v763, 0.25
      %v770 = vmul.f32 %v766, 0.25
      %v771 = vsel %vm267, %v769, -inf
      %772 = vmax.xlane.f32.xlu0 %v771
      %v773 = vpop.xlane.xlu0 %772
      %v774 = vsel %vm267, %v770, -inf
      %775 = vmax.xlane.f32.xlu0 %v774
      %v776 = vpop.xlane.xlu0 %775
      %v777 = vsub.f32 %v769, %v773
      %v778 = vsub.f32 %v770, %v776
      %v779 = vmul.f32 %v777, 1.442695
      %v780 = vpow.pop %v779
      %v781 = vmul.f32 %v778, 1.442695
      %v782 = vpow.pop %v781
      %v783 = vsel %vm267, %v780, 0.0
      %784 = vadd.xlane.f32.xlu0 %v783
      %v785 = vpop.xlane.xlu0 %784
      %v786 = vsel %vm267, %v782, 0.0
      %787 = vadd.xlane.f32.xlu0 %v786
      %v788 = vpop.xlane.xlu0 %787
      %v789 = vpack.c.bf16 %v782, %v780
      %v792 = vunpack.c.l.b16 %v706
      %v793 = vunpack.c.l.b16 %v707
      %v794 = vpack.c.b16 %v793, %v792
      %795 = vrot.lane.b32.xlu0 %v794, 80
      %v796 = vpop.permute.xlu0 %795
      %v799 = vsel %vm267, %v789, 0
      %801 = vmatprep.subr.bf16.mxu0 0
      %802 = vmatpush1.bf16.msra.mxu0 %v796
      %803 = vmatprep.subr.bf16.mxu0 0
      %804 = vmatpush1.bf16.msra.mxu0 0
      %805 = vmatprep.subr.bf16.mxu0 0
      %806 = vmatpush1.bf16.msra.mxu0 0
      %807 = vmatprep.subr.bf16.mxu0 0
      %808 = vmatpush1.bf16.msra.mxu0 0
      %809 = vmatprep.subr.bf16.mxu0 0
      %810 = vmatpush1.bf16.msra.mxu0 0
      %811 = vmatprep.subr.bf16.mxu0 0
      %812 = vmatpush1.bf16.msra.mxu0 0
      %813 = vmatprep.subr.bf16.mxu0 0
      %814 = vmatpush1.bf16.msra.mxu0 0
      %815 = vmatprep.subr.bf16.mxu0 0
      %816 = vmatpush1.bf16.msra.mxu0 0
      %817 = vmatprep.subr.bf16.mxu0 0
      %818 = vmatpush1.bf16.msra.mxu0 0
      %819 = vmatprep.subr.bf16.mxu0 0
      %820 = vmatpush1.bf16.msra.mxu0 0
      %821 = vmatprep.subr.bf16.mxu0 0
      %822 = vmatpush1.bf16.msra.mxu0 0
      %823 = vmatprep.subr.bf16.mxu0 0
      %824 = vmatpush1.bf16.msra.mxu0 0
      %825 = vmatprep.subr.bf16.mxu0 0
      %826 = vmatpush1.bf16.msra.mxu0 0
      %827 = vmatprep.subr.bf16.mxu0 0
      %828 = vmatpush1.bf16.msra.mxu0 0
      %829 = vmatprep.subr.bf16.mxu0 0
      %830 = vmatpush1.bf16.msra.mxu0 0
      %831 = vmatprep.subr.bf16.mxu0 0
      %832 = vmatpush1.bf16.msra.mxu0 0
      %833 = vmatprep.mubr.bf16.mxu0 0
      %834 = vmatmul.mubr.bf16.gmra.mrb[0].mxu0 %v799
      %v835 = vpop.f32.mrb[0].mxu0
      %v836 = vadd.f32 0.0, %v835
      %v837 = vpop.f32.mrb[0].mxu0
      %v838 = vpop.f32.mrb[0].mxu0
      %v839 = vadd.f32 0.0, %v838
      %v840 = vpop.f32.mrb[0].mxu0
      %841 = vdwg.mxu0
      %v842 = vrcp.pop %v785
      %v843 = vrcp.pop %v788
      %v844 = vmul.f32 %v836, %v842
      %v845 = vmul.f32 %v839, %v843
      %848 = vrot.lane.b32.xlu0 %v844, 48
      %v849 = vpop.permute.xlu0 %848
      %850 = vrot.lane.b32.xlu0 %v845, 48
      %v851 = vpop.permute.xlu0 %850
      %vm854 = vcmask 523648
      %855 = vst.msk [vmem:[#allocation2] sm:$0xff] %vm854, %v849
      %856 = vst.msk [vmem:[#allocation2 + $0x8] sm:$0xff] %vm854, %v851
      %v857 = vld [vmem:[#allocation2] sm:$0xff]
      %v858 = vld [vmem:[#allocation2 + $0x8] sm:$0xff]
      %v859 = vpack.c.bf16 %v858, %v857
      %v861 = vunpack.c.l.b16 %v859
      %v862 = vunpack.c.h.b16 %v859
      %v863 = vpack.c.b16 %v861, %v861
      %v864 = vpack.c.b16 %v862, %v862
      %vm867 = vcmask 519168
      %868 = vst.msk [vmem:[%s248] sm:$0xf] %vm867, %v863
      %869 = vst.msk [vmem:[%s248 + $0x4] sm:$0xf] %vm867, %v864
      %s870 = smul.u32 2, %s19
      %p871 = scmp.lt.s32.totalorder %s18, 1
      %s872 = scalar_select %p871, %s18, 1
      %p873 = scmp.lt.s32.totalorder %s870, 1
      %s874 = scalar_select %p873, %s870, 1
      %s875 = smul.addr %s872, 2
      %s876 = sadd.s32 %s874, %s875
      %s877 = smul.addr %s876, 4
      %s878 = scalar_lea.vmem %s3, %s877
      // Predicated region
      $region33: #{closed_call.29} parent=31 // pred_check
        %p879 = pneg %p126
      $region34: #{closed_call.29} parent=31 // pred_check_branch
        %881 = sbr.rel (%p879) target = $region36
      $region35: #{closed_call.29} parent=31 // pred_region
        %s882 = smul.u32 2, %s19
      $region36: #{closed_call.29} parent=31 // pred_fallthru
        _
    $region32: #{closed_call.29} parent=5 // pred_fallthru
      _
    %p883 = scmp.le.s32.totalorder 2, %s9
    // Predicated region
    $region37: #{closed_call.29} parent=5 // pred_check
      %p884 = pneg %p883
    $region38: #{closed_call.29} parent=5 // pred_check_branch
      %886 = sbr.rel (%p884) target = $region40
    $region39: #{closed_call.29} parent=5 // pred_region
      %s887 = ssub.s32 %s9, 2
      // Predicated region
      $region41: #{closed_call.29} parent=39 // pred_check
        %p888 = pneg %p132
      $region42: #{closed_call.29} parent=39 // pred_check_branch
        %890 = sbr.rel (%p888) target = $region44
      $region43: #{closed_call.29} parent=39 // pred_region
        %s891 = smul.u32 2, %s21
        %p892 = scmp.lt.s32.totalorder %s20, 1
        %s893 = scalar_select %p892, %s20, 1
        %p894 = scmp.lt.s32.totalorder %s891, 1
        %s895 = scalar_select %p894, %s891, 1
        %s896 = smul.addr %s893, 2
        %s897 = sadd.s32 %s895, %s896
        %s898 = smul.addr %s897, 4
        %s899 = scalar_lea.vmem %s3, %s898
      $region44: #{closed_call.29} parent=39 // pred_fallthru
        _
    $region40: #{closed_call.29} parent=5 // pred_fallthru
      _
  $region6: #{closed_call.29} parent=0 // loop_footer
    %s13 = sadd.s32 1, %s9
  $region7: #{closed_call.29} parent=0 // loop_footer_branch
    %8 = sbr.rel target = $region3
  $region8: #{closed_call.29} parent=0 // loop_exit
    _

// kernel: closed_call.32
$region0: #{closed_call.32}
  #allocation0 [shape = 'u32[]', space=smem, size = 0x4, offset = 0x4, fixed_abs, tag = 'smem constant byte address 0x4 - core index']
  #allocation1 [shape = 'u32[144,128]{1,0:T(1,128)}', space=vmem, size = 0x12000, scoped, tag = 'internal scratch']
  %s0 = inlined_call_operand.vmem [shape: f32[2,8,64], index: 0, kind: input, shape index: {}]
  %s1 = inlined_call_operand.vmem [shape: bf16[64,64], index: 1, kind: input, shape index: {}]
  %s2 = inlined_call_operand.vmem [shape: bf16[64,64], index: 2, kind: input, shape index: {}]
  %s3 = inlined_call_operand.vmem [shape: f32[1,64], index: 3, kind: input, shape index: {}]
  %s4 = inlined_call_operand.vmem [shape: f32[1,64], index: 4, kind: input, shape index: {}]
  %s5 = inlined_call_operand.vmem [shape: bf16[2,8,64], index: 5, kind: output, shape index: {0}]
  %s6 = inlined_call_operand.vmem [shape: bf16[2,8,64], index: 6, kind: output, shape index: {1}]
  %7 = xla_tuple %s5, %s6
  %s8 = sld [smem:[#allocation0]]
  $region61: #{closed_call.32} parent=0
    _
  %s10 = ssub.s32 1, %s8
  %s11 = scalar_select 0, %s10, %s8
  loop: start=0, step=1, limit=4
  $region2: #{closed_call.32} parent=0 // loop_pre_header
    _
  $region3: #{closed_call.32} parent=0 // loop_header
    %s13 = sphi 0, %s17
    %p14 = scmp.ge.s32.totalorder %s13, 4
    %s20 = sphi 0, %s39
    %s21 = sphi 0, %s35
    %s22 = sphi 0, %s31
    %s23 = sphi 0, %s20
    %s24 = sphi 0, %s21
    %s25 = sphi 0, %s22
    %s26 = sphi 0, %s23
    %s27 = sphi 0, %s24
    %s28 = sphi 0, %s25
    %s44 = sphi 0, %s46
    %s47 = sphi 0, %s44
    %s48 = sphi 0, %s47
    %s64 = sphi 0, %s48
    %s70 = sphi 0, %s72
    %s73 = sphi 0, %s70
    %s74 = sphi 0, %s73
    %s90 = sphi 0, %s74
    %s96 = sphi 0, %s98
    %s99 = sphi 0, %s96
    %s100 = sphi 0, %s99
    %s116 = sphi 0, %s100
    %s122 = sphi 0, %s124
    %s125 = sphi 0, %s122
    %s126 = sphi 0, %s125
    %s142 = sphi 0, %s126
    %s148 = sphi 0, %s150
    %s151 = sphi 0, %s148
    %s152 = sphi 0, %s151
    %s168 = sphi 0, %s152
    %s178 = sphi 0, %s180
    %s181 = sphi 0, %s178
    %s182 = sphi 0, %s181
    %s198 = sphi 0, %s182
    %s208 = sphi 0, %s210
    %s211 = sphi 0, %s208
    %s212 = sphi 0, %s211
    %s228 = sphi 0, %s212
  $region4: #{closed_call.32} parent=0 // loop_header_branch
    %16 = sbr.rel (%p14) target = $region8
  $region5: #{closed_call.32} parent=0 // loop_body
    %s18 = ssub.s32 %s13, 1
    %s19 = ssub.s32 %s13, 2
    %s29 = sadd.s32 1, %s22
    %p30 = scmp.ge.s32.totalorder %s29, 1
    %s31 = scalar_select %p30, 0, %s29
    %s32 = sadd.s32 1, %s21
    %s33 = scalar_select %p30, %s32, %s21
    %p34 = scmp.ge.s32.totalorder %s33, 1
    %s35 = scalar_select %p34, 0, %s33
    %s36 = sadd.s32 1, %s20
    %s37 = scalar_select %p34, %s36, %s20
    %p38 = scmp.ge.s32.totalorder %s37, 2
    %s39 = scalar_select %p38, 0, %s37
    %s40 = ssub.s32 %s20, %s39
    %s41 = ssub.s32 %s21, %s35
    %s42 = sor.u32 %s40, %s41
    %p43 = scmp.eq.s32.totalorder %s42, 0
    %s45 = sadd.s32 %s44, 1
    %s46 = scalar_select %p43, %s44, %s45
    %p49 = pneg %p43
    %p50 = scmp.eq.s32.totalorder %s13, 1
    %p51 = por %p49, %p50
    %p52 = scmp.ne.s32.totalorder %s44, %s47
    %p53 = scmp.eq.s32.totalorder %s13, 0
    %p54 = por %p52, %p53
    %p55 = scmp.ne.s32.totalorder %s44, %s47
    %p56 = scmp.eq.s32.totalorder %s18, 1
    %p57 = por %p55, %p56
    %p58 = scmp.ne.s32.totalorder %s47, %s48
    %p59 = scmp.eq.s32.totalorder %s18, 0
    %p60 = por %p58, %p59
    %p61 = scmp.ne.s32.totalorder %s47, %s48
    %p62 = scmp.eq.s32.totalorder %s19, 1
    %p63 = por %p61, %p62
    %p65 = scmp.ne.s32.totalorder %s48, %s64
    %p66 = scmp.eq.s32.totalorder %s19, 0
    %p67 = por %p65, %p66
    %s68 = ssub.s32 %s22, %s31
    %p69 = scmp.eq.s32.totalorder %s68, 0
    %s71 = sadd.s32 %s70, 1
    %s72 = scalar_select %p69, %s70, %s71
    %p75 = pneg %p69
    %p76 = scmp.eq.s32.totalorder %s13, 1
    %p77 = por %p75, %p76
    %p78 = scmp.ne.s32.totalorder %s70, %s73
    %p79 = scmp.eq.s32.totalorder %s13, 0
    %p80 = por %p78, %p79
    %p81 = scmp.ne.s32.totalorder %s70, %s73
    %p82 = scmp.eq.s32.totalorder %s18, 1
    %p83 = por %p81, %p82
    %p84 = scmp.ne.s32.totalorder %s73, %s74
    %p85 = scmp.eq.s32.totalorder %s18, 0
    %p86 = por %p84, %p85
    %p87 = scmp.ne.s32.totalorder %s73, %s74
    %p88 = scmp.eq.s32.totalorder %s19, 1
    %p89 = por %p87, %p88
    %p91 = scmp.ne.s32.totalorder %s74, %s90
    %p92 = scmp.eq.s32.totalorder %s19, 0
    %p93 = por %p91, %p92
    %s94 = ssub.s32 %s22, %s31
    %p95 = scmp.eq.s32.totalorder %s94, 0
    %s97 = sadd.s32 %s96, 1
    %s98 = scalar_select %p95, %s96, %s97
    %p101 = pneg %p95
    %p102 = scmp.eq.s32.totalorder %s13, 1
    %p103 = por %p101, %p102
    %p104 = scmp.ne.s32.totalorder %s96, %s99
    %p105 = scmp.eq.s32.totalorder %s13, 0
    %p106 = por %p104, %p105
    %p107 = scmp.ne.s32.totalorder %s96, %s99
    %p108 = scmp.eq.s32.totalorder %s18, 1
    %p109 = por %p107, %p108
    %p110 = scmp.ne.s32.totalorder %s99, %s100
    %p111 = scmp.eq.s32.totalorder %s18, 0
    %p112 = por %p110, %p111
    %p113 = scmp.ne.s32.totalorder %s99, %s100
    %p114 = scmp.eq.s32.totalorder %s19, 1
    %p115 = por %p113, %p114
    %p117 = scmp.ne.s32.totalorder %s100, %s116
    %p118 = scmp.eq.s32.totalorder %s19, 0
    %p119 = por %p117, %p118
    %s120 = ssub.s32 %s22, %s31
    %p121 = scmp.eq.s32.totalorder %s120, 0
    %s123 = sadd.s32 %s122, 1
    %s124 = scalar_select %p121, %s122, %s123
    %p127 = pneg %p121
    %p128 = scmp.eq.s32.totalorder %s13, 1
    %p129 = por %p127, %p128
    %p130 = scmp.ne.s32.totalorder %s122, %s125
    %p131 = scmp.eq.s32.totalorder %s13, 0
    %p132 = por %p130, %p131
    %p133 = scmp.ne.s32.totalorder %s122, %s125
    %p134 = scmp.eq.s32.totalorder %s18, 1
    %p135 = por %p133, %p134
    %p136 = scmp.ne.s32.totalorder %s125, %s126
    %p137 = scmp.eq.s32.totalorder %s18, 0
    %p138 = por %p136, %p137
    %p139 = scmp.ne.s32.totalorder %s125, %s126
    %p140 = scmp.eq.s32.totalorder %s19, 1
    %p141 = por %p139, %p140
    %p143 = scmp.ne.s32.totalorder %s126, %s142
    %p144 = scmp.eq.s32.totalorder %s19, 0
    %p145 = por %p143, %p144
    %s146 = ssub.s32 %s22, %s31
    %p147 = scmp.eq.s32.totalorder %s146, 0
    %s149 = sadd.s32 %s148, 1
    %s150 = scalar_select %p147, %s148, %s149
    %p153 = pneg %p147
    %p154 = scmp.eq.s32.totalorder %s13, 1
    %p155 = por %p153, %p154
    %p156 = scmp.ne.s32.totalorder %s148, %s151
    %p157 = scmp.eq.s32.totalorder %s13, 0
    %p158 = por %p156, %p157
    %p159 = scmp.ne.s32.totalorder %s148, %s151
    %p160 = scmp.eq.s32.totalorder %s18, 1
    %p161 = por %p159, %p160
    %p162 = scmp.ne.s32.totalorder %s151, %s152
    %p163 = scmp.eq.s32.totalorder %s18, 0
    %p164 = por %p162, %p163
    %p165 = scmp.ne.s32.totalorder %s151, %s152
    %p166 = scmp.eq.s32.totalorder %s19, 1
    %p167 = por %p165, %p166
    %p169 = scmp.ne.s32.totalorder %s152, %s168
    %p170 = scmp.eq.s32.totalorder %s19, 0
    %p171 = por %p169, %p170
    %s172 = ssub.s32 %s20, %s39
    %s173 = ssub.s32 %s21, %s35
    %s174 = sor.u32 %s172, %s173
    %s175 = ssub.s32 %s22, %s31
    %s176 = sor.u32 %s174, %s175
    %p177 = scmp.eq.s32.totalorder %s176, 0
    %s179 = sadd.s32 %s178, 1
    %s180 = scalar_select %p177, %s178, %s179
    %p183 = pneg %p177
    %p184 = scmp.eq.s32.totalorder %s13, 1
    %p185 = por %p183, %p184
    %p186 = scmp.ne.s32.totalorder %s178, %s181
    %p187 = scmp.eq.s32.totalorder %s13, 0
    %p188 = por %p186, %p187
    %p189 = scmp.ne.s32.totalorder %s178, %s181
    %p190 = scmp.eq.s32.totalorder %s18, 1
    %p191 = por %p189, %p190
    %p192 = scmp.ne.s32.totalorder %s181, %s182
    %p193 = scmp.eq.s32.totalorder %s18, 0
    %p194 = por %p192, %p193
    %p195 = scmp.ne.s32.totalorder %s181, %s182
    %p196 = scmp.eq.s32.totalorder %s19, 1
    %p197 = por %p195, %p196
    %p199 = scmp.ne.s32.totalorder %s182, %s198
    %p200 = scmp.eq.s32.totalorder %s19, 0
    %p201 = por %p199, %p200
    %s202 = ssub.s32 %s20, %s39
    %s203 = ssub.s32 %s21, %s35
    %s204 = sor.u32 %s202, %s203
    %s205 = ssub.s32 %s22, %s31
    %s206 = sor.u32 %s204, %s205
    %p207 = scmp.eq.s32.totalorder %s206, 0
    %s209 = sadd.s32 %s208, 1
    %s210 = scalar_select %p207, %s208, %s209
    %p213 = pneg %p207
    %p214 = scmp.eq.s32.totalorder %s13, 1
    %p215 = por %p213, %p214
    %p216 = scmp.ne.s32.totalorder %s208, %s211
    %p217 = scmp.eq.s32.totalorder %s13, 0
    %p218 = por %p216, %p217
    %p219 = scmp.ne.s32.totalorder %s208, %s211
    %p220 = scmp.eq.s32.totalorder %s18, 1
    %p221 = por %p219, %p220
    %p222 = scmp.ne.s32.totalorder %s211, %s212
    %p223 = scmp.eq.s32.totalorder %s18, 0
    %p224 = por %p222, %p223
    %p225 = scmp.ne.s32.totalorder %s211, %s212
    %p226 = scmp.eq.s32.totalorder %s19, 1
    %p227 = por %p225, %p226
    %p229 = scmp.ne.s32.totalorder %s212, %s228
    %p230 = scmp.eq.s32.totalorder %s19, 0
    %p231 = por %p229, %p230
    %p232 = scmp.le.s32.totalorder 1, %s13
    %p233 = scmp.lt.s32.totalorder %s13, 3
    %p234 = pnand %p232, %p233
    %p235 = pneg %p234
    // Predicated region
    $region9: #{closed_call.32} parent=5 // pred_check
      _
    $region10: #{closed_call.32} parent=5 // pred_check_branch
      %237 = sbr.rel (%p234) target = $region12
    $region11: #{closed_call.32} parent=5 // pred_region
      %s238 = ssub.s32 %s13, 1
      // Predicated region
      $region13: #{closed_call.32} parent=11 // pred_check
        %p239 = pneg %p86
      $region14: #{closed_call.32} parent=11 // pred_check_branch
        %241 = sbr.rel (%p239) target = $region16
      $region15: #{closed_call.32} parent=11 // pred_region
        %p242 = scmp.lt.s32.totalorder %s25, 0
        %s243 = scalar_select %p242, %s25, 0
        %s244 = smul.addr %s243, 4
        %s245 = scalar_lea.vmem %s1, %s244
      $region16: #{closed_call.32} parent=11 // pred_fallthru
        _
      // Predicated region
      $region17: #{closed_call.32} parent=11 // pred_check
        %p246 = pneg %p112
      $region18: #{closed_call.32} parent=11 // pred_check_branch
        %248 = sbr.rel (%p246) target = $region20
      $region19: #{closed_call.32} parent=11 // pred_region
        %p249 = scmp.lt.s32.totalorder %s25, 0
        %s250 = scalar_select %p249, %s25, 0
        %s251 = smul.addr %s250, 4
        %s252 = scalar_lea.vmem %s2, %s251
      $region20: #{closed_call.32} parent=11 // pred_fallthru
        _
      // Predicated region
      $region21: #{closed_call.32} parent=11 // pred_check
        %p253 = pneg %p138
      $region22: #{closed_call.32} parent=11 // pred_check_branch
        %255 = sbr.rel (%p253) target = $region24
      $region23: #{closed_call.32} parent=11 // pred_region
        %p256 = scmp.lt.s32.totalorder %s25, 0
        %s257 = scalar_select %p256, %s25, 0
        %s258 = scalar_lea.vmem %s3, %s257
      $region24: #{closed_call.32} parent=11 // pred_fallthru
        _
      // Predicated region
      $region25: #{closed_call.32} parent=11 // pred_check
        %p259 = pneg %p164
      $region26: #{closed_call.32} parent=11 // pred_check_branch
        %261 = sbr.rel (%p259) target = $region28
      $region27: #{closed_call.32} parent=11 // pred_region
        %p262 = scmp.lt.s32.totalorder %s25, 0
        %s263 = scalar_select %p262, %s25, 0
        %s264 = scalar_lea.vmem %s4, %s263
      $region28: #{closed_call.32} parent=11 // pred_fallthru
        _
    $region12: #{closed_call.32} parent=5 // pred_fallthru
      _
    %p265 = scmp.lt.s32.totalorder %s13, 2
    // Predicated region
    $region29: #{closed_call.32} parent=5 // pred_check
      %p266 = pneg %p265
    $region30: #{closed_call.32} parent=5 // pred_check_branch
      %268 = sbr.rel (%p266) target = $region32
    $region31: #{closed_call.32} parent=5 // pred_region
      // Predicated region
      $region33: #{closed_call.32} parent=31 // pred_check
        %p269 = pneg %p54
      $region34: #{closed_call.32} parent=31 // pred_check_branch
        %271 = sbr.rel (%p269) target = $region36
      $region35: #{closed_call.32} parent=31 // pred_region
        %p272 = scmp.lt.s32.totalorder %s20, 1
        %s273 = scalar_select %p272, %s20, 1
        %p274 = scmp.lt.s32.totalorder %s21, 0
        %s275 = scalar_select %p274, %s21, 0
        %s276 = sadd.s32 %s275, %s273
        %s277 = smul.addr %s276, 8
        %s278 = scalar_lea.vmem %s0, %s277
      $region36: #{closed_call.32} parent=31 // pred_fallthru
        _
    $region32: #{closed_call.32} parent=5 // pred_fallthru
      _
    %p279 = scmp.le.s32.totalorder 1, %s13
    %p280 = scmp.lt.s32.totalorder %s13, 3
    %p281 = pnand %p279, %p280
    %p282 = pneg %p281
    // Predicated region
    $region37: #{closed_call.32} parent=5 // pred_check
      _
    $region38: #{closed_call.32} parent=5 // pred_check_branch
      %284 = sbr.rel (%p281) target = $region40
    $region39: #{closed_call.32} parent=5 // pred_region
      %s285 = ssub.s32 %s13, 1
      %p286 = scmp.lt.s32.totalorder %s23, 1
      %s287 = scalar_select %p286, %s23, 1
      %p288 = scmp.lt.s32.totalorder %s24, 0
      %s289 = scalar_select %p288, %s24, 0
      %s290 = sadd.s32 %s289, %s287
      %s291 = smul.addr %s290, 8
      %s292 = scalar_lea.vmem %s0, %s291
      %p293 = pneg %p60
      %p294 = pneg %p57
      %p295 = scmp.lt.s32.totalorder %s25, 0
      %s296 = scalar_select %p295, %s25, 0
      %s297 = smul.addr %s296, 4
      %s298 = scalar_lea.vmem %s1, %s297
      %p299 = pneg %p86
      %p300 = pneg %p83
      %p301 = scmp.lt.s32.totalorder %s25, 0
      %s302 = scalar_select %p301, %s25, 0
      %s303 = smul.addr %s302, 4
      %s304 = scalar_lea.vmem %s2, %s303
      %p305 = pneg %p112
      %p306 = pneg %p109
      %p307 = scmp.lt.s32.totalorder %s25, 0
      %s308 = scalar_select %p307, %s25, 0
      %s309 = scalar_lea.vmem %s3, %s308
      %p310 = pneg %p138
      %p311 = pneg %p135
      %p312 = scmp.lt.s32.totalorder %s25, 0
      %s313 = scalar_select %p312, %s25, 0
      %s314 = scalar_lea.vmem %s4, %s313
      %p315 = pneg %p164
      %p316 = pneg %p161
      %p317 = pneg %p194
      %p318 = pneg %p191
      %p319 = scmp.lt.s32.totalorder %s23, 1
      %s320 = scalar_select %p319, %s23, 1
      %p321 = scmp.lt.s32.totalorder %s24, 0
      %s322 = scalar_select %p321, %s24, 0
      %p323 = scmp.lt.s32.totalorder %s25, 0
      %s324 = scalar_select %p323, %s25, 0
      %s325 = sadd.s32 %s324, %s322
      %s326 = sadd.s32 %s325, %s320
      %s327 = smul.addr %s326, 4
      %s328 = scalar_lea.vmem %s5, %s327
      %p329 = pneg %p224
      %p330 = pneg %p221
      %p331 = scmp.lt.s32.totalorder %s23, 1
      %s332 = scalar_select %p331, %s23, 1
      %p333 = scmp.lt.s32.totalorder %s24, 0
      %s334 = scalar_select %p333, %s24, 0
      %p335 = scmp.lt.s32.totalorder %s25, 0
      %s336 = scalar_select %p335, %s25, 0
      %s337 = sadd.s32 %s336, %s334
      %s338 = sadd.s32 %s337, %s332
      %s339 = smul.addr %s338, 4
      %s340 = scalar_lea.vmem %s6, %s339
      %p341 = scmp.lt.s32.totalorder %s23, 1
      %s342 = scalar_select %p341, %s23, 1
      %p343 = scmp.lt.s32.totalorder %s24, 0
      %s344 = scalar_select %p343, %s24, 0
      %s345 = sadd.s32 %s344, %s342
      %s346 = smul.addr %s345, 8
      %s347 = scalar_lea.vmem %s0, %s346
      %p348 = scmp.lt.s32.totalorder %s25, 0
      %s349 = scalar_select %p348, %s25, 0
      %s350 = smul.addr %s349, 4
      %s351 = scalar_lea.vmem %s1, %s350
      %p352 = scmp.lt.s32.totalorder %s25, 0
      %s353 = scalar_select %p352, %s25, 0
      %s354 = smul.addr %s353, 4
      %s355 = scalar_lea.vmem %s2, %s354
      %p356 = scmp.lt.s32.totalorder %s25, 0
      %s357 = scalar_select %p356, %s25, 0
      %s358 = scalar_lea.vmem %s3, %s357
      %p359 = scmp.lt.s32.totalorder %s25, 0
      %s360 = scalar_select %p359, %s25, 0
      %s361 = scalar_lea.vmem %s4, %s360
      %p362 = scmp.lt.s32.totalorder %s23, 1
      %s363 = scalar_select %p362, %s23, 1
      %p364 = scmp.lt.s32.totalorder %s24, 0
      %s365 = scalar_select %p364, %s24, 0
      %p366 = scmp.lt.s32.totalorder %s25, 0
      %s367 = scalar_select %p366, %s25, 0
      %s368 = sadd.s32 %s367, %s365
      %s369 = sadd.s32 %s368, %s363
      %s370 = smul.addr %s369, 4
      %s371 = scalar_lea.vmem %s5, %s370
      %p372 = scmp.lt.s32.totalorder %s23, 1
      %s373 = scalar_select %p372, %s23, 1
      %p374 = scmp.lt.s32.totalorder %s24, 0
      %s375 = scalar_select %p374, %s24, 0
      %p376 = scmp.lt.s32.totalorder %s25, 0
      %s377 = scalar_select %p376, %s25, 0
      %s378 = sadd.s32 %s377, %s375
      %s379 = sadd.s32 %s378, %s373
      %s380 = smul.addr %s379, 4
      %s381 = scalar_lea.vmem %s6, %s380
      %v383 = vld [vmem:[%s347] sm:$0xff]
      %v384 = vpack.c.bf16 %v383, %v383
      %v385 = vld [vmem:[%s351] sm:$0xf]
      %v386 = vld [vmem:[%s351 + $0x4] sm:$0xf]
      %v387 = vld [vmem:[%s351 + $0x8] sm:$0xf]
      %v388 = vld [vmem:[%s351 + $0xc] sm:$0xf]
      %v389 = vld [vmem:[%s351 + $0x10] sm:$0xf]
      %v390 = vld [vmem:[%s351 + $0x14] sm:$0xf]
      %v391 = vld [vmem:[%s351 + $0x18] sm:$0xf]
      %v392 = vld [vmem:[%s351 + $0x1c] sm:$0xf]
      %v393 = vld [vmem:[%s358] sm:$0x1]
      %v395 = vlaneseq
      %v396 = vshrl.u32 %v395, 7
      %v397 = vsub.s32 0, %v396
      %v398 = vrot.slane %v393, %v397
      %v408 = vunpack.c.l.b16 %v385
      %v409 = vunpack.c.l.b16 %v386
      %v410 = vunpack.c.l.b16 %v387
      %v411 = vunpack.c.l.b16 %v388
      %v412 = vunpack.c.l.b16 %v389
      %v413 = vunpack.c.l.b16 %v390
      %v414 = vunpack.c.l.b16 %v391
      %v415 = vunpack.c.l.b16 %v392
      %v416 = vpack.c.b16 %v409, %v408
      %v417 = vpack.c.b16 %v411, %v410
      %v418 = vpack.c.b16 %v413, %v412
      %v419 = vpack.c.b16 %v415, %v414
      %vm424 = vcmask 523264
      %v426 = vsel %vm424, %v384, 0
      %428 = vmatprep.subr.bf16.mxu0 0
      %429 = vmatpush1.bf16.msra.mxu0 %v416
      %430 = vmatprep.subr.bf16.mxu0 0
      %431 = vmatpush1.bf16.msra.mxu0 %v417
      %432 = vmatprep.subr.bf16.mxu0 0
      %433 = vmatpush1.bf16.msra.mxu0 %v418
      %434 = vmatprep.subr.bf16.mxu0 0
      %435 = vmatpush1.bf16.msra.mxu0 %v419
      %436 = vmatprep.subr.bf16.mxu0 0
      %437 = vmatpush1.bf16.msra.mxu0 0
      %438 = vmatprep.subr.bf16.mxu0 0
      %439 = vmatpush1.bf16.msra.mxu0 0
      %440 = vmatprep.subr.bf16.mxu0 0
      %441 = vmatpush1.bf16.msra.mxu0 0
      %442 = vmatprep.subr.bf16.mxu0 0
      %443 = vmatpush1.bf16.msra.mxu0 0
      %444 = vmatprep.subr.bf16.mxu0 0
      %445 = vmatpush1.bf16.msra.mxu0 0
      %446 = vmatprep.subr.bf16.mxu0 0
      %447 = vmatpush1.bf16.msra.mxu0 0
      %448 = vmatprep.subr.bf16.mxu0 0
      %449 = vmatpush1.bf16.msra.mxu0 0
      %450 = vmatprep.subr.bf16.mxu0 0
      %451 = vmatpush1.bf16.msra.mxu0 0
      %452 = vmatprep.subr.bf16.mxu0 0
      %453 = vmatpush1.bf16.msra.mxu0 0
      %454 = vmatprep.subr.bf16.mxu0 0
      %455 = vmatpush1.bf16.msra.mxu0 0
      %456 = vmatprep.subr.bf16.mxu0 0
      %457 = vmatpush1.bf16.msra.mxu0 0
      %458 = vmatprep.subr.bf16.mxu0 0
      %459 = vmatpush1.bf16.msra.mxu0 0
      %460 = vmatprep.mubr.bf16.mxu0 0
      %461 = vmatmul.mubr.bf16.gmra.mrb[0].mxu0 %v426
      %v462 = vpop.f32.mrb[0].mxu0
      %v463 = vadd.f32 %v398, %v462
      %v464 = vpop.f32.mrb[0].mxu0
      %v465 = vpop.f32.mrb[0].mxu0
      %v466 = vpop.f32.mrb[0].mxu0
      %467 = vdwg.mxu0
      %v468 = vpack.c.bf16 %v463, %v463
      %vm469 = vcmask 519168
      %470 = vst.msk [vmem:[%s371] sm:$0xf] %vm469, %v468
      %v471 = vld [vmem:[%s355] sm:$0xf]
      %v472 = vld [vmem:[%s355 + $0x4] sm:$0xf]
      %v473 = vld [vmem:[%s355 + $0x8] sm:$0xf]
      %v474 = vld [vmem:[%s355 + $0xc] sm:$0xf]
      %v475 = vld [vmem:[%s355 + $0x10] sm:$0xf]
      %v476 = vld [vmem:[%s355 + $0x14] sm:$0xf]
      %v477 = vld [vmem:[%s355 + $0x18] sm:$0xf]
      %v478 = vld [vmem:[%s355 + $0x1c] sm:$0xf]
      %v479 = vld [vmem:[%s361] sm:$0x1]
      %v481 = vlaneseq
      %v482 = vshrl.u32 %v481, 7
      %v483 = vsub.s32 0, %v482
      %v484 = vrot.slane %v479, %v483
      %v494 = vunpack.c.l.b16 %v471
      %v495 = vunpack.c.l.b16 %v472
      %v496 = vunpack.c.l.b16 %v473
      %v497 = vunpack.c.l.b16 %v474
      %v498 = vunpack.c.l.b16 %v475
      %v499 = vunpack.c.l.b16 %v476
      %v500 = vunpack.c.l.b16 %v477
      %v501 = vunpack.c.l.b16 %v478
      %v502 = vpack.c.b16 %v495, %v494
      %v503 = vpack.c.b16 %v497, %v496
      %v504 = vpack.c.b16 %v499, %v498
      %v505 = vpack.c.b16 %v501, %v500
      %510 = vmatprep.subr.bf16.mxu0 0
      %511 = vmatpush1.bf16.msra.mxu0 %v502
      %512 = vmatprep.subr.bf16.mxu0 0
      %513 = vmatpush1.bf16.msra.mxu0 %v503
      %514 = vmatprep.subr.bf16.mxu0 0
      %515 = vmatpush1.bf16.msra.mxu0 %v504
      %516 = vmatprep.subr.bf16.mxu0 0
      %517 = vmatpush1.bf16.msra.mxu0 %v505
      %518 = vmatprep.subr.bf16.mxu0 0
      %519 = vmatpush1.bf16.msra.mxu0 0
      %520 = vmatprep.subr.bf16.mxu0 0
      %521 = vmatpush1.bf16.msra.mxu0 0
      %522 = vmatprep.subr.bf16.mxu0 0
      %523 = vmatpush1.bf16.msra.mxu0 0
      %524 = vmatprep.subr.bf16.mxu0 0
      %525 = vmatpush1.bf16.msra.mxu0 0
      %526 = vmatprep.subr.bf16.mxu0 0
      %527 = vmatpush1.bf16.msra.mxu0 0
      %528 = vmatprep.subr.bf16.mxu0 0
      %529 = vmatpush1.bf16.msra.mxu0 0
      %530 = vmatprep.subr.bf16.mxu0 0
      %531 = vmatpush1.bf16.msra.mxu0 0
      %532 = vmatprep.subr.bf16.mxu0 0
      %533 = vmatpush1.bf16.msra.mxu0 0
      %534 = vmatprep.subr.bf16.mxu0 0
      %535 = vmatpush1.bf16.msra.mxu0 0
      %536 = vmatprep.subr.bf16.mxu0 0
      %537 = vmatpush1.bf16.msra.mxu0 0
      %538 = vmatprep.subr.bf16.mxu0 0
      %539 = vmatpush1.bf16.msra.mxu0 0
      %540 = vmatprep.subr.bf16.mxu0 0
      %541 = vmatpush1.bf16.msra.mxu0 0
      %542 = vmatprep.mubr.bf16.mxu0 0
      %543 = vmatmul.mubr.bf16.gmra.mrb[0].mxu0 %v426
      %v544 = vpop.f32.mrb[0].mxu0
      %v545 = vadd.f32 %v484, %v544
      %v546 = vpop.f32.mrb[0].mxu0
      %v547 = vpop.f32.mrb[0].mxu0
      %v548 = vpop.f32.mrb[0].mxu0
      %549 = vdwg.mxu0
      %v550 = vpack.c.bf16 %v545, %v545
      %551 = vst.msk [vmem:[%s381] sm:$0xf] %vm469, %v550
      %p552 = scmp.lt.s32.totalorder %s23, 1
      %s553 = scalar_select %p552, %s23, 1
      %p554 = scmp.lt.s32.totalorder %s24, 0
      %s555 = scalar_select %p554, %s24, 0
      %p556 = scmp.lt.s32.totalorder %s25, 0
      %s557 = scalar_select %p556, %s25, 0
      %s558 = sadd.s32 %s557, %s555
      %s559 = sadd.s32 %s558, %s553
      %s560 = smul.addr %s559, 4
      %s561 = scalar_lea.vmem %s5, %s560
      %p562 = scmp.lt.s32.totalorder %s23, 1
      %s563 = scalar_select %p562, %s23, 1
      %p564 = scmp.lt.s32.totalorder %s24, 0
      %s565 = scalar_select %p564, %s24, 0
      %p566 = scmp.lt.s32.totalorder %s25, 0
      %s567 = scalar_select %p566, %s25, 0
      %s568 = sadd.s32 %s567, %s565
      %s569 = sadd.s32 %s568, %s563
      %s570 = smul.addr %s569, 4
      %s571 = scalar_lea.vmem %s6, %s570
      // Predicated region
      $region41: #{closed_call.32} parent=39 // pred_check
        %p572 = pneg %p191
      $region42: #{closed_call.32} parent=39 // pred_check_branch
        %574 = sbr.rel (%p572) target = $region44
      $region43: #{closed_call.32} parent=39 // pred_region
        _
      $region44: #{closed_call.32} parent=39 // pred_fallthru
        _
      // Predicated region
      $region45: #{closed_call.32} parent=39 // pred_check
        %p575 = pneg %p221
      $region46: #{closed_call.32} parent=39 // pred_check_branch
        %577 = sbr.rel (%p575) target = $region48
      $region47: #{closed_call.32} parent=39 // pred_region
        _
      $region48: #{closed_call.32} parent=39 // pred_fallthru
        _
    $region40: #{closed_call.32} parent=5 // pred_fallthru
      _
    %p578 = scmp.le.s32.totalorder 2, %s13
    // Predicated region
    $region49: #{closed_call.32} parent=5 // pred_check
      %p579 = pneg %p578
    $region50: #{closed_call.32} parent=5 // pred_check_branch
      %581 = sbr.rel (%p579) target = $region52
    $region51: #{closed_call.32} parent=5 // pred_region
      %s582 = ssub.s32 %s13, 2
      // Predicated region
      $region53: #{closed_call.32} parent=51 // pred_check
        %p583 = pneg %p197
      $region54: #{closed_call.32} parent=51 // pred_check_branch
        %585 = sbr.rel (%p583) target = $region56
      $region55: #{closed_call.32} parent=51 // pred_region
        %p586 = scmp.lt.s32.totalorder %s26, 1
        %s587 = scalar_select %p586, %s26, 1
        %p588 = scmp.lt.s32.totalorder %s27, 0
        %s589 = scalar_select %p588, %s27, 0
        %p590 = scmp.lt.s32.totalorder %s28, 0
        %s591 = scalar_select %p590, %s28, 0
        %s592 = sadd.s32 %s591, %s589
        %s593 = sadd.s32 %s592, %s587
        %s594 = smul.addr %s593, 4
        %s595 = scalar_lea.vmem %s5, %s594
      $region56: #{closed_call.32} parent=51 // pred_fallthru
        _
      // Predicated region
      $region57: #{closed_call.32} parent=51 // pred_check
        %p596 = pneg %p227
      $region58: #{closed_call.32} parent=51 // pred_check_branch
        %598 = sbr.rel (%p596) target = $region60
      $region59: #{closed_call.32} parent=51 // pred_region
        %p599 = scmp.lt.s32.totalorder %s26, 1
        %s600 = scalar_select %p599, %s26, 1
        %p601 = scmp.lt.s32.totalorder %s27, 0
        %s602 = scalar_select %p601, %s27, 0
        %p603 = scmp.lt.s32.totalorder %s28, 0
        %s604 = scalar_select %p603, %s28, 0
        %s605 = sadd.s32 %s604, %s602
        %s606 = sadd.s32 %s605, %s600
        %s607 = smul.addr %s606, 4
        %s608 = scalar_lea.vmem %s6, %s607
      $region60: #{closed_call.32} parent=51 // pred_fallthru
        _
    $region52: #{closed_call.32} parent=5 // pred_fallthru
      _
  $region6: #{closed_call.32} parent=0 // loop_footer
    %s17 = sadd.s32 1, %s13
  $region7: #{closed_call.32} parent=0 // loop_footer_branch
    %12 = sbr.rel target = $region3
  $region8: #{closed_call.32} parent=0 // loop_exit
    _

// kernel: closed_call.34
$region0: #{closed_call.34}
  #allocation0 [shape = 'u32[]', space=smem, size = 0x4, offset = 0x4, fixed_abs, tag = 'smem constant byte address 0x4 - core index']
  #allocation1 [shape = 'u32[144,128]{1,0:T(1,128)}', space=vmem, size = 0x12000, scoped, tag = 'internal scratch']
  %s0 = inlined_call_operand.vmem [shape: bf16[2,16,64], index: 0, kind: input, shape index: {}]
  %s1 = inlined_call_operand.vmem [shape: bf16[64,64], index: 1, kind: input, shape index: {}]
  %s2 = inlined_call_operand.vmem [shape: f32[1,64], index: 2, kind: input, shape index: {}]
  %s3 = inlined_call_operand.vmem [shape: f32[2,16,64], index: 3, kind: input, shape index: {}]
  %s4 = inlined_call_operand.vmem [shape: f32[2,16,64], index: 4, kind: output, shape index: {}]
  %s5 = sld [smem:[#allocation0]]
  $region57: #{closed_call.34} parent=0
    _
  %s7 = ssub.s32 1, %s5
  %s8 = scalar_select 0, %s7, %s5
  loop: start=0, step=1, limit=4
  $region2: #{closed_call.34} parent=0 // loop_pre_header
    _
  $region3: #{closed_call.34} parent=0 // loop_header
    %s10 = sphi 0, %s14
    %p11 = scmp.ge.s32.totalorder %s10, 4
    %s17 = sphi 0, %s43
    %s18 = sphi 0, %s39
    %s19 = sphi 0, %s35
    %s20 = sphi 0, %s31
    %s21 = sphi 0, %s17
    %s22 = sphi 0, %s18
    %s23 = sphi 0, %s19
    %s24 = sphi 0, %s20
    %s25 = sphi 0, %s21
    %s26 = sphi 0, %s22
    %s27 = sphi 0, %s23
    %s28 = sphi 0, %s24
    %s50 = sphi 0, %s52
    %s53 = sphi 0, %s50
    %s54 = sphi 0, %s53
    %s70 = sphi 0, %s54
    %s78 = sphi 0, %s80
    %s81 = sphi 0, %s78
    %s82 = sphi 0, %s81
    %s98 = sphi 0, %s82
    %s104 = sphi 0, %s106
    %s107 = sphi 0, %s104
    %s108 = sphi 0, %s107
    %s124 = sphi 0, %s108
    %s134 = sphi 0, %s136
    %s137 = sphi 0, %s134
    %s138 = sphi 0, %s137
    %s154 = sphi 0, %s138
    %s164 = sphi 0, %s166
    %s167 = sphi 0, %s164
    %s168 = sphi 0, %s167
    %s184 = sphi 0, %s168
  $region4: #{closed_call.34} parent=0 // loop_header_branch
    %13 = sbr.rel (%p11) target = $region8
  $region5: #{closed_call.34} parent=0 // loop_body
    %s15 = ssub.s32 %s10, 1
    %s16 = ssub.s32 %s10, 2
    %s29 = sadd.s32 1, %s20
    %p30 = scmp.ge.s32.totalorder %s29, 1
    %s31 = scalar_select %p30, 0, %s29
    %s32 = sadd.s32 1, %s19
    %s33 = scalar_select %p30, %s32, %s19
    %p34 = scmp.ge.s32.totalorder %s33, 1
    %s35 = scalar_select %p34, 0, %s33
    %s36 = sadd.s32 1, %s18
    %s37 = scalar_select %p34, %s36, %s18
    %p38 = scmp.ge.s32.totalorder %s37, 1
    %s39 = scalar_select %p38, 0, %s37
    %s40 = sadd.s32 1, %s17
    %s41 = scalar_select %p38, %s40, %s17
    %p42 = scmp.ge.s32.totalorder %s41, 2
    %s43 = scalar_select %p42, 0, %s41
    %s44 = ssub.s32 %s17, %s43
    %s45 = ssub.s32 %s18, %s39
    %s46 = sor.u32 %s44, %s45
    %s47 = ssub.s32 %s20, %s31
    %s48 = sor.u32 %s46, %s47
    %p49 = scmp.eq.s32.totalorder %s48, 0
    %s51 = sadd.s32 %s50, 1
    %s52 = scalar_select %p49, %s50, %s51
    %p55 = pneg %p49
    %p56 = scmp.eq.s32.totalorder %s10, 1
    %p57 = por %p55, %p56
    %p58 = scmp.ne.s32.totalorder %s50, %s53
    %p59 = scmp.eq.s32.totalorder %s10, 0
    %p60 = por %p58, %p59
    %p61 = scmp.ne.s32.totalorder %s50, %s53
    %p62 = scmp.eq.s32.totalorder %s15, 1
    %p63 = por %p61, %p62
    %p64 = scmp.ne.s32.totalorder %s53, %s54
    %p65 = scmp.eq.s32.totalorder %s15, 0
    %p66 = por %p64, %p65
    %p67 = scmp.ne.s32.totalorder %s53, %s54
    %p68 = scmp.eq.s32.totalorder %s16, 1
    %p69 = por %p67, %p68
    %p71 = scmp.ne.s32.totalorder %s54, %s70
    %p72 = scmp.eq.s32.totalorder %s16, 0
    %p73 = por %p71, %p72
    %s74 = ssub.s32 %s20, %s31
    %s75 = ssub.s32 %s19, %s35
    %s76 = sor.u32 %s74, %s75
    %p77 = scmp.eq.s32.totalorder %s76, 0
    %s79 = sadd.s32 %s78, 1
    %s80 = scalar_select %p77, %s78, %s79
    %p83 = pneg %p77
    %p84 = scmp.eq.s32.totalorder %s10, 1
    %p85 = por %p83, %p84
    %p86 = scmp.ne.s32.totalorder %s78, %s81
    %p87 = scmp.eq.s32.totalorder %s10, 0
    %p88 = por %p86, %p87
    %p89 = scmp.ne.s32.totalorder %s78, %s81
    %p90 = scmp.eq.s32.totalorder %s15, 1
    %p91 = por %p89, %p90
    %p92 = scmp.ne.s32.totalorder %s81, %s82
    %p93 = scmp.eq.s32.totalorder %s15, 0
    %p94 = por %p92, %p93
    %p95 = scmp.ne.s32.totalorder %s81, %s82
    %p96 = scmp.eq.s32.totalorder %s16, 1
    %p97 = por %p95, %p96
    %p99 = scmp.ne.s32.totalorder %s82, %s98
    %p100 = scmp.eq.s32.totalorder %s16, 0
    %p101 = por %p99, %p100
    %s102 = ssub.s32 %s19, %s35
    %p103 = scmp.eq.s32.totalorder %s102, 0
    %s105 = sadd.s32 %s104, 1
    %s106 = scalar_select %p103, %s104, %s105
    %p109 = pneg %p103
    %p110 = scmp.eq.s32.totalorder %s10, 1
    %p111 = por %p109, %p110
    %p112 = scmp.ne.s32.totalorder %s104, %s107
    %p113 = scmp.eq.s32.totalorder %s10, 0
    %p114 = por %p112, %p113
    %p115 = scmp.ne.s32.totalorder %s104, %s107
    %p116 = scmp.eq.s32.totalorder %s15, 1
    %p117 = por %p115, %p116
    %p118 = scmp.ne.s32.totalorder %s107, %s108
    %p119 = scmp.eq.s32.totalorder %s15, 0
    %p120 = por %p118, %p119
    %p121 = scmp.ne.s32.totalorder %s107, %s108
    %p122 = scmp.eq.s32.totalorder %s16, 1
    %p123 = por %p121, %p122
    %p125 = scmp.ne.s32.totalorder %s108, %s124
    %p126 = scmp.eq.s32.totalorder %s16, 0
    %p127 = por %p125, %p126
    %s128 = ssub.s32 %s17, %s43
    %s129 = ssub.s32 %s18, %s39
    %s130 = sor.u32 %s128, %s129
    %s131 = ssub.s32 %s19, %s35
    %s132 = sor.u32 %s130, %s131
    %p133 = scmp.eq.s32.totalorder %s132, 0
    %s135 = sadd.s32 %s134, 1
    %s136 = scalar_select %p133, %s134, %s135
    %p139 = pneg %p133
    %p140 = scmp.eq.s32.totalorder %s10, 1
    %p141 = por %p139, %p140
    %p142 = scmp.ne.s32.totalorder %s134, %s137
    %p143 = scmp.eq.s32.totalorder %s10, 0
    %p144 = por %p142, %p143
    %p145 = scmp.ne.s32.totalorder %s134, %s137
    %p146 = scmp.eq.s32.totalorder %s15, 1
    %p147 = por %p145, %p146
    %p148 = scmp.ne.s32.totalorder %s137, %s138
    %p149 = scmp.eq.s32.totalorder %s15, 0
    %p150 = por %p148, %p149
    %p151 = scmp.ne.s32.totalorder %s137, %s138
    %p152 = scmp.eq.s32.totalorder %s16, 1
    %p153 = por %p151, %p152
    %p155 = scmp.ne.s32.totalorder %s138, %s154
    %p156 = scmp.eq.s32.totalorder %s16, 0
    %p157 = por %p155, %p156
    %s158 = ssub.s32 %s17, %s43
    %s159 = ssub.s32 %s18, %s39
    %s160 = sor.u32 %s158, %s159
    %s161 = ssub.s32 %s19, %s35
    %s162 = sor.u32 %s160, %s161
    %p163 = scmp.eq.s32.totalorder %s162, 0
    %s165 = sadd.s32 %s164, 1
    %s166 = scalar_select %p163, %s164, %s165
    %p169 = pneg %p163
    %p170 = scmp.eq.s32.totalorder %s10, 1
    %p171 = por %p169, %p170
    %p172 = scmp.ne.s32.totalorder %s164, %s167
    %p173 = scmp.eq.s32.totalorder %s10, 0
    %p174 = por %p172, %p173
    %p175 = scmp.ne.s32.totalorder %s164, %s167
    %p176 = scmp.eq.s32.totalorder %s15, 1
    %p177 = por %p175, %p176
    %p178 = scmp.ne.s32.totalorder %s167, %s168
    %p179 = scmp.eq.s32.totalorder %s15, 0
    %p180 = por %p178, %p179
    %p181 = scmp.ne.s32.totalorder %s167, %s168
    %p182 = scmp.eq.s32.totalorder %s16, 1
    %p183 = por %p181, %p182
    %p185 = scmp.ne.s32.totalorder %s168, %s184
    %p186 = scmp.eq.s32.totalorder %s16, 0
    %p187 = por %p185, %p186
    %p188 = scmp.le.s32.totalorder 1, %s10
    %p189 = scmp.lt.s32.totalorder %s10, 3
    %p190 = pnand %p188, %p189
    %p191 = pneg %p190
    // Predicated region
    $region9: #{closed_call.34} parent=5 // pred_check
      _
    $region10: #{closed_call.34} parent=5 // pred_check_branch
      %193 = sbr.rel (%p190) target = $region12
    $region11: #{closed_call.34} parent=5 // pred_region
      %s194 = ssub.s32 %s10, 1
      // Predicated region
      $region13: #{closed_call.34} parent=11 // pred_check
        %p195 = pneg %p94
      $region14: #{closed_call.34} parent=11 // pred_check_branch
        %197 = sbr.rel (%p195) target = $region16
      $region15: #{closed_call.34} parent=11 // pred_region
        %s198 = smul.u32 8, %s24
        %p199 = scmp.lt.s32.totalorder %s198, 7
        %s200 = scalar_select %p199, %s198, 7
        %p201 = scmp.lt.s32.totalorder %s23, 0
        %s202 = scalar_select %p201, %s23, 0
        %s203 = sadd.s32 %s202, %s200
        %s204 = smul.addr %s203, 4
        %s205 = scalar_lea.vmem %s1, %s204
        %s206 = smul.u32 8, %s24
      $region16: #{closed_call.34} parent=11 // pred_fallthru
        _
      // Predicated region
      $region17: #{closed_call.34} parent=11 // pred_check
        %p207 = pneg %p120
      $region18: #{closed_call.34} parent=11 // pred_check_branch
        %209 = sbr.rel (%p207) target = $region20
      $region19: #{closed_call.34} parent=11 // pred_region
        %p210 = scmp.lt.s32.totalorder %s23, 0
        %s211 = scalar_select %p210, %s23, 0
        %s212 = scalar_lea.vmem %s2, %s211
      $region20: #{closed_call.34} parent=11 // pred_fallthru
        _
    $region12: #{closed_call.34} parent=5 // pred_fallthru
      _
    %p213 = scmp.lt.s32.totalorder %s10, 2
    // Predicated region
    $region21: #{closed_call.34} parent=5 // pred_check
      %p214 = pneg %p213
    $region22: #{closed_call.34} parent=5 // pred_check_branch
      %216 = sbr.rel (%p214) target = $region24
    $region23: #{closed_call.34} parent=5 // pred_region
      // Predicated region
      $region25: #{closed_call.34} parent=23 // pred_check
        %p217 = pneg %p60
      $region26: #{closed_call.34} parent=23 // pred_check_branch
        %219 = sbr.rel (%p217) target = $region28
      $region27: #{closed_call.34} parent=23 // pred_region
        %s220 = smul.u32 2, %s18
        %p221 = scmp.lt.s32.totalorder %s17, 1
        %s222 = scalar_select %p221, %s17, 1
        %p223 = scmp.lt.s32.totalorder %s220, 1
        %s224 = scalar_select %p223, %s220, 1
        %p225 = scmp.lt.s32.totalorder %s20, 0
        %s226 = scalar_select %p225, %s20, 0
        %s227 = sadd.s32 %s226, %s224
        %s228 = smul.addr %s222, 2
        %s229 = sadd.s32 %s227, %s228
        %s230 = smul.addr %s229, 4
        %s231 = scalar_lea.vmem %s0, %s230
        %s232 = smul.u32 2, %s18
      $region28: #{closed_call.34} parent=23 // pred_fallthru
        _
      // Predicated region
      $region29: #{closed_call.34} parent=23 // pred_check
        %p233 = pneg %p144
      $region30: #{closed_call.34} parent=23 // pred_check_branch
        %235 = sbr.rel (%p233) target = $region32
      $region31: #{closed_call.34} parent=23 // pred_region
        %s236 = smul.u32 2, %s18
        %p237 = scmp.lt.s32.totalorder %s17, 1
        %s238 = scalar_select %p237, %s17, 1
        %p239 = scmp.lt.s32.totalorder %s236, 1
        %s240 = scalar_select %p239, %s236, 1
        %p241 = scmp.lt.s32.totalorder %s19, 0
        %s242 = scalar_select %p241, %s19, 0
        %s243 = sadd.s32 %s242, %s240
        %s244 = smul.addr %s238, 2
        %s245 = sadd.s32 %s243, %s244
        %s246 = smul.addr %s245, 8
        %s247 = scalar_lea.vmem %s3, %s246
        %s248 = smul.u32 2, %s18
      $region32: #{closed_call.34} parent=23 // pred_fallthru
        _
    $region24: #{closed_call.34} parent=5 // pred_fallthru
      _
    %p249 = scmp.le.s32.totalorder 1, %s10
    %p250 = scmp.lt.s32.totalorder %s10, 3
    %p251 = pnand %p249, %p250
    %p252 = pneg %p251
    // Predicated region
    $region33: #{closed_call.34} parent=5 // pred_check
      _
    $region34: #{closed_call.34} parent=5 // pred_check_branch
      %254 = sbr.rel (%p251) target = $region36
    $region35: #{closed_call.34} parent=5 // pred_region
      %s255 = ssub.s32 %s10, 1
      %s256 = smul.u32 2, %s22
      %p257 = scmp.lt.s32.totalorder %s21, 1
      %s258 = scalar_select %p257, %s21, 1
      %p259 = scmp.lt.s32.totalorder %s256, 1
      %s260 = scalar_select %p259, %s256, 1
      %p261 = scmp.lt.s32.totalorder %s24, 0
      %s262 = scalar_select %p261, %s24, 0
      %s263 = sadd.s32 %s262, %s260
      %s264 = smul.addr %s258, 2
      %s265 = sadd.s32 %s263, %s264
      %s266 = smul.addr %s265, 4
      %s267 = scalar_lea.vmem %s0, %s266
      %p268 = pneg %p66
      %p269 = pneg %p63
      %s270 = smul.u32 8, %s24
      %p271 = scmp.lt.s32.totalorder %s270, 7
      %s272 = scalar_select %p271, %s270, 7
      %p273 = scmp.lt.s32.totalorder %s23, 0
      %s274 = scalar_select %p273, %s23, 0
      %s275 = sadd.s32 %s274, %s272
      %s276 = smul.addr %s275, 4
      %s277 = scalar_lea.vmem %s1, %s276
      %p278 = pneg %p94
      %p279 = pneg %p91
      %p280 = scmp.lt.s32.totalorder %s23, 0
      %s281 = scalar_select %p280, %s23, 0
      %s282 = scalar_lea.vmem %s2, %s281
      %p283 = pneg %p120
      %p284 = pneg %p117
      %s285 = smul.u32 2, %s22
      %p286 = scmp.lt.s32.totalorder %s21, 1
      %s287 = scalar_select %p286, %s21, 1
      %p288 = scmp.lt.s32.totalorder %s285, 1
      %s289 = scalar_select %p288, %s285, 1
      %p290 = scmp.lt.s32.totalorder %s23, 0
      %s291 = scalar_select %p290, %s23, 0
      %s292 = sadd.s32 %s291, %s289
      %s293 = smul.addr %s287, 2
      %s294 = sadd.s32 %s292, %s293
      %s295 = smul.addr %s294, 8
      %s296 = scalar_lea.vmem %s3, %s295
      %p297 = pneg %p150
      %p298 = pneg %p147
      %p299 = pneg %p180
      %p300 = pneg %p177
      %s301 = smul.u32 2, %s22
      %p302 = scmp.lt.s32.totalorder %s21, 1
      %s303 = scalar_select %p302, %s21, 1
      %p304 = scmp.lt.s32.totalorder %s301, 1
      %s305 = scalar_select %p304, %s301, 1
      %p306 = scmp.lt.s32.totalorder %s23, 0
      %s307 = scalar_select %p306, %s23, 0
      %s308 = sadd.s32 %s307, %s305
      %s309 = smul.addr %s303, 2
      %s310 = sadd.s32 %s308, %s309
      %s311 = smul.addr %s310, 8
      %s312 = scalar_lea.vmem %s4, %s311
      %s313 = smul.u32 2, %s22
      %p314 = scmp.lt.s32.totalorder %s21, 1
      %s315 = scalar_select %p314, %s21, 1
      %p316 = scmp.lt.s32.totalorder %s313, 1
      %s317 = scalar_select %p316, %s313, 1
      %p318 = scmp.lt.s32.totalorder %s24, 0
      %s319 = scalar_select %p318, %s24, 0
      %s320 = sadd.s32 %s319, %s317
      %s321 = smul.addr %s315, 2
      %s322 = sadd.s32 %s320, %s321
      %s323 = smul.addr %s322, 4
      %s324 = scalar_lea.vmem %s0, %s323
      %s325 = smul.u32 2, %s22
      %s326 = smul.u32 8, %s24
      %p327 = scmp.lt.s32.totalorder %s326, 7
      %s328 = scalar_select %p327, %s326, 7
      %p329 = scmp.lt.s32.totalorder %s23, 0
      %s330 = scalar_select %p329, %s23, 0
      %s331 = sadd.s32 %s330, %s328
      %s332 = smul.addr %s331, 4
      %s333 = scalar_lea.vmem %s1, %s332
      %s334 = smul.u32 8, %s24
      %p335 = scmp.lt.s32.totalorder %s23, 0
      %s336 = scalar_select %p335, %s23, 0
      %s337 = scalar_lea.vmem %s2, %s336
      %s338 = smul.u32 2, %s22
      %p339 = scmp.lt.s32.totalorder %s21, 1
      %s340 = scalar_select %p339, %s21, 1
      %p341 = scmp.lt.s32.totalorder %s338, 1
      %s342 = scalar_select %p341, %s338, 1
      %p343 = scmp.lt.s32.totalorder %s23, 0
      %s344 = scalar_select %p343, %s23, 0
      %s345 = sadd.s32 %s344, %s342
      %s346 = smul.addr %s340, 2
      %s347 = sadd.s32 %s345, %s346
      %s348 = smul.addr %s347, 8
      %s349 = scalar_lea.vmem %s3, %s348
      %s350 = smul.u32 2, %s22
      %s351 = smul.u32 2, %s22
      %p352 = scmp.lt.s32.totalorder %s21, 1
      %s353 = scalar_select %p352, %s21, 1
      %p354 = scmp.lt.s32.totalorder %s351, 1
      %s355 = scalar_select %p354, %s351, 1
      %p356 = scmp.lt.s32.totalorder %s23, 0
      %s357 = scalar_select %p356, %s23, 0
      %s358 = sadd.s32 %s357, %s355
      %s359 = smul.addr %s353, 2
      %s360 = sadd.s32 %s358, %s359
      %s361 = smul.addr %s360, 8
      %s362 = scalar_lea.vmem %s4, %s361
      %s363 = smul.u32 2, %s22
      %p365 = scmp.eq.s32.totalorder %s24, 0
      // Predicated region
      $region37: #{closed_call.34} parent=35 // pred_check
        %p366 = pneg %p365
      $region38: #{closed_call.34} parent=35 // pred_check_branch
        %368 = sbr.rel (%p366) target = $region40
      $region39: #{closed_call.34} parent=35 // pred_region
        %vm369 = vcmask 523264
        %370 = vst.msk [vmem:[%s362] sm:$0xff] %vm369, 0.0
        %371 = vst.msk [vmem:[%s362 + $0x8] sm:$0xff] %vm369, 0.0
      $region40: #{closed_call.34} parent=35 // pred_fallthru
        _
      %v372 = vld [vmem:[%s324] sm:$0xf]
      %v373 = vld [vmem:[%s324 + $0x4] sm:$0xf]
      %v374 = vld [vmem:[%s362] sm:$0xff]
      %v375 = vld [vmem:[%s362 + $0x8] sm:$0xff]
      %v376 = vld [vmem:[%s333] sm:$0xf]
      %v377 = vld [vmem:[%s333 + $0x4] sm:$0xf]
      %v378 = vld [vmem:[%s333 + $0x8] sm:$0xf]
      %v379 = vld [vmem:[%s333 + $0xc] sm:$0xf]
      %v380 = vld [vmem:[%s333 + $0x10] sm:$0xf]
      %v381 = vld [vmem:[%s333 + $0x14] sm:$0xf]
      %v382 = vld [vmem:[%s333 + $0x18] sm:$0xf]
      %v383 = vld [vmem:[%s333 + $0x1c] sm:$0xf]
      %v386 = vunpack.c.l.b16 %v372
      %v387 = vunpack.c.l.b16 %v373
      %v388 = vpack.c.b16 %v387, %v386
      %v397 = vunpack.c.l.b16 %v376
      %v398 = vunpack.c.l.b16 %v377
      %v399 = vunpack.c.l.b16 %v378
      %v400 = vunpack.c.l.b16 %v379
      %v401 = vunpack.c.l.b16 %v380
      %v402 = vunpack.c.l.b16 %v381
      %v403 = vunpack.c.l.b16 %v382
      %v404 = vunpack.c.l.b16 %v383
      %v405 = vpack.c.b16 %v398, %v397
      %v406 = vpack.c.b16 %v400, %v399
      %v407 = vpack.c.b16 %v402, %v401
      %v408 = vpack.c.b16 %v404, %v403
      %vm413 = vcmask 523264
      %v415 = vsel %vm413, %v388, 0
      %417 = vmatprep.subr.bf16.mxu0 0
      %418 = vmatpush1.bf16.msra.mxu0 %v405
      %419 = vmatprep.subr.bf16.mxu0 0
      %420 = vmatpush1.bf16.msra.mxu0 %v406
      %421 = vmatprep.subr.bf16.mxu0 0
      %422 = vmatpush1.bf16.msra.mxu0 %v407
      %423 = vmatprep.subr.bf16.mxu0 0
      %424 = vmatpush1.bf16.msra.mxu0 %v408
      %425 = vmatprep.subr.bf16.mxu0 0
      %426 = vmatpush1.bf16.msra.mxu0 0
      %427 = vmatprep.subr.bf16.mxu0 0
      %428 = vmatpush1.bf16.msra.mxu0 0
      %429 = vmatprep.subr.bf16.mxu0 0
      %430 = vmatpush1.bf16.msra.mxu0 0
      %431 = vmatprep.subr.bf16.mxu0 0
      %432 = vmatpush1.bf16.msra.mxu0 0
      %433 = vmatprep.subr.bf16.mxu0 0
      %434 = vmatpush1.bf16.msra.mxu0 0
      %435 = vmatprep.subr.bf16.mxu0 0
      %436 = vmatpush1.bf16.msra.mxu0 0
      %437 = vmatprep.subr.bf16.mxu0 0
      %438 = vmatpush1.bf16.msra.mxu0 0
      %439 = vmatprep.subr.bf16.mxu0 0
      %440 = vmatpush1.bf16.msra.mxu0 0
      %441 = vmatprep.subr.bf16.mxu0 0
      %442 = vmatpush1.bf16.msra.mxu0 0
      %443 = vmatprep.subr.bf16.mxu0 0
      %444 = vmatpush1.bf16.msra.mxu0 0
      %445 = vmatprep.subr.bf16.mxu0 0
      %446 = vmatpush1.bf16.msra.mxu0 0
      %447 = vmatprep.subr.bf16.mxu0 0
      %448 = vmatpush1.bf16.msra.mxu0 0
      %449 = vmatprep.mubr.bf16.mxu0 0
      %450 = vmatmul.mubr.bf16.gmra.mrb[0].mxu0 %v415
      %v451 = vpop.f32.mrb[0].mxu0
      %v452 = vadd.f32 0.0, %v451
      %v453 = vpop.f32.mrb[0].mxu0
      %v454 = vpop.f32.mrb[0].mxu0
      %v455 = vadd.f32 0.0, %v454
      %v456 = vpop.f32.mrb[0].mxu0
      %457 = vdwg.mxu0
      %v458 = vadd.f32 %v374, %v452
      %v459 = vadd.f32 %v375, %v455
      %460 = vst.msk [vmem:[%s362] sm:$0xff] %vm413, %v458
      %461 = vst.msk [vmem:[%s362 + $0x8] sm:$0xff] %vm413, %v459
      // Predicated region
      $region41: #{closed_call.34} parent=35 // pred_check
        %p462 = pneg %p365
      $region42: #{closed_call.34} parent=35 // pred_check_branch
        %464 = sbr.rel (%p462) target = $region44
      $region43: #{closed_call.34} parent=35 // pred_region
        %v465 = vld [vmem:[%s362] sm:$0xff]
        %v466 = vld [vmem:[%s362 + $0x8] sm:$0xff]
        %v467 = vld [vmem:[%s337] sm:$0x1]
        %v469 = vlaneseq
        %v470 = vshrl.u32 %v469, 7
        %v471 = vsub.s32 0, %v470
        %v472 = vrot.slane %v467, %v471
        %v474 = vadd.f32 %v465, %v472
        %v475 = vadd.f32 %v466, %v472
        %v476 = vld [vmem:[%s349] sm:$0xff]
        %v477 = vld [vmem:[%s349 + $0x8] sm:$0xff]
        %v478 = vadd.f32 %v476, %v474
        %v479 = vadd.f32 %v477, %v475
        %480 = vst.msk [vmem:[%s362] sm:$0xff] %vm413, %v478
        %481 = vst.msk [vmem:[%s362 + $0x8] sm:$0xff] %vm413, %v479
      $region44: #{closed_call.34} parent=35 // pred_fallthru
        _
      %s482 = smul.u32 2, %s22
      %p483 = scmp.lt.s32.totalorder %s21, 1
      %s484 = scalar_select %p483, %s21, 1
      %p485 = scmp.lt.s32.totalorder %s482, 1
      %s486 = scalar_select %p485, %s482, 1
      %p487 = scmp.lt.s32.totalorder %s23, 0
      %s488 = scalar_select %p487, %s23, 0
      %s489 = sadd.s32 %s488, %s486
      %s490 = smul.addr %s484, 2
      %s491 = sadd.s32 %s489, %s490
      %s492 = smul.addr %s491, 8
      %s493 = scalar_lea.vmem %s4, %s492
      // Predicated region
      $region45: #{closed_call.34} parent=35 // pred_check
        %p494 = pneg %p177
      $region46: #{closed_call.34} parent=35 // pred_check_branch
        %496 = sbr.rel (%p494) target = $region48
      $region47: #{closed_call.34} parent=35 // pred_region
        %s497 = smul.u32 2, %s22
      $region48: #{closed_call.34} parent=35 // pred_fallthru
        _
    $region36: #{closed_call.34} parent=5 // pred_fallthru
      _
    %p498 = scmp.le.s32.totalorder 2, %s10
    // Predicated region
    $region49: #{closed_call.34} parent=5 // pred_check
      %p499 = pneg %p498
    $region50: #{closed_call.34} parent=5 // pred_check_branch
      %501 = sbr.rel (%p499) target = $region52
    $region51: #{closed_call.34} parent=5 // pred_region
      %s502 = ssub.s32 %s10, 2
      // Predicated region
      $region53: #{closed_call.34} parent=51 // pred_check
        %p503 = pneg %p183
      $region54: #{closed_call.34} parent=51 // pred_check_branch
        %505 = sbr.rel (%p503) target = $region56
      $region55: #{closed_call.34} parent=51 // pred_region
        %s506 = smul.u32 2, %s26
        %p507 = scmp.lt.s32.totalorder %s25, 1
        %s508 = scalar_select %p507, %s25, 1
        %p509 = scmp.lt.s32.totalorder %s506, 1
        %s510 = scalar_select %p509, %s506, 1
        %p511 = scmp.lt.s32.totalorder %s27, 0
        %s512 = scalar_select %p511, %s27, 0
        %s513 = sadd.s32 %s512, %s510
        %s514 = smul.addr %s508, 2
        %s515 = sadd.s32 %s513, %s514
        %s516 = smul.addr %s515, 8
        %s517 = scalar_lea.vmem %s4, %s516
      $region56: #{closed_call.34} parent=51 // pred_fallthru
        _
    $region52: #{closed_call.34} parent=5 // pred_fallthru
      _
  $region6: #{closed_call.34} parent=0 // loop_footer
    %s14 = sadd.s32 1, %s10
  $region7: #{closed_call.34} parent=0 // loop_footer_branch
    %9 = sbr.rel target = $region3
  $region8: #{closed_call.34} parent=0 // loop_exit
    _

// kernel: closed_call.33
$region0: #{closed_call.33}
  #allocation0 [shape = 'u32[]', space=smem, size = 0x4, offset = 0x4, fixed_abs, tag = 'smem constant byte address 0x4 - core index']
  #allocation1 [shape = 'u32[144,128]{1,0:T(1,128)}', space=vmem, size = 0x12000, scoped, tag = 'internal scratch']
  #allocation2 [shape = 'f32[16,64]{1,0:T(8,128)}', space=vmem, size = 0x2000, scoped, tag = 'scratch operand']
  %s0 = inlined_call_operand.vmem [shape: bf16[2,16,64], index: 0, kind: input, shape index: {}]
  %s1 = inlined_call_operand.vmem [shape: bf16[2,8,64], index: 1, kind: input, shape index: {}]
  %s2 = inlined_call_operand.vmem [shape: bf16[2,8,64], index: 2, kind: input, shape index: {}]
  %s3 = inlined_call_operand.vmem [shape: bf16[2,16,64], index: 3, kind: output, shape index: {}]
  %s4 = sld [smem:[#allocation0]]
  $region45: #{closed_call.33} parent=0
    _
  %s6 = ssub.s32 1, %s4
  %s7 = scalar_select 0, %s6, %s4
  loop: start=0, step=1, limit=4
  $region2: #{closed_call.33} parent=0 // loop_pre_header
    _
  $region3: #{closed_call.33} parent=0 // loop_header
    %s9 = sphi 0, %s13
    %p10 = scmp.ge.s32.totalorder %s9, 4
    %s16 = sphi 0, %s28
    %s17 = sphi 0, %s24
    %s18 = sphi 0, %s16
    %s19 = sphi 0, %s17
    %s20 = sphi 0, %s18
    %s21 = sphi 0, %s19
    %s33 = sphi 0, %s35
    %s36 = sphi 0, %s33
    %s37 = sphi 0, %s36
    %s53 = sphi 0, %s37
    %s59 = sphi 0, %s61
    %s62 = sphi 0, %s59
    %s63 = sphi 0, %s62
    %s79 = sphi 0, %s63
    %s85 = sphi 0, %s87
    %s88 = sphi 0, %s85
    %s89 = sphi 0, %s88
    %s105 = sphi 0, %s89
    %s113 = sphi 0, %s115
    %s116 = sphi 0, %s113
    %s117 = sphi 0, %s116
    %s133 = sphi 0, %s117
  $region4: #{closed_call.33} parent=0 // loop_header_branch
    %12 = sbr.rel (%p10) target = $region8
  $region5: #{closed_call.33} parent=0 // loop_body
    %s14 = ssub.s32 %s9, 1
    %s15 = ssub.s32 %s9, 2
    %s22 = sadd.s32 1, %s17
    %p23 = scmp.ge.s32.totalorder %s22, 1
    %s24 = scalar_select %p23, 0, %s22
    %s25 = sadd.s32 1, %s16
    %s26 = scalar_select %p23, %s25, %s16
    %p27 = scmp.ge.s32.totalorder %s26, 2
    %s28 = scalar_select %p27, 0, %s26
    %s29 = ssub.s32 %s16, %s28
    %s30 = ssub.s32 %s17, %s24
    %s31 = sor.u32 %s29, %s30
    %p32 = scmp.eq.s32.totalorder %s31, 0
    %s34 = sadd.s32 %s33, 1
    %s35 = scalar_select %p32, %s33, %s34
    %p38 = pneg %p32
    %p39 = scmp.eq.s32.totalorder %s9, 1
    %p40 = por %p38, %p39
    %p41 = scmp.ne.s32.totalorder %s33, %s36
    %p42 = scmp.eq.s32.totalorder %s9, 0
    %p43 = por %p41, %p42
    %p44 = scmp.ne.s32.totalorder %s33, %s36
    %p45 = scmp.eq.s32.totalorder %s14, 1
    %p46 = por %p44, %p45
    %p47 = scmp.ne.s32.totalorder %s36, %s37
    %p48 = scmp.eq.s32.totalorder %s14, 0
    %p49 = por %p47, %p48
    %p50 = scmp.ne.s32.totalorder %s36, %s37
    %p51 = scmp.eq.s32.totalorder %s15, 1
    %p52 = por %p50, %p51
    %p54 = scmp.ne.s32.totalorder %s37, %s53
    %p55 = scmp.eq.s32.totalorder %s15, 0
    %p56 = por %p54, %p55
    %s57 = ssub.s32 %s16, %s28
    %p58 = scmp.eq.s32.totalorder %s57, 0
    %s60 = sadd.s32 %s59, 1
    %s61 = scalar_select %p58, %s59, %s60
    %p64 = pneg %p58
    %p65 = scmp.eq.s32.totalorder %s9, 1
    %p66 = por %p64, %p65
    %p67 = scmp.ne.s32.totalorder %s59, %s62
    %p68 = scmp.eq.s32.totalorder %s9, 0
    %p69 = por %p67, %p68
    %p70 = scmp.ne.s32.totalorder %s59, %s62
    %p71 = scmp.eq.s32.totalorder %s14, 1
    %p72 = por %p70, %p71
    %p73 = scmp.ne.s32.totalorder %s62, %s63
    %p74 = scmp.eq.s32.totalorder %s14, 0
    %p75 = por %p73, %p74
    %p76 = scmp.ne.s32.totalorder %s62, %s63
    %p77 = scmp.eq.s32.totalorder %s15, 1
    %p78 = por %p76, %p77
    %p80 = scmp.ne.s32.totalorder %s63, %s79
    %p81 = scmp.eq.s32.totalorder %s15, 0
    %p82 = por %p80, %p81
    %s83 = ssub.s32 %s16, %s28
    %p84 = scmp.eq.s32.totalorder %s83, 0
    %s86 = sadd.s32 %s85, 1
    %s87 = scalar_select %p84, %s85, %s86
    %p90 = pneg %p84
    %p91 = scmp.eq.s32.totalorder %s9, 1
    %p92 = por %p90, %p91
    %p93 = scmp.ne.s32.totalorder %s85, %s88
    %p94 = scmp.eq.s32.totalorder %s9, 0
    %p95 = por %p93, %p94
    %p96 = scmp.ne.s32.totalorder %s85, %s88
    %p97 = scmp.eq.s32.totalorder %s14, 1
    %p98 = por %p96, %p97
    %p99 = scmp.ne.s32.totalorder %s88, %s89
    %p100 = scmp.eq.s32.totalorder %s14, 0
    %p101 = por %p99, %p100
    %p102 = scmp.ne.s32.totalorder %s88, %s89
    %p103 = scmp.eq.s32.totalorder %s15, 1
    %p104 = por %p102, %p103
    %p106 = scmp.ne.s32.totalorder %s89, %s105
    %p107 = scmp.eq.s32.totalorder %s15, 0
    %p108 = por %p106, %p107
    %s109 = ssub.s32 %s16, %s28
    %s110 = ssub.s32 %s17, %s24
    %s111 = sor.u32 %s109, %s110
    %p112 = scmp.eq.s32.totalorder %s111, 0
    %s114 = sadd.s32 %s113, 1
    %s115 = scalar_select %p112, %s113, %s114
    %p118 = pneg %p112
    %p119 = scmp.eq.s32.totalorder %s9, 1
    %p120 = por %p118, %p119
    %p121 = scmp.ne.s32.totalorder %s113, %s116
    %p122 = scmp.eq.s32.totalorder %s9, 0
    %p123 = por %p121, %p122
    %p124 = scmp.ne.s32.totalorder %s113, %s116
    %p125 = scmp.eq.s32.totalorder %s14, 1
    %p126 = por %p124, %p125
    %p127 = scmp.ne.s32.totalorder %s116, %s117
    %p128 = scmp.eq.s32.totalorder %s14, 0
    %p129 = por %p127, %p128
    %p130 = scmp.ne.s32.totalorder %s116, %s117
    %p131 = scmp.eq.s32.totalorder %s15, 1
    %p132 = por %p130, %p131
    %p134 = scmp.ne.s32.totalorder %s117, %s133
    %p135 = scmp.eq.s32.totalorder %s15, 0
    %p136 = por %p134, %p135
    %p137 = scmp.le.s32.totalorder 1, %s9
    %p138 = scmp.lt.s32.totalorder %s9, 3
    %p139 = pnand %p137, %p138
    %p140 = pneg %p139
    // Predicated region
    $region9: #{closed_call.33} parent=5 // pred_check
      _
    $region10: #{closed_call.33} parent=5 // pred_check_branch
      %142 = sbr.rel (%p139) target = $region12
    $region11: #{closed_call.33} parent=5 // pred_region
      %s143 = ssub.s32 %s9, 1
    $region12: #{closed_call.33} parent=5 // pred_fallthru
      _
    %p144 = scmp.lt.s32.totalorder %s9, 2
    // Predicated region
    $region13: #{closed_call.33} parent=5 // pred_check
      %p145 = pneg %p144
    $region14: #{closed_call.33} parent=5 // pred_check_branch
      %147 = sbr.rel (%p145) target = $region16
    $region15: #{closed_call.33} parent=5 // pred_region
      // Predicated region
      $region17: #{closed_call.33} parent=15 // pred_check
        %p148 = pneg %p43
      $region18: #{closed_call.33} parent=15 // pred_check_branch
        %150 = sbr.rel (%p148) target = $region20
      $region19: #{closed_call.33} parent=15 // pred_region
        %s151 = smul.u32 2, %s17
        %p152 = scmp.lt.s32.totalorder %s16, 1
        %s153 = scalar_select %p152, %s16, 1
        %p154 = scmp.lt.s32.totalorder %s151, 1
        %s155 = scalar_select %p154, %s151, 1
        %s156 = smul.addr %s153, 2
        %s157 = sadd.s32 %s155, %s156
        %s158 = smul.addr %s157, 4
        %s159 = scalar_lea.vmem %s0, %s158
        %s160 = smul.u32 2, %s17
      $region20: #{closed_call.33} parent=15 // pred_fallthru
        _
      // Predicated region
      $region21: #{closed_call.33} parent=15 // pred_check
        %p161 = pneg %p69
      $region22: #{closed_call.33} parent=15 // pred_check_branch
        %163 = sbr.rel (%p161) target = $region24
      $region23: #{closed_call.33} parent=15 // pred_region
        %p164 = scmp.lt.s32.totalorder %s16, 1
        %s165 = scalar_select %p164, %s16, 1
        %s166 = smul.addr %s165, 4
        %s167 = scalar_lea.vmem %s1, %s166
      $region24: #{closed_call.33} parent=15 // pred_fallthru
        _
      // Predicated region
      $region25: #{closed_call.33} parent=15 // pred_check
        %p168 = pneg %p95
      $region26: #{closed_call.33} parent=15 // pred_check_branch
        %170 = sbr.rel (%p168) target = $region28
      $region27: #{closed_call.33} parent=15 // pred_region
        %p171 = scmp.lt.s32.totalorder %s16, 1
        %s172 = scalar_select %p171, %s16, 1
        %s173 = smul.addr %s172, 4
        %s174 = scalar_lea.vmem %s2, %s173
      $region28: #{closed_call.33} parent=15 // pred_fallthru
        _
    $region16: #{closed_call.33} parent=5 // pred_fallthru
      _
    %p175 = scmp.le.s32.totalorder 1, %s9
    %p176 = scmp.lt.s32.totalorder %s9, 3
    %p177 = pnand %p175, %p176
    %p178 = pneg %p177
    // Predicated region
    $region29: #{closed_call.33} parent=5 // pred_check
      _
    $region30: #{closed_call.33} parent=5 // pred_check_branch
      %180 = sbr.rel (%p177) target = $region32
    $region31: #{closed_call.33} parent=5 // pred_region
      %s181 = ssub.s32 %s9, 1
      %s182 = smul.u32 2, %s19
      %p183 = scmp.lt.s32.totalorder %s18, 1
      %s184 = scalar_select %p183, %s18, 1
      %p185 = scmp.lt.s32.totalorder %s182, 1
      %s186 = scalar_select %p185, %s182, 1
      %s187 = smul.addr %s184, 2
      %s188 = sadd.s32 %s186, %s187
      %s189 = smul.addr %s188, 4
      %s190 = scalar_lea.vmem %s0, %s189
      %p191 = pneg %p49
      %p192 = pneg %p46
      %p193 = scmp.lt.s32.totalorder %s18, 1
      %s194 = scalar_select %p193, %s18, 1
      %s195 = smul.addr %s194, 4
      %s196 = scalar_lea.vmem %s1, %s195
      %p197 = pneg %p75
      %p198 = pneg %p72
      %p199 = scmp.lt.s32.totalorder %s18, 1
      %s200 = scalar_select %p199, %s18, 1
      %s201 = smul.addr %s200, 4
      %s202 = scalar_lea.vmem %s2, %s201
      %p203 = pneg %p101
      %p204 = pneg %p98
      %p205 = pneg %p129
      %p206 = pneg %p126
      %s207 = smul.u32 2, %s19
      %p208 = scmp.lt.s32.totalorder %s18, 1
      %s209 = scalar_select %p208, %s18, 1
      %p210 = scmp.lt.s32.totalorder %s207, 1
      %s211 = scalar_select %p210, %s207, 1
      %s212 = smul.addr %s209, 2
      %s213 = sadd.s32 %s211, %s212
      %s214 = smul.addr %s213, 4
      %s215 = scalar_lea.vmem %s3, %s214
      %s216 = smul.u32 2, %s19
      %p217 = scmp.lt.s32.totalorder %s18, 1
      %s218 = scalar_select %p217, %s18, 1
      %p219 = scmp.lt.s32.totalorder %s216, 1
      %s220 = scalar_select %p219, %s216, 1
      %s221 = smul.addr %s218, 2
      %s222 = sadd.s32 %s220, %s221
      %s223 = smul.addr %s222, 4
      %s224 = scalar_lea.vmem %s0, %s223
      %s225 = smul.u32 2, %s19
      %p226 = scmp.lt.s32.totalorder %s18, 1
      %s227 = scalar_select %p226, %s18, 1
      %s228 = smul.addr %s227, 4
      %s229 = scalar_lea.vmem %s1, %s228
      %p230 = scmp.lt.s32.totalorder %s18, 1
      %s231 = scalar_select %p230, %s18, 1
      %s232 = smul.addr %s231, 4
      %s233 = scalar_lea.vmem %s2, %s232
      %s234 = smul.u32 2, %s19
      %p235 = scmp.lt.s32.totalorder %s18, 1
      %s236 = scalar_select %p235, %s18, 1
      %p237 = scmp.lt.s32.totalorder %s234, 1
      %s238 = scalar_select %p237, %s234, 1
      %s239 = smul.addr %s236, 2
      %s240 = sadd.s32 %s238, %s239
      %s241 = smul.addr %s240, 4
      %s242 = scalar_lea.vmem %s3, %s241
      %s243 = smul.u32 2, %s19
      %v245 = vld [vmem:[%s224] sm:$0xf]
      %v246 = vld [vmem:[%s224 + $0x4] sm:$0xf]
      %v247 = vld [vmem:[%s229] sm:$0xf]
      %v248 = vld [vmem:[%s233] sm:$0xf]
      %v251 = vunpack.c.l.b16 %v245
      %v252 = vunpack.c.l.b16 %v246
      %v253 = vpack.c.b16 %v252, %v251
      %vm254 = vcmask 130048
      %v256 = vsel %vm254, %v253, 0
      %v259 = vsel %vm254, %v247, 0
      %261 = vmatprep.subr.bf16.mxu0 0
      %262 = vmatpush1.bf16.xpose.msra.mxu0 %v259
      %263 = vmatprep.subr.bf16.mxu0 0
      %264 = vmatpush1.bf16.xpose.msra.mxu0 0
      %265 = vmatprep.subr.bf16.mxu0 0
      %266 = vmatpush1.bf16.xpose.msra.mxu0 0
      %267 = vmatprep.subr.bf16.mxu0 0
      %268 = vmatpush1.bf16.xpose.msra.mxu0 0
      %269 = vmatprep.subr.bf16.mxu0 0
      %270 = vmatpush1.bf16.xpose.msra.mxu0 0
      %271 = vmatprep.subr.bf16.mxu0 0
      %272 = vmatpush1.bf16.xpose.msra.mxu0 0
      %273 = vmatprep.subr.bf16.mxu0 0
      %274 = vmatpush1.bf16.xpose.msra.mxu0 0
      %275 = vmatprep.subr.bf16.mxu0 0
      %276 = vmatpush1.bf16.xpose.msra.mxu0 0
      %277 = vmatprep.subr.bf16.mxu0 0
      %278 = vmatpush1.bf16.xpose.msra.mxu0 0
      %279 = vmatprep.subr.bf16.mxu0 0
      %280 = vmatpush1.bf16.xpose.msra.mxu0 0
      %281 = vmatprep.subr.bf16.mxu0 0
      %282 = vmatpush1.bf16.xpose.msra.mxu0 0
      %283 = vmatprep.subr.bf16.mxu0 0
      %284 = vmatpush1.bf16.xpose.msra.mxu0 0
      %285 = vmatprep.subr.bf16.mxu0 0
      %286 = vmatpush1.bf16.xpose.msra.mxu0 0
      %287 = vmatprep.subr.bf16.mxu0 0
      %288 = vmatpush1.bf16.xpose.msra.mxu0 0
      %289 = vmatprep.subr.bf16.mxu0 0
      %290 = vmatpush1.bf16.xpose.msra.mxu0 0
      %291 = vmatprep.subr.bf16.mxu0 0
      %292 = vmatpush1.bf16.xpose.msra.mxu0 0
      %293 = vmatprep.mubr.bf16.mxu0 0
      %294 = vmatmul.mubr.bf16.gmra.mrb[0].mxu0 %v256
      %v295 = vpop.f32.mrb[0].mxu0
      %v296 = vadd.f32 0.0, %v295
      %v297 = vpop.f32.mrb[0].mxu0
      %v298 = vpop.f32.mrb[0].mxu0
      %v299 = vadd.f32 0.0, %v298
      %v300 = vpop.f32.mrb[0].mxu0
      %301 = vdwg.mxu0
      %v302 = vmul.f32 %v296, 0.25
      %v303 = vmul.f32 %v299, 0.25
      %vm304 = vcmask 64512
      %v305 = vsel %vm304, %v302, -inf
      %306 = vmax.xlane.f32.xlu0 %v305
      %v307 = vpop.xlane.xlu0 %306
      %v308 = vsel %vm304, %v303, -inf
      %309 = vmax.xlane.f32.xlu0 %v308
      %v310 = vpop.xlane.xlu0 %309
      %v311 = vsub.f32 %v302, %v307
      %v312 = vsub.f32 %v303, %v310
      %v313 = vmul.f32 %v311, 1.442695
      %v314 = vpow.pop %v313
      %v315 = vmul.f32 %v312, 1.442695
      %v316 = vpow.pop %v315
      %v317 = vsel %vm304, %v314, 0.0
      %318 = vadd.xlane.f32.xlu0 %v317
      %v319 = vpop.xlane.xlu0 %318
      %v320 = vsel %vm304, %v316, 0.0
      %321 = vadd.xlane.f32.xlu0 %v320
      %v322 = vpop.xlane.xlu0 %321
      %v323 = vpack.c.bf16 %v316, %v314
      %v325 = vsel %vm304, %v323, 0
      %vm327 = vcmask 1043456
      %v329 = vsel %vm327, %v248, 0
      %331 = vmatprep.subr.bf16.mxu0 0
      %332 = vmatpush1.bf16.msra.mxu0 %v329
      %333 = vmatprep.subr.bf16.mxu0 0
      %334 = vmatpush1.bf16.msra.mxu0 0
      %335 = vmatprep.subr.bf16.mxu0 0
      %336 = vmatpush1.bf16.msra.mxu0 0
      %337 = vmatprep.subr.bf16.mxu0 0
      %338 = vmatpush1.bf16.msra.mxu0 0
      %339 = vmatprep.subr.bf16.mxu0 0
      %340 = vmatpush1.bf16.msra.mxu0 0
      %341 = vmatprep.subr.bf16.mxu0 0
      %342 = vmatpush1.bf16.msra.mxu0 0
      %343 = vmatprep.subr.bf16.mxu0 0
      %344 = vmatpush1.bf16.msra.mxu0 0
      %345 = vmatprep.subr.bf16.mxu0 0
      %346 = vmatpush1.bf16.msra.mxu0 0
      %347 = vmatprep.subr.bf16.mxu0 0
      %348 = vmatpush1.bf16.msra.mxu0 0
      %349 = vmatprep.subr.bf16.mxu0 0
      %350 = vmatpush1.bf16.msra.mxu0 0
      %351 = vmatprep.subr.bf16.mxu0 0
      %352 = vmatpush1.bf16.msra.mxu0 0
      %353 = vmatprep.subr.bf16.mxu0 0
      %354 = vmatpush1.bf16.msra.mxu0 0
      %355 = vmatprep.subr.bf16.mxu0 0
      %356 = vmatpush1.bf16.msra.mxu0 0
      %357 = vmatprep.subr.bf16.mxu0 0
      %358 = vmatpush1.bf16.msra.mxu0 0
      %359 = vmatprep.subr.bf16.mxu0 0
      %360 = vmatpush1.bf16.msra.mxu0 0
      %361 = vmatprep.subr.bf16.mxu0 0
      %362 = vmatpush1.bf16.msra.mxu0 0
      %363 = vmatprep.mubr.bf16.mxu0 0
      %364 = vmatmul.mubr.bf16.gmra.mrb[0].mxu0 %v325
      %v365 = vpop.f32.mrb[0].mxu0
      %v366 = vadd.f32 0.0, %v365
      %v367 = vpop.f32.mrb[0].mxu0
      %v368 = vpop.f32.mrb[0].mxu0
      %v369 = vadd.f32 0.0, %v368
      %v370 = vpop.f32.mrb[0].mxu0
      %371 = vdwg.mxu0
      %v372 = vrcp.pop %v319
      %v373 = vrcp.pop %v322
      %v374 = vmul.f32 %v366, %v372
      %v375 = vmul.f32 %v369, %v373
      %376 = vst.msk [vmem:[#allocation2] sm:$0xff] %vm254, %v374
      %377 = vst.msk [vmem:[#allocation2 + $0x8] sm:$0xff] %vm254, %v375
      %v378 = vld [vmem:[%s224] sm:$0xf]
      %v379 = vld [vmem:[%s224 + $0x4] sm:$0xf]
      %v380 = vld [vmem:[%s229] sm:$0xf]
      %v381 = vld [vmem:[%s233] sm:$0xf]
      %v384 = vunpack.c.l.b16 %v378
      %v385 = vunpack.c.l.b16 %v379
      %v386 = vpack.c.b16 %v385, %v384
      %387 = vrot.lane.b32.xlu0 %v386, 112
      %v388 = vpop.permute.xlu0 %387
      %v390 = vunpack.c.l.b16 %v380
      %v391 = vpack.c.b16 %v390, %v390
      %392 = vrot.lane.b32.xlu0 %v391, 112
      %v393 = vpop.permute.xlu0 %392
      %v395 = vsel %vm254, %v388, 0
      %v398 = vsel %vm254, %v393, 0
      %400 = vmatprep.subr.bf16.mxu0 0
      %401 = vmatpush1.bf16.xpose.msra.mxu0 %v398
      %402 = vmatprep.subr.bf16.mxu0 0
      %403 = vmatpush1.bf16.xpose.msra.mxu0 0
      %404 = vmatprep.subr.bf16.mxu0 0
      %405 = vmatpush1.bf16.xpose.msra.mxu0 0
      %406 = vmatprep.subr.bf16.mxu0 0
      %407 = vmatpush1.bf16.xpose.msra.mxu0 0
      %408 = vmatprep.subr.bf16.mxu0 0
      %409 = vmatpush1.bf16.xpose.msra.mxu0 0
      %410 = vmatprep.subr.bf16.mxu0 0
      %411 = vmatpush1.bf16.xpose.msra.mxu0 0
      %412 = vmatprep.subr.bf16.mxu0 0
      %413 = vmatpush1.bf16.xpose.msra.mxu0 0
      %414 = vmatprep.subr.bf16.mxu0 0
      %415 = vmatpush1.bf16.xpose.msra.mxu0 0
      %416 = vmatprep.subr.bf16.mxu0 0
      %417 = vmatpush1.bf16.xpose.msra.mxu0 0
      %418 = vmatprep.subr.bf16.mxu0 0
      %419 = vmatpush1.bf16.xpose.msra.mxu0 0
      %420 = vmatprep.subr.bf16.mxu0 0
      %421 = vmatpush1.bf16.xpose.msra.mxu0 0
      %422 = vmatprep.subr.bf16.mxu0 0
      %423 = vmatpush1.bf16.xpose.msra.mxu0 0
      %424 = vmatprep.subr.bf16.mxu0 0
      %425 = vmatpush1.bf16.xpose.msra.mxu0 0
      %426 = vmatprep.subr.bf16.mxu0 0
      %427 = vmatpush1.bf16.xpose.msra.mxu0 0
      %428 = vmatprep.subr.bf16.mxu0 0
      %429 = vmatpush1.bf16.xpose.msra.mxu0 0
      %430 = vmatprep.subr.bf16.mxu0 0
      %431 = vmatpush1.bf16.xpose.msra.mxu0 0
      %432 = vmatprep.mubr.bf16.mxu0 0
      %433 = vmatmul.mubr.bf16.gmra.mrb[0].mxu0 %v395
      %v434 = vpop.f32.mrb[0].mxu0
      %v435 = vadd.f32 0.0, %v434
      %v436 = vpop.f32.mrb[0].mxu0
      %v437 = vpop.f32.mrb[0].mxu0
      %v438 = vadd.f32 0.0, %v437
      %v439 = vpop.f32.mrb[0].mxu0
      %440 = vdwg.mxu0
      %v441 = vmul.f32 %v435, 0.25
      %v442 = vmul.f32 %v438, 0.25
      %v443 = vsel %vm304, %v441, -inf
      %444 = vmax.xlane.f32.xlu0 %v443
      %v445 = vpop.xlane.xlu0 %444
      %v446 = vsel %vm304, %v442, -inf
      %447 = vmax.xlane.f32.xlu0 %v446
      %v448 = vpop.xlane.xlu0 %447
      %v449 = vsub.f32 %v441, %v445
      %v450 = vsub.f32 %v442, %v448
      %v451 = vmul.f32 %v449, 1.442695
      %v452 = vpow.pop %v451
      %v453 = vmul.f32 %v450, 1.442695
      %v454 = vpow.pop %v453
      %v455 = vsel %vm304, %v452, 0.0
      %456 = vadd.xlane.f32.xlu0 %v455
      %v457 = vpop.xlane.xlu0 %456
      %v458 = vsel %vm304, %v454, 0.0
      %459 = vadd.xlane.f32.xlu0 %v458
      %v460 = vpop.xlane.xlu0 %459
      %v461 = vpack.c.bf16 %v454, %v452
      %v463 = vunpack.c.l.b16 %v381
      %v464 = vpack.c.b16 %v463, %v463
      %465 = vrot.lane.b32.xlu0 %v464, 112
      %v466 = vpop.permute.xlu0 %465
      %v468 = vsel %vm304, %v461, 0
      %v471 = vsel %vm327, %v466, 0
      %473 = vmatprep.subr.bf16.mxu0 0
      %474 = vmatpush1.bf16.msra.mxu0 %v471
      %475 = vmatprep.subr.bf16.mxu0 0
      %476 = vmatpush1.bf16.msra.mxu0 0
      %477 = vmatprep.subr.bf16.mxu0 0
      %478 = vmatpush1.bf16.msra.mxu0 0
      %479 = vmatprep.subr.bf16.mxu0 0
      %480 = vmatpush1.bf16.msra.mxu0 0
      %481 = vmatprep.subr.bf16.mxu0 0
      %482 = vmatpush1.bf16.msra.mxu0 0
      %483 = vmatprep.subr.bf16.mxu0 0
      %484 = vmatpush1.bf16.msra.mxu0 0
      %485 = vmatprep.subr.bf16.mxu0 0
      %486 = vmatpush1.bf16.msra.mxu0 0
      %487 = vmatprep.subr.bf16.mxu0 0
      %488 = vmatpush1.bf16.msra.mxu0 0
      %489 = vmatprep.subr.bf16.mxu0 0
      %490 = vmatpush1.bf16.msra.mxu0 0
      %491 = vmatprep.subr.bf16.mxu0 0
      %492 = vmatpush1.bf16.msra.mxu0 0
      %493 = vmatprep.subr.bf16.mxu0 0
      %494 = vmatpush1.bf16.msra.mxu0 0
      %495 = vmatprep.subr.bf16.mxu0 0
      %496 = vmatpush1.bf16.msra.mxu0 0
      %497 = vmatprep.subr.bf16.mxu0 0
      %498 = vmatpush1.bf16.msra.mxu0 0
      %499 = vmatprep.subr.bf16.mxu0 0
      %500 = vmatpush1.bf16.msra.mxu0 0
      %501 = vmatprep.subr.bf16.mxu0 0
      %502 = vmatpush1.bf16.msra.mxu0 0
      %503 = vmatprep.subr.bf16.mxu0 0
      %504 = vmatpush1.bf16.msra.mxu0 0
      %505 = vmatprep.mubr.bf16.mxu0 0
      %506 = vmatmul.mubr.bf16.gmra.mrb[0].mxu0 %v468
      %v507 = vpop.f32.mrb[0].mxu0
      %v508 = vadd.f32 0.0, %v507
      %v509 = vpop.f32.mrb[0].mxu0
      %v510 = vpop.f32.mrb[0].mxu0
      %v511 = vadd.f32 0.0, %v510
      %v512 = vpop.f32.mrb[0].mxu0
      %513 = vdwg.mxu0
      %v514 = vrcp.pop %v457
      %v515 = vrcp.pop %v460
      %v516 = vmul.f32 %v508, %v514
      %v517 = vmul.f32 %v511, %v515
      %520 = vrot.lane.b32.xlu0 %v516, 16
      %v521 = vpop.permute.xlu0 %520
      %522 = vrot.lane.b32.xlu0 %v517, 16
      %v523 = vpop.permute.xlu0 %522
      %vm526 = vcmask 261248
      %527 = vst.msk [vmem:[#allocation2] sm:$0xff] %vm526, %v521
      %528 = vst.msk [vmem:[#allocation2 + $0x8] sm:$0xff] %vm526, %v523
      %v529 = vld [vmem:[%s224] sm:$0xf]
      %v530 = vld [vmem:[%s224 + $0x4] sm:$0xf]
      %v531 = vld [vmem:[%s229] sm:$0xf]
      %v532 = vld [vmem:[%s233] sm:$0xf]
      %v535 = vunpack.c.l.b16 %v529
      %v536 = vunpack.c.l.b16 %v530
      %v537 = vpack.c.b16 %v536, %v535
      %538 = vrot.lane.b32.xlu0 %v537, 96
      %v539 = vpop.permute.xlu0 %538
      %v541 = vunpack.c.l.b16 %v531
      %v542 = vpack.c.b16 %v541, %v541
      %543 = vrot.lane.b32.xlu0 %v542, 96
      %v544 = vpop.permute.xlu0 %543
      %v546 = vsel %vm254, %v539, 0
      %v549 = vsel %vm254, %v544, 0
      %551 = vmatprep.subr.bf16.mxu0 0
      %552 = vmatpush1.bf16.xpose.msra.mxu0 %v549
      %553 = vmatprep.subr.bf16.mxu0 0
      %554 = vmatpush1.bf16.xpose.msra.mxu0 0
      %555 = vmatprep.subr.bf16.mxu0 0
      %556 = vmatpush1.bf16.xpose.msra.mxu0 0
      %557 = vmatprep.subr.bf16.mxu0 0
      %558 = vmatpush1.bf16.xpose.msra.mxu0 0
      %559 = vmatprep.subr.bf16.mxu0 0
      %560 = vmatpush1.bf16.xpose.msra.mxu0 0
      %561 = vmatprep.subr.bf16.mxu0 0
      %562 = vmatpush1.bf16.xpose.msra.mxu0 0
      %563 = vmatprep.subr.bf16.mxu0 0
      %564 = vmatpush1.bf16.xpose.msra.mxu0 0
      %565 = vmatprep.subr.bf16.mxu0 0
      %566 = vmatpush1.bf16.xpose.msra.mxu0 0
      %567 = vmatprep.subr.bf16.mxu0 0
      %568 = vmatpush1.bf16.xpose.msra.mxu0 0
      %569 = vmatprep.subr.bf16.mxu0 0
      %570 = vmatpush1.bf16.xpose.msra.mxu0 0
      %571 = vmatprep.subr.bf16.mxu0 0
      %572 = vmatpush1.bf16.xpose.msra.mxu0 0
      %573 = vmatprep.subr.bf16.mxu0 0
      %574 = vmatpush1.bf16.xpose.msra.mxu0 0
      %575 = vmatprep.subr.bf16.mxu0 0
      %576 = vmatpush1.bf16.xpose.msra.mxu0 0
      %577 = vmatprep.subr.bf16.mxu0 0
      %578 = vmatpush1.bf16.xpose.msra.mxu0 0
      %579 = vmatprep.subr.bf16.mxu0 0
      %580 = vmatpush1.bf16.xpose.msra.mxu0 0
      %581 = vmatprep.subr.bf16.mxu0 0
      %582 = vmatpush1.bf16.xpose.msra.mxu0 0
      %583 = vmatprep.mubr.bf16.mxu0 0
      %584 = vmatmul.mubr.bf16.gmra.mrb[0].mxu0 %v546
      %v585 = vpop.f32.mrb[0].mxu0
      %v586 = vadd.f32 0.0, %v585
      %v587 = vpop.f32.mrb[0].mxu0
      %v588 = vpop.f32.mrb[0].mxu0
      %v589 = vadd.f32 0.0, %v588
      %v590 = vpop.f32.mrb[0].mxu0
      %591 = vdwg.mxu0
      %v592 = vmul.f32 %v586, 0.25
      %v593 = vmul.f32 %v589, 0.25
      %v594 = vsel %vm304, %v592, -inf
      %595 = vmax.xlane.f32.xlu0 %v594
      %v596 = vpop.xlane.xlu0 %595
      %v597 = vsel %vm304, %v593, -inf
      %598 = vmax.xlane.f32.xlu0 %v597
      %v599 = vpop.xlane.xlu0 %598
      %v600 = vsub.f32 %v592, %v596
      %v601 = vsub.f32 %v593, %v599
      %v602 = vmul.f32 %v600, 1.442695
      %v603 = vpow.pop %v602
      %v604 = vmul.f32 %v601, 1.442695
      %v605 = vpow.pop %v604
      %v606 = vsel %vm304, %v603, 0.0
      %607 = vadd.xlane.f32.xlu0 %v606
      %v608 = vpop.xlane.xlu0 %607
      %v609 = vsel %vm304, %v605, 0.0
      %610 = vadd.xlane.f32.xlu0 %v609
      %v611 = vpop.xlane.xlu0 %610
      %v612 = vpack.c.bf16 %v605, %v603
      %v614 = vunpack.c.l.b16 %v532
      %v615 = vpack.c.b16 %v614, %v614
      %616 = vrot.lane.b32.xlu0 %v615, 96
      %v617 = vpop.permute.xlu0 %616
      %v619 = vsel %vm304, %v612, 0
      %v622 = vsel %vm327, %v617, 0
      %624 = vmatprep.subr.bf16.mxu0 0
      %625 = vmatpush1.bf16.msra.mxu0 %v622
      %626 = vmatprep.subr.bf16.mxu0 0
      %627 = vmatpush1.bf16.msra.mxu0 0
      %628 = vmatprep.subr.bf16.mxu0 0
      %629 = vmatpush1.bf16.msra.mxu0 0
      %630 = vmatprep.subr.bf16.mxu0 0
      %631 = vmatpush1.bf16.msra.mxu0 0
      %632 = vmatprep.subr.bf16.mxu0 0
      %633 = vmatpush1.bf16.msra.mxu0 0
      %634 = vmatprep.subr.bf16.mxu0 0
      %635 = vmatpush1.bf16.msra.mxu0 0
      %636 = vmatprep.subr.bf16.mxu0 0
      %637 = vmatpush1.bf16.msra.mxu0 0
      %638 = vmatprep.subr.bf16.mxu0 0
      %639 = vmatpush1.bf16.msra.mxu0 0
      %640 = vmatprep.subr.bf16.mxu0 0
      %641 = vmatpush1.bf16.msra.mxu0 0
      %642 = vmatprep.subr.bf16.mxu0 0
      %643 = vmatpush1.bf16.msra.mxu0 0
      %644 = vmatprep.subr.bf16.mxu0 0
      %645 = vmatpush1.bf16.msra.mxu0 0
      %646 = vmatprep.subr.bf16.mxu0 0
      %647 = vmatpush1.bf16.msra.mxu0 0
      %648 = vmatprep.subr.bf16.mxu0 0
      %649 = vmatpush1.bf16.msra.mxu0 0
      %650 = vmatprep.subr.bf16.mxu0 0
      %651 = vmatpush1.bf16.msra.mxu0 0
      %652 = vmatprep.subr.bf16.mxu0 0
      %653 = vmatpush1.bf16.msra.mxu0 0
      %654 = vmatprep.subr.bf16.mxu0 0
      %655 = vmatpush1.bf16.msra.mxu0 0
      %656 = vmatprep.mubr.bf16.mxu0 0
      %657 = vmatmul.mubr.bf16.gmra.mrb[0].mxu0 %v619
      %v658 = vpop.f32.mrb[0].mxu0
      %v659 = vadd.f32 0.0, %v658
      %v660 = vpop.f32.mrb[0].mxu0
      %v661 = vpop.f32.mrb[0].mxu0
      %v662 = vadd.f32 0.0, %v661
      %v663 = vpop.f32.mrb[0].mxu0
      %664 = vdwg.mxu0
      %v665 = vrcp.pop %v608
      %v666 = vrcp.pop %v611
      %v667 = vmul.f32 %v659, %v665
      %v668 = vmul.f32 %v662, %v666
      %671 = vrot.lane.b32.xlu0 %v667, 32
      %v672 = vpop.permute.xlu0 %671
      %673 = vrot.lane.b32.xlu0 %v668, 32
      %v674 = vpop.permute.xlu0 %673
      %vm677 = vcmask 392448
      %678 = vst.msk [vmem:[#allocation2] sm:$0xff] %vm677, %v672
      %679 = vst.msk [vmem:[#allocation2 + $0x8] sm:$0xff] %vm677, %v674
      %v680 = vld [vmem:[%s224] sm:$0xf]
      %v681 = vld [vmem:[%s224 + $0x4] sm:$0xf]
      %v682 = vld [vmem:[%s229] sm:$0xf]
      %v683 = vld [vmem:[%s233] sm:$0xf]
      %v686 = vunpack.c.l.b16 %v680
      %v687 = vunpack.c.l.b16 %v681
      %v688 = vpack.c.b16 %v687, %v686
      %689 = vrot.lane.b32.xlu0 %v688, 80
      %v690 = vpop.permute.xlu0 %689
      %v692 = vunpack.c.l.b16 %v682
      %v693 = vpack.c.b16 %v692, %v692
      %694 = vrot.lane.b32.xlu0 %v693, 80
      %v695 = vpop.permute.xlu0 %694
      %v697 = vsel %vm254, %v690, 0
      %v700 = vsel %vm254, %v695, 0
      %702 = vmatprep.subr.bf16.mxu0 0
      %703 = vmatpush1.bf16.xpose.msra.mxu0 %v700
      %704 = vmatprep.subr.bf16.mxu0 0
      %705 = vmatpush1.bf16.xpose.msra.mxu0 0
      %706 = vmatprep.subr.bf16.mxu0 0
      %707 = vmatpush1.bf16.xpose.msra.mxu0 0
      %708 = vmatprep.subr.bf16.mxu0 0
      %709 = vmatpush1.bf16.xpose.msra.mxu0 0
      %710 = vmatprep.subr.bf16.mxu0 0
      %711 = vmatpush1.bf16.xpose.msra.mxu0 0
      %712 = vmatprep.subr.bf16.mxu0 0
      %713 = vmatpush1.bf16.xpose.msra.mxu0 0
      %714 = vmatprep.subr.bf16.mxu0 0
      %715 = vmatpush1.bf16.xpose.msra.mxu0 0
      %716 = vmatprep.subr.bf16.mxu0 0
      %717 = vmatpush1.bf16.xpose.msra.mxu0 0
      %718 = vmatprep.subr.bf16.mxu0 0
      %719 = vmatpush1.bf16.xpose.msra.mxu0 0
      %720 = vmatprep.subr.bf16.mxu0 0
      %721 = vmatpush1.bf16.xpose.msra.mxu0 0
      %722 = vmatprep.subr.bf16.mxu0 0
      %723 = vmatpush1.bf16.xpose.msra.mxu0 0
      %724 = vmatprep.subr.bf16.mxu0 0
      %725 = vmatpush1.bf16.xpose.msra.mxu0 0
      %726 = vmatprep.subr.bf16.mxu0 0
      %727 = vmatpush1.bf16.xpose.msra.mxu0 0
      %728 = vmatprep.subr.bf16.mxu0 0
      %729 = vmatpush1.bf16.xpose.msra.mxu0 0
      %730 = vmatprep.subr.bf16.mxu0 0
      %731 = vmatpush1.bf16.xpose.msra.mxu0 0
      %732 = vmatprep.subr.bf16.mxu0 0
      %733 = vmatpush1.bf16.xpose.msra.mxu0 0
      %734 = vmatprep.mubr.bf16.mxu0 0
      %735 = vmatmul.mubr.bf16.gmra.mrb[0].mxu0 %v697
      %v736 = vpop.f32.mrb[0].mxu0
      %v737 = vadd.f32 0.0, %v736
      %v738 = vpop.f32.mrb[0].mxu0
      %v739 = vpop.f32.mrb[0].mxu0
      %v740 = vadd.f32 0.0, %v739
      %v741 = vpop.f32.mrb[0].mxu0
      %742 = vdwg.mxu0
      %v743 = vmul.f32 %v737, 0.25
      %v744 = vmul.f32 %v740, 0.25
      %v745 = vsel %vm304, %v743, -inf
      %746 = vmax.xlane.f32.xlu0 %v745
      %v747 = vpop.xlane.xlu0 %746
      %v748 = vsel %vm304, %v744, -inf
      %749 = vmax.xlane.f32.xlu0 %v748
      %v750 = vpop.xlane.xlu0 %749
      %v751 = vsub.f32 %v743, %v747
      %v752 = vsub.f32 %v744, %v750
      %v753 = vmul.f32 %v751, 1.442695
      %v754 = vpow.pop %v753
      %v755 = vmul.f32 %v752, 1.442695
      %v756 = vpow.pop %v755
      %v757 = vsel %vm304, %v754, 0.0
      %758 = vadd.xlane.f32.xlu0 %v757
      %v759 = vpop.xlane.xlu0 %758
      %v760 = vsel %vm304, %v756, 0.0
      %761 = vadd.xlane.f32.xlu0 %v760
      %v762 = vpop.xlane.xlu0 %761
      %v763 = vpack.c.bf16 %v756, %v754
      %v765 = vunpack.c.l.b16 %v683
      %v766 = vpack.c.b16 %v765, %v765
      %767 = vrot.lane.b32.xlu0 %v766, 80
      %v768 = vpop.permute.xlu0 %767
      %v770 = vsel %vm304, %v763, 0
      %v773 = vsel %vm327, %v768, 0
      %775 = vmatprep.subr.bf16.mxu0 0
      %776 = vmatpush1.bf16.msra.mxu0 %v773
      %777 = vmatprep.subr.bf16.mxu0 0
      %778 = vmatpush1.bf16.msra.mxu0 0
      %779 = vmatprep.subr.bf16.mxu0 0
      %780 = vmatpush1.bf16.msra.mxu0 0
      %781 = vmatprep.subr.bf16.mxu0 0
      %782 = vmatpush1.bf16.msra.mxu0 0
      %783 = vmatprep.subr.bf16.mxu0 0
      %784 = vmatpush1.bf16.msra.mxu0 0
      %785 = vmatprep.subr.bf16.mxu0 0
      %786 = vmatpush1.bf16.msra.mxu0 0
      %787 = vmatprep.subr.bf16.mxu0 0
      %788 = vmatpush1.bf16.msra.mxu0 0
      %789 = vmatprep.subr.bf16.mxu0 0
      %790 = vmatpush1.bf16.msra.mxu0 0
      %791 = vmatprep.subr.bf16.mxu0 0
      %792 = vmatpush1.bf16.msra.mxu0 0
      %793 = vmatprep.subr.bf16.mxu0 0
      %794 = vmatpush1.bf16.msra.mxu0 0
      %795 = vmatprep.subr.bf16.mxu0 0
      %796 = vmatpush1.bf16.msra.mxu0 0
      %797 = vmatprep.subr.bf16.mxu0 0
      %798 = vmatpush1.bf16.msra.mxu0 0
      %799 = vmatprep.subr.bf16.mxu0 0
      %800 = vmatpush1.bf16.msra.mxu0 0
      %801 = vmatprep.subr.bf16.mxu0 0
      %802 = vmatpush1.bf16.msra.mxu0 0
      %803 = vmatprep.subr.bf16.mxu0 0
      %804 = vmatpush1.bf16.msra.mxu0 0
      %805 = vmatprep.subr.bf16.mxu0 0
      %806 = vmatpush1.bf16.msra.mxu0 0
      %807 = vmatprep.mubr.bf16.mxu0 0
      %808 = vmatmul.mubr.bf16.gmra.mrb[0].mxu0 %v770
      %v809 = vpop.f32.mrb[0].mxu0
      %v810 = vadd.f32 0.0, %v809
      %v811 = vpop.f32.mrb[0].mxu0
      %v812 = vpop.f32.mrb[0].mxu0
      %v813 = vadd.f32 0.0, %v812
      %v814 = vpop.f32.mrb[0].mxu0
      %815 = vdwg.mxu0
      %v816 = vrcp.pop %v759
      %v817 = vrcp.pop %v762
      %v818 = vmul.f32 %v810, %v816
      %v819 = vmul.f32 %v813, %v817
      %822 = vrot.lane.b32.xlu0 %v818, 48
      %v823 = vpop.permute.xlu0 %822
      %824 = vrot.lane.b32.xlu0 %v819, 48
      %v825 = vpop.permute.xlu0 %824
      %vm828 = vcmask 523648
      %829 = vst.msk [vmem:[#allocation2] sm:$0xff] %vm828, %v823
      %830 = vst.msk [vmem:[#allocation2 + $0x8] sm:$0xff] %vm828, %v825
      %v831 = vld [vmem:[#allocation2] sm:$0xff]
      %v832 = vld [vmem:[#allocation2 + $0x8] sm:$0xff]
      %v833 = vpack.c.bf16 %v832, %v831
      %v835 = vunpack.c.l.b16 %v833
      %v836 = vunpack.c.h.b16 %v833
      %v837 = vpack.c.b16 %v835, %v835
      %v838 = vpack.c.b16 %v836, %v836
      %vm841 = vcmask 519168
      %842 = vst.msk [vmem:[%s242] sm:$0xf] %vm841, %v837
      %843 = vst.msk [vmem:[%s242 + $0x4] sm:$0xf] %vm841, %v838
      %s844 = smul.u32 2, %s19
      %p845 = scmp.lt.s32.totalorder %s18, 1
      %s846 = scalar_select %p845, %s18, 1
      %p847 = scmp.lt.s32.totalorder %s844, 1
      %s848 = scalar_select %p847, %s844, 1
      %s849 = smul.addr %s846, 2
      %s850 = sadd.s32 %s848, %s849
      %s851 = smul.addr %s850, 4
      %s852 = scalar_lea.vmem %s3, %s851
      // Predicated region
      $region33: #{closed_call.33} parent=31 // pred_check
        %p853 = pneg %p126
      $region34: #{closed_call.33} parent=31 // pred_check_branch
        %855 = sbr.rel (%p853) target = $region36
      $region35: #{closed_call.33} parent=31 // pred_region
        %s856 = smul.u32 2, %s19
      $region36: #{closed_call.33} parent=31 // pred_fallthru
        _
    $region32: #{closed_call.33} parent=5 // pred_fallthru
      _
    %p857 = scmp.le.s32.totalorder 2, %s9
    // Predicated region
    $region37: #{closed_call.33} parent=5 // pred_check
      %p858 = pneg %p857
    $region38: #{closed_call.33} parent=5 // pred_check_branch
      %860 = sbr.rel (%p858) target = $region40
    $region39: #{closed_call.33} parent=5 // pred_region
      %s861 = ssub.s32 %s9, 2
      // Predicated region
      $region41: #{closed_call.33} parent=39 // pred_check
        %p862 = pneg %p132
      $region42: #{closed_call.33} parent=39 // pred_check_branch
        %864 = sbr.rel (%p862) target = $region44
      $region43: #{closed_call.33} parent=39 // pred_region
        %s865 = smul.u32 2, %s21
        %p866 = scmp.lt.s32.totalorder %s20, 1
        %s867 = scalar_select %p866, %s20, 1
        %p868 = scmp.lt.s32.totalorder %s865, 1
        %s869 = scalar_select %p868, %s865, 1
        %s870 = smul.addr %s867, 2
        %s871 = sadd.s32 %s869, %s870
        %s872 = smul.addr %s871, 4
        %s873 = scalar_lea.vmem %s3, %s872
      $region44: #{closed_call.33} parent=39 // pred_fallthru
        _
    $region40: #{closed_call.33} parent=5 // pred_fallthru
      _
  $region6: #{closed_call.33} parent=0 // loop_footer
    %s13 = sadd.s32 1, %s9
  $region7: #{closed_call.33} parent=0 // loop_footer_branch
    %8 = sbr.rel target = $region3
  $region8: #{closed_call.33} parent=0 // loop_exit
    _

// kernel: closed_call.35
$region0: #{closed_call.35}
  #allocation0 [shape = 'u32[]', space=smem, size = 0x4, offset = 0x4, fixed_abs, tag = 'smem constant byte address 0x4 - core index']
  #allocation1 [shape = 'u32[144,128]{1,0:T(1,128)}', space=vmem, size = 0x12000, scoped, tag = 'internal scratch']
  #allocation2 [shape = 'bf16[16,64]{1,0:T(16,128)(2,1)}', space=vmem, size = 0x1000, scoped, tag = 'scratch operand']
  %s0 = inlined_call_operand.vmem [shape: f32[2,16,64], index: 0, kind: input, shape index: {}]
  %s1 = inlined_call_operand.vmem [shape: f32[2,1,64], index: 1, kind: input, shape index: {}]
  %s2 = inlined_call_operand.vmem [shape: f32[2,1,64], index: 2, kind: input, shape index: {}]
  %s3 = inlined_call_operand.vmem [shape: bf16[64,256], index: 3, kind: input, shape index: {}]
  %s4 = inlined_call_operand.vmem [shape: f32[1,256], index: 4, kind: input, shape index: {}]
  %s5 = inlined_call_operand.vmem [shape: bf16[2,16,256], index: 5, kind: output, shape index: {}]
  %s6 = sld [smem:[#allocation0]]
  $region57: #{closed_call.35} parent=0
    _
  %s8 = ssub.s32 1, %s6
  %s9 = scalar_select 0, %s8, %s6
  loop: start=0, step=1, limit=4
  $region2: #{closed_call.35} parent=0 // loop_pre_header
    _
  $region3: #{closed_call.35} parent=0 // loop_header
    %s11 = sphi 0, %s15
    %p12 = scmp.ge.s32.totalorder %s11, 4
    %s18 = sphi 0, %s37
    %s19 = sphi 0, %s33
    %s20 = sphi 0, %s29
    %s21 = sphi 0, %s18
    %s22 = sphi 0, %s19
    %s23 = sphi 0, %s20
    %s24 = sphi 0, %s21
    %s25 = sphi 0, %s22
    %s26 = sphi 0, %s23
    %s42 = sphi 0, %s44
    %s45 = sphi 0, %s42
    %s46 = sphi 0, %s45
    %s62 = sphi 0, %s46
    %s68 = sphi 0, %s70
    %s71 = sphi 0, %s68
    %s72 = sphi 0, %s71
    %s88 = sphi 0, %s72
    %s94 = sphi 0, %s96
    %s97 = sphi 0, %s94
    %s98 = sphi 0, %s97
    %s114 = sphi 0, %s98
    %s120 = sphi 0, %s122
    %s123 = sphi 0, %s120
    %s124 = sphi 0, %s123
    %s140 = sphi 0, %s124
    %s146 = sphi 0, %s148
    %s149 = sphi 0, %s146
    %s150 = sphi 0, %s149
    %s166 = sphi 0, %s150
    %s176 = sphi 0, %s178
    %s179 = sphi 0, %s176
    %s180 = sphi 0, %s179
    %s196 = sphi 0, %s180
  $region4: #{closed_call.35} parent=0 // loop_header_branch
    %14 = sbr.rel (%p12) target = $region8
  $region5: #{closed_call.35} parent=0 // loop_body
    %s16 = ssub.s32 %s11, 1
    %s17 = ssub.s32 %s11, 2
    %s27 = sadd.s32 1, %s20
    %p28 = scmp.ge.s32.totalorder %s27, 1
    %s29 = scalar_select %p28, 0, %s27
    %s30 = sadd.s32 1, %s19
    %s31 = scalar_select %p28, %s30, %s19
    %p32 = scmp.ge.s32.totalorder %s31, 1
    %s33 = scalar_select %p32, 0, %s31
    %s34 = sadd.s32 1, %s18
    %s35 = scalar_select %p32, %s34, %s18
    %p36 = scmp.ge.s32.totalorder %s35, 2
    %s37 = scalar_select %p36, 0, %s35
    %s38 = ssub.s32 %s18, %s37
    %s39 = ssub.s32 %s19, %s33
    %s40 = sor.u32 %s38, %s39
    %p41 = scmp.eq.s32.totalorder %s40, 0
    %s43 = sadd.s32 %s42, 1
    %s44 = scalar_select %p41, %s42, %s43
    %p47 = pneg %p41
    %p48 = scmp.eq.s32.totalorder %s11, 1
    %p49 = por %p47, %p48
    %p50 = scmp.ne.s32.totalorder %s42, %s45
    %p51 = scmp.eq.s32.totalorder %s11, 0
    %p52 = por %p50, %p51
    %p53 = scmp.ne.s32.totalorder %s42, %s45
    %p54 = scmp.eq.s32.totalorder %s16, 1
    %p55 = por %p53, %p54
    %p56 = scmp.ne.s32.totalorder %s45, %s46
    %p57 = scmp.eq.s32.totalorder %s16, 0
    %p58 = por %p56, %p57
    %p59 = scmp.ne.s32.totalorder %s45, %s46
    %p60 = scmp.eq.s32.totalorder %s17, 1
    %p61 = por %p59, %p60
    %p63 = scmp.ne.s32.totalorder %s46, %s62
    %p64 = scmp.eq.s32.totalorder %s17, 0
    %p65 = por %p63, %p64
    %s66 = ssub.s32 %s18, %s37
    %p67 = scmp.eq.s32.totalorder %s66, 0
    %s69 = sadd.s32 %s68, 1
    %s70 = scalar_select %p67, %s68, %s69
    %p73 = pneg %p67
    %p74 = scmp.eq.s32.totalorder %s11, 1
    %p75 = por %p73, %p74
    %p76 = scmp.ne.s32.totalorder %s68, %s71
    %p77 = scmp.eq.s32.totalorder %s11, 0
    %p78 = por %p76, %p77
    %p79 = scmp.ne.s32.totalorder %s68, %s71
    %p80 = scmp.eq.s32.totalorder %s16, 1
    %p81 = por %p79, %p80
    %p82 = scmp.ne.s32.totalorder %s71, %s72
    %p83 = scmp.eq.s32.totalorder %s16, 0
    %p84 = por %p82, %p83
    %p85 = scmp.ne.s32.totalorder %s71, %s72
    %p86 = scmp.eq.s32.totalorder %s17, 1
    %p87 = por %p85, %p86
    %p89 = scmp.ne.s32.totalorder %s72, %s88
    %p90 = scmp.eq.s32.totalorder %s17, 0
    %p91 = por %p89, %p90
    %s92 = ssub.s32 %s18, %s37
    %p93 = scmp.eq.s32.totalorder %s92, 0
    %s95 = sadd.s32 %s94, 1
    %s96 = scalar_select %p93, %s94, %s95
    %p99 = pneg %p93
    %p100 = scmp.eq.s32.totalorder %s11, 1
    %p101 = por %p99, %p100
    %p102 = scmp.ne.s32.totalorder %s94, %s97
    %p103 = scmp.eq.s32.totalorder %s11, 0
    %p104 = por %p102, %p103
    %p105 = scmp.ne.s32.totalorder %s94, %s97
    %p106 = scmp.eq.s32.totalorder %s16, 1
    %p107 = por %p105, %p106
    %p108 = scmp.ne.s32.totalorder %s97, %s98
    %p109 = scmp.eq.s32.totalorder %s16, 0
    %p110 = por %p108, %p109
    %p111 = scmp.ne.s32.totalorder %s97, %s98
    %p112 = scmp.eq.s32.totalorder %s17, 1
    %p113 = por %p111, %p112
    %p115 = scmp.ne.s32.totalorder %s98, %s114
    %p116 = scmp.eq.s32.totalorder %s17, 0
    %p117 = por %p115, %p116
    %s118 = ssub.s32 %s20, %s29
    %p119 = scmp.eq.s32.totalorder %s118, 0
    %s121 = sadd.s32 %s120, 1
    %s122 = scalar_select %p119, %s120, %s121
    %p125 = pneg %p119
    %p126 = scmp.eq.s32.totalorder %s11, 1
    %p127 = por %p125, %p126
    %p128 = scmp.ne.s32.totalorder %s120, %s123
    %p129 = scmp.eq.s32.totalorder %s11, 0
    %p130 = por %p128, %p129
    %p131 = scmp.ne.s32.totalorder %s120, %s123
    %p132 = scmp.eq.s32.totalorder %s16, 1
    %p133 = por %p131, %p132
    %p134 = scmp.ne.s32.totalorder %s123, %s124
    %p135 = scmp.eq.s32.totalorder %s16, 0
    %p136 = por %p134, %p135
    %p137 = scmp.ne.s32.totalorder %s123, %s124
    %p138 = scmp.eq.s32.totalorder %s17, 1
    %p139 = por %p137, %p138
    %p141 = scmp.ne.s32.totalorder %s124, %s140
    %p142 = scmp.eq.s32.totalorder %s17, 0
    %p143 = por %p141, %p142
    %s144 = ssub.s32 %s20, %s29
    %p145 = scmp.eq.s32.totalorder %s144, 0
    %s147 = sadd.s32 %s146, 1
    %s148 = scalar_select %p145, %s146, %s147
    %p151 = pneg %p145
    %p152 = scmp.eq.s32.totalorder %s11, 1
    %p153 = por %p151, %p152
    %p154 = scmp.ne.s32.totalorder %s146, %s149
    %p155 = scmp.eq.s32.totalorder %s11, 0
    %p156 = por %p154, %p155
    %p157 = scmp.ne.s32.totalorder %s146, %s149
    %p158 = scmp.eq.s32.totalorder %s16, 1
    %p159 = por %p157, %p158
    %p160 = scmp.ne.s32.totalorder %s149, %s150
    %p161 = scmp.eq.s32.totalorder %s16, 0
    %p162 = por %p160, %p161
    %p163 = scmp.ne.s32.totalorder %s149, %s150
    %p164 = scmp.eq.s32.totalorder %s17, 1
    %p165 = por %p163, %p164
    %p167 = scmp.ne.s32.totalorder %s150, %s166
    %p168 = scmp.eq.s32.totalorder %s17, 0
    %p169 = por %p167, %p168
    %s170 = ssub.s32 %s18, %s37
    %s171 = ssub.s32 %s19, %s33
    %s172 = sor.u32 %s170, %s171
    %s173 = ssub.s32 %s20, %s29
    %s174 = sor.u32 %s172, %s173
    %p175 = scmp.eq.s32.totalorder %s174, 0
    %s177 = sadd.s32 %s176, 1
    %s178 = scalar_select %p175, %s176, %s177
    %p181 = pneg %p175
    %p182 = scmp.eq.s32.totalorder %s11, 1
    %p183 = por %p181, %p182
    %p184 = scmp.ne.s32.totalorder %s176, %s179
    %p185 = scmp.eq.s32.totalorder %s11, 0
    %p186 = por %p184, %p185
    %p187 = scmp.ne.s32.totalorder %s176, %s179
    %p188 = scmp.eq.s32.totalorder %s16, 1
    %p189 = por %p187, %p188
    %p190 = scmp.ne.s32.totalorder %s179, %s180
    %p191 = scmp.eq.s32.totalorder %s16, 0
    %p192 = por %p190, %p191
    %p193 = scmp.ne.s32.totalorder %s179, %s180
    %p194 = scmp.eq.s32.totalorder %s17, 1
    %p195 = por %p193, %p194
    %p197 = scmp.ne.s32.totalorder %s180, %s196
    %p198 = scmp.eq.s32.totalorder %s17, 0
    %p199 = por %p197, %p198
    %p200 = scmp.le.s32.totalorder 1, %s11
    %p201 = scmp.lt.s32.totalorder %s11, 3
    %p202 = pnand %p200, %p201
    %p203 = pneg %p202
    // Predicated region
    $region9: #{closed_call.35} parent=5 // pred_check
      _
    $region10: #{closed_call.35} parent=5 // pred_check_branch
      %205 = sbr.rel (%p202) target = $region12
    $region11: #{closed_call.35} parent=5 // pred_region
      %s206 = ssub.s32 %s11, 1
      // Predicated region
      $region13: #{closed_call.35} parent=11 // pred_check
        %p207 = pneg %p136
      $region14: #{closed_call.35} parent=11 // pred_check_branch
        %209 = sbr.rel (%p207) target = $region16
      $region15: #{closed_call.35} parent=11 // pred_region
        %s210 = smul.u32 2, %s23
        %p211 = scmp.lt.s32.totalorder %s210, 1
        %s212 = scalar_select %p211, %s210, 1
        %s213 = smul.addr %s212, 4
        %s214 = scalar_lea.vmem %s3, %s213
        %s215 = smul.u32 2, %s23
      $region16: #{closed_call.35} parent=11 // pred_fallthru
        _
      // Predicated region
      $region17: #{closed_call.35} parent=11 // pred_check
        %p216 = pneg %p162
      $region18: #{closed_call.35} parent=11 // pred_check_branch
        %218 = sbr.rel (%p216) target = $region20
      $region19: #{closed_call.35} parent=11 // pred_region
        %s219 = smul.u32 2, %s23
        %p220 = scmp.lt.s32.totalorder %s219, 1
        %s221 = scalar_select %p220, %s219, 1
        %s222 = scalar_lea.vmem %s4, %s221
        %s223 = smul.u32 2, %s23
      $region20: #{closed_call.35} parent=11 // pred_fallthru
        _
    $region12: #{closed_call.35} parent=5 // pred_fallthru
      _
    %p224 = scmp.lt.s32.totalorder %s11, 2
    // Predicated region
    $region21: #{closed_call.35} parent=5 // pred_check
      %p225 = pneg %p224
    $region22: #{closed_call.35} parent=5 // pred_check_branch
      %227 = sbr.rel (%p225) target = $region24
    $region23: #{closed_call.35} parent=5 // pred_region
      // Predicated region
      $region25: #{closed_call.35} parent=23 // pred_check
        %p228 = pneg %p52
      $region26: #{closed_call.35} parent=23 // pred_check_branch
        %230 = sbr.rel (%p228) target = $region28
      $region27: #{closed_call.35} parent=23 // pred_region
        %s231 = smul.u32 2, %s19
        %p232 = scmp.lt.s32.totalorder %s18, 1
        %s233 = scalar_select %p232, %s18, 1
        %p234 = scmp.lt.s32.totalorder %s231, 1
        %s235 = scalar_select %p234, %s231, 1
        %s236 = smul.addr %s233, 2
        %s237 = sadd.s32 %s235, %s236
        %s238 = smul.addr %s237, 8
        %s239 = scalar_lea.vmem %s0, %s238
        %s240 = smul.u32 2, %s19
      $region28: #{closed_call.35} parent=23 // pred_fallthru
        _
      // Predicated region
      $region29: #{closed_call.35} parent=23 // pred_check
        %p241 = pneg %p78
      $region30: #{closed_call.35} parent=23 // pred_check_branch
        %243 = sbr.rel (%p241) target = $region32
      $region31: #{closed_call.35} parent=23 // pred_region
        %p244 = scmp.lt.s32.totalorder %s18, 1
        %s245 = scalar_select %p244, %s18, 1
        %s246 = scalar_lea.vmem %s1, %s245
      $region32: #{closed_call.35} parent=23 // pred_fallthru
        _
      // Predicated region
      $region33: #{closed_call.35} parent=23 // pred_check
        %p247 = pneg %p104
      $region34: #{closed_call.35} parent=23 // pred_check_branch
        %249 = sbr.rel (%p247) target = $region36
      $region35: #{closed_call.35} parent=23 // pred_region
        %p250 = scmp.lt.s32.totalorder %s18, 1
        %s251 = scalar_select %p250, %s18, 1
        %s252 = scalar_lea.vmem %s2, %s251
      $region36: #{closed_call.35} parent=23 // pred_fallthru
        _
    $region24: #{closed_call.35} parent=5 // pred_fallthru
      _
    %p253 = scmp.le.s32.totalorder 1, %s11
    %p254 = scmp.lt.s32.totalorder %s11, 3
    %p255 = pnand %p253, %p254
    %p256 = pneg %p255
    // Predicated region
    $region37: #{closed_call.35} parent=5 // pred_check
      _
    $region38: #{closed_call.35} parent=5 // pred_check_branch
      %258 = sbr.rel (%p255) target = $region40
    $region39: #{closed_call.35} parent=5 // pred_region
      %s259 = ssub.s32 %s11, 1
      %s260 = smul.u32 2, %s22
      %p261 = scmp.lt.s32.totalorder %s21, 1
      %s262 = scalar_select %p261, %s21, 1
      %p263 = scmp.lt.s32.totalorder %s260, 1
      %s264 = scalar_select %p263, %s260, 1
      %s265 = smul.addr %s262, 2
      %s266 = sadd.s32 %s264, %s265
      %s267 = smul.addr %s266, 8
      %s268 = scalar_lea.vmem %s0, %s267
      %p269 = pneg %p58
      %p270 = pneg %p55
      %p271 = scmp.lt.s32.totalorder %s21, 1
      %s272 = scalar_select %p271, %s21, 1
      %s273 = scalar_lea.vmem %s1, %s272
      %p274 = pneg %p84
      %p275 = pneg %p81
      %p276 = scmp.lt.s32.totalorder %s21, 1
      %s277 = scalar_select %p276, %s21, 1
      %s278 = scalar_lea.vmem %s2, %s277
      %p279 = pneg %p110
      %p280 = pneg %p107
      %s281 = smul.u32 2, %s23
      %p282 = scmp.lt.s32.totalorder %s281, 1
      %s283 = scalar_select %p282, %s281, 1
      %s284 = smul.addr %s283, 4
      %s285 = scalar_lea.vmem %s3, %s284
      %p286 = pneg %p136
      %p287 = pneg %p133
      %s288 = smul.u32 2, %s23
      %p289 = scmp.lt.s32.totalorder %s288, 1
      %s290 = scalar_select %p289, %s288, 1
      %s291 = scalar_lea.vmem %s4, %s290
      %p292 = pneg %p162
      %p293 = pneg %p159
      %p294 = pneg %p192
      %p295 = pneg %p189
      %s296 = smul.u32 2, %s22
      %s297 = smul.u32 2, %s23
      %p298 = scmp.lt.s32.totalorder %s21, 1
      %s299 = scalar_select %p298, %s21, 1
      %p300 = scmp.lt.s32.totalorder %s296, 1
      %s301 = scalar_select %p300, %s296, 1
      %p302 = scmp.lt.s32.totalorder %s297, 1
      %s303 = scalar_select %p302, %s297, 1
      %s304 = smul.addr %s301, 2
      %s305 = sadd.s32 %s303, %s304
      %s306 = smul.addr %s299, 4
      %s307 = sadd.s32 %s305, %s306
      %s308 = smul.addr %s307, 4
      %s309 = scalar_lea.vmem %s5, %s308
      %s310 = smul.u32 2, %s22
      %p311 = scmp.lt.s32.totalorder %s21, 1
      %s312 = scalar_select %p311, %s21, 1
      %p313 = scmp.lt.s32.totalorder %s310, 1
      %s314 = scalar_select %p313, %s310, 1
      %s315 = smul.addr %s312, 2
      %s316 = sadd.s32 %s314, %s315
      %s317 = smul.addr %s316, 8
      %s318 = scalar_lea.vmem %s0, %s317
      %s319 = smul.u32 2, %s22
      %p320 = scmp.lt.s32.totalorder %s21, 1
      %s321 = scalar_select %p320, %s21, 1
      %s322 = scalar_lea.vmem %s1, %s321
      %p323 = scmp.lt.s32.totalorder %s21, 1
      %s324 = scalar_select %p323, %s21, 1
      %s325 = scalar_lea.vmem %s2, %s324
      %s326 = smul.u32 2, %s23
      %p327 = scmp.lt.s32.totalorder %s326, 1
      %s328 = scalar_select %p327, %s326, 1
      %s329 = smul.addr %s328, 4
      %s330 = scalar_lea.vmem %s3, %s329
      %s331 = smul.u32 2, %s23
      %s332 = smul.u32 2, %s23
      %p333 = scmp.lt.s32.totalorder %s332, 1
      %s334 = scalar_select %p333, %s332, 1
      %s335 = scalar_lea.vmem %s4, %s334
      %s336 = smul.u32 2, %s23
      %s337 = smul.u32 2, %s22
      %s338 = smul.u32 2, %s23
      %p339 = scmp.lt.s32.totalorder %s21, 1
      %s340 = scalar_select %p339, %s21, 1
      %p341 = scmp.lt.s32.totalorder %s337, 1
      %s342 = scalar_select %p341, %s337, 1
      %p343 = scmp.lt.s32.totalorder %s338, 1
      %s344 = scalar_select %p343, %s338, 1
      %s345 = smul.addr %s342, 2
      %s346 = sadd.s32 %s344, %s345
      %s347 = smul.addr %s340, 4
      %s348 = sadd.s32 %s346, %s347
      %s349 = smul.addr %s348, 4
      %s350 = scalar_lea.vmem %s5, %s349
      %s351 = smul.u32 2, %s22
      %s352 = smul.u32 2, %s23
      %p354 = scmp.eq.s32.totalorder %s23, 0
      // Predicated region
      $region41: #{closed_call.35} parent=39 // pred_check
        %p355 = pneg %p354
      $region42: #{closed_call.35} parent=39 // pred_check_branch
        %357 = sbr.rel (%p355) target = $region44
      $region43: #{closed_call.35} parent=39 // pred_region
        %v358 = vld [vmem:[%s318] sm:$0xff]
        %v359 = vld [vmem:[%s318 + $0x8] sm:$0xff]
        %vm360 = vcmask 523264
        %v361 = vsel %vm360, %v358, 0.0
        %362 = vadd.xlane.f32.xlu0 %v361
        %v363 = vpop.xlane.xlu0 %362
        %v364 = vsel %vm360, %v359, 0.0
        %365 = vadd.xlane.f32.xlu0 %v364
        %v366 = vpop.xlane.xlu0 %365
        %v367 = vrcp.pop 64.0
        %v368 = vmul.f32 %v363, %v367
        %v369 = vmul.f32 %v366, %v367
        %v370 = vsub.f32 %v358, %v368
        %v371 = vsub.f32 %v359, %v369
        %v372 = vmul.f32 %v370, %v370
        %v373 = vmul.f32 %v371, %v371
        %v374 = vsel %vm360, %v372, 0.0
        %375 = vadd.xlane.f32.xlu0 %v374
        %v376 = vpop.xlane.xlu0 %375
        %v377 = vsel %vm360, %v373, 0.0
        %378 = vadd.xlane.f32.xlu0 %v377
        %v379 = vpop.xlane.xlu0 %378
        %v380 = vmul.f32 %v376, %v367
        %v381 = vmul.f32 %v379, %v367
        %v382 = vadd.f32 %v380, 1e-06
        %v383 = vadd.f32 %v381, 1e-06
        %v384 = vrsqrt.pop %v382
        %v385 = vrsqrt.pop %v383
        %v386 = vmul.f32 %v370, %v384
        %v387 = vmul.f32 %v371, %v385
        %v388 = vld [vmem:[%s325] sm:$0x1]
        %v389 = vadd.f32 %v388, 1.0
        %v391 = vlaneseq
        %v392 = vshrl.u32 %v391, 7
        %v393 = vsub.s32 0, %v392
        %v394 = vrot.slane %v389, %v393
        %v396 = vmul.f32 %v386, %v394
        %v397 = vmul.f32 %v387, %v394
        %v398 = vld [vmem:[%s322] sm:$0x1]
        %v400 = vlaneseq
        %v401 = vshrl.u32 %v400, 7
        %v402 = vsub.s32 0, %v401
        %v403 = vrot.slane %v398, %v402
        %v405 = vadd.f32 %v396, %v403
        %v406 = vadd.f32 %v397, %v403
        %v407 = vpack.c.bf16 %v406, %v405
        %408 = vst.msk [vmem:[#allocation2] sm:$0xff] %vm360, %v407
      $region44: #{closed_call.35} parent=39 // pred_fallthru
        _
      %v409 = vld [vmem:[#allocation2] sm:$0xff]
      %v410 = vld [vmem:[%s330] sm:$0xff]
      %v411 = vld [vmem:[%s330 + $0x8] sm:$0xff]
      %v412 = vld [vmem:[%s330 + $0x10] sm:$0xff]
      %v413 = vld [vmem:[%s330 + $0x18] sm:$0xff]
      %v414 = vld [vmem:[%s330 + $0x20] sm:$0xff]
      %v415 = vld [vmem:[%s330 + $0x28] sm:$0xff]
      %v416 = vld [vmem:[%s330 + $0x30] sm:$0xff]
      %v417 = vld [vmem:[%s330 + $0x38] sm:$0xff]
      %v418 = vld [vmem:[%s335] sm:$0x3]
      %v420 = vlaneseq
      %v421 = vshrl.u32 %v420, 7
      %v422 = vsub.s32 0, %v421
      %v423 = vrot.slane %v418, %v422
      %v424 = vlaneseq
      %v425 = vshrl.u32 %v424, 7
      %v426 = vsub.s32 1, %v425
      %v427 = vrot.slane %v418, %v426
      %v438 = vunpack.c.l.b16 %v410
      %v439 = vunpack.c.h.b16 %v410
      %v440 = vunpack.c.l.b16 %v411
      %v441 = vunpack.c.h.b16 %v411
      %v442 = vunpack.c.l.b16 %v412
      %v443 = vunpack.c.h.b16 %v412
      %v444 = vunpack.c.l.b16 %v413
      %v445 = vunpack.c.h.b16 %v413
      %v446 = vunpack.c.l.b16 %v414
      %v447 = vunpack.c.h.b16 %v414
      %v448 = vunpack.c.l.b16 %v415
      %v449 = vunpack.c.h.b16 %v415
      %v450 = vunpack.c.l.b16 %v416
      %v451 = vunpack.c.h.b16 %v416
      %v452 = vunpack.c.l.b16 %v417
      %v453 = vunpack.c.h.b16 %v417
      %v454 = vpack.c.b16 %v440, %v438
      %v455 = vpack.c.b16 %v441, %v439
      %v456 = vpack.c.b16 %v444, %v442
      %v457 = vpack.c.b16 %v445, %v443
      %v458 = vpack.c.b16 %v448, %v446
      %v459 = vpack.c.b16 %v449, %v447
      %v460 = vpack.c.b16 %v452, %v450
      %v461 = vpack.c.b16 %v453, %v451
      %vm470 = vcmask 523264
      %v472 = vsel %vm470, %v409, 0
      %474 = vmatprep.subr.bf16.mxu0 %v455
      %475 = vmatpush1.bf16.msra.mxu0 %v454
      %476 = vmatprep.subr.bf16.mxu0 %v457
      %477 = vmatpush1.bf16.msra.mxu0 %v456
      %478 = vmatprep.subr.bf16.mxu0 %v459
      %479 = vmatpush1.bf16.msra.mxu0 %v458
      %480 = vmatprep.subr.bf16.mxu0 %v461
      %481 = vmatpush1.bf16.msra.mxu0 %v460
      %482 = vmatprep.subr.bf16.mxu0 0
      %483 = vmatpush1.bf16.msra.mxu0 0
      %484 = vmatprep.subr.bf16.mxu0 0
      %485 = vmatpush1.bf16.msra.mxu0 0
      %486 = vmatprep.subr.bf16.mxu0 0
      %487 = vmatpush1.bf16.msra.mxu0 0
      %488 = vmatprep.subr.bf16.mxu0 0
      %489 = vmatpush1.bf16.msra.mxu0 0
      %490 = vmatprep.subr.bf16.mxu0 0
      %491 = vmatpush1.bf16.msra.mxu0 0
      %492 = vmatprep.subr.bf16.mxu0 0
      %493 = vmatpush1.bf16.msra.mxu0 0
      %494 = vmatprep.subr.bf16.mxu0 0
      %495 = vmatpush1.bf16.msra.mxu0 0
      %496 = vmatprep.subr.bf16.mxu0 0
      %497 = vmatpush1.bf16.msra.mxu0 0
      %498 = vmatprep.subr.bf16.mxu0 0
      %499 = vmatpush1.bf16.msra.mxu0 0
      %500 = vmatprep.subr.bf16.mxu0 0
      %501 = vmatpush1.bf16.msra.mxu0 0
      %502 = vmatprep.subr.bf16.mxu0 0
      %503 = vmatpush1.bf16.msra.mxu0 0
      %504 = vmatprep.subr.bf16.mxu0 0
      %505 = vmatpush1.bf16.msra.mxu0 0
      %506 = vmatprep.mubr.bf16.mxu0 0
      %507 = vmatmul.mubr.bf16.gmra.mrb[0].mxu0 %v472
      %v508 = vpop.f32.mrb[0].mxu0
      %v509 = vadd.f32 %v423, %v508
      %v510 = vpop.f32.mrb[0].mxu0
      %v511 = vadd.f32 %v427, %v510
      %v512 = vpop.f32.mrb[0].mxu0
      %v513 = vadd.f32 %v423, %v512
      %v514 = vpop.f32.mrb[0].mxu0
      %v515 = vadd.f32 %v427, %v514
      %516 = vdwg.mxu0
      %v517 = vmul.f32 %v509, 0.5
      %v518 = vmul.f32 %v511, 0.5
      %v519 = vmul.f32 %v513, 0.5
      %v520 = vmul.f32 %v515, 0.5
      %v521 = vmul.f32 %v509, 0.044715
      %v522 = vmul.f32 %v511, 0.044715
      %v523 = vmul.f32 %v513, 0.044715
      %v524 = vmul.f32 %v515, 0.044715
      %v525 = vmul.f32 %v521, %v509
      %v526 = vmul.f32 %v522, %v511
      %v527 = vmul.f32 %v523, %v513
      %v528 = vmul.f32 %v524, %v515
      %v529 = vmul.f32 %v525, %v509
      %v530 = vmul.f32 %v526, %v511
      %v531 = vmul.f32 %v527, %v513
      %v532 = vmul.f32 %v528, %v515
      %v533 = vadd.f32 %v509, %v529
      %v534 = vadd.f32 %v511, %v530
      %v535 = vadd.f32 %v513, %v531
      %v536 = vadd.f32 %v515, %v532
      %v537 = vmul.f32 %v533, 0.7978846
      %v538 = vmul.f32 %v534, 0.7978846
      %v539 = vmul.f32 %v535, 0.7978846
      %v540 = vmul.f32 %v536, 0.7978846
      %v541 = vtanh.pop %v537
      %v542 = vtanh.pop %v538
      %v543 = vtanh.pop %v539
      %v544 = vtanh.pop %v540
      %v545 = vadd.f32 %v541, 1.0
      %v546 = vadd.f32 %v542, 1.0
      %v547 = vadd.f32 %v543, 1.0
      %v548 = vadd.f32 %v544, 1.0
      %v549 = vmul.f32 %v517, %v545
      %v550 = vmul.f32 %v518, %v546
      %v551 = vmul.f32 %v519, %v547
      %v552 = vmul.f32 %v520, %v548
      %v553 = vpack.c.bf16 %v551, %v549
      %v554 = vpack.c.bf16 %v552, %v550
      %v557 = vunpack.c.l.b16 %v553
      %v558 = vunpack.c.l.b16 %v554
      %v559 = vunpack.c.h.b16 %v553
      %v560 = vunpack.c.h.b16 %v554
      %v561 = vpack.c.b16 %v558, %v557
      %v562 = vpack.c.b16 %v560, %v559
      %565 = vst [vmem:[%s350] sm:$0xff] %v561
      %566 = vst [vmem:[%s350 + $0x8] sm:$0xff] %v562
      %s567 = smul.u32 2, %s22
      %s568 = smul.u32 2, %s23
      %p569 = scmp.lt.s32.totalorder %s21, 1
      %s570 = scalar_select %p569, %s21, 1
      %p571 = scmp.lt.s32.totalorder %s567, 1
      %s572 = scalar_select %p571, %s567, 1
      %p573 = scmp.lt.s32.totalorder %s568, 1
      %s574 = scalar_select %p573, %s568, 1
      %s575 = smul.addr %s572, 2
      %s576 = sadd.s32 %s574, %s575
      %s577 = smul.addr %s570, 4
      %s578 = sadd.s32 %s576, %s577
      %s579 = smul.addr %s578, 4
      %s580 = scalar_lea.vmem %s5, %s579
      // Predicated region
      $region45: #{closed_call.35} parent=39 // pred_check
        %p581 = pneg %p189
      $region46: #{closed_call.35} parent=39 // pred_check_branch
        %583 = sbr.rel (%p581) target = $region48
      $region47: #{closed_call.35} parent=39 // pred_region
        %s584 = smul.u32 2, %s22
        %s585 = smul.u32 2, %s23
      $region48: #{closed_call.35} parent=39 // pred_fallthru
        _
    $region40: #{closed_call.35} parent=5 // pred_fallthru
      _
    %p586 = scmp.le.s32.totalorder 2, %s11
    // Predicated region
    $region49: #{closed_call.35} parent=5 // pred_check
      %p587 = pneg %p586
    $region50: #{closed_call.35} parent=5 // pred_check_branch
      %589 = sbr.rel (%p587) target = $region52
    $region51: #{closed_call.35} parent=5 // pred_region
      %s590 = ssub.s32 %s11, 2
      // Predicated region
      $region53: #{closed_call.35} parent=51 // pred_check
        %p591 = pneg %p195
      $region54: #{closed_call.35} parent=51 // pred_check_branch
        %593 = sbr.rel (%p591) target = $region56
      $region55: #{closed_call.35} parent=51 // pred_region
        %s594 = smul.u32 2, %s25
        %s595 = smul.u32 2, %s26
        %p596 = scmp.lt.s32.totalorder %s24, 1
        %s597 = scalar_select %p596, %s24, 1
        %p598 = scmp.lt.s32.totalorder %s594, 1
        %s599 = scalar_select %p598, %s594, 1
        %p600 = scmp.lt.s32.totalorder %s595, 1
        %s601 = scalar_select %p600, %s595, 1
        %s602 = smul.addr %s599, 2
        %s603 = sadd.s32 %s601, %s602
        %s604 = smul.addr %s597, 4
        %s605 = sadd.s32 %s603, %s604
        %s606 = smul.addr %s605, 4
        %s607 = scalar_lea.vmem %s5, %s606
      $region56: #{closed_call.35} parent=51 // pred_fallthru
        _
    $region52: #{closed_call.35} parent=5 // pred_fallthru
      _
  $region6: #{closed_call.35} parent=0 // loop_footer
    %s15 = sadd.s32 1, %s11
  $region7: #{closed_call.35} parent=0 // loop_footer_branch
    %10 = sbr.rel target = $region3
  $region8: #{closed_call.35} parent=0 // loop_exit
    _

// kernel: closed_call.36
$region0: #{closed_call.36}
  #allocation0 [shape = 'u32[]', space=smem, size = 0x4, offset = 0x4, fixed_abs, tag = 'smem constant byte address 0x4 - core index']
  #allocation1 [shape = 'u32[144,128]{1,0:T(1,128)}', space=vmem, size = 0x12000, scoped, tag = 'internal scratch']
  %s0 = inlined_call_operand.vmem [shape: bf16[2,16,256], index: 0, kind: input, shape index: {}]
  %s1 = inlined_call_operand.vmem [shape: bf16[256,64], index: 1, kind: input, shape index: {}]
  %s2 = inlined_call_operand.vmem [shape: f32[1,64], index: 2, kind: input, shape index: {}]
  %s3 = inlined_call_operand.vmem [shape: f32[2,16,64], index: 3, kind: input, shape index: {}]
  %s4 = inlined_call_operand.vmem [shape: f32[2,1,64], index: 4, kind: input, shape index: {}]
  %s5 = inlined_call_operand.vmem [shape: f32[2,16,64], index: 5, kind: output, shape index: {}]
  %s6 = sld [smem:[#allocation0]]
  $region61: #{closed_call.36} parent=0
    _
  %s8 = ssub.s32 1, %s6
  %s9 = scalar_select 0, %s8, %s6
  loop: start=0, step=1, limit=4
  $region2: #{closed_call.36} parent=0 // loop_pre_header
    _
  $region3: #{closed_call.36} parent=0 // loop_header
    %s11 = sphi 0, %s15
    %p12 = scmp.ge.s32.totalorder %s11, 4
    %s18 = sphi 0, %s44
    %s19 = sphi 0, %s40
    %s20 = sphi 0, %s36
    %s21 = sphi 0, %s32
    %s22 = sphi 0, %s18
    %s23 = sphi 0, %s19
    %s24 = sphi 0, %s20
    %s25 = sphi 0, %s21
    %s26 = sphi 0, %s22
    %s27 = sphi 0, %s23
    %s28 = sphi 0, %s24
    %s29 = sphi 0, %s25
    %s51 = sphi 0, %s53
    %s54 = sphi 0, %s51
    %s55 = sphi 0, %s54
    %s71 = sphi 0, %s55
    %s79 = sphi 0, %s81
    %s82 = sphi 0, %s79
    %s83 = sphi 0, %s82
    %s99 = sphi 0, %s83
    %s105 = sphi 0, %s107
    %s108 = sphi 0, %s105
    %s109 = sphi 0, %s108
    %s125 = sphi 0, %s109
    %s135 = sphi 0, %s137
    %s138 = sphi 0, %s135
    %s139 = sphi 0, %s138
    %s155 = sphi 0, %s139
    %s163 = sphi 0, %s165
    %s166 = sphi 0, %s163
    %s167 = sphi 0, %s166
    %s183 = sphi 0, %s167
    %s193 = sphi 0, %s195
    %s196 = sphi 0, %s193
    %s197 = sphi 0, %s196
    %s213 = sphi 0, %s197
  $region4: #{closed_call.36} parent=0 // loop_header_branch
    %14 = sbr.rel (%p12) target = $region8
  $region5: #{closed_call.36} parent=0 // loop_body
    %s16 = ssub.s32 %s11, 1
    %s17 = ssub.s32 %s11, 2
    %s30 = sadd.s32 1, %s21
    %p31 = scmp.ge.s32.totalorder %s30, 1
    %s32 = scalar_select %p31, 0, %s30
    %s33 = sadd.s32 1, %s20
    %s34 = scalar_select %p31, %s33, %s20
    %p35 = scmp.ge.s32.totalorder %s34, 1
    %s36 = scalar_select %p35, 0, %s34
    %s37 = sadd.s32 1, %s19
    %s38 = scalar_select %p35, %s37, %s19
    %p39 = scmp.ge.s32.totalorder %s38, 1
    %s40 = scalar_select %p39, 0, %s38
    %s41 = sadd.s32 1, %s18
    %s42 = scalar_select %p39, %s41, %s18
    %p43 = scmp.ge.s32.totalorder %s42, 2
    %s44 = scalar_select %p43, 0, %s42
    %s45 = ssub.s32 %s18, %s44
    %s46 = ssub.s32 %s19, %s40
    %s47 = sor.u32 %s45, %s46
    %s48 = ssub.s32 %s21, %s32
    %s49 = sor.u32 %s47, %s48
    %p50 = scmp.eq.s32.totalorder %s49, 0
    %s52 = sadd.s32 %s51, 1
    %s53 = scalar_select %p50, %s51, %s52
    %p56 = pneg %p50
    %p57 = scmp.eq.s32.totalorder %s11, 1
    %p58 = por %p56, %p57
    %p59 = scmp.ne.s32.totalorder %s51, %s54
    %p60 = scmp.eq.s32.totalorder %s11, 0
    %p61 = por %p59, %p60
    %p62 = scmp.ne.s32.totalorder %s51, %s54
    %p63 = scmp.eq.s32.totalorder %s16, 1
    %p64 = por %p62, %p63
    %p65 = scmp.ne.s32.totalorder %s54, %s55
    %p66 = scmp.eq.s32.totalorder %s16, 0
    %p67 = por %p65, %p66
    %p68 = scmp.ne.s32.totalorder %s54, %s55
    %p69 = scmp.eq.s32.totalorder %s17, 1
    %p70 = por %p68, %p69
    %p72 = scmp.ne.s32.totalorder %s55, %s71
    %p73 = scmp.eq.s32.totalorder %s17, 0
    %p74 = por %p72, %p73
    %s75 = ssub.s32 %s21, %s32
    %s76 = ssub.s32 %s20, %s36
    %s77 = sor.u32 %s75, %s76
    %p78 = scmp.eq.s32.totalorder %s77, 0
    %s80 = sadd.s32 %s79, 1
    %s81 = scalar_select %p78, %s79, %s80
    %p84 = pneg %p78
    %p85 = scmp.eq.s32.totalorder %s11, 1
    %p86 = por %p84, %p85
    %p87 = scmp.ne.s32.totalorder %s79, %s82
    %p88 = scmp.eq.s32.totalorder %s11, 0
    %p89 = por %p87, %p88
    %p90 = scmp.ne.s32.totalorder %s79, %s82
    %p91 = scmp.eq.s32.totalorder %s16, 1
    %p92 = por %p90, %p91
    %p93 = scmp.ne.s32.totalorder %s82, %s83
    %p94 = scmp.eq.s32.totalorder %s16, 0
    %p95 = por %p93, %p94
    %p96 = scmp.ne.s32.totalorder %s82, %s83
    %p97 = scmp.eq.s32.totalorder %s17, 1
    %p98 = por %p96, %p97
    %p100 = scmp.ne.s32.totalorder %s83, %s99
    %p101 = scmp.eq.s32.totalorder %s17, 0
    %p102 = por %p100, %p101
    %s103 = ssub.s32 %s20, %s36
    %p104 = scmp.eq.s32.totalorder %s103, 0
    %s106 = sadd.s32 %s105, 1
    %s107 = scalar_select %p104, %s105, %s106
    %p110 = pneg %p104
    %p111 = scmp.eq.s32.totalorder %s11, 1
    %p112 = por %p110, %p111
    %p113 = scmp.ne.s32.totalorder %s105, %s108
    %p114 = scmp.eq.s32.totalorder %s11, 0
    %p115 = por %p113, %p114
    %p116 = scmp.ne.s32.totalorder %s105, %s108
    %p117 = scmp.eq.s32.totalorder %s16, 1
    %p118 = por %p116, %p117
    %p119 = scmp.ne.s32.totalorder %s108, %s109
    %p120 = scmp.eq.s32.totalorder %s16, 0
    %p121 = por %p119, %p120
    %p122 = scmp.ne.s32.totalorder %s108, %s109
    %p123 = scmp.eq.s32.totalorder %s17, 1
    %p124 = por %p122, %p123
    %p126 = scmp.ne.s32.totalorder %s109, %s125
    %p127 = scmp.eq.s32.totalorder %s17, 0
    %p128 = por %p126, %p127
    %s129 = ssub.s32 %s18, %s44
    %s130 = ssub.s32 %s19, %s40
    %s131 = sor.u32 %s129, %s130
    %s132 = ssub.s32 %s20, %s36
    %s133 = sor.u32 %s131, %s132
    %p134 = scmp.eq.s32.totalorder %s133, 0
    %s136 = sadd.s32 %s135, 1
    %s137 = scalar_select %p134, %s135, %s136
    %p140 = pneg %p134
    %p141 = scmp.eq.s32.totalorder %s11, 1
    %p142 = por %p140, %p141
    %p143 = scmp.ne.s32.totalorder %s135, %s138
    %p144 = scmp.eq.s32.totalorder %s11, 0
    %p145 = por %p143, %p144
    %p146 = scmp.ne.s32.totalorder %s135, %s138
    %p147 = scmp.eq.s32.totalorder %s16, 1
    %p148 = por %p146, %p147
    %p149 = scmp.ne.s32.totalorder %s138, %s139
    %p150 = scmp.eq.s32.totalorder %s16, 0
    %p151 = por %p149, %p150
    %p152 = scmp.ne.s32.totalorder %s138, %s139
    %p153 = scmp.eq.s32.totalorder %s17, 1
    %p154 = por %p152, %p153
    %p156 = scmp.ne.s32.totalorder %s139, %s155
    %p157 = scmp.eq.s32.totalorder %s17, 0
    %p158 = por %p156, %p157
    %s159 = ssub.s32 %s18, %s44
    %s160 = ssub.s32 %s20, %s36
    %s161 = sor.u32 %s159, %s160
    %p162 = scmp.eq.s32.totalorder %s161, 0
    %s164 = sadd.s32 %s163, 1
    %s165 = scalar_select %p162, %s163, %s164
    %p168 = pneg %p162
    %p169 = scmp.eq.s32.totalorder %s11, 1
    %p170 = por %p168, %p169
    %p171 = scmp.ne.s32.totalorder %s163, %s166
    %p172 = scmp.eq.s32.totalorder %s11, 0
    %p173 = por %p171, %p172
    %p174 = scmp.ne.s32.totalorder %s163, %s166
    %p175 = scmp.eq.s32.totalorder %s16, 1
    %p176 = por %p174, %p175
    %p177 = scmp.ne.s32.totalorder %s166, %s167
    %p178 = scmp.eq.s32.totalorder %s16, 0
    %p179 = por %p177, %p178
    %p180 = scmp.ne.s32.totalorder %s166, %s167
    %p181 = scmp.eq.s32.totalorder %s17, 1
    %p182 = por %p180, %p181
    %p184 = scmp.ne.s32.totalorder %s167, %s183
    %p185 = scmp.eq.s32.totalorder %s17, 0
    %p186 = por %p184, %p185
    %s187 = ssub.s32 %s18, %s44
    %s188 = ssub.s32 %s19, %s40
    %s189 = sor.u32 %s187, %s188
    %s190 = ssub.s32 %s20, %s36
    %s191 = sor.u32 %s189, %s190
    %p192 = scmp.eq.s32.totalorder %s191, 0
    %s194 = sadd.s32 %s193, 1
    %s195 = scalar_select %p192, %s193, %s194
    %p198 = pneg %p192
    %p199 = scmp.eq.s32.totalorder %s11, 1
    %p200 = por %p198, %p199
    %p201 = scmp.ne.s32.totalorder %s193, %s196
    %p202 = scmp.eq.s32.totalorder %s11, 0
    %p203 = por %p201, %p202
    %p204 = scmp.ne.s32.totalorder %s193, %s196
    %p205 = scmp.eq.s32.totalorder %s16, 1
    %p206 = por %p204, %p205
    %p207 = scmp.ne.s32.totalorder %s196, %s197
    %p208 = scmp.eq.s32.totalorder %s16, 0
    %p209 = por %p207, %p208
    %p210 = scmp.ne.s32.totalorder %s196, %s197
    %p211 = scmp.eq.s32.totalorder %s17, 1
    %p212 = por %p210, %p211
    %p214 = scmp.ne.s32.totalorder %s197, %s213
    %p215 = scmp.eq.s32.totalorder %s17, 0
    %p216 = por %p214, %p215
    %p217 = scmp.le.s32.totalorder 1, %s11
    %p218 = scmp.lt.s32.totalorder %s11, 3
    %p219 = pnand %p217, %p218
    %p220 = pneg %p219
    // Predicated region
    $region9: #{closed_call.36} parent=5 // pred_check
      _
    $region10: #{closed_call.36} parent=5 // pred_check_branch
      %222 = sbr.rel (%p219) target = $region12
    $region11: #{closed_call.36} parent=5 // pred_region
      %s223 = ssub.s32 %s11, 1
      // Predicated region
      $region13: #{closed_call.36} parent=11 // pred_check
        %p224 = pneg %p95
      $region14: #{closed_call.36} parent=11 // pred_check_branch
        %226 = sbr.rel (%p224) target = $region16
      $region15: #{closed_call.36} parent=11 // pred_region
        %s227 = smul.u32 32, %s25
        %p228 = scmp.lt.s32.totalorder %s227, 31
        %s229 = scalar_select %p228, %s227, 31
        %p230 = scmp.lt.s32.totalorder %s24, 0
        %s231 = scalar_select %p230, %s24, 0
        %s232 = sadd.s32 %s231, %s229
        %s233 = smul.addr %s232, 4
        %s234 = scalar_lea.vmem %s1, %s233
        %s235 = smul.u32 32, %s25
      $region16: #{closed_call.36} parent=11 // pred_fallthru
        _
      // Predicated region
      $region17: #{closed_call.36} parent=11 // pred_check
        %p236 = pneg %p121
      $region18: #{closed_call.36} parent=11 // pred_check_branch
        %238 = sbr.rel (%p236) target = $region20
      $region19: #{closed_call.36} parent=11 // pred_region
        %p239 = scmp.lt.s32.totalorder %s24, 0
        %s240 = scalar_select %p239, %s24, 0
        %s241 = scalar_lea.vmem %s2, %s240
      $region20: #{closed_call.36} parent=11 // pred_fallthru
        _
    $region12: #{closed_call.36} parent=5 // pred_fallthru
      _
    %p242 = scmp.lt.s32.totalorder %s11, 2
    // Predicated region
    $region21: #{closed_call.36} parent=5 // pred_check
      %p243 = pneg %p242
    $region22: #{closed_call.36} parent=5 // pred_check_branch
      %245 = sbr.rel (%p243) target = $region24
    $region23: #{closed_call.36} parent=5 // pred_region
      // Predicated region
      $region25: #{closed_call.36} parent=23 // pred_check
        %p246 = pneg %p61
      $region26: #{closed_call.36} parent=23 // pred_check_branch
        %248 = sbr.rel (%p246) target = $region28
      $region27: #{closed_call.36} parent=23 // pred_region
        %s249 = smul.u32 2, %s19
        %s250 = smul.u32 2, %s21
        %p251 = scmp.lt.s32.totalorder %s18, 1
        %s252 = scalar_select %p251, %s18, 1
        %p253 = scmp.lt.s32.totalorder %s249, 1
        %s254 = scalar_select %p253, %s249, 1
        %p255 = scmp.lt.s32.totalorder %s250, 1
        %s256 = scalar_select %p255, %s250, 1
        %s257 = smul.addr %s254, 2
        %s258 = sadd.s32 %s256, %s257
        %s259 = smul.addr %s252, 4
        %s260 = sadd.s32 %s258, %s259
        %s261 = smul.addr %s260, 4
        %s262 = scalar_lea.vmem %s0, %s261
        %s263 = smul.u32 2, %s19
        %s264 = smul.u32 2, %s21
      $region28: #{closed_call.36} parent=23 // pred_fallthru
        _
      // Predicated region
      $region29: #{closed_call.36} parent=23 // pred_check
        %p265 = pneg %p145
      $region30: #{closed_call.36} parent=23 // pred_check_branch
        %267 = sbr.rel (%p265) target = $region32
      $region31: #{closed_call.36} parent=23 // pred_region
        %s268 = smul.u32 2, %s19
        %p269 = scmp.lt.s32.totalorder %s18, 1
        %s270 = scalar_select %p269, %s18, 1
        %p271 = scmp.lt.s32.totalorder %s268, 1
        %s272 = scalar_select %p271, %s268, 1
        %p273 = scmp.lt.s32.totalorder %s20, 0
        %s274 = scalar_select %p273, %s20, 0
        %s275 = sadd.s32 %s274, %s272
        %s276 = smul.addr %s270, 2
        %s277 = sadd.s32 %s275, %s276
        %s278 = smul.addr %s277, 8
        %s279 = scalar_lea.vmem %s3, %s278
        %s280 = smul.u32 2, %s19
      $region32: #{closed_call.36} parent=23 // pred_fallthru
        _
      // Predicated region
      $region33: #{closed_call.36} parent=23 // pred_check
        %p281 = pneg %p173
      $region34: #{closed_call.36} parent=23 // pred_check_branch
        %283 = sbr.rel (%p281) target = $region36
      $region35: #{closed_call.36} parent=23 // pred_region
        %p284 = scmp.lt.s32.totalorder %s18, 1
        %s285 = scalar_select %p284, %s18, 1
        %p286 = scmp.lt.s32.totalorder %s20, 0
        %s287 = scalar_select %p286, %s20, 0
        %s288 = sadd.s32 %s287, %s285
        %s289 = scalar_lea.vmem %s4, %s288
      $region36: #{closed_call.36} parent=23 // pred_fallthru
        _
    $region24: #{closed_call.36} parent=5 // pred_fallthru
      _
    %p290 = scmp.le.s32.totalorder 1, %s11
    %p291 = scmp.lt.s32.totalorder %s11, 3
    %p292 = pnand %p290, %p291
    %p293 = pneg %p292
    // Predicated region
    $region37: #{closed_call.36} parent=5 // pred_check
      _
    $region38: #{closed_call.36} parent=5 // pred_check_branch
      %295 = sbr.rel (%p292) target = $region40
    $region39: #{closed_call.36} parent=5 // pred_region
      %s296 = ssub.s32 %s11, 1
      %s297 = smul.u32 2, %s23
      %s298 = smul.u32 2, %s25
      %p299 = scmp.lt.s32.totalorder %s22, 1
      %s300 = scalar_select %p299, %s22, 1
      %p301 = scmp.lt.s32.totalorder %s297, 1
      %s302 = scalar_select %p301, %s297, 1
      %p303 = scmp.lt.s32.totalorder %s298, 1
      %s304 = scalar_select %p303, %s298, 1
      %s305 = smul.addr %s302, 2
      %s306 = sadd.s32 %s304, %s305
      %s307 = smul.addr %s300, 4
      %s308 = sadd.s32 %s306, %s307
      %s309 = smul.addr %s308, 4
      %s310 = scalar_lea.vmem %s0, %s309
      %p311 = pneg %p67
      %p312 = pneg %p64
      %s313 = smul.u32 32, %s25
      %p314 = scmp.lt.s32.totalorder %s313, 31
      %s315 = scalar_select %p314, %s313, 31
      %p316 = scmp.lt.s32.totalorder %s24, 0
      %s317 = scalar_select %p316, %s24, 0
      %s318 = sadd.s32 %s317, %s315
      %s319 = smul.addr %s318, 4
      %s320 = scalar_lea.vmem %s1, %s319
      %p321 = pneg %p95
      %p322 = pneg %p92
      %p323 = scmp.lt.s32.totalorder %s24, 0
      %s324 = scalar_select %p323, %s24, 0
      %s325 = scalar_lea.vmem %s2, %s324
      %p326 = pneg %p121
      %p327 = pneg %p118
      %s328 = smul.u32 2, %s23
      %p329 = scmp.lt.s32.totalorder %s22, 1
      %s330 = scalar_select %p329, %s22, 1
      %p331 = scmp.lt.s32.totalorder %s328, 1
      %s332 = scalar_select %p331, %s328, 1
      %p333 = scmp.lt.s32.totalorder %s24, 0
      %s334 = scalar_select %p333, %s24, 0
      %s335 = sadd.s32 %s334, %s332
      %s336 = smul.addr %s330, 2
      %s337 = sadd.s32 %s335, %s336
      %s338 = smul.addr %s337, 8
      %s339 = scalar_lea.vmem %s3, %s338
      %p340 = pneg %p151
      %p341 = pneg %p148
      %p342 = scmp.lt.s32.totalorder %s22, 1
      %s343 = scalar_select %p342, %s22, 1
      %p344 = scmp.lt.s32.totalorder %s24, 0
      %s345 = scalar_select %p344, %s24, 0
      %s346 = sadd.s32 %s345, %s343
      %s347 = scalar_lea.vmem %s4, %s346
      %p348 = pneg %p179
      %p349 = pneg %p176
      %p350 = pneg %p209
      %p351 = pneg %p206
      %s352 = smul.u32 2, %s23
      %p353 = scmp.lt.s32.totalorder %s22, 1
      %s354 = scalar_select %p353, %s22, 1
      %p355 = scmp.lt.s32.totalorder %s352, 1
      %s356 = scalar_select %p355, %s352, 1
      %p357 = scmp.lt.s32.totalorder %s24, 0
      %s358 = scalar_select %p357, %s24, 0
      %s359 = sadd.s32 %s358, %s356
      %s360 = smul.addr %s354, 2
      %s361 = sadd.s32 %s359, %s360
      %s362 = smul.addr %s361, 8
      %s363 = scalar_lea.vmem %s5, %s362
      %s364 = smul.u32 2, %s23
      %s365 = smul.u32 2, %s25
      %p366 = scmp.lt.s32.totalorder %s22, 1
      %s367 = scalar_select %p366, %s22, 1
      %p368 = scmp.lt.s32.totalorder %s364, 1
      %s369 = scalar_select %p368, %s364, 1
      %p370 = scmp.lt.s32.totalorder %s365, 1
      %s371 = scalar_select %p370, %s365, 1
      %s372 = smul.addr %s369, 2
      %s373 = sadd.s32 %s371, %s372
      %s374 = smul.addr %s367, 4
      %s375 = sadd.s32 %s373, %s374
      %s376 = smul.addr %s375, 4
      %s377 = scalar_lea.vmem %s0, %s376
      %s378 = smul.u32 2, %s23
      %s379 = smul.u32 2, %s25
      %s380 = smul.u32 32, %s25
      %p381 = scmp.lt.s32.totalorder %s380, 31
      %s382 = scalar_select %p381, %s380, 31
      %p383 = scmp.lt.s32.totalorder %s24, 0
      %s384 = scalar_select %p383, %s24, 0
      %s385 = sadd.s32 %s384, %s382
      %s386 = smul.addr %s385, 4
      %s387 = scalar_lea.vmem %s1, %s386
      %s388 = smul.u32 32, %s25
      %p389 = scmp.lt.s32.totalorder %s24, 0
      %s390 = scalar_select %p389, %s24, 0
      %s391 = scalar_lea.vmem %s2, %s390
      %s392 = smul.u32 2, %s23
      %p393 = scmp.lt.s32.totalorder %s22, 1
      %s394 = scalar_select %p393, %s22, 1
      %p395 = scmp.lt.s32.totalorder %s392, 1
      %s396 = scalar_select %p395, %s392, 1
      %p397 = scmp.lt.s32.totalorder %s24, 0
      %s398 = scalar_select %p397, %s24, 0
      %s399 = sadd.s32 %s398, %s396
      %s400 = smul.addr %s394, 2
      %s401 = sadd.s32 %s399, %s400
      %s402 = smul.addr %s401, 8
      %s403 = scalar_lea.vmem %s3, %s402
      %s404 = smul.u32 2, %s23
      %p405 = scmp.lt.s32.totalorder %s22, 1
      %s406 = scalar_select %p405, %s22, 1
      %p407 = scmp.lt.s32.totalorder %s24, 0
      %s408 = scalar_select %p407, %s24, 0
      %s409 = sadd.s32 %s408, %s406
      %s410 = scalar_lea.vmem %s4, %s409
      %s411 = smul.u32 2, %s23
      %p412 = scmp.lt.s32.totalorder %s22, 1
      %s413 = scalar_select %p412, %s22, 1
      %p414 = scmp.lt.s32.totalorder %s411, 1
      %s415 = scalar_select %p414, %s411, 1
      %p416 = scmp.lt.s32.totalorder %s24, 0
      %s417 = scalar_select %p416, %s24, 0
      %s418 = sadd.s32 %s417, %s415
      %s419 = smul.addr %s413, 2
      %s420 = sadd.s32 %s418, %s419
      %s421 = smul.addr %s420, 8
      %s422 = scalar_lea.vmem %s5, %s421
      %s423 = smul.u32 2, %s23
      %p425 = scmp.eq.s32.totalorder %s25, 0
      // Predicated region
      $region41: #{closed_call.36} parent=39 // pred_check
        %p426 = pneg %p425
      $region42: #{closed_call.36} parent=39 // pred_check_branch
        %428 = sbr.rel (%p426) target = $region44
      $region43: #{closed_call.36} parent=39 // pred_region
        %vm429 = vcmask 523264
        %430 = vst.msk [vmem:[%s422] sm:$0xff] %vm429, 0.0
        %431 = vst.msk [vmem:[%s422 + $0x8] sm:$0xff] %vm429, 0.0
      $region44: #{closed_call.36} parent=39 // pred_fallthru
        _
      %v432 = vld [vmem:[%s377] sm:$0xff]
      %v433 = vld [vmem:[%s377 + $0x8] sm:$0xff]
      %v434 = vld [vmem:[%s422] sm:$0xff]
      %v435 = vld [vmem:[%s422 + $0x8] sm:$0xff]
      %v436 = vld [vmem:[%s387] sm:$0xf]
      %v437 = vld [vmem:[%s387 + $0x4] sm:$0xf]
      %v438 = vld [vmem:[%s387 + $0x8] sm:$0xf]
      %v439 = vld [vmem:[%s387 + $0xc] sm:$0xf]
      %v440 = vld [vmem:[%s387 + $0x10] sm:$0xf]
      %v441 = vld [vmem:[%s387 + $0x14] sm:$0xf]
      %v442 = vld [vmem:[%s387 + $0x18] sm:$0xf]
      %v443 = vld [vmem:[%s387 + $0x1c] sm:$0xf]
      %v444 = vld [vmem:[%s387 + $0x20] sm:$0xf]
      %v445 = vld [vmem:[%s387 + $0x24] sm:$0xf]
      %v446 = vld [vmem:[%s387 + $0x28] sm:$0xf]
      %v447 = vld [vmem:[%s387 + $0x2c] sm:$0xf]
      %v448 = vld [vmem:[%s387 + $0x30] sm:$0xf]
      %v449 = vld [vmem:[%s387 + $0x34] sm:$0xf]
      %v450 = vld [vmem:[%s387 + $0x38] sm:$0xf]
      %v451 = vld [vmem:[%s387 + $0x3c] sm:$0xf]
      %v452 = vld [vmem:[%s387 + $0x40] sm:$0xf]
      %v453 = vld [vmem:[%s387 + $0x44] sm:$0xf]
      %v454 = vld [vmem:[%s387 + $0x48] sm:$0xf]
      %v455 = vld [vmem:[%s387 + $0x4c] sm:$0xf]
      %v456 = vld [vmem:[%s387 + $0x50] sm:$0xf]
      %v457 = vld [vmem:[%s387 + $0x54] sm:$0xf]
      %v458 = vld [vmem:[%s387 + $0x58] sm:$0xf]
      %v459 = vld [vmem:[%s387 + $0x5c] sm:$0xf]
      %v460 = vld [vmem:[%s387 + $0x60] sm:$0xf]
      %v461 = vld [vmem:[%s387 + $0x64] sm:$0xf]
      %v462 = vld [vmem:[%s387 + $0x68] sm:$0xf]
      %v463 = vld [vmem:[%s387 + $0x6c] sm:$0xf]
      %v464 = vld [vmem:[%s387 + $0x70] sm:$0xf]
      %v465 = vld [vmem:[%s387 + $0x74] sm:$0xf]
      %v466 = vld [vmem:[%s387 + $0x78] sm:$0xf]
      %v467 = vld [vmem:[%s387 + $0x7c] sm:$0xf]
      %v470 = vunpack.c.l.b16 %v432
      %v471 = vunpack.c.h.b16 %v432
      %v472 = vunpack.c.l.b16 %v433
      %v473 = vunpack.c.h.b16 %v433
      %v474 = vpack.c.b16 %v472, %v470
      %v475 = vpack.c.b16 %v473, %v471
      %v510 = vunpack.c.l.b16 %v436
      %v511 = vunpack.c.l.b16 %v437
      %v512 = vunpack.c.l.b16 %v438
      %v513 = vunpack.c.l.b16 %v439
      %v514 = vunpack.c.l.b16 %v440
      %v515 = vunpack.c.l.b16 %v441
      %v516 = vunpack.c.l.b16 %v442
      %v517 = vunpack.c.l.b16 %v443
      %v518 = vunpack.c.l.b16 %v444
      %v519 = vunpack.c.l.b16 %v445
      %v520 = vunpack.c.l.b16 %v446
      %v521 = vunpack.c.l.b16 %v447
      %v522 = vunpack.c.l.b16 %v448
      %v523 = vunpack.c.l.b16 %v449
      %v524 = vunpack.c.l.b16 %v450
      %v525 = vunpack.c.l.b16 %v451
      %v526 = vunpack.c.l.b16 %v452
      %v527 = vunpack.c.l.b16 %v453
      %v528 = vunpack.c.l.b16 %v454
      %v529 = vunpack.c.l.b16 %v455
      %v530 = vunpack.c.l.b16 %v456
      %v531 = vunpack.c.l.b16 %v457
      %v532 = vunpack.c.l.b16 %v458
      %v533 = vunpack.c.l.b16 %v459
      %v534 = vunpack.c.l.b16 %v460
      %v535 = vunpack.c.l.b16 %v461
      %v536 = vunpack.c.l.b16 %v462
      %v537 = vunpack.c.l.b16 %v463
      %v538 = vunpack.c.l.b16 %v464
      %v539 = vunpack.c.l.b16 %v465
      %v540 = vunpack.c.l.b16 %v466
      %v541 = vunpack.c.l.b16 %v467
      %v542 = vpack.c.b16 %v511, %v510
      %v543 = vpack.c.b16 %v513, %v512
      %v544 = vpack.c.b16 %v515, %v514
      %v545 = vpack.c.b16 %v517, %v516
      %v546 = vpack.c.b16 %v519, %v518
      %v547 = vpack.c.b16 %v521, %v520
      %v548 = vpack.c.b16 %v523, %v522
      %v549 = vpack.c.b16 %v525, %v524
      %v550 = vpack.c.b16 %v527, %v526
      %v551 = vpack.c.b16 %v529, %v528
      %v552 = vpack.c.b16 %v531, %v530
      %v553 = vpack.c.b16 %v533, %v532
      %v554 = vpack.c.b16 %v535, %v534
      %v555 = vpack.c.b16 %v537, %v536
      %v556 = vpack.c.b16 %v539, %v538
      %v557 = vpack.c.b16 %v541, %v540
      %574 = vmatprep.subr.bf16.mxu0 0
      %575 = vmatpush1.bf16.msra.mxu0 %v542
      %576 = vmatprep.subr.bf16.mxu0 0
      %577 = vmatpush1.bf16.msra.mxu0 %v543
      %578 = vmatprep.subr.bf16.mxu0 0
      %579 = vmatpush1.bf16.msra.mxu0 %v544
      %580 = vmatprep.subr.bf16.mxu0 0
      %581 = vmatpush1.bf16.msra.mxu0 %v545
      %582 = vmatprep.subr.bf16.mxu0 0
      %583 = vmatpush1.bf16.msra.mxu0 %v546
      %584 = vmatprep.subr.bf16.mxu0 0
      %585 = vmatpush1.bf16.msra.mxu0 %v547
      %586 = vmatprep.subr.bf16.mxu0 0
      %587 = vmatpush1.bf16.msra.mxu0 %v548
      %588 = vmatprep.subr.bf16.mxu0 0
      %589 = vmatpush1.bf16.msra.mxu0 %v549
      %590 = vmatprep.subr.bf16.mxu0 0
      %591 = vmatpush1.bf16.msra.mxu0 %v550
      %592 = vmatprep.subr.bf16.mxu0 0
      %593 = vmatpush1.bf16.msra.mxu0 %v551
      %594 = vmatprep.subr.bf16.mxu0 0
      %595 = vmatpush1.bf16.msra.mxu0 %v552
      %596 = vmatprep.subr.bf16.mxu0 0
      %597 = vmatpush1.bf16.msra.mxu0 %v553
      %598 = vmatprep.subr.bf16.mxu0 0
      %599 = vmatpush1.bf16.msra.mxu0 %v554
      %600 = vmatprep.subr.bf16.mxu0 0
      %601 = vmatpush1.bf16.msra.mxu0 %v555
      %602 = vmatprep.subr.bf16.mxu0 0
      %603 = vmatpush1.bf16.msra.mxu0 %v556
      %604 = vmatprep.subr.bf16.mxu0 0
      %605 = vmatpush1.bf16.msra.mxu0 %v557
      %606 = vmatprep.mubr.bf16.mxu0 %v475
      %607 = vmatmul.mubr.bf16.gmra.mrb[0].mxu0 %v474
      %v608 = vpop.f32.mrb[0].mxu0
      %v609 = vadd.f32 0.0, %v608
      %v610 = vpop.f32.mrb[0].mxu0
      %v611 = vpop.f32.mrb[0].mxu0
      %v612 = vadd.f32 0.0, %v611
      %v613 = vpop.f32.mrb[0].mxu0
      %614 = vdwg.mxu0
      %v615 = vadd.f32 %v434, %v609
      %v616 = vadd.f32 %v435, %v612
      %vm617 = vcmask 523264
      %618 = vst.msk [vmem:[%s422] sm:$0xff] %vm617, %v615
      %619 = vst.msk [vmem:[%s422 + $0x8] sm:$0xff] %vm617, %v616
      // Predicated region
      $region45: #{closed_call.36} parent=39 // pred_check
        %p620 = pneg %p425
      $region46: #{closed_call.36} parent=39 // pred_check_branch
        %622 = sbr.rel (%p620) target = $region48
      $region47: #{closed_call.36} parent=39 // pred_region
        %v623 = vld [vmem:[%s422] sm:$0xff]
        %v624 = vld [vmem:[%s422 + $0x8] sm:$0xff]
        %v625 = vld [vmem:[%s391] sm:$0x1]
        %v627 = vlaneseq
        %v628 = vshrl.u32 %v627, 7
        %v629 = vsub.s32 0, %v628
        %v630 = vrot.slane %v625, %v629
        %v632 = vadd.f32 %v623, %v630
        %v633 = vadd.f32 %v624, %v630
        %v634 = vld [vmem:[%s410] sm:$0x1]
        %v636 = vlaneseq
        %v637 = vshrl.u32 %v636, 7
        %v638 = vsub.s32 0, %v637
        %v639 = vrot.slane %v634, %v638
        %v641 = vmul.f32 %v632, %v639
        %v642 = vmul.f32 %v633, %v639
        %v643 = vld [vmem:[%s403] sm:$0xff]
        %v644 = vld [vmem:[%s403 + $0x8] sm:$0xff]
        %v645 = vadd.f32 %v643, %v641
        %v646 = vadd.f32 %v644, %v642
        %647 = vst.msk [vmem:[%s422] sm:$0xff] %vm617, %v645
        %648 = vst.msk [vmem:[%s422 + $0x8] sm:$0xff] %vm617, %v646
      $region48: #{closed_call.36} parent=39 // pred_fallthru
        _
      %s649 = smul.u32 2, %s23
      %p650 = scmp.lt.s32.totalorder %s22, 1
      %s651 = scalar_select %p650, %s22, 1
      %p652 = scmp.lt.s32.totalorder %s649, 1
      %s653 = scalar_select %p652, %s649, 1
      %p654 = scmp.lt.s32.totalorder %s24, 0
      %s655 = scalar_select %p654, %s24, 0
      %s656 = sadd.s32 %s655, %s653
      %s657 = smul.addr %s651, 2
      %s658 = sadd.s32 %s656, %s657
      %s659 = smul.addr %s658, 8
      %s660 = scalar_lea.vmem %s5, %s659
      // Predicated region
      $region49: #{closed_call.36} parent=39 // pred_check
        %p661 = pneg %p206
      $region50: #{closed_call.36} parent=39 // pred_check_branch
        %663 = sbr.rel (%p661) target = $region52
      $region51: #{closed_call.36} parent=39 // pred_region
        %s664 = smul.u32 2, %s23
      $region52: #{closed_call.36} parent=39 // pred_fallthru
        _
    $region40: #{closed_call.36} parent=5 // pred_fallthru
      _
    %p665 = scmp.le.s32.totalorder 2, %s11
    // Predicated region
    $region53: #{closed_call.36} parent=5 // pred_check
      %p666 = pneg %p665
    $region54: #{closed_call.36} parent=5 // pred_check_branch
      %668 = sbr.rel (%p666) target = $region56
    $region55: #{closed_call.36} parent=5 // pred_region
      %s669 = ssub.s32 %s11, 2
      // Predicated region
      $region57: #{closed_call.36} parent=55 // pred_check
        %p670 = pneg %p212
      $region58: #{closed_call.36} parent=55 // pred_check_branch
        %672 = sbr.rel (%p670) target = $region60
      $region59: #{closed_call.36} parent=55 // pred_region
        %s673 = smul.u32 2, %s27
        %p674 = scmp.lt.s32.totalorder %s26, 1
        %s675 = scalar_select %p674, %s26, 1
        %p676 = scmp.lt.s32.totalorder %s673, 1
        %s677 = scalar_select %p676, %s673, 1
        %p678 = scmp.lt.s32.totalorder %s28, 0
        %s679 = scalar_select %p678, %s28, 0
        %s680 = sadd.s32 %s679, %s677
        %s681 = smul.addr %s675, 2
        %s682 = sadd.s32 %s680, %s681
        %s683 = smul.addr %s682, 8
        %s684 = scalar_lea.vmem %s5, %s683
      $region60: #{closed_call.36} parent=55 // pred_fallthru
        _
    $region56: #{closed_call.36} parent=5 // pred_fallthru
      _
  $region6: #{closed_call.36} parent=0 // loop_footer
    %s15 = sadd.s32 1, %s11
  $region7: #{closed_call.36} parent=0 // loop_footer_branch
    %10 = sbr.rel target = $region3
  $region8: #{closed_call.36} parent=0 // loop_exit
    _

// kernel: _lambda_.15
$region0: #{_lambda_.15}
  #allocation0 [shape = 'u32[]', space=smem, size = 0x4, offset = 0x4, fixed_abs, tag = 'smem constant byte address 0x4 - core index']
  #allocation1 [shape = 'u32[144,128]{1,0:T(1,128)}', space=vmem, size = 0x12000, scoped, tag = 'internal scratch']
  #allocation2 [shape = 'bf16[16,64]{1,0:T(16,128)(2,1)}', space=vmem, size = 0x1000, scoped, tag = 'scratch operand']
  %s0 = inlined_call_operand.vmem [shape: f32[2,16,64], index: 0, kind: input, shape index: {}]
  %s1 = inlined_call_operand.vmem [shape: f32[2,1,64], index: 1, kind: input, shape index: {}]
  %s2 = inlined_call_operand.vmem [shape: f32[2,1,64], index: 2, kind: input, shape index: {}]
  %s3 = inlined_call_operand.vmem [shape: bf16[64,16], index: 3, kind: input, shape index: {}]
  %s4 = inlined_call_operand.vmem [shape: f32[1,16], index: 4, kind: input, shape index: {}]
  %s5 = inlined_call_operand.vmem [shape: f32[2,16,16], index: 5, kind: output, shape index: {}]
  %s6 = sld [smem:[#allocation0]]
  $region57: #{_lambda_.15} parent=0
    _
  %s8 = ssub.s32 1, %s6
  %s9 = scalar_select 0, %s8, %s6
  loop: start=0, step=1, limit=4
  $region2: #{_lambda_.15} parent=0 // loop_pre_header
    _
  $region3: #{_lambda_.15} parent=0 // loop_header
    %s11 = sphi 0, %s15
    %p12 = scmp.ge.s32.totalorder %s11, 4
    %s18 = sphi 0, %s37
    %s19 = sphi 0, %s33
    %s20 = sphi 0, %s29
    %s21 = sphi 0, %s18
    %s22 = sphi 0, %s19
    %s23 = sphi 0, %s20
    %s24 = sphi 0, %s21
    %s25 = sphi 0, %s22
    %s26 = sphi 0, %s23
    %s42 = sphi 0, %s44
    %s45 = sphi 0, %s42
    %s46 = sphi 0, %s45
    %s62 = sphi 0, %s46
    %s68 = sphi 0, %s70
    %s71 = sphi 0, %s68
    %s72 = sphi 0, %s71
    %s88 = sphi 0, %s72
    %s94 = sphi 0, %s96
    %s97 = sphi 0, %s94
    %s98 = sphi 0, %s97
    %s114 = sphi 0, %s98
    %s120 = sphi 0, %s122
    %s123 = sphi 0, %s120
    %s124 = sphi 0, %s123
    %s140 = sphi 0, %s124
    %s146 = sphi 0, %s148
    %s149 = sphi 0, %s146
    %s150 = sphi 0, %s149
    %s166 = sphi 0, %s150
    %s176 = sphi 0, %s178
    %s179 = sphi 0, %s176
    %s180 = sphi 0, %s179
    %s196 = sphi 0, %s180
  $region4: #{_lambda_.15} parent=0 // loop_header_branch
    %14 = sbr.rel (%p12) target = $region8
  $region5: #{_lambda_.15} parent=0 // loop_body
    %s16 = ssub.s32 %s11, 1
    %s17 = ssub.s32 %s11, 2
    %s27 = sadd.s32 1, %s20
    %p28 = scmp.ge.s32.totalorder %s27, 1
    %s29 = scalar_select %p28, 0, %s27
    %s30 = sadd.s32 1, %s19
    %s31 = scalar_select %p28, %s30, %s19
    %p32 = scmp.ge.s32.totalorder %s31, 1
    %s33 = scalar_select %p32, 0, %s31
    %s34 = sadd.s32 1, %s18
    %s35 = scalar_select %p32, %s34, %s18
    %p36 = scmp.ge.s32.totalorder %s35, 2
    %s37 = scalar_select %p36, 0, %s35
    %s38 = ssub.s32 %s18, %s37
    %s39 = ssub.s32 %s19, %s33
    %s40 = sor.u32 %s38, %s39
    %p41 = scmp.eq.s32.totalorder %s40, 0
    %s43 = sadd.s32 %s42, 1
    %s44 = scalar_select %p41, %s42, %s43
    %p47 = pneg %p41
    %p48 = scmp.eq.s32.totalorder %s11, 1
    %p49 = por %p47, %p48
    %p50 = scmp.ne.s32.totalorder %s42, %s45
    %p51 = scmp.eq.s32.totalorder %s11, 0
    %p52 = por %p50, %p51
    %p53 = scmp.ne.s32.totalorder %s42, %s45
    %p54 = scmp.eq.s32.totalorder %s16, 1
    %p55 = por %p53, %p54
    %p56 = scmp.ne.s32.totalorder %s45, %s46
    %p57 = scmp.eq.s32.totalorder %s16, 0
    %p58 = por %p56, %p57
    %p59 = scmp.ne.s32.totalorder %s45, %s46
    %p60 = scmp.eq.s32.totalorder %s17, 1
    %p61 = por %p59, %p60
    %p63 = scmp.ne.s32.totalorder %s46, %s62
    %p64 = scmp.eq.s32.totalorder %s17, 0
    %p65 = por %p63, %p64
    %s66 = ssub.s32 %s18, %s37
    %p67 = scmp.eq.s32.totalorder %s66, 0
    %s69 = sadd.s32 %s68, 1
    %s70 = scalar_select %p67, %s68, %s69
    %p73 = pneg %p67
    %p74 = scmp.eq.s32.totalorder %s11, 1
    %p75 = por %p73, %p74
    %p76 = scmp.ne.s32.totalorder %s68, %s71
    %p77 = scmp.eq.s32.totalorder %s11, 0
    %p78 = por %p76, %p77
    %p79 = scmp.ne.s32.totalorder %s68, %s71
    %p80 = scmp.eq.s32.totalorder %s16, 1
    %p81 = por %p79, %p80
    %p82 = scmp.ne.s32.totalorder %s71, %s72
    %p83 = scmp.eq.s32.totalorder %s16, 0
    %p84 = por %p82, %p83
    %p85 = scmp.ne.s32.totalorder %s71, %s72
    %p86 = scmp.eq.s32.totalorder %s17, 1
    %p87 = por %p85, %p86
    %p89 = scmp.ne.s32.totalorder %s72, %s88
    %p90 = scmp.eq.s32.totalorder %s17, 0
    %p91 = por %p89, %p90
    %s92 = ssub.s32 %s18, %s37
    %p93 = scmp.eq.s32.totalorder %s92, 0
    %s95 = sadd.s32 %s94, 1
    %s96 = scalar_select %p93, %s94, %s95
    %p99 = pneg %p93
    %p100 = scmp.eq.s32.totalorder %s11, 1
    %p101 = por %p99, %p100
    %p102 = scmp.ne.s32.totalorder %s94, %s97
    %p103 = scmp.eq.s32.totalorder %s11, 0
    %p104 = por %p102, %p103
    %p105 = scmp.ne.s32.totalorder %s94, %s97
    %p106 = scmp.eq.s32.totalorder %s16, 1
    %p107 = por %p105, %p106
    %p108 = scmp.ne.s32.totalorder %s97, %s98
    %p109 = scmp.eq.s32.totalorder %s16, 0
    %p110 = por %p108, %p109
    %p111 = scmp.ne.s32.totalorder %s97, %s98
    %p112 = scmp.eq.s32.totalorder %s17, 1
    %p113 = por %p111, %p112
    %p115 = scmp.ne.s32.totalorder %s98, %s114
    %p116 = scmp.eq.s32.totalorder %s17, 0
    %p117 = por %p115, %p116
    %s118 = ssub.s32 %s20, %s29
    %p119 = scmp.eq.s32.totalorder %s118, 0
    %s121 = sadd.s32 %s120, 1
    %s122 = scalar_select %p119, %s120, %s121
    %p125 = pneg %p119
    %p126 = scmp.eq.s32.totalorder %s11, 1
    %p127 = por %p125, %p126
    %p128 = scmp.ne.s32.totalorder %s120, %s123
    %p129 = scmp.eq.s32.totalorder %s11, 0
    %p130 = por %p128, %p129
    %p131 = scmp.ne.s32.totalorder %s120, %s123
    %p132 = scmp.eq.s32.totalorder %s16, 1
    %p133 = por %p131, %p132
    %p134 = scmp.ne.s32.totalorder %s123, %s124
    %p135 = scmp.eq.s32.totalorder %s16, 0
    %p136 = por %p134, %p135
    %p137 = scmp.ne.s32.totalorder %s123, %s124
    %p138 = scmp.eq.s32.totalorder %s17, 1
    %p139 = por %p137, %p138
    %p141 = scmp.ne.s32.totalorder %s124, %s140
    %p142 = scmp.eq.s32.totalorder %s17, 0
    %p143 = por %p141, %p142
    %s144 = ssub.s32 %s20, %s29
    %p145 = scmp.eq.s32.totalorder %s144, 0
    %s147 = sadd.s32 %s146, 1
    %s148 = scalar_select %p145, %s146, %s147
    %p151 = pneg %p145
    %p152 = scmp.eq.s32.totalorder %s11, 1
    %p153 = por %p151, %p152
    %p154 = scmp.ne.s32.totalorder %s146, %s149
    %p155 = scmp.eq.s32.totalorder %s11, 0
    %p156 = por %p154, %p155
    %p157 = scmp.ne.s32.totalorder %s146, %s149
    %p158 = scmp.eq.s32.totalorder %s16, 1
    %p159 = por %p157, %p158
    %p160 = scmp.ne.s32.totalorder %s149, %s150
    %p161 = scmp.eq.s32.totalorder %s16, 0
    %p162 = por %p160, %p161
    %p163 = scmp.ne.s32.totalorder %s149, %s150
    %p164 = scmp.eq.s32.totalorder %s17, 1
    %p165 = por %p163, %p164
    %p167 = scmp.ne.s32.totalorder %s150, %s166
    %p168 = scmp.eq.s32.totalorder %s17, 0
    %p169 = por %p167, %p168
    %s170 = ssub.s32 %s18, %s37
    %s171 = ssub.s32 %s19, %s33
    %s172 = sor.u32 %s170, %s171
    %s173 = ssub.s32 %s20, %s29
    %s174 = sor.u32 %s172, %s173
    %p175 = scmp.eq.s32.totalorder %s174, 0
    %s177 = sadd.s32 %s176, 1
    %s178 = scalar_select %p175, %s176, %s177
    %p181 = pneg %p175
    %p182 = scmp.eq.s32.totalorder %s11, 1
    %p183 = por %p181, %p182
    %p184 = scmp.ne.s32.totalorder %s176, %s179
    %p185 = scmp.eq.s32.totalorder %s11, 0
    %p186 = por %p184, %p185
    %p187 = scmp.ne.s32.totalorder %s176, %s179
    %p188 = scmp.eq.s32.totalorder %s16, 1
    %p189 = por %p187, %p188
    %p190 = scmp.ne.s32.totalorder %s179, %s180
    %p191 = scmp.eq.s32.totalorder %s16, 0
    %p192 = por %p190, %p191
    %p193 = scmp.ne.s32.totalorder %s179, %s180
    %p194 = scmp.eq.s32.totalorder %s17, 1
    %p195 = por %p193, %p194
    %p197 = scmp.ne.s32.totalorder %s180, %s196
    %p198 = scmp.eq.s32.totalorder %s17, 0
    %p199 = por %p197, %p198
    %p200 = scmp.le.s32.totalorder 1, %s11
    %p201 = scmp.lt.s32.totalorder %s11, 3
    %p202 = pnand %p200, %p201
    %p203 = pneg %p202
    // Predicated region
    $region9: #{_lambda_.15} parent=5 // pred_check
      _
    $region10: #{_lambda_.15} parent=5 // pred_check_branch
      %205 = sbr.rel (%p202) target = $region12
    $region11: #{_lambda_.15} parent=5 // pred_region
      %s206 = ssub.s32 %s11, 1
      // Predicated region
      $region13: #{_lambda_.15} parent=11 // pred_check
        %p207 = pneg %p136
      $region14: #{_lambda_.15} parent=11 // pred_check_branch
        %209 = sbr.rel (%p207) target = $region16
      $region15: #{_lambda_.15} parent=11 // pred_region
        %p210 = scmp.lt.s32.totalorder %s23, 0
        %s211 = scalar_select %p210, %s23, 0
        %s212 = smul.addr %s211, 4
        %s213 = scalar_lea.vmem %s3, %s212
      $region16: #{_lambda_.15} parent=11 // pred_fallthru
        _
      // Predicated region
      $region17: #{_lambda_.15} parent=11 // pred_check
        %p214 = pneg %p162
      $region18: #{_lambda_.15} parent=11 // pred_check_branch
        %216 = sbr.rel (%p214) target = $region20
      $region19: #{_lambda_.15} parent=11 // pred_region
        %p217 = scmp.lt.s32.totalorder %s23, 0
        %s218 = scalar_select %p217, %s23, 0
        %s219 = scalar_lea.vmem %s4, %s218
      $region20: #{_lambda_.15} parent=11 // pred_fallthru
        _
    $region12: #{_lambda_.15} parent=5 // pred_fallthru
      _
    %p220 = scmp.lt.s32.totalorder %s11, 2
    // Predicated region
    $region21: #{_lambda_.15} parent=5 // pred_check
      %p221 = pneg %p220
    $region22: #{_lambda_.15} parent=5 // pred_check_branch
      %223 = sbr.rel (%p221) target = $region24
    $region23: #{_lambda_.15} parent=5 // pred_region
      // Predicated region
      $region25: #{_lambda_.15} parent=23 // pred_check
        %p224 = pneg %p52
      $region26: #{_lambda_.15} parent=23 // pred_check_branch
        %226 = sbr.rel (%p224) target = $region28
      $region27: #{_lambda_.15} parent=23 // pred_region
        %s227 = smul.u32 2, %s19
        %p228 = scmp.lt.s32.totalorder %s18, 1
        %s229 = scalar_select %p228, %s18, 1
        %p230 = scmp.lt.s32.totalorder %s227, 1
        %s231 = scalar_select %p230, %s227, 1
        %s232 = smul.addr %s229, 2
        %s233 = sadd.s32 %s231, %s232
        %s234 = smul.addr %s233, 8
        %s235 = scalar_lea.vmem %s0, %s234
        %s236 = smul.u32 2, %s19
      $region28: #{_lambda_.15} parent=23 // pred_fallthru
        _
      // Predicated region
      $region29: #{_lambda_.15} parent=23 // pred_check
        %p237 = pneg %p78
      $region30: #{_lambda_.15} parent=23 // pred_check_branch
        %239 = sbr.rel (%p237) target = $region32
      $region31: #{_lambda_.15} parent=23 // pred_region
        %p240 = scmp.lt.s32.totalorder %s18, 1
        %s241 = scalar_select %p240, %s18, 1
        %s242 = scalar_lea.vmem %s1, %s241
      $region32: #{_lambda_.15} parent=23 // pred_fallthru
        _
      // Predicated region
      $region33: #{_lambda_.15} parent=23 // pred_check
        %p243 = pneg %p104
      $region34: #{_lambda_.15} parent=23 // pred_check_branch
        %245 = sbr.rel (%p243) target = $region36
      $region35: #{_lambda_.15} parent=23 // pred_region
        %p246 = scmp.lt.s32.totalorder %s18, 1
        %s247 = scalar_select %p246, %s18, 1
        %s248 = scalar_lea.vmem %s2, %s247
      $region36: #{_lambda_.15} parent=23 // pred_fallthru
        _
    $region24: #{_lambda_.15} parent=5 // pred_fallthru
      _
    %p249 = scmp.le.s32.totalorder 1, %s11
    %p250 = scmp.lt.s32.totalorder %s11, 3
    %p251 = pnand %p249, %p250
    %p252 = pneg %p251
    // Predicated region
    $region37: #{_lambda_.15} parent=5 // pred_check
      _
    $region38: #{_lambda_.15} parent=5 // pred_check_branch
      %254 = sbr.rel (%p251) target = $region40
    $region39: #{_lambda_.15} parent=5 // pred_region
      %s255 = ssub.s32 %s11, 1
      %s256 = smul.u32 2, %s22
      %p257 = scmp.lt.s32.totalorder %s21, 1
      %s258 = scalar_select %p257, %s21, 1
      %p259 = scmp.lt.s32.totalorder %s256, 1
      %s260 = scalar_select %p259, %s256, 1
      %s261 = smul.addr %s258, 2
      %s262 = sadd.s32 %s260, %s261
      %s263 = smul.addr %s262, 8
      %s264 = scalar_lea.vmem %s0, %s263
      %p265 = pneg %p58
      %p266 = pneg %p55
      %p267 = scmp.lt.s32.totalorder %s21, 1
      %s268 = scalar_select %p267, %s21, 1
      %s269 = scalar_lea.vmem %s1, %s268
      %p270 = pneg %p84
      %p271 = pneg %p81
      %p272 = scmp.lt.s32.totalorder %s21, 1
      %s273 = scalar_select %p272, %s21, 1
      %s274 = scalar_lea.vmem %s2, %s273
      %p275 = pneg %p110
      %p276 = pneg %p107
      %p277 = scmp.lt.s32.totalorder %s23, 0
      %s278 = scalar_select %p277, %s23, 0
      %s279 = smul.addr %s278, 4
      %s280 = scalar_lea.vmem %s3, %s279
      %p281 = pneg %p136
      %p282 = pneg %p133
      %p283 = scmp.lt.s32.totalorder %s23, 0
      %s284 = scalar_select %p283, %s23, 0
      %s285 = scalar_lea.vmem %s4, %s284
      %p286 = pneg %p162
      %p287 = pneg %p159
      %p288 = pneg %p192
      %p289 = pneg %p189
      %s290 = smul.u32 2, %s22
      %p291 = scmp.lt.s32.totalorder %s21, 1
      %s292 = scalar_select %p291, %s21, 1
      %p293 = scmp.lt.s32.totalorder %s290, 1
      %s294 = scalar_select %p293, %s290, 1
      %p295 = scmp.lt.s32.totalorder %s23, 0
      %s296 = scalar_select %p295, %s23, 0
      %s297 = sadd.s32 %s296, %s294
      %s298 = smul.addr %s292, 2
      %s299 = sadd.s32 %s297, %s298
      %s300 = smul.addr %s299, 8
      %s301 = scalar_lea.vmem %s5, %s300
      %s302 = smul.u32 2, %s22
      %p303 = scmp.lt.s32.totalorder %s21, 1
      %s304 = scalar_select %p303, %s21, 1
      %p305 = scmp.lt.s32.totalorder %s302, 1
      %s306 = scalar_select %p305, %s302, 1
      %s307 = smul.addr %s304, 2
      %s308 = sadd.s32 %s306, %s307
      %s309 = smul.addr %s308, 8
      %s310 = scalar_lea.vmem %s0, %s309
      %s311 = smul.u32 2, %s22
      %p312 = scmp.lt.s32.totalorder %s21, 1
      %s313 = scalar_select %p312, %s21, 1
      %s314 = scalar_lea.vmem %s1, %s313
      %p315 = scmp.lt.s32.totalorder %s21, 1
      %s316 = scalar_select %p315, %s21, 1
      %s317 = scalar_lea.vmem %s2, %s316
      %p318 = scmp.lt.s32.totalorder %s23, 0
      %s319 = scalar_select %p318, %s23, 0
      %s320 = smul.addr %s319, 4
      %s321 = scalar_lea.vmem %s3, %s320
      %p322 = scmp.lt.s32.totalorder %s23, 0
      %s323 = scalar_select %p322, %s23, 0
      %s324 = scalar_lea.vmem %s4, %s323
      %s325 = smul.u32 2, %s22
      %p326 = scmp.lt.s32.totalorder %s21, 1
      %s327 = scalar_select %p326, %s21, 1
      %p328 = scmp.lt.s32.totalorder %s325, 1
      %s329 = scalar_select %p328, %s325, 1
      %p330 = scmp.lt.s32.totalorder %s23, 0
      %s331 = scalar_select %p330, %s23, 0
      %s332 = sadd.s32 %s331, %s329
      %s333 = smul.addr %s327, 2
      %s334 = sadd.s32 %s332, %s333
      %s335 = smul.addr %s334, 8
      %s336 = scalar_lea.vmem %s5, %s335
      %s337 = smul.u32 2, %s22
      %p339 = scmp.eq.s32.totalorder %s23, 0
      // Predicated region
      $region41: #{_lambda_.15} parent=39 // pred_check
        %p340 = pneg %p339
      $region42: #{_lambda_.15} parent=39 // pred_check_branch
        %342 = sbr.rel (%p340) target = $region44
      $region43: #{_lambda_.15} parent=39 // pred_region
        %v343 = vld [vmem:[%s310] sm:$0xff]
        %v344 = vld [vmem:[%s310 + $0x8] sm:$0xff]
        %vm345 = vcmask 523264
        %v346 = vsel %vm345, %v343, 0.0
        %347 = vadd.xlane.f32.xlu0 %v346
        %v348 = vpop.xlane.xlu0 %347
        %v349 = vsel %vm345, %v344, 0.0
        %350 = vadd.xlane.f32.xlu0 %v349
        %v351 = vpop.xlane.xlu0 %350
        %v352 = vrcp.pop 64.0
        %v353 = vmul.f32 %v348, %v352
        %v354 = vmul.f32 %v351, %v352
        %v355 = vsub.f32 %v343, %v353
        %v356 = vsub.f32 %v344, %v354
        %v357 = vmul.f32 %v355, %v355
        %v358 = vmul.f32 %v356, %v356
        %v359 = vsel %vm345, %v357, 0.0
        %360 = vadd.xlane.f32.xlu0 %v359
        %v361 = vpop.xlane.xlu0 %360
        %v362 = vsel %vm345, %v358, 0.0
        %363 = vadd.xlane.f32.xlu0 %v362
        %v364 = vpop.xlane.xlu0 %363
        %v365 = vmul.f32 %v361, %v352
        %v366 = vmul.f32 %v364, %v352
        %v367 = vadd.f32 %v365, 1e-06
        %v368 = vadd.f32 %v366, 1e-06
        %v369 = vrsqrt.pop %v367
        %v370 = vrsqrt.pop %v368
        %v371 = vmul.f32 %v355, %v369
        %v372 = vmul.f32 %v356, %v370
        %v373 = vld [vmem:[%s317] sm:$0x1]
        %v374 = vadd.f32 %v373, 1.0
        %v376 = vlaneseq
        %v377 = vshrl.u32 %v376, 7
        %v378 = vsub.s32 0, %v377
        %v379 = vrot.slane %v374, %v378
        %v381 = vmul.f32 %v371, %v379
        %v382 = vmul.f32 %v372, %v379
        %v383 = vld [vmem:[%s314] sm:$0x1]
        %v385 = vlaneseq
        %v386 = vshrl.u32 %v385, 7
        %v387 = vsub.s32 0, %v386
        %v388 = vrot.slane %v383, %v387
        %v390 = vadd.f32 %v381, %v388
        %v391 = vadd.f32 %v382, %v388
        %v392 = vpack.c.bf16 %v391, %v390
        %393 = vst.msk [vmem:[#allocation2] sm:$0xff] %vm345, %v392
      $region44: #{_lambda_.15} parent=39 // pred_fallthru
        _
      %v394 = vld [vmem:[#allocation2] sm:$0xff]
      %v395 = vld [vmem:[%s321] sm:$0xf]
      %v396 = vld [vmem:[%s321 + $0x4] sm:$0xf]
      %v397 = vld [vmem:[%s321 + $0x8] sm:$0xf]
      %v398 = vld [vmem:[%s321 + $0xc] sm:$0xf]
      %v399 = vld [vmem:[%s321 + $0x10] sm:$0xf]
      %v400 = vld [vmem:[%s321 + $0x14] sm:$0xf]
      %v401 = vld [vmem:[%s321 + $0x18] sm:$0xf]
      %v402 = vld [vmem:[%s321 + $0x1c] sm:$0xf]
      %v403 = vld [vmem:[%s324] sm:$0x1]
      %v405 = vlaneseq
      %v406 = vshrl.u32 %v405, 7
      %v407 = vsub.s32 0, %v406
      %v408 = vrot.slane %v403, %v407
      %v418 = vunpack.c.l.b16 %v395
      %v419 = vunpack.c.l.b16 %v396
      %v420 = vunpack.c.l.b16 %v397
      %v421 = vunpack.c.l.b16 %v398
      %v422 = vunpack.c.l.b16 %v399
      %v423 = vunpack.c.l.b16 %v400
      %v424 = vunpack.c.l.b16 %v401
      %v425 = vunpack.c.l.b16 %v402
      %v426 = vpack.c.b16 %v419, %v418
      %v427 = vpack.c.b16 %v421, %v420
      %v428 = vpack.c.b16 %v423, %v422
      %v429 = vpack.c.b16 %v425, %v424
      %vm434 = vcmask 523264
      %v436 = vsel %vm434, %v394, 0
      %438 = vmatprep.subr.bf16.mxu0 0
      %439 = vmatpush1.bf16.msra.mxu0 %v426
      %440 = vmatprep.subr.bf16.mxu0 0
      %441 = vmatpush1.bf16.msra.mxu0 %v427
      %442 = vmatprep.subr.bf16.mxu0 0
      %443 = vmatpush1.bf16.msra.mxu0 %v428
      %444 = vmatprep.subr.bf16.mxu0 0
      %445 = vmatpush1.bf16.msra.mxu0 %v429
      %446 = vmatprep.subr.bf16.mxu0 0
      %447 = vmatpush1.bf16.msra.mxu0 0
      %448 = vmatprep.subr.bf16.mxu0 0
      %449 = vmatpush1.bf16.msra.mxu0 0
      %450 = vmatprep.subr.bf16.mxu0 0
      %451 = vmatpush1.bf16.msra.mxu0 0
      %452 = vmatprep.subr.bf16.mxu0 0
      %453 = vmatpush1.bf16.msra.mxu0 0
      %454 = vmatprep.subr.bf16.mxu0 0
      %455 = vmatpush1.bf16.msra.mxu0 0
      %456 = vmatprep.subr.bf16.mxu0 0
      %457 = vmatpush1.bf16.msra.mxu0 0
      %458 = vmatprep.subr.bf16.mxu0 0
      %459 = vmatpush1.bf16.msra.mxu0 0
      %460 = vmatprep.subr.bf16.mxu0 0
      %461 = vmatpush1.bf16.msra.mxu0 0
      %462 = vmatprep.subr.bf16.mxu0 0
      %463 = vmatpush1.bf16.msra.mxu0 0
      %464 = vmatprep.subr.bf16.mxu0 0
      %465 = vmatpush1.bf16.msra.mxu0 0
      %466 = vmatprep.subr.bf16.mxu0 0
      %467 = vmatpush1.bf16.msra.mxu0 0
      %468 = vmatprep.subr.bf16.mxu0 0
      %469 = vmatpush1.bf16.msra.mxu0 0
      %470 = vmatprep.mubr.bf16.mxu0 0
      %471 = vmatmul.mubr.bf16.gmra.mrb[0].mxu0 %v436
      %v472 = vpop.f32.mrb[0].mxu0
      %v473 = vadd.f32 %v408, %v472
      %v474 = vpop.f32.mrb[0].mxu0
      %v475 = vpop.f32.mrb[0].mxu0
      %v476 = vadd.f32 %v408, %v475
      %v477 = vpop.f32.mrb[0].mxu0
      %478 = vdwg.mxu0
      %vm479 = vcmask 130048
      %480 = vst.msk [vmem:[%s336] sm:$0xff] %vm479, %v473
      %481 = vst.msk [vmem:[%s336 + $0x8] sm:$0xff] %vm479, %v476
      %s482 = smul.u32 2, %s22
      %p483 = scmp.lt.s32.totalorder %s21, 1
      %s484 = scalar_select %p483, %s21, 1
      %p485 = scmp.lt.s32.totalorder %s482, 1
      %s486 = scalar_select %p485, %s482, 1
      %p487 = scmp.lt.s32.totalorder %s23, 0
      %s488 = scalar_select %p487, %s23, 0
      %s489 = sadd.s32 %s488, %s486
      %s490 = smul.addr %s484, 2
      %s491 = sadd.s32 %s489, %s490
      %s492 = smul.addr %s491, 8
      %s493 = scalar_lea.vmem %s5, %s492
      // Predicated region
      $region45: #{_lambda_.15} parent=39 // pred_check
        %p494 = pneg %p189
      $region46: #{_lambda_.15} parent=39 // pred_check_branch
        %496 = sbr.rel (%p494) target = $region48
      $region47: #{_lambda_.15} parent=39 // pred_region
        %s497 = smul.u32 2, %s22
      $region48: #{_lambda_.15} parent=39 // pred_fallthru
        _
    $region40: #{_lambda_.15} parent=5 // pred_fallthru
      _
    %p498 = scmp.le.s32.totalorder 2, %s11
    // Predicated region
    $region49: #{_lambda_.15} parent=5 // pred_check
      %p499 = pneg %p498
    $region50: #{_lambda_.15} parent=5 // pred_check_branch
      %501 = sbr.rel (%p499) target = $region52
    $region51: #{_lambda_.15} parent=5 // pred_region
      %s502 = ssub.s32 %s11, 2
      // Predicated region
      $region53: #{_lambda_.15} parent=51 // pred_check
        %p503 = pneg %p195
      $region54: #{_lambda_.15} parent=51 // pred_check_branch
        %505 = sbr.rel (%p503) target = $region56
      $region55: #{_lambda_.15} parent=51 // pred_region
        %s506 = smul.u32 2, %s25
        %p507 = scmp.lt.s32.totalorder %s24, 1
        %s508 = scalar_select %p507, %s24, 1
        %p509 = scmp.lt.s32.totalorder %s506, 1
        %s510 = scalar_select %p509, %s506, 1
        %p511 = scmp.lt.s32.totalorder %s26, 0
        %s512 = scalar_select %p511, %s26, 0
        %s513 = sadd.s32 %s512, %s510
        %s514 = smul.addr %s508, 2
        %s515 = sadd.s32 %s513, %s514
        %s516 = smul.addr %s515, 8
        %s517 = scalar_lea.vmem %s5, %s516
      $region56: #{_lambda_.15} parent=51 // pred_fallthru
        _
    $region52: #{_lambda_.15} parent=5 // pred_fallthru
      _
  $region6: #{_lambda_.15} parent=0 // loop_footer
    %s15 = sadd.s32 1, %s11
  $region7: #{_lambda_.15} parent=0 // loop_footer_branch
    %10 = sbr.rel target = $region3
  $region8: #{_lambda_.15} parent=0 // loop_exit
    _

</llo_original>
